<compile_context>
chip_gen: v5e
topology: v5e:2x2
jax: 0.10.0
libtpu: 0.0.40
codegen_flags: <defaults>
</compile_context>

<pallas_src>
import functools
import math

import jax
import jax.numpy as jnp
from jax import lax
from jax.experimental import pallas as pl
from jax.experimental.pallas import tpu as pltpu


# ------------------------------ kernel helpers ------------------------------

def _dot(a, b):
    return jnp.dot(a, b, preferred_element_type=jnp.float32)


def _layer_norm(x, g, b, eps):
    mu = jnp.mean(x, axis=-1, keepdims=True)
    var = jnp.mean((x - mu) ** 2, axis=-1, keepdims=True)
    return (x - mu) * lax.rsqrt(var + eps) * g + b


def _mha(q_in, k_in, v_in, wqkv, bqkv, wo, bo, bias, Lq, Lk, H, Dh, *,
         self_attn):
    """Multi-head attention for a single batch element, batched over heads.

    q_in : (Lq, C) f32    k_in, v_in : (Lk, C) f32
    wqkv : (C, 3C) bf16 packed, pre-transposed; bqkv : (1, 3C) f32
    wo   : (C, C) bf16;  bo : (1, C) f32
    bias : (1, 1, Lk) f32 additive key-padding bias, or None
    self_attn : True when query and key inputs are identical (packed Q|K).
    """
    C = H * Dh
    scale = 1.0 / math.sqrt(Dh)

    q_bf = q_in.astype(jnp.bfloat16)
    v_src_bf = v_in.astype(jnp.bfloat16)
    if self_attn:
        # self-attention: one packed matmul computes Q and K together.
        qk = _dot(q_bf, wqkv[:, :2 * C]) + bqkv[:, :2 * C]
        q, k = qk[:, :C], qk[:, C:2 * C]
    else:
        k_bf = k_in.astype(jnp.bfloat16)
        q = _dot(q_bf, wqkv[:, :C]) + bqkv[:, :C]
        k = _dot(k_bf, wqkv[:, C:2 * C]) + bqkv[:, C:2 * C]
    v = _dot(v_src_bf, wqkv[:, 2 * C:]) + bqkv[:, 2 * C:]

    # Head-major views (H, L, Dh); bf16 operands for the MXU, f32 accumulate.
    qh = jnp.transpose(q.reshape(Lq, H, Dh), (1, 0, 2)).astype(jnp.bfloat16)
    kh = jnp.transpose(k.reshape(Lk, H, Dh), (1, 0, 2)).astype(jnp.bfloat16)
    vh = jnp.transpose(v.reshape(Lk, H, Dh), (1, 0, 2)).astype(jnp.bfloat16)

    s = jnp.einsum('hqd,hkd->hqk', qh, kh,
                   preferred_element_type=jnp.float32) * scale   # (H, Lq, Lk)
    if bias is not None:
        s = s + bias                                             # (1, 1, Lk)
    s = s - jnp.max(s, axis=-1, keepdims=True)
    p = jnp.exp(s)
    p = p * pl.reciprocal(jnp.sum(p, axis=-1, keepdims=True), approx=True)

    o = jnp.einsum('hqk,hkd->hqd', p.astype(jnp.bfloat16), vh,
                   preferred_element_type=jnp.float32)           # (H, Lq, Dh)
    o2d = jnp.transpose(o, (1, 0, 2)).reshape(Lq, C).astype(jnp.bfloat16)
    return _dot(o2d, wo) + bo


# ------------------------------- fused kernel -------------------------------

_PARAM_NAMES = (
    # encoder (stacked on leading layer axis)
    "e_wqkv", "e_bqkv", "e_wo", "e_bo",
    "e_w1", "e_b1", "e_w2", "e_b2",
    "e_ln1g", "e_ln1b", "e_ln2g", "e_ln2b",
    # decoder (stacked on leading layer axis)
    "d_sa_wqkv", "d_sa_bqkv", "d_sa_wo", "d_sa_bo",
    "d_ca_wqkv", "d_ca_bqkv", "d_ca_wo", "d_ca_bo",
    "d_w1", "d_b1", "d_w2", "d_b2",
    "d_ln1g", "d_ln1b", "d_ln2g", "d_ln2b", "d_ln3g", "d_ln3b",
    # final decoder norm
    "dn_g", "dn_b",
)

# Weight matrices (matmul operands) that are staged in bf16; biases / LN
# parameters stay f32.
_BF16_WEIGHTS = frozenset({
    "e_wqkv", "e_wo", "e_w1", "e_w2",
    "d_sa_wqkv", "d_sa_wo", "d_ca_wqkv", "d_ca_wo", "d_w1", "d_w2",
})


def _transformer_kernel(*refs, names, S, N, C, H, n_enc, n_dec, eps):
    out_ref = refs[-1]
    r = dict(zip(names, refs[:-1]))
    Dh = C // H

    feat = r["feat"][0]          # (S, C)  this batch element, f32
    pos = r["pos"][0]            # (S, C)
    qpos = r["qpos"][0]          # (N, C)
    bias = r["bias"][...]        # (1, 1, S) additive key-padding bias

    # --------------------------- encoder stack ---------------------------
    src = feat
    memory = []
    for l in range(n_enc):
        qk_in = src + pos
        a = _mha(qk_in, qk_in, src,
                 r["e_wqkv"][l], r["e_bqkv"][l],
                 r["e_wo"][l], r["e_bo"][l],
                 bias, S, S, H, Dh, self_attn=True)
        src = _layer_norm(src + a, r["e_ln1g"][l], r["e_ln1b"][l], eps)
        h1 = jnp.maximum(
            _dot(src.astype(jnp.bfloat16), r["e_w1"][l]) + r["e_b1"][l], 0.0)
        f = _dot(h1.astype(jnp.bfloat16), r["e_w2"][l]) + r["e_b2"][l]
        src = _layer_norm(src + f, r["e_ln2g"][l], r["e_ln2b"][l], eps)
        memory.append(src)

    # --------------------------- decoder stack ---------------------------
    tgt = jnp.zeros((N, C), jnp.float32)
    for l in range(n_dec):
        mem = memory[l]          # decoder layer l attends the l-th encoder output
        # self-attention (no key-padding mask on the queries)
        qk_in = tgt + qpos
        a = _mha(qk_in, qk_in, tgt,
                 r["d_sa_wqkv"][l], r["d_sa_bqkv"][l],
                 r["d_sa_wo"][l], r["d_sa_bo"][l],
                 None, N, N, H, Dh, self_attn=True)
        tgt = _layer_norm(tgt + a, r["d_ln1g"][l], r["d_ln1b"][l], eps)
        # cross-attention over the l-th encoder output
        a = _mha(tgt + qpos, mem + pos, mem,
                 r["d_ca_wqkv"][l], r["d_ca_bqkv"][l],
                 r["d_ca_wo"][l], r["d_ca_bo"][l],
                 bias, N, S, H, Dh, self_attn=False)
        tgt = _layer_norm(tgt + a, r["d_ln2g"][l], r["d_ln2b"][l], eps)
        # feed-forward
        h1 = jnp.maximum(
            _dot(tgt.astype(jnp.bfloat16), r["d_w1"][l]) + r["d_b1"][l], 0.0)
        f = _dot(h1.astype(jnp.bfloat16), r["d_w2"][l]) + r["d_b2"][l]
        tgt = _layer_norm(tgt + f, r["d_ln3g"][l], r["d_ln3b"][l], eps)

    # final decoder LayerNorm (no residual)
    tgt = _layer_norm(tgt, r["dn_g"][...], r["dn_b"][...], eps)

    out_ref[0] = tgt.astype(out_ref.dtype)      # (N, C) slab for this batch


# --------------------------------- wrapper -----------------------------------

def transformer_forward(params, feat, mask, query_embed, pos_embed, nhead):
    """Replicates Transformer.forward(mode='all', return_encoder_output=False)."""
    S, B, C = feat.shape
    N = query_embed.shape[0]
    n_enc = params["e_wqkv"].shape[0]
    n_dec = params["d_sa_wqkv"].shape[0]

    # bf16 matmul operands; biases / LayerNorm params stay f32.
    p = {k: (v.astype(jnp.bfloat16) if k in _BF16_WEIGHTS else v)
         for k, v in params.items()}

    # Layout plumbing outside the kernel: batch-major slabs, per-batch blocks.
    feat_b = jnp.transpose(feat, (1, 0, 2))                     # (B, S, C)
    pos_b = jnp.transpose(pos_embed, (1, 0, 2))                 # (B, S, C)
    qpos_b = jnp.broadcast_to(query_embed[None, :, :], (B, N, C))
    # Key-padding bias built once per forward (reused by every attention).
    bias_b = jnp.where(mask, -1e9, 0.0).astype(jnp.float32).reshape(B, 1, S)

    names = ("feat", "pos", "qpos", "bias") + _PARAM_NAMES
    args = (feat_b, pos_b, qpos_b, bias_b) + tuple(p[k] for k in _PARAM_NAMES)

    def _const_map(ndim):
        zeros = (0,) * ndim
        return lambda b: zeros

    in_specs = [
        pl.BlockSpec((1, S, C), lambda b: (b, 0, 0)),           # feat
        pl.BlockSpec((1, S, C), lambda b: (b, 0, 0)),           # pos
        pl.BlockSpec((1, N, C), lambda b: (b, 0, 0)),           # qpos
        pl.BlockSpec((1, 1, S), lambda b: (b, 0, 0)),           # bias
    ]
    # Stacked weights: constant index_map -> DMA once, resident across grid.
    in_specs += [pl.BlockSpec(p[k].shape, _const_map(p[k].ndim))
                 for k in _PARAM_NAMES]

    kern = functools.partial(
        _transformer_kernel, names=names,
        S=S, N=N, C=C, H=nhead, n_enc=n_enc, n_dec=n_dec, eps=1e-5)

    out = pl.pallas_call(
        kern,
        out_shape=jax.ShapeDtypeStruct((B, N, C), jnp.float32),
        grid=(B,),
        in_specs=in_specs,
        out_specs=pl.BlockSpec((1, N, C), lambda b: (b, 0, 0)),
        compiler_params=pltpu.CompilerParams(
            dimension_semantics=("parallel",),
            vmem_limit_bytes=32 * 1024 * 1024),
    )(*args)

    # decoder output.unsqueeze(0).transpose(1, 2)  ->  (1, B, N, C)
    return out[None]


# ----------------------------- parameter setup ------------------------------

def make_params(key, d_model, dim_ff, n_enc, n_dec):
    C, F = d_model, dim_ff

    def xavier(k, shape, fan_in, fan_out):
        a = math.sqrt(6.0 / (fan_in + fan_out))
        return jax.random.uniform(k, shape, jnp.float32, -a, a)

    def w_stack(k, n, shape, fan_in, fan_out):
        ks = jax.random.split(k, n)
        return jnp.stack([xavier(kk, shape, fan_in, fan_out) for kk in ks])

    ks = jax.random.split(key, 10)
    zeros = lambda *s: jnp.zeros(s, jnp.float32)
    ones = lambda *s: jnp.ones(s, jnp.float32)

    params = {
        # encoder — weights pre-transposed to (in, out), Q/K/V packed on out
        "e_wqkv": w_stack(ks[0], n_enc, (C, 3 * C), C, C),
        "e_bqkv": zeros(n_enc, 1, 3 * C),
        "e_wo":   w_stack(ks[1], n_enc, (C, C), C, C),
        "e_bo":   zeros(n_enc, 1, C),
        "e_w1":   w_stack(ks[2], n_enc, (C, F), C, F),
        "e_b1":   zeros(n_enc, 1, F),
        "e_w2":   w_stack(ks[3], n_enc, (F, C), F, C),
        "e_b2":   zeros(n_enc, 1, C),
        "e_ln1g": ones(n_enc, 1, C), "e_ln1b": zeros(n_enc, 1, C),
        "e_ln2g": ones(n_enc, 1, C), "e_ln2b": zeros(n_enc, 1, C),
        # decoder
        "d_sa_wqkv": w_stack(ks[4], n_dec, (C, 3 * C), C, C),
        "d_sa_bqkv": zeros(n_dec, 1, 3 * C),
        "d_sa_wo":   w_stack(ks[5], n_dec, (C, C), C, C),
        "d_sa_bo":   zeros(n_dec, 1, C),
        "d_ca_wqkv": w_stack(ks[6], n_dec, (C, 3 * C), C, C),
        "d_ca_bqkv": zeros(n_dec, 1, 3 * C),
        "d_ca_wo":   w_stack(ks[7], n_dec, (C, C), C, C),
        "d_ca_bo":   zeros(n_dec, 1, C),
        "d_w1":   w_stack(ks[8], n_dec, (C, F), C, F),
        "d_b1":   zeros(n_dec, 1, F),
        "d_w2":   w_stack(ks[9], n_dec, (F, C), F, C),
        "d_b2":   zeros(n_dec, 1, C),
        "d_ln1g": ones(n_dec, 1, C), "d_ln1b": zeros(n_dec, 1, C),
        "d_ln2g": ones(n_dec, 1, C), "d_ln2b": zeros(n_dec, 1, C),
        "d_ln3g": ones(n_dec, 1, C), "d_ln3b": zeros(n_dec, 1, C),
        # final decoder norm
        "dn_g": ones(1, C), "dn_b": zeros(1, C),
    }
    return params


# ----------------------------------- main ------------------------------------

if __name__ == "__main__":
    # small config consistent with the module
    d_model, nhead, dim_ff = 32, 4, 64
    n_enc, n_dec = 2, 2
    S, B, N = 16, 2, 8          # S = H1W1+H2W2 tokens, B batch, N queries

    key = jax.random.PRNGKey(0)
    key, kf, kp, kq = jax.random.split(key, 4)

    feat = jax.random.normal(kf, (S, B, d_model), jnp.float32)        # (S, B, C)
    pos_embed = jax.random.normal(kp, (S, B, d_model), jnp.float32)   # (S, B, C)
    query_embed = jax.random.normal(kq, (N, d_model), jnp.float32)    # (N, C)
    mask = jnp.zeros((B, S), dtype=bool)                              # no padding

    params = make_params(key, d_model, dim_ff, n_enc, n_dec)

    fwd = jax.jit(functools.partial(transformer_forward, nhead=nhead))
    hs = jax.block_until_ready(fwd(params, feat, mask, query_embed, pos_embed))

    assert hs.shape == (1, B, N, d_model), hs.shape
    assert bool(jnp.all(jnp.isfinite(hs)))
    print("KERNEL_OK")
</pallas_src>

<mosaic_0001>
module attributes {stable_mosaic.version = 11 : i64} {
  func.func @_transformer_kernel(%arg0: i32, %arg1: memref<1x16x32xf32, #tpu.memory_space<vmem>>, %arg2: memref<1x16x32xf32, #tpu.memory_space<vmem>>, %arg3: memref<1x8x32xf32, #tpu.memory_space<vmem>>, %arg4: memref<1x1x16xf32, #tpu.memory_space<vmem>>, %arg5: memref<2x32x96xbf16, #tpu.memory_space<vmem>>, %arg6: memref<2x1x96xf32, #tpu.memory_space<vmem>>, %arg7: memref<2x32x32xbf16, #tpu.memory_space<vmem>>, %arg8: memref<2x1x32xf32, #tpu.memory_space<vmem>>, %arg9: memref<2x32x64xbf16, #tpu.memory_space<vmem>>, %arg10: memref<2x1x64xf32, #tpu.memory_space<vmem>>, %arg11: memref<2x64x32xbf16, #tpu.memory_space<vmem>>, %arg12: memref<2x1x32xf32, #tpu.memory_space<vmem>>, %arg13: memref<2x1x32xf32, #tpu.memory_space<vmem>>, %arg14: memref<2x1x32xf32, #tpu.memory_space<vmem>>, %arg15: memref<2x1x32xf32, #tpu.memory_space<vmem>>, %arg16: memref<2x1x32xf32, #tpu.memory_space<vmem>>, %arg17: memref<2x32x96xbf16, #tpu.memory_space<vmem>>, %arg18: memref<2x1x96xf32, #tpu.memory_space<vmem>>, %arg19: memref<2x32x32xbf16, #tpu.memory_space<vmem>>, %arg20: memref<2x1x32xf32, #tpu.memory_space<vmem>>, %arg21: memref<2x32x96xbf16, #tpu.memory_space<vmem>>, %arg22: memref<2x1x96xf32, #tpu.memory_space<vmem>>, %arg23: memref<2x32x32xbf16, #tpu.memory_space<vmem>>, %arg24: memref<2x1x32xf32, #tpu.memory_space<vmem>>, %arg25: memref<2x32x64xbf16, #tpu.memory_space<vmem>>, %arg26: memref<2x1x64xf32, #tpu.memory_space<vmem>>, %arg27: memref<2x64x32xbf16, #tpu.memory_space<vmem>>, %arg28: memref<2x1x32xf32, #tpu.memory_space<vmem>>, %arg29: memref<2x1x32xf32, #tpu.memory_space<vmem>>, %arg30: memref<2x1x32xf32, #tpu.memory_space<vmem>>, %arg31: memref<2x1x32xf32, #tpu.memory_space<vmem>>, %arg32: memref<2x1x32xf32, #tpu.memory_space<vmem>>, %arg33: memref<2x1x32xf32, #tpu.memory_space<vmem>>, %arg34: memref<2x1x32xf32, #tpu.memory_space<vmem>>, %arg35: memref<1x32xf32, #tpu.memory_space<vmem>>, %arg36: memref<1x32xf32, #tpu.memory_space<vmem>>, %arg37: memref<1x8x32xf32, #tpu.memory_space<vmem>>) attributes {dimension_semantics = [#tpu.dimension_semantics<parallel>], iteration_bounds = array<i64: 2>, scalar_prefetch = 0 : i64, scratch_operands = 0 : i64, tpu.core_type = #tpu.core_type<tc>, window_params = [{transform_indices = @transform_0, window_bounds = array<i64: 1, 16, 32>}, {transform_indices = @transform_1, window_bounds = array<i64: 1, 16, 32>}, {transform_indices = @transform_2, window_bounds = array<i64: 1, 8, 32>}, {transform_indices = @transform_3, window_bounds = array<i64: 1, 1, 16>}, {pipeline_mode = #tpu.pipeline_mode<synchronous>, transform_indices = @transform_4, window_bounds = array<i64: 2, 32, 96>}, {pipeline_mode = #tpu.pipeline_mode<synchronous>, transform_indices = @transform_5, window_bounds = array<i64: 2, 1, 96>}, {pipeline_mode = #tpu.pipeline_mode<synchronous>, transform_indices = @transform_6, window_bounds = array<i64: 2, 32, 32>}, {pipeline_mode = #tpu.pipeline_mode<synchronous>, transform_indices = @transform_7, window_bounds = array<i64: 2, 1, 32>}, {pipeline_mode = #tpu.pipeline_mode<synchronous>, transform_indices = @transform_8, window_bounds = array<i64: 2, 32, 64>}, {pipeline_mode = #tpu.pipeline_mode<synchronous>, transform_indices = @transform_9, window_bounds = array<i64: 2, 1, 64>}, {pipeline_mode = #tpu.pipeline_mode<synchronous>, transform_indices = @transform_10, window_bounds = array<i64: 2, 64, 32>}, {pipeline_mode = #tpu.pipeline_mode<synchronous>, transform_indices = @transform_11, window_bounds = array<i64: 2, 1, 32>}, {pipeline_mode = #tpu.pipeline_mode<synchronous>, transform_indices = @transform_12, window_bounds = array<i64: 2, 1, 32>}, {pipeline_mode = #tpu.pipeline_mode<synchronous>, transform_indices = @transform_13, window_bounds = array<i64: 2, 1, 32>}, {pipeline_mode = #tpu.pipeline_mode<synchronous>, transform_indices = @transform_14, window_bounds = array<i64: 2, 1, 32>}, {pipeline_mode = #tpu.pipeline_mode<synchronous>, transform_indices = @transform_15, window_bounds = array<i64: 2, 1, 32>}, {pipeline_mode = #tpu.pipeline_mode<synchronous>, transform_indices = @transform_16, window_bounds = array<i64: 2, 32, 96>}, {pipeline_mode = #tpu.pipeline_mode<synchronous>, transform_indices = @transform_17, window_bounds = array<i64: 2, 1, 96>}, {pipeline_mode = #tpu.pipeline_mode<synchronous>, transform_indices = @transform_18, window_bounds = array<i64: 2, 32, 32>}, {pipeline_mode = #tpu.pipeline_mode<synchronous>, transform_indices = @transform_19, window_bounds = array<i64: 2, 1, 32>}, {pipeline_mode = #tpu.pipeline_mode<synchronous>, transform_indices = @transform_20, window_bounds = array<i64: 2, 32, 96>}, {pipeline_mode = #tpu.pipeline_mode<synchronous>, transform_indices = @transform_21, window_bounds = array<i64: 2, 1, 96>}, {pipeline_mode = #tpu.pipeline_mode<synchronous>, transform_indices = @transform_22, window_bounds = array<i64: 2, 32, 32>}, {pipeline_mode = #tpu.pipeline_mode<synchronous>, transform_indices = @transform_23, window_bounds = array<i64: 2, 1, 32>}, {pipeline_mode = #tpu.pipeline_mode<synchronous>, transform_indices = @transform_24, window_bounds = array<i64: 2, 32, 64>}, {pipeline_mode = #tpu.pipeline_mode<synchronous>, transform_indices = @transform_25, window_bounds = array<i64: 2, 1, 64>}, {pipeline_mode = #tpu.pipeline_mode<synchronous>, transform_indices = @transform_26, window_bounds = array<i64: 2, 64, 32>}, {pipeline_mode = #tpu.pipeline_mode<synchronous>, transform_indices = @transform_27, window_bounds = array<i64: 2, 1, 32>}, {pipeline_mode = #tpu.pipeline_mode<synchronous>, transform_indices = @transform_28, window_bounds = array<i64: 2, 1, 32>}, {pipeline_mode = #tpu.pipeline_mode<synchronous>, transform_indices = @transform_29, window_bounds = array<i64: 2, 1, 32>}, {pipeline_mode = #tpu.pipeline_mode<synchronous>, transform_indices = @transform_30, window_bounds = array<i64: 2, 1, 32>}, {pipeline_mode = #tpu.pipeline_mode<synchronous>, transform_indices = @transform_31, window_bounds = array<i64: 2, 1, 32>}, {pipeline_mode = #tpu.pipeline_mode<synchronous>, transform_indices = @transform_32, window_bounds = array<i64: 2, 1, 32>}, {pipeline_mode = #tpu.pipeline_mode<synchronous>, transform_indices = @transform_33, window_bounds = array<i64: 2, 1, 32>}, {pipeline_mode = #tpu.pipeline_mode<synchronous>, transform_indices = @transform_34, window_bounds = array<i64: 1, 32>}, {pipeline_mode = #tpu.pipeline_mode<synchronous>, transform_indices = @transform_35, window_bounds = array<i64: 1, 32>}, {transform_indices = @transform_36, window_bounds = array<i64: 1, 8, 32>}]} {
    %c0 = arith.constant 0 : index
    %c0_0 = arith.constant 0 : index
    %c0_1 = arith.constant 0 : index
    %0 = vector.load %arg1[%c0, %c0_0, %c0_1] : memref<1x16x32xf32, #tpu.memory_space<vmem>>, vector<1x16x32xf32>
    %1 = vector.shape_cast %0 : vector<1x16x32xf32> to vector<16x32xf32>
    %c0_2 = arith.constant 0 : index
    %c0_3 = arith.constant 0 : index
    %c0_4 = arith.constant 0 : index
    %2 = vector.load %arg2[%c0_2, %c0_3, %c0_4] : memref<1x16x32xf32, #tpu.memory_space<vmem>>, vector<1x16x32xf32>
    %3 = vector.shape_cast %2 : vector<1x16x32xf32> to vector<16x32xf32>
    %c0_5 = arith.constant 0 : index
    %c0_6 = arith.constant 0 : index
    %c0_7 = arith.constant 0 : index
    %4 = vector.load %arg3[%c0_5, %c0_6, %c0_7] : memref<1x8x32xf32, #tpu.memory_space<vmem>>, vector<1x8x32xf32>
    %5 = vector.shape_cast %4 : vector<1x8x32xf32> to vector<8x32xf32>
    %c0_8 = arith.constant 0 : index
    %c0_9 = arith.constant 0 : index
    %c0_10 = arith.constant 0 : index
    %6 = vector.load %arg4[%c0_8, %c0_9, %c0_10] : memref<1x1x16xf32, #tpu.memory_space<vmem>>, vector<1x1x16xf32>
    %7 = arith.addf %1, %3 : vector<16x32xf32>
    %c0_11 = arith.constant 0 : index
    %c0_12 = arith.constant 0 : index
    %c0_13 = arith.constant 0 : index
    %8 = vector.load %arg5[%c0_11, %c0_12, %c0_13] : memref<2x32x96xbf16, #tpu.memory_space<vmem>>, vector<1x32x96xbf16>
    %9 = vector.shape_cast %8 : vector<1x32x96xbf16> to vector<32x96xbf16>
    %c0_14 = arith.constant 0 : index
    %c0_15 = arith.constant 0 : index
    %c0_16 = arith.constant 0 : index
    %10 = vector.load %arg6[%c0_14, %c0_15, %c0_16] : memref<2x1x96xf32, #tpu.memory_space<vmem>>, vector<1x1x96xf32>
    %11 = vector.shape_cast %10 : vector<1x1x96xf32> to vector<1x96xf32>
    %c0_17 = arith.constant 0 : index
    %c0_18 = arith.constant 0 : index
    %c0_19 = arith.constant 0 : index
    %12 = vector.load %arg7[%c0_17, %c0_18, %c0_19] : memref<2x32x32xbf16, #tpu.memory_space<vmem>>, vector<1x32x32xbf16>
    %13 = vector.shape_cast %12 : vector<1x32x32xbf16> to vector<32x32xbf16>
    %c0_20 = arith.constant 0 : index
    %c0_21 = arith.constant 0 : index
    %c0_22 = arith.constant 0 : index
    %14 = vector.load %arg8[%c0_20, %c0_21, %c0_22] : memref<2x1x32xf32, #tpu.memory_space<vmem>>, vector<1x1x32xf32>
    %15 = vector.shape_cast %14 : vector<1x1x32xf32> to vector<1x32xf32>
    %16 = arith.truncf %7 : vector<16x32xf32> to vector<16x32xbf16>
    %17 = arith.truncf %1 : vector<16x32xf32> to vector<16x32xbf16>
    %18 = vector.extract_strided_slice %9 {offsets = [0, 0], sizes = [32, 64], strides = [1, 1]} : vector<32x96xbf16> to vector<32x64xbf16>
    %cst = arith.constant dense<0.000000e+00> : vector<16x64xf32>
    %19 = tpu.matmul %16, %18, %cst {dimension_numbers = #tpu.dot_dimension_numbers<[1], [0], [0], [1], [0, 0, 1, 1], [], []>} : vector<16x32xbf16>, vector<32x64xbf16>, vector<16x64xf32> -> vector<16x64xf32>
    %20 = vector.extract_strided_slice %11 {offsets = [0, 0], sizes = [1, 64], strides = [1, 1]} : vector<1x96xf32> to vector<1x64xf32>
    %21 = vector.broadcast %20 : vector<1x64xf32> to vector<16x64xf32>
    %22 = arith.addf %19, %21 : vector<16x64xf32>
    %23 = vector.extract_strided_slice %22 {offsets = [0, 0], sizes = [16, 32], strides = [1, 1]} : vector<16x64xf32> to vector<16x32xf32>
    %24 = vector.extract_strided_slice %22 {offsets = [0, 32], sizes = [16, 32], strides = [1, 1]} : vector<16x64xf32> to vector<16x32xf32>
    %25 = vector.extract_strided_slice %9 {offsets = [0, 64], sizes = [32, 32], strides = [1, 1]} : vector<32x96xbf16> to vector<32x32xbf16>
    %cst_23 = arith.constant dense<0.000000e+00> : vector<16x32xf32>
    %26 = tpu.matmul %17, %25, %cst_23 {dimension_numbers = #tpu.dot_dimension_numbers<[1], [0], [0], [1], [0, 0, 1, 1], [], []>} : vector<16x32xbf16>, vector<32x32xbf16>, vector<16x32xf32> -> vector<16x32xf32>
    %27 = vector.extract_strided_slice %11 {offsets = [0, 64], sizes = [1, 32], strides = [1, 1]} : vector<1x96xf32> to vector<1x32xf32>
    %28 = vector.broadcast %27 : vector<1x32xf32> to vector<16x32xf32>
    %29 = arith.addf %26, %28 : vector<16x32xf32>
    %30 = vector.shape_cast %23 : vector<16x32xf32> to vector<16x4x8xf32>
    %31 = tpu.transpose %30, [1, 0, 2] : vector<16x4x8xf32> -> vector<4x16x8xf32>
    %32 = arith.truncf %31 : vector<4x16x8xf32> to vector<4x16x8xbf16>
    %33 = vector.shape_cast %24 : vector<16x32xf32> to vector<16x4x8xf32>
    %34 = tpu.transpose %33, [1, 0, 2] : vector<16x4x8xf32> -> vector<4x16x8xf32>
    %35 = arith.truncf %34 : vector<4x16x8xf32> to vector<4x16x8xbf16>
    %36 = vector.shape_cast %29 : vector<16x32xf32> to vector<16x4x8xf32>
    %37 = tpu.transpose %36, [1, 0, 2] : vector<16x4x8xf32> -> vector<4x16x8xf32>
    %38 = arith.truncf %37 : vector<4x16x8xf32> to vector<4x16x8xbf16>
    "tpu.trace_start"() <{level = 10 : i32, message = "hqd,hkd->hqk"}> : () -> ()
    %cst_24 = arith.constant dense<0.000000e+00> : vector<4x16x16xf32>
    %39 = tpu.matmul %32, %35, %cst_24 {dimension_numbers = #tpu.dot_dimension_numbers<[2], [2], [1], [1], [0, 0, 0, 1, 1, 1], [0], [0]>} : vector<4x16x8xbf16>, vector<4x16x8xbf16>, vector<4x16x16xf32> -> vector<4x16x16xf32>
    "tpu.trace_stop"() : () -> ()
    %cst_25 = arith.constant 0.353553385 : f32
    %40 = vector.broadcast %cst_25 : f32 to vector<4x16x16xf32>
    %41 = arith.mulf %39, %40 : vector<4x16x16xf32>
    %42 = vector.broadcast %6 : vector<1x1x16xf32> to vector<4x16x16xf32>
    %43 = arith.addf %41, %42 : vector<4x16x16xf32>
    %cst_26 = arith.constant dense<0xFF800000> : vector<4x16xf32>
    %44 = vector.multi_reduction <maximumf>, %43, %cst_26 [2] : vector<4x16x16xf32> to vector<4x16xf32>
    %45 = vector.shape_cast %44 : vector<4x16xf32> to vector<4x16x1xf32>
    %46 = vector.broadcast %45 : vector<4x16x1xf32> to vector<4x16x16xf32>
    %47 = arith.subf %43, %46 : vector<4x16x16xf32>
    %48 = math.exp %47 : vector<4x16x16xf32>
    %cst_27 = arith.constant dense<0.000000e+00> : vector<4x16xf32>
    %49 = vector.multi_reduction <add>, %48, %cst_27 [2] : vector<4x16x16xf32> to vector<4x16xf32>
    %50 = vector.shape_cast %49 : vector<4x16xf32> to vector<4x16x1xf32>
    %51 = tpu.reciprocal %50 {approx = true} : vector<4x16x1xf32> -> vector<4x16x1xf32>
    %52 = vector.broadcast %51 : vector<4x16x1xf32> to vector<4x16x16xf32>
    %53 = arith.mulf %48, %52 : vector<4x16x16xf32>
    %54 = arith.truncf %53 : vector<4x16x16xf32> to vector<4x16x16xbf16>
    "tpu.trace_start"() <{level = 10 : i32, message = "hqk,hkd->hqd"}> : () -> ()
    %cst_28 = arith.constant dense<0.000000e+00> : vector<4x16x8xf32>
    %55 = tpu.matmul %54, %38, %cst_28 {dimension_numbers = #tpu.dot_dimension_numbers<[2], [1], [1], [2], [0, 0, 0, 1, 1, 2], [0], [0]>} : vector<4x16x16xbf16>, vector<4x16x8xbf16>, vector<4x16x8xf32> -> vector<4x16x8xf32>
    "tpu.trace_stop"() : () -> ()
    %56 = tpu.transpose %55, [1, 0, 2] : vector<4x16x8xf32> -> vector<16x4x8xf32>
    %57 = vector.shape_cast %56 : vector<16x4x8xf32> to vector<16x32xf32>
    %58 = arith.truncf %57 : vector<16x32xf32> to vector<16x32xbf16>
    %cst_29 = arith.constant dense<0.000000e+00> : vector<16x32xf32>
    %59 = tpu.matmul %58, %13, %cst_29 {dimension_numbers = #tpu.dot_dimension_numbers<[1], [0], [0], [1], [0, 0, 1, 1], [], []>} : vector<16x32xbf16>, vector<32x32xbf16>, vector<16x32xf32> -> vector<16x32xf32>
    %60 = vector.broadcast %15 : vector<1x32xf32> to vector<16x32xf32>
    %61 = arith.addf %59, %60 : vector<16x32xf32>
    %62 = arith.addf %1, %61 : vector<16x32xf32>
    %c0_30 = arith.constant 0 : index
    %c0_31 = arith.constant 0 : index
    %c0_32 = arith.constant 0 : index
    %63 = vector.load %arg13[%c0_30, %c0_31, %c0_32] : memref<2x1x32xf32, #tpu.memory_space<vmem>>, vector<1x1x32xf32>
    %64 = vector.shape_cast %63 : vector<1x1x32xf32> to vector<1x32xf32>
    %c0_33 = arith.constant 0 : index
    %c0_34 = arith.constant 0 : index
    %c0_35 = arith.constant 0 : index
    %65 = vector.load %arg14[%c0_33, %c0_34, %c0_35] : memref<2x1x32xf32, #tpu.memory_space<vmem>>, vector<1x1x32xf32>
    %66 = vector.shape_cast %65 : vector<1x1x32xf32> to vector<1x32xf32>
    %cst_36 = arith.constant dense<0.000000e+00> : vector<16xf32>
    %67 = vector.multi_reduction <add>, %62, %cst_36 [1] : vector<16x32xf32> to vector<16xf32>
    %68 = vector.shape_cast %67 : vector<16xf32> to vector<16x1xf32>
    %cst_37 = arith.constant 3.200000e+01 : f32
    %69 = vector.broadcast %cst_37 : f32 to vector<16x1xf32>
    %70 = arith.divf %68, %69 : vector<16x1xf32>
    %71 = vector.broadcast %70 : vector<16x1xf32> to vector<16x32xf32>
    %72 = arith.subf %62, %71 : vector<16x32xf32>
    %73 = arith.mulf %72, %72 : vector<16x32xf32>
    %cst_38 = arith.constant dense<0.000000e+00> : vector<16xf32>
    %74 = vector.multi_reduction <add>, %73, %cst_38 [1] : vector<16x32xf32> to vector<16xf32>
    %75 = vector.shape_cast %74 : vector<16xf32> to vector<16x1xf32>
    %cst_39 = arith.constant 3.200000e+01 : f32
    %76 = vector.broadcast %cst_39 : f32 to vector<16x1xf32>
    %77 = arith.divf %75, %76 : vector<16x1xf32>
    %78 = vector.broadcast %70 : vector<16x1xf32> to vector<16x32xf32>
    %79 = arith.subf %62, %78 : vector<16x32xf32>
    %cst_40 = arith.constant 9.99999974E-6 : f32
    %80 = vector.broadcast %cst_40 : f32 to vector<16x1xf32>
    %81 = arith.addf %77, %80 : vector<16x1xf32>
    %82 = math.rsqrt %81 : vector<16x1xf32>
    %83 = vector.broadcast %82 : vector<16x1xf32> to vector<16x32xf32>
    %84 = arith.mulf %79, %83 : vector<16x32xf32>
    %85 = vector.broadcast %64 : vector<1x32xf32> to vector<16x32xf32>
    %86 = arith.mulf %84, %85 : vector<16x32xf32>
    %87 = vector.broadcast %66 : vector<1x32xf32> to vector<16x32xf32>
    %88 = arith.addf %86, %87 : vector<16x32xf32>
    %89 = arith.truncf %88 : vector<16x32xf32> to vector<16x32xbf16>
    %c0_41 = arith.constant 0 : index
    %c0_42 = arith.constant 0 : index
    %c0_43 = arith.constant 0 : index
    %90 = vector.load %arg9[%c0_41, %c0_42, %c0_43] : memref<2x32x64xbf16, #tpu.memory_space<vmem>>, vector<1x32x64xbf16>
    %91 = vector.shape_cast %90 : vector<1x32x64xbf16> to vector<32x64xbf16>
    %cst_44 = arith.constant dense<0.000000e+00> : vector<16x64xf32>
    %92 = tpu.matmul %89, %91, %cst_44 {dimension_numbers = #tpu.dot_dimension_numbers<[1], [0], [0], [1], [0, 0, 1, 1], [], []>} : vector<16x32xbf16>, vector<32x64xbf16>, vector<16x64xf32> -> vector<16x64xf32>
    %c0_45 = arith.constant 0 : index
    %c0_46 = arith.constant 0 : index
    %c0_47 = arith.constant 0 : index
    %93 = vector.load %arg10[%c0_45, %c0_46, %c0_47] : memref<2x1x64xf32, #tpu.memory_space<vmem>>, vector<1x1x64xf32>
    %94 = vector.shape_cast %93 : vector<1x1x64xf32> to vector<1x64xf32>
    %95 = vector.broadcast %94 : vector<1x64xf32> to vector<16x64xf32>
    %96 = arith.addf %92, %95 : vector<16x64xf32>
    %cst_48 = arith.constant 0.000000e+00 : f32
    %97 = vector.broadcast %cst_48 : f32 to vector<16x64xf32>
    %98 = arith.maximumf %96, %97 : vector<16x64xf32>
    %99 = arith.truncf %98 : vector<16x64xf32> to vector<16x64xbf16>
    %c0_49 = arith.constant 0 : index
    %c0_50 = arith.constant 0 : index
    %c0_51 = arith.constant 0 : index
    %100 = vector.load %arg11[%c0_49, %c0_50, %c0_51] : memref<2x64x32xbf16, #tpu.memory_space<vmem>>, vector<1x64x32xbf16>
    %101 = vector.shape_cast %100 : vector<1x64x32xbf16> to vector<64x32xbf16>
    %cst_52 = arith.constant dense<0.000000e+00> : vector<16x32xf32>
    %102 = tpu.matmul %99, %101, %cst_52 {dimension_numbers = #tpu.dot_dimension_numbers<[1], [0], [0], [1], [0, 0, 1, 1], [], []>} : vector<16x64xbf16>, vector<64x32xbf16>, vector<16x32xf32> -> vector<16x32xf32>
    %c0_53 = arith.constant 0 : index
    %c0_54 = arith.constant 0 : index
    %c0_55 = arith.constant 0 : index
    %103 = vector.load %arg12[%c0_53, %c0_54, %c0_55] : memref<2x1x32xf32, #tpu.memory_space<vmem>>, vector<1x1x32xf32>
    %104 = vector.shape_cast %103 : vector<1x1x32xf32> to vector<1x32xf32>
    %105 = vector.broadcast %104 : vector<1x32xf32> to vector<16x32xf32>
    %106 = arith.addf %102, %105 : vector<16x32xf32>
    %107 = arith.addf %88, %106 : vector<16x32xf32>
    %c0_56 = arith.constant 0 : index
    %c0_57 = arith.constant 0 : index
    %c0_58 = arith.constant 0 : index
    %108 = vector.load %arg15[%c0_56, %c0_57, %c0_58] : memref<2x1x32xf32, #tpu.memory_space<vmem>>, vector<1x1x32xf32>
    %109 = vector.shape_cast %108 : vector<1x1x32xf32> to vector<1x32xf32>
    %c0_59 = arith.constant 0 : index
    %c0_60 = arith.constant 0 : index
    %c0_61 = arith.constant 0 : index
    %110 = vector.load %arg16[%c0_59, %c0_60, %c0_61] : memref<2x1x32xf32, #tpu.memory_space<vmem>>, vector<1x1x32xf32>
    %111 = vector.shape_cast %110 : vector<1x1x32xf32> to vector<1x32xf32>
    %cst_62 = arith.constant dense<0.000000e+00> : vector<16xf32>
    %112 = vector.multi_reduction <add>, %107, %cst_62 [1] : vector<16x32xf32> to vector<16xf32>
    %113 = vector.shape_cast %112 : vector<16xf32> to vector<16x1xf32>
    %cst_63 = arith.constant 3.200000e+01 : f32
    %114 = vector.broadcast %cst_63 : f32 to vector<16x1xf32>
    %115 = arith.divf %113, %114 : vector<16x1xf32>
    %116 = vector.broadcast %115 : vector<16x1xf32> to vector<16x32xf32>
    %117 = arith.subf %107, %116 : vector<16x32xf32>
    %118 = arith.mulf %117, %117 : vector<16x32xf32>
    %cst_64 = arith.constant dense<0.000000e+00> : vector<16xf32>
    %119 = vector.multi_reduction <add>, %118, %cst_64 [1] : vector<16x32xf32> to vector<16xf32>
    %120 = vector.shape_cast %119 : vector<16xf32> to vector<16x1xf32>
    %cst_65 = arith.constant 3.200000e+01 : f32
    %121 = vector.broadcast %cst_65 : f32 to vector<16x1xf32>
    %122 = arith.divf %120, %121 : vector<16x1xf32>
    %123 = vector.broadcast %115 : vector<16x1xf32> to vector<16x32xf32>
    %124 = arith.subf %107, %123 : vector<16x32xf32>
    %cst_66 = arith.constant 9.99999974E-6 : f32
    %125 = vector.broadcast %cst_66 : f32 to vector<16x1xf32>
    %126 = arith.addf %122, %125 : vector<16x1xf32>
    %127 = math.rsqrt %126 : vector<16x1xf32>
    %128 = vector.broadcast %127 : vector<16x1xf32> to vector<16x32xf32>
    %129 = arith.mulf %124, %128 : vector<16x32xf32>
    %130 = vector.broadcast %109 : vector<1x32xf32> to vector<16x32xf32>
    %131 = arith.mulf %129, %130 : vector<16x32xf32>
    %132 = vector.broadcast %111 : vector<1x32xf32> to vector<16x32xf32>
    %133 = arith.addf %131, %132 : vector<16x32xf32>
    %134 = arith.addf %133, %3 : vector<16x32xf32>
    %c1 = arith.constant 1 : index
    %c0_67 = arith.constant 0 : index
    %c0_68 = arith.constant 0 : index
    %135 = vector.load %arg5[%c1, %c0_67, %c0_68] : memref<2x32x96xbf16, #tpu.memory_space<vmem>>, vector<1x32x96xbf16>
    %136 = vector.shape_cast %135 : vector<1x32x96xbf16> to vector<32x96xbf16>
    %c1_69 = arith.constant 1 : index
    %c0_70 = arith.constant 0 : index
    %c0_71 = arith.constant 0 : index
    %137 = vector.load %arg6[%c1_69, %c0_70, %c0_71] : memref<2x1x96xf32, #tpu.memory_space<vmem>>, vector<1x1x96xf32>
    %138 = vector.shape_cast %137 : vector<1x1x96xf32> to vector<1x96xf32>
    %c1_72 = arith.constant 1 : index
    %c0_73 = arith.constant 0 : index
    %c0_74 = arith.constant 0 : index
    %139 = vector.load %arg7[%c1_72, %c0_73, %c0_74] : memref<2x32x32xbf16, #tpu.memory_space<vmem>>, vector<1x32x32xbf16>
    %140 = vector.shape_cast %139 : vector<1x32x32xbf16> to vector<32x32xbf16>
    %c1_75 = arith.constant 1 : index
    %c0_76 = arith.constant 0 : index
    %c0_77 = arith.constant 0 : index
    %141 = vector.load %arg8[%c1_75, %c0_76, %c0_77] : memref<2x1x32xf32, #tpu.memory_space<vmem>>, vector<1x1x32xf32>
    %142 = vector.shape_cast %141 : vector<1x1x32xf32> to vector<1x32xf32>
    %143 = arith.truncf %134 : vector<16x32xf32> to vector<16x32xbf16>
    %144 = arith.truncf %133 : vector<16x32xf32> to vector<16x32xbf16>
    %145 = vector.extract_strided_slice %136 {offsets = [0, 0], sizes = [32, 64], strides = [1, 1]} : vector<32x96xbf16> to vector<32x64xbf16>
    %cst_78 = arith.constant dense<0.000000e+00> : vector<16x64xf32>
    %146 = tpu.matmul %143, %145, %cst_78 {dimension_numbers = #tpu.dot_dimension_numbers<[1], [0], [0], [1], [0, 0, 1, 1], [], []>} : vector<16x32xbf16>, vector<32x64xbf16>, vector<16x64xf32> -> vector<16x64xf32>
    %147 = vector.extract_strided_slice %138 {offsets = [0, 0], sizes = [1, 64], strides = [1, 1]} : vector<1x96xf32> to vector<1x64xf32>
    %148 = vector.broadcast %147 : vector<1x64xf32> to vector<16x64xf32>
    %149 = arith.addf %146, %148 : vector<16x64xf32>
    %150 = vector.extract_strided_slice %149 {offsets = [0, 0], sizes = [16, 32], strides = [1, 1]} : vector<16x64xf32> to vector<16x32xf32>
    %151 = vector.extract_strided_slice %149 {offsets = [0, 32], sizes = [16, 32], strides = [1, 1]} : vector<16x64xf32> to vector<16x32xf32>
    %152 = vector.extract_strided_slice %136 {offsets = [0, 64], sizes = [32, 32], strides = [1, 1]} : vector<32x96xbf16> to vector<32x32xbf16>
    %cst_79 = arith.constant dense<0.000000e+00> : vector<16x32xf32>
    %153 = tpu.matmul %144, %152, %cst_79 {dimension_numbers = #tpu.dot_dimension_numbers<[1], [0], [0], [1], [0, 0, 1, 1], [], []>} : vector<16x32xbf16>, vector<32x32xbf16>, vector<16x32xf32> -> vector<16x32xf32>
    %154 = vector.extract_strided_slice %138 {offsets = [0, 64], sizes = [1, 32], strides = [1, 1]} : vector<1x96xf32> to vector<1x32xf32>
    %155 = vector.broadcast %154 : vector<1x32xf32> to vector<16x32xf32>
    %156 = arith.addf %153, %155 : vector<16x32xf32>
    %157 = vector.shape_cast %150 : vector<16x32xf32> to vector<16x4x8xf32>
    %158 = tpu.transpose %157, [1, 0, 2] : vector<16x4x8xf32> -> vector<4x16x8xf32>
    %159 = arith.truncf %158 : vector<4x16x8xf32> to vector<4x16x8xbf16>
    %160 = vector.shape_cast %151 : vector<16x32xf32> to vector<16x4x8xf32>
    %161 = tpu.transpose %160, [1, 0, 2] : vector<16x4x8xf32> -> vector<4x16x8xf32>
    %162 = arith.truncf %161 : vector<4x16x8xf32> to vector<4x16x8xbf16>
    %163 = vector.shape_cast %156 : vector<16x32xf32> to vector<16x4x8xf32>
    %164 = tpu.transpose %163, [1, 0, 2] : vector<16x4x8xf32> -> vector<4x16x8xf32>
    %165 = arith.truncf %164 : vector<4x16x8xf32> to vector<4x16x8xbf16>
    "tpu.trace_start"() <{level = 10 : i32, message = "hqd,hkd->hqk"}> : () -> ()
    %cst_80 = arith.constant dense<0.000000e+00> : vector<4x16x16xf32>
    %166 = tpu.matmul %159, %162, %cst_80 {dimension_numbers = #tpu.dot_dimension_numbers<[2], [2], [1], [1], [0, 0, 0, 1, 1, 1], [0], [0]>} : vector<4x16x8xbf16>, vector<4x16x8xbf16>, vector<4x16x16xf32> -> vector<4x16x16xf32>
    "tpu.trace_stop"() : () -> ()
    %cst_81 = arith.constant 0.353553385 : f32
    %167 = vector.broadcast %cst_81 : f32 to vector<4x16x16xf32>
    %168 = arith.mulf %166, %167 : vector<4x16x16xf32>
    %169 = vector.broadcast %6 : vector<1x1x16xf32> to vector<4x16x16xf32>
    %170 = arith.addf %168, %169 : vector<4x16x16xf32>
    %cst_82 = arith.constant dense<0xFF800000> : vector<4x16xf32>
    %171 = vector.multi_reduction <maximumf>, %170, %cst_82 [2] : vector<4x16x16xf32> to vector<4x16xf32>
    %172 = vector.shape_cast %171 : vector<4x16xf32> to vector<4x16x1xf32>
    %173 = vector.broadcast %172 : vector<4x16x1xf32> to vector<4x16x16xf32>
    %174 = arith.subf %170, %173 : vector<4x16x16xf32>
    %175 = math.exp %174 : vector<4x16x16xf32>
    %cst_83 = arith.constant dense<0.000000e+00> : vector<4x16xf32>
    %176 = vector.multi_reduction <add>, %175, %cst_83 [2] : vector<4x16x16xf32> to vector<4x16xf32>
    %177 = vector.shape_cast %176 : vector<4x16xf32> to vector<4x16x1xf32>
    %178 = tpu.reciprocal %177 {approx = true} : vector<4x16x1xf32> -> vector<4x16x1xf32>
    %179 = vector.broadcast %178 : vector<4x16x1xf32> to vector<4x16x16xf32>
    %180 = arith.mulf %175, %179 : vector<4x16x16xf32>
    %181 = arith.truncf %180 : vector<4x16x16xf32> to vector<4x16x16xbf16>
    "tpu.trace_start"() <{level = 10 : i32, message = "hqk,hkd->hqd"}> : () -> ()
    %cst_84 = arith.constant dense<0.000000e+00> : vector<4x16x8xf32>
    %182 = tpu.matmul %181, %165, %cst_84 {dimension_numbers = #tpu.dot_dimension_numbers<[2], [1], [1], [2], [0, 0, 0, 1, 1, 2], [0], [0]>} : vector<4x16x16xbf16>, vector<4x16x8xbf16>, vector<4x16x8xf32> -> vector<4x16x8xf32>
    "tpu.trace_stop"() : () -> ()
    %183 = tpu.transpose %182, [1, 0, 2] : vector<4x16x8xf32> -> vector<16x4x8xf32>
    %184 = vector.shape_cast %183 : vector<16x4x8xf32> to vector<16x32xf32>
    %185 = arith.truncf %184 : vector<16x32xf32> to vector<16x32xbf16>
    %cst_85 = arith.constant dense<0.000000e+00> : vector<16x32xf32>
    %186 = tpu.matmul %185, %140, %cst_85 {dimension_numbers = #tpu.dot_dimension_numbers<[1], [0], [0], [1], [0, 0, 1, 1], [], []>} : vector<16x32xbf16>, vector<32x32xbf16>, vector<16x32xf32> -> vector<16x32xf32>
    %187 = vector.broadcast %142 : vector<1x32xf32> to vector<16x32xf32>
    %188 = arith.addf %186, %187 : vector<16x32xf32>
    %189 = arith.addf %133, %188 : vector<16x32xf32>
    %c1_86 = arith.constant 1 : index
    %c0_87 = arith.constant 0 : index
    %c0_88 = arith.constant 0 : index
    %190 = vector.load %arg13[%c1_86, %c0_87, %c0_88] : memref<2x1x32xf32, #tpu.memory_space<vmem>>, vector<1x1x32xf32>
    %191 = vector.shape_cast %190 : vector<1x1x32xf32> to vector<1x32xf32>
    %c1_89 = arith.constant 1 : index
    %c0_90 = arith.constant 0 : index
    %c0_91 = arith.constant 0 : index
    %192 = vector.load %arg14[%c1_89, %c0_90, %c0_91] : memref<2x1x32xf32, #tpu.memory_space<vmem>>, vector<1x1x32xf32>
    %193 = vector.shape_cast %192 : vector<1x1x32xf32> to vector<1x32xf32>
    %cst_92 = arith.constant dense<0.000000e+00> : vector<16xf32>
    %194 = vector.multi_reduction <add>, %189, %cst_92 [1] : vector<16x32xf32> to vector<16xf32>
    %195 = vector.shape_cast %194 : vector<16xf32> to vector<16x1xf32>
    %cst_93 = arith.constant 3.200000e+01 : f32
    %196 = vector.broadcast %cst_93 : f32 to vector<16x1xf32>
    %197 = arith.divf %195, %196 : vector<16x1xf32>
    %198 = vector.broadcast %197 : vector<16x1xf32> to vector<16x32xf32>
    %199 = arith.subf %189, %198 : vector<16x32xf32>
    %200 = arith.mulf %199, %199 : vector<16x32xf32>
    %cst_94 = arith.constant dense<0.000000e+00> : vector<16xf32>
    %201 = vector.multi_reduction <add>, %200, %cst_94 [1] : vector<16x32xf32> to vector<16xf32>
    %202 = vector.shape_cast %201 : vector<16xf32> to vector<16x1xf32>
    %cst_95 = arith.constant 3.200000e+01 : f32
    %203 = vector.broadcast %cst_95 : f32 to vector<16x1xf32>
    %204 = arith.divf %202, %203 : vector<16x1xf32>
    %205 = vector.broadcast %197 : vector<16x1xf32> to vector<16x32xf32>
    %206 = arith.subf %189, %205 : vector<16x32xf32>
    %cst_96 = arith.constant 9.99999974E-6 : f32
    %207 = vector.broadcast %cst_96 : f32 to vector<16x1xf32>
    %208 = arith.addf %204, %207 : vector<16x1xf32>
    %209 = math.rsqrt %208 : vector<16x1xf32>
    %210 = vector.broadcast %209 : vector<16x1xf32> to vector<16x32xf32>
    %211 = arith.mulf %206, %210 : vector<16x32xf32>
    %212 = vector.broadcast %191 : vector<1x32xf32> to vector<16x32xf32>
    %213 = arith.mulf %211, %212 : vector<16x32xf32>
    %214 = vector.broadcast %193 : vector<1x32xf32> to vector<16x32xf32>
    %215 = arith.addf %213, %214 : vector<16x32xf32>
    %216 = arith.truncf %215 : vector<16x32xf32> to vector<16x32xbf16>
    %c1_97 = arith.constant 1 : index
    %c0_98 = arith.constant 0 : index
    %c0_99 = arith.constant 0 : index
    %217 = vector.load %arg9[%c1_97, %c0_98, %c0_99] : memref<2x32x64xbf16, #tpu.memory_space<vmem>>, vector<1x32x64xbf16>
    %218 = vector.shape_cast %217 : vector<1x32x64xbf16> to vector<32x64xbf16>
    %cst_100 = arith.constant dense<0.000000e+00> : vector<16x64xf32>
    %219 = tpu.matmul %216, %218, %cst_100 {dimension_numbers = #tpu.dot_dimension_numbers<[1], [0], [0], [1], [0, 0, 1, 1], [], []>} : vector<16x32xbf16>, vector<32x64xbf16>, vector<16x64xf32> -> vector<16x64xf32>
    %c1_101 = arith.constant 1 : index
    %c0_102 = arith.constant 0 : index
    %c0_103 = arith.constant 0 : index
    %220 = vector.load %arg10[%c1_101, %c0_102, %c0_103] : memref<2x1x64xf32, #tpu.memory_space<vmem>>, vector<1x1x64xf32>
    %221 = vector.shape_cast %220 : vector<1x1x64xf32> to vector<1x64xf32>
    %222 = vector.broadcast %221 : vector<1x64xf32> to vector<16x64xf32>
    %223 = arith.addf %219, %222 : vector<16x64xf32>
    %cst_104 = arith.constant 0.000000e+00 : f32
    %224 = vector.broadcast %cst_104 : f32 to vector<16x64xf32>
    %225 = arith.maximumf %223, %224 : vector<16x64xf32>
    %226 = arith.truncf %225 : vector<16x64xf32> to vector<16x64xbf16>
    %c1_105 = arith.constant 1 : index
    %c0_106 = arith.constant 0 : index
    %c0_107 = arith.constant 0 : index
    %227 = vector.load %arg11[%c1_105, %c0_106, %c0_107] : memref<2x64x32xbf16, #tpu.memory_space<vmem>>, vector<1x64x32xbf16>
    %228 = vector.shape_cast %227 : vector<1x64x32xbf16> to vector<64x32xbf16>
    %cst_108 = arith.constant dense<0.000000e+00> : vector<16x32xf32>
    %229 = tpu.matmul %226, %228, %cst_108 {dimension_numbers = #tpu.dot_dimension_numbers<[1], [0], [0], [1], [0, 0, 1, 1], [], []>} : vector<16x64xbf16>, vector<64x32xbf16>, vector<16x32xf32> -> vector<16x32xf32>
    %c1_109 = arith.constant 1 : index
    %c0_110 = arith.constant 0 : index
    %c0_111 = arith.constant 0 : index
    %230 = vector.load %arg12[%c1_109, %c0_110, %c0_111] : memref<2x1x32xf32, #tpu.memory_space<vmem>>, vector<1x1x32xf32>
    %231 = vector.shape_cast %230 : vector<1x1x32xf32> to vector<1x32xf32>
    %232 = vector.broadcast %231 : vector<1x32xf32> to vector<16x32xf32>
    %233 = arith.addf %229, %232 : vector<16x32xf32>
    %234 = arith.addf %215, %233 : vector<16x32xf32>
    %c1_112 = arith.constant 1 : index
    %c0_113 = arith.constant 0 : index
    %c0_114 = arith.constant 0 : index
    %235 = vector.load %arg15[%c1_112, %c0_113, %c0_114] : memref<2x1x32xf32, #tpu.memory_space<vmem>>, vector<1x1x32xf32>
    %236 = vector.shape_cast %235 : vector<1x1x32xf32> to vector<1x32xf32>
    %c1_115 = arith.constant 1 : index
    %c0_116 = arith.constant 0 : index
    %c0_117 = arith.constant 0 : index
    %237 = vector.load %arg16[%c1_115, %c0_116, %c0_117] : memref<2x1x32xf32, #tpu.memory_space<vmem>>, vector<1x1x32xf32>
    %238 = vector.shape_cast %237 : vector<1x1x32xf32> to vector<1x32xf32>
    %cst_118 = arith.constant dense<0.000000e+00> : vector<16xf32>
    %239 = vector.multi_reduction <add>, %234, %cst_118 [1] : vector<16x32xf32> to vector<16xf32>
    %240 = vector.shape_cast %239 : vector<16xf32> to vector<16x1xf32>
    %cst_119 = arith.constant 3.200000e+01 : f32
    %241 = vector.broadcast %cst_119 : f32 to vector<16x1xf32>
    %242 = arith.divf %240, %241 : vector<16x1xf32>
    %243 = vector.broadcast %242 : vector<16x1xf32> to vector<16x32xf32>
    %244 = arith.subf %234, %243 : vector<16x32xf32>
    %245 = arith.mulf %244, %244 : vector<16x32xf32>
    %cst_120 = arith.constant dense<0.000000e+00> : vector<16xf32>
    %246 = vector.multi_reduction <add>, %245, %cst_120 [1] : vector<16x32xf32> to vector<16xf32>
    %247 = vector.shape_cast %246 : vector<16xf32> to vector<16x1xf32>
    %cst_121 = arith.constant 3.200000e+01 : f32
    %248 = vector.broadcast %cst_121 : f32 to vector<16x1xf32>
    %249 = arith.divf %247, %248 : vector<16x1xf32>
    %250 = vector.broadcast %242 : vector<16x1xf32> to vector<16x32xf32>
    %251 = arith.subf %234, %250 : vector<16x32xf32>
    %cst_122 = arith.constant 9.99999974E-6 : f32
    %252 = vector.broadcast %cst_122 : f32 to vector<16x1xf32>
    %253 = arith.addf %249, %252 : vector<16x1xf32>
    %254 = math.rsqrt %253 : vector<16x1xf32>
    %255 = vector.broadcast %254 : vector<16x1xf32> to vector<16x32xf32>
    %256 = arith.mulf %251, %255 : vector<16x32xf32>
    %257 = vector.broadcast %236 : vector<1x32xf32> to vector<16x32xf32>
    %258 = arith.mulf %256, %257 : vector<16x32xf32>
    %259 = vector.broadcast %238 : vector<1x32xf32> to vector<16x32xf32>
    %260 = arith.addf %258, %259 : vector<16x32xf32>
    %cst_123 = arith.constant 0.000000e+00 : f32
    %261 = vector.broadcast %cst_123 : f32 to vector<8x32xf32>
    %262 = arith.addf %261, %5 : vector<8x32xf32>
    %c0_124 = arith.constant 0 : index
    %c0_125 = arith.constant 0 : index
    %c0_126 = arith.constant 0 : index
    %263 = vector.load %arg17[%c0_124, %c0_125, %c0_126] : memref<2x32x96xbf16, #tpu.memory_space<vmem>>, vector<1x32x96xbf16>
    %264 = vector.shape_cast %263 : vector<1x32x96xbf16> to vector<32x96xbf16>
    %c0_127 = arith.constant 0 : index
    %c0_128 = arith.constant 0 : index
    %c0_129 = arith.constant 0 : index
    %265 = vector.load %arg18[%c0_127, %c0_128, %c0_129] : memref<2x1x96xf32, #tpu.memory_space<vmem>>, vector<1x1x96xf32>
    %266 = vector.shape_cast %265 : vector<1x1x96xf32> to vector<1x96xf32>
    %c0_130 = arith.constant 0 : index
    %c0_131 = arith.constant 0 : index
    %c0_132 = arith.constant 0 : index
    %267 = vector.load %arg19[%c0_130, %c0_131, %c0_132] : memref<2x32x32xbf16, #tpu.memory_space<vmem>>, vector<1x32x32xbf16>
    %268 = vector.shape_cast %267 : vector<1x32x32xbf16> to vector<32x32xbf16>
    %c0_133 = arith.constant 0 : index
    %c0_134 = arith.constant 0 : index
    %c0_135 = arith.constant 0 : index
    %269 = vector.load %arg20[%c0_133, %c0_134, %c0_135] : memref<2x1x32xf32, #tpu.memory_space<vmem>>, vector<1x1x32xf32>
    %270 = vector.shape_cast %269 : vector<1x1x32xf32> to vector<1x32xf32>
    %271 = arith.truncf %262 : vector<8x32xf32> to vector<8x32xbf16>
    %272 = arith.truncf %261 : vector<8x32xf32> to vector<8x32xbf16>
    %273 = vector.extract_strided_slice %264 {offsets = [0, 0], sizes = [32, 64], strides = [1, 1]} : vector<32x96xbf16> to vector<32x64xbf16>
    %cst_136 = arith.constant dense<0.000000e+00> : vector<8x64xf32>
    %274 = tpu.matmul %271, %273, %cst_136 {dimension_numbers = #tpu.dot_dimension_numbers<[1], [0], [0], [1], [0, 0, 1, 1], [], []>} : vector<8x32xbf16>, vector<32x64xbf16>, vector<8x64xf32> -> vector<8x64xf32>
    %275 = vector.extract_strided_slice %266 {offsets = [0, 0], sizes = [1, 64], strides = [1, 1]} : vector<1x96xf32> to vector<1x64xf32>
    %276 = vector.broadcast %275 : vector<1x64xf32> to vector<8x64xf32>
    %277 = arith.addf %274, %276 : vector<8x64xf32>
    %278 = vector.extract_strided_slice %277 {offsets = [0, 0], sizes = [8, 32], strides = [1, 1]} : vector<8x64xf32> to vector<8x32xf32>
    %279 = vector.extract_strided_slice %277 {offsets = [0, 32], sizes = [8, 32], strides = [1, 1]} : vector<8x64xf32> to vector<8x32xf32>
    %280 = vector.extract_strided_slice %264 {offsets = [0, 64], sizes = [32, 32], strides = [1, 1]} : vector<32x96xbf16> to vector<32x32xbf16>
    %cst_137 = arith.constant dense<0.000000e+00> : vector<8x32xf32>
    %281 = tpu.matmul %272, %280, %cst_137 {dimension_numbers = #tpu.dot_dimension_numbers<[1], [0], [0], [1], [0, 0, 1, 1], [], []>} : vector<8x32xbf16>, vector<32x32xbf16>, vector<8x32xf32> -> vector<8x32xf32>
    %282 = vector.extract_strided_slice %266 {offsets = [0, 64], sizes = [1, 32], strides = [1, 1]} : vector<1x96xf32> to vector<1x32xf32>
    %283 = vector.broadcast %282 : vector<1x32xf32> to vector<8x32xf32>
    %284 = arith.addf %281, %283 : vector<8x32xf32>
    %285 = vector.shape_cast %278 : vector<8x32xf32> to vector<8x4x8xf32>
    %286 = tpu.transpose %285, [1, 0, 2] : vector<8x4x8xf32> -> vector<4x8x8xf32>
    %287 = arith.truncf %286 : vector<4x8x8xf32> to vector<4x8x8xbf16>
    %288 = vector.shape_cast %279 : vector<8x32xf32> to vector<8x4x8xf32>
    %289 = tpu.transpose %288, [1, 0, 2] : vector<8x4x8xf32> -> vector<4x8x8xf32>
    %290 = arith.truncf %289 : vector<4x8x8xf32> to vector<4x8x8xbf16>
    %291 = vector.shape_cast %284 : vector<8x32xf32> to vector<8x4x8xf32>
    %292 = tpu.transpose %291, [1, 0, 2] : vector<8x4x8xf32> -> vector<4x8x8xf32>
    %293 = arith.truncf %292 : vector<4x8x8xf32> to vector<4x8x8xbf16>
    "tpu.trace_start"() <{level = 10 : i32, message = "hqd,hkd->hqk"}> : () -> ()
    %cst_138 = arith.constant dense<0.000000e+00> : vector<4x8x8xf32>
    %294 = tpu.matmul %287, %290, %cst_138 {dimension_numbers = #tpu.dot_dimension_numbers<[2], [2], [1], [1], [0, 0, 0, 1, 1, 1], [0], [0]>} : vector<4x8x8xbf16>, vector<4x8x8xbf16>, vector<4x8x8xf32> -> vector<4x8x8xf32>
    "tpu.trace_stop"() : () -> ()
    %cst_139 = arith.constant 0.353553385 : f32
    %295 = vector.broadcast %cst_139 : f32 to vector<4x8x8xf32>
    %296 = arith.mulf %294, %295 : vector<4x8x8xf32>
    %cst_140 = arith.constant dense<0xFF800000> : vector<4x8xf32>
    %297 = vector.multi_reduction <maximumf>, %296, %cst_140 [2] : vector<4x8x8xf32> to vector<4x8xf32>
    %298 = vector.shape_cast %297 : vector<4x8xf32> to vector<4x8x1xf32>
    %299 = vector.broadcast %298 : vector<4x8x1xf32> to vector<4x8x8xf32>
    %300 = arith.subf %296, %299 : vector<4x8x8xf32>
    %301 = math.exp %300 : vector<4x8x8xf32>
    %cst_141 = arith.constant dense<0.000000e+00> : vector<4x8xf32>
    %302 = vector.multi_reduction <add>, %301, %cst_141 [2] : vector<4x8x8xf32> to vector<4x8xf32>
    %303 = vector.shape_cast %302 : vector<4x8xf32> to vector<4x8x1xf32>
    %304 = tpu.reciprocal %303 {approx = true} : vector<4x8x1xf32> -> vector<4x8x1xf32>
    %305 = vector.broadcast %304 : vector<4x8x1xf32> to vector<4x8x8xf32>
    %306 = arith.mulf %301, %305 : vector<4x8x8xf32>
    %307 = arith.truncf %306 : vector<4x8x8xf32> to vector<4x8x8xbf16>
    "tpu.trace_start"() <{level = 10 : i32, message = "hqk,hkd->hqd"}> : () -> ()
    %cst_142 = arith.constant dense<0.000000e+00> : vector<4x8x8xf32>
    %308 = tpu.matmul %307, %293, %cst_142 {dimension_numbers = #tpu.dot_dimension_numbers<[2], [1], [1], [2], [0, 0, 0, 1, 1, 2], [0], [0]>} : vector<4x8x8xbf16>, vector<4x8x8xbf16>, vector<4x8x8xf32> -> vector<4x8x8xf32>
    "tpu.trace_stop"() : () -> ()
    %309 = tpu.transpose %308, [1, 0, 2] : vector<4x8x8xf32> -> vector<8x4x8xf32>
    %310 = vector.shape_cast %309 : vector<8x4x8xf32> to vector<8x32xf32>
    %311 = arith.truncf %310 : vector<8x32xf32> to vector<8x32xbf16>
    %cst_143 = arith.constant dense<0.000000e+00> : vector<8x32xf32>
    %312 = tpu.matmul %311, %268, %cst_143 {dimension_numbers = #tpu.dot_dimension_numbers<[1], [0], [0], [1], [0, 0, 1, 1], [], []>} : vector<8x32xbf16>, vector<32x32xbf16>, vector<8x32xf32> -> vector<8x32xf32>
    %313 = vector.broadcast %270 : vector<1x32xf32> to vector<8x32xf32>
    %314 = arith.addf %312, %313 : vector<8x32xf32>
    %315 = arith.addf %261, %314 : vector<8x32xf32>
    %c0_144 = arith.constant 0 : index
    %c0_145 = arith.constant 0 : index
    %c0_146 = arith.constant 0 : index
    %316 = vector.load %arg29[%c0_144, %c0_145, %c0_146] : memref<2x1x32xf32, #tpu.memory_space<vmem>>, vector<1x1x32xf32>
    %317 = vector.shape_cast %316 : vector<1x1x32xf32> to vector<1x32xf32>
    %c0_147 = arith.constant 0 : index
    %c0_148 = arith.constant 0 : index
    %c0_149 = arith.constant 0 : index
    %318 = vector.load %arg30[%c0_147, %c0_148, %c0_149] : memref<2x1x32xf32, #tpu.memory_space<vmem>>, vector<1x1x32xf32>
    %319 = vector.shape_cast %318 : vector<1x1x32xf32> to vector<1x32xf32>
    %cst_150 = arith.constant dense<0.000000e+00> : vector<8xf32>
    %320 = vector.multi_reduction <add>, %315, %cst_150 [1] : vector<8x32xf32> to vector<8xf32>
    %321 = vector.shape_cast %320 : vector<8xf32> to vector<8x1xf32>
    %cst_151 = arith.constant 3.200000e+01 : f32
    %322 = vector.broadcast %cst_151 : f32 to vector<8x1xf32>
    %323 = arith.divf %321, %322 : vector<8x1xf32>
    %324 = vector.broadcast %323 : vector<8x1xf32> to vector<8x32xf32>
    %325 = arith.subf %315, %324 : vector<8x32xf32>
    %326 = arith.mulf %325, %325 : vector<8x32xf32>
    %cst_152 = arith.constant dense<0.000000e+00> : vector<8xf32>
    %327 = vector.multi_reduction <add>, %326, %cst_152 [1] : vector<8x32xf32> to vector<8xf32>
    %328 = vector.shape_cast %327 : vector<8xf32> to vector<8x1xf32>
    %cst_153 = arith.constant 3.200000e+01 : f32
    %329 = vector.broadcast %cst_153 : f32 to vector<8x1xf32>
    %330 = arith.divf %328, %329 : vector<8x1xf32>
    %331 = vector.broadcast %323 : vector<8x1xf32> to vector<8x32xf32>
    %332 = arith.subf %315, %331 : vector<8x32xf32>
    %cst_154 = arith.constant 9.99999974E-6 : f32
    %333 = vector.broadcast %cst_154 : f32 to vector<8x1xf32>
    %334 = arith.addf %330, %333 : vector<8x1xf32>
    %335 = math.rsqrt %334 : vector<8x1xf32>
    %336 = vector.broadcast %335 : vector<8x1xf32> to vector<8x32xf32>
    %337 = arith.mulf %332, %336 : vector<8x32xf32>
    %338 = vector.broadcast %317 : vector<1x32xf32> to vector<8x32xf32>
    %339 = arith.mulf %337, %338 : vector<8x32xf32>
    %340 = vector.broadcast %319 : vector<1x32xf32> to vector<8x32xf32>
    %341 = arith.addf %339, %340 : vector<8x32xf32>
    %342 = arith.addf %341, %5 : vector<8x32xf32>
    %343 = arith.addf %133, %3 : vector<16x32xf32>
    %c0_155 = arith.constant 0 : index
    %c0_156 = arith.constant 0 : index
    %c0_157 = arith.constant 0 : index
    %344 = vector.load %arg21[%c0_155, %c0_156, %c0_157] : memref<2x32x96xbf16, #tpu.memory_space<vmem>>, vector<1x32x96xbf16>
    %345 = vector.shape_cast %344 : vector<1x32x96xbf16> to vector<32x96xbf16>
    %c0_158 = arith.constant 0 : index
    %c0_159 = arith.constant 0 : index
    %c0_160 = arith.constant 0 : index
    %346 = vector.load %arg22[%c0_158, %c0_159, %c0_160] : memref<2x1x96xf32, #tpu.memory_space<vmem>>, vector<1x1x96xf32>
    %347 = vector.shape_cast %346 : vector<1x1x96xf32> to vector<1x96xf32>
    %c0_161 = arith.constant 0 : index
    %c0_162 = arith.constant 0 : index
    %c0_163 = arith.constant 0 : index
    %348 = vector.load %arg23[%c0_161, %c0_162, %c0_163] : memref<2x32x32xbf16, #tpu.memory_space<vmem>>, vector<1x32x32xbf16>
    %349 = vector.shape_cast %348 : vector<1x32x32xbf16> to vector<32x32xbf16>
    %c0_164 = arith.constant 0 : index
    %c0_165 = arith.constant 0 : index
    %c0_166 = arith.constant 0 : index
    %350 = vector.load %arg24[%c0_164, %c0_165, %c0_166] : memref<2x1x32xf32, #tpu.memory_space<vmem>>, vector<1x1x32xf32>
    %351 = vector.shape_cast %350 : vector<1x1x32xf32> to vector<1x32xf32>
    %352 = arith.truncf %342 : vector<8x32xf32> to vector<8x32xbf16>
    %353 = arith.truncf %133 : vector<16x32xf32> to vector<16x32xbf16>
    %354 = arith.truncf %343 : vector<16x32xf32> to vector<16x32xbf16>
    %355 = vector.extract_strided_slice %345 {offsets = [0, 0], sizes = [32, 32], strides = [1, 1]} : vector<32x96xbf16> to vector<32x32xbf16>
    %cst_167 = arith.constant dense<0.000000e+00> : vector<8x32xf32>
    %356 = tpu.matmul %352, %355, %cst_167 {dimension_numbers = #tpu.dot_dimension_numbers<[1], [0], [0], [1], [0, 0, 1, 1], [], []>} : vector<8x32xbf16>, vector<32x32xbf16>, vector<8x32xf32> -> vector<8x32xf32>
    %357 = vector.extract_strided_slice %347 {offsets = [0, 0], sizes = [1, 32], strides = [1, 1]} : vector<1x96xf32> to vector<1x32xf32>
    %358 = vector.broadcast %357 : vector<1x32xf32> to vector<8x32xf32>
    %359 = arith.addf %356, %358 : vector<8x32xf32>
    %360 = vector.extract_strided_slice %345 {offsets = [0, 32], sizes = [32, 32], strides = [1, 1]} : vector<32x96xbf16> to vector<32x32xbf16>
    %cst_168 = arith.constant dense<0.000000e+00> : vector<16x32xf32>
    %361 = tpu.matmul %354, %360, %cst_168 {dimension_numbers = #tpu.dot_dimension_numbers<[1], [0], [0], [1], [0, 0, 1, 1], [], []>} : vector<16x32xbf16>, vector<32x32xbf16>, vector<16x32xf32> -> vector<16x32xf32>
    %362 = vector.extract_strided_slice %347 {offsets = [0, 32], sizes = [1, 32], strides = [1, 1]} : vector<1x96xf32> to vector<1x32xf32>
    %363 = vector.broadcast %362 : vector<1x32xf32> to vector<16x32xf32>
    %364 = arith.addf %361, %363 : vector<16x32xf32>
    %365 = vector.extract_strided_slice %345 {offsets = [0, 64], sizes = [32, 32], strides = [1, 1]} : vector<32x96xbf16> to vector<32x32xbf16>
    %cst_169 = arith.constant dense<0.000000e+00> : vector<16x32xf32>
    %366 = tpu.matmul %353, %365, %cst_169 {dimension_numbers = #tpu.dot_dimension_numbers<[1], [0], [0], [1], [0, 0, 1, 1], [], []>} : vector<16x32xbf16>, vector<32x32xbf16>, vector<16x32xf32> -> vector<16x32xf32>
    %367 = vector.extract_strided_slice %347 {offsets = [0, 64], sizes = [1, 32], strides = [1, 1]} : vector<1x96xf32> to vector<1x32xf32>
    %368 = vector.broadcast %367 : vector<1x32xf32> to vector<16x32xf32>
    %369 = arith.addf %366, %368 : vector<16x32xf32>
    %370 = vector.shape_cast %359 : vector<8x32xf32> to vector<8x4x8xf32>
    %371 = tpu.transpose %370, [1, 0, 2] : vector<8x4x8xf32> -> vector<4x8x8xf32>
    %372 = arith.truncf %371 : vector<4x8x8xf32> to vector<4x8x8xbf16>
    %373 = vector.shape_cast %364 : vector<16x32xf32> to vector<16x4x8xf32>
    %374 = tpu.transpose %373, [1, 0, 2] : vector<16x4x8xf32> -> vector<4x16x8xf32>
    %375 = arith.truncf %374 : vector<4x16x8xf32> to vector<4x16x8xbf16>
    %376 = vector.shape_cast %369 : vector<16x32xf32> to vector<16x4x8xf32>
    %377 = tpu.transpose %376, [1, 0, 2] : vector<16x4x8xf32> -> vector<4x16x8xf32>
    %378 = arith.truncf %377 : vector<4x16x8xf32> to vector<4x16x8xbf16>
    "tpu.trace_start"() <{level = 10 : i32, message = "hqd,hkd->hqk"}> : () -> ()
    %cst_170 = arith.constant dense<0.000000e+00> : vector<4x8x16xf32>
    %379 = tpu.matmul %372, %375, %cst_170 {dimension_numbers = #tpu.dot_dimension_numbers<[2], [2], [1], [1], [0, 0, 0, 1, 1, 1], [0], [0]>} : vector<4x8x8xbf16>, vector<4x16x8xbf16>, vector<4x8x16xf32> -> vector<4x8x16xf32>
    "tpu.trace_stop"() : () -> ()
    %cst_171 = arith.constant 0.353553385 : f32
    %380 = vector.broadcast %cst_171 : f32 to vector<4x8x16xf32>
    %381 = arith.mulf %379, %380 : vector<4x8x16xf32>
    %382 = vector.broadcast %6 : vector<1x1x16xf32> to vector<4x8x16xf32>
    %383 = arith.addf %381, %382 : vector<4x8x16xf32>
    %cst_172 = arith.constant dense<0xFF800000> : vector<4x8xf32>
    %384 = vector.multi_reduction <maximumf>, %383, %cst_172 [2] : vector<4x8x16xf32> to vector<4x8xf32>
    %385 = vector.shape_cast %384 : vector<4x8xf32> to vector<4x8x1xf32>
    %386 = vector.broadcast %385 : vector<4x8x1xf32> to vector<4x8x16xf32>
    %387 = arith.subf %383, %386 : vector<4x8x16xf32>
    %388 = math.exp %387 : vector<4x8x16xf32>
    %cst_173 = arith.constant dense<0.000000e+00> : vector<4x8xf32>
    %389 = vector.multi_reduction <add>, %388, %cst_173 [2] : vector<4x8x16xf32> to vector<4x8xf32>
    %390 = vector.shape_cast %389 : vector<4x8xf32> to vector<4x8x1xf32>
    %391 = tpu.reciprocal %390 {approx = true} : vector<4x8x1xf32> -> vector<4x8x1xf32>
    %392 = vector.broadcast %391 : vector<4x8x1xf32> to vector<4x8x16xf32>
    %393 = arith.mulf %388, %392 : vector<4x8x16xf32>
    %394 = arith.truncf %393 : vector<4x8x16xf32> to vector<4x8x16xbf16>
    "tpu.trace_start"() <{level = 10 : i32, message = "hqk,hkd->hqd"}> : () -> ()
    %cst_174 = arith.constant dense<0.000000e+00> : vector<4x8x8xf32>
    %395 = tpu.matmul %394, %378, %cst_174 {dimension_numbers = #tpu.dot_dimension_numbers<[2], [1], [1], [2], [0, 0, 0, 1, 1, 2], [0], [0]>} : vector<4x8x16xbf16>, vector<4x16x8xbf16>, vector<4x8x8xf32> -> vector<4x8x8xf32>
    "tpu.trace_stop"() : () -> ()
    %396 = tpu.transpose %395, [1, 0, 2] : vector<4x8x8xf32> -> vector<8x4x8xf32>
    %397 = vector.shape_cast %396 : vector<8x4x8xf32> to vector<8x32xf32>
    %398 = arith.truncf %397 : vector<8x32xf32> to vector<8x32xbf16>
    %cst_175 = arith.constant dense<0.000000e+00> : vector<8x32xf32>
    %399 = tpu.matmul %398, %349, %cst_175 {dimension_numbers = #tpu.dot_dimension_numbers<[1], [0], [0], [1], [0, 0, 1, 1], [], []>} : vector<8x32xbf16>, vector<32x32xbf16>, vector<8x32xf32> -> vector<8x32xf32>
    %400 = vector.broadcast %351 : vector<1x32xf32> to vector<8x32xf32>
    %401 = arith.addf %399, %400 : vector<8x32xf32>
    %402 = arith.addf %341, %401 : vector<8x32xf32>
    %c0_176 = arith.constant 0 : index
    %c0_177 = arith.constant 0 : index
    %c0_178 = arith.constant 0 : index
    %403 = vector.load %arg31[%c0_176, %c0_177, %c0_178] : memref<2x1x32xf32, #tpu.memory_space<vmem>>, vector<1x1x32xf32>
    %404 = vector.shape_cast %403 : vector<1x1x32xf32> to vector<1x32xf32>
    %c0_179 = arith.constant 0 : index
    %c0_180 = arith.constant 0 : index
    %c0_181 = arith.constant 0 : index
    %405 = vector.load %arg32[%c0_179, %c0_180, %c0_181] : memref<2x1x32xf32, #tpu.memory_space<vmem>>, vector<1x1x32xf32>
    %406 = vector.shape_cast %405 : vector<1x1x32xf32> to vector<1x32xf32>
    %cst_182 = arith.constant dense<0.000000e+00> : vector<8xf32>
    %407 = vector.multi_reduction <add>, %402, %cst_182 [1] : vector<8x32xf32> to vector<8xf32>
    %408 = vector.shape_cast %407 : vector<8xf32> to vector<8x1xf32>
    %cst_183 = arith.constant 3.200000e+01 : f32
    %409 = vector.broadcast %cst_183 : f32 to vector<8x1xf32>
    %410 = arith.divf %408, %409 : vector<8x1xf32>
    %411 = vector.broadcast %410 : vector<8x1xf32> to vector<8x32xf32>
    %412 = arith.subf %402, %411 : vector<8x32xf32>
    %413 = arith.mulf %412, %412 : vector<8x32xf32>
    %cst_184 = arith.constant dense<0.000000e+00> : vector<8xf32>
    %414 = vector.multi_reduction <add>, %413, %cst_184 [1] : vector<8x32xf32> to vector<8xf32>
    %415 = vector.shape_cast %414 : vector<8xf32> to vector<8x1xf32>
    %cst_185 = arith.constant 3.200000e+01 : f32
    %416 = vector.broadcast %cst_185 : f32 to vector<8x1xf32>
    %417 = arith.divf %415, %416 : vector<8x1xf32>
    %418 = vector.broadcast %410 : vector<8x1xf32> to vector<8x32xf32>
    %419 = arith.subf %402, %418 : vector<8x32xf32>
    %cst_186 = arith.constant 9.99999974E-6 : f32
    %420 = vector.broadcast %cst_186 : f32 to vector<8x1xf32>
    %421 = arith.addf %417, %420 : vector<8x1xf32>
    %422 = math.rsqrt %421 : vector<8x1xf32>
    %423 = vector.broadcast %422 : vector<8x1xf32> to vector<8x32xf32>
    %424 = arith.mulf %419, %423 : vector<8x32xf32>
    %425 = vector.broadcast %404 : vector<1x32xf32> to vector<8x32xf32>
    %426 = arith.mulf %424, %425 : vector<8x32xf32>
    %427 = vector.broadcast %406 : vector<1x32xf32> to vector<8x32xf32>
    %428 = arith.addf %426, %427 : vector<8x32xf32>
    %429 = arith.truncf %428 : vector<8x32xf32> to vector<8x32xbf16>
    %c0_187 = arith.constant 0 : index
    %c0_188 = arith.constant 0 : index
    %c0_189 = arith.constant 0 : index
    %430 = vector.load %arg25[%c0_187, %c0_188, %c0_189] : memref<2x32x64xbf16, #tpu.memory_space<vmem>>, vector<1x32x64xbf16>
    %431 = vector.shape_cast %430 : vector<1x32x64xbf16> to vector<32x64xbf16>
    %cst_190 = arith.constant dense<0.000000e+00> : vector<8x64xf32>
    %432 = tpu.matmul %429, %431, %cst_190 {dimension_numbers = #tpu.dot_dimension_numbers<[1], [0], [0], [1], [0, 0, 1, 1], [], []>} : vector<8x32xbf16>, vector<32x64xbf16>, vector<8x64xf32> -> vector<8x64xf32>
    %c0_191 = arith.constant 0 : index
    %c0_192 = arith.constant 0 : index
    %c0_193 = arith.constant 0 : index
    %433 = vector.load %arg26[%c0_191, %c0_192, %c0_193] : memref<2x1x64xf32, #tpu.memory_space<vmem>>, vector<1x1x64xf32>
    %434 = vector.shape_cast %433 : vector<1x1x64xf32> to vector<1x64xf32>
    %435 = vector.broadcast %434 : vector<1x64xf32> to vector<8x64xf32>
    %436 = arith.addf %432, %435 : vector<8x64xf32>
    %cst_194 = arith.constant 0.000000e+00 : f32
    %437 = vector.broadcast %cst_194 : f32 to vector<8x64xf32>
    %438 = arith.maximumf %436, %437 : vector<8x64xf32>
    %439 = arith.truncf %438 : vector<8x64xf32> to vector<8x64xbf16>
    %c0_195 = arith.constant 0 : index
    %c0_196 = arith.constant 0 : index
    %c0_197 = arith.constant 0 : index
    %440 = vector.load %arg27[%c0_195, %c0_196, %c0_197] : memref<2x64x32xbf16, #tpu.memory_space<vmem>>, vector<1x64x32xbf16>
    %441 = vector.shape_cast %440 : vector<1x64x32xbf16> to vector<64x32xbf16>
    %cst_198 = arith.constant dense<0.000000e+00> : vector<8x32xf32>
    %442 = tpu.matmul %439, %441, %cst_198 {dimension_numbers = #tpu.dot_dimension_numbers<[1], [0], [0], [1], [0, 0, 1, 1], [], []>} : vector<8x64xbf16>, vector<64x32xbf16>, vector<8x32xf32> -> vector<8x32xf32>
    %c0_199 = arith.constant 0 : index
    %c0_200 = arith.constant 0 : index
    %c0_201 = arith.constant 0 : index
    %443 = vector.load %arg28[%c0_199, %c0_200, %c0_201] : memref<2x1x32xf32, #tpu.memory_space<vmem>>, vector<1x1x32xf32>
    %444 = vector.shape_cast %443 : vector<1x1x32xf32> to vector<1x32xf32>
    %445 = vector.broadcast %444 : vector<1x32xf32> to vector<8x32xf32>
    %446 = arith.addf %442, %445 : vector<8x32xf32>
    %447 = arith.addf %428, %446 : vector<8x32xf32>
    %c0_202 = arith.constant 0 : index
    %c0_203 = arith.constant 0 : index
    %c0_204 = arith.constant 0 : index
    %448 = vector.load %arg33[%c0_202, %c0_203, %c0_204] : memref<2x1x32xf32, #tpu.memory_space<vmem>>, vector<1x1x32xf32>
    %449 = vector.shape_cast %448 : vector<1x1x32xf32> to vector<1x32xf32>
    %c0_205 = arith.constant 0 : index
    %c0_206 = arith.constant 0 : index
    %c0_207 = arith.constant 0 : index
    %450 = vector.load %arg34[%c0_205, %c0_206, %c0_207] : memref<2x1x32xf32, #tpu.memory_space<vmem>>, vector<1x1x32xf32>
    %451 = vector.shape_cast %450 : vector<1x1x32xf32> to vector<1x32xf32>
    %cst_208 = arith.constant dense<0.000000e+00> : vector<8xf32>
    %452 = vector.multi_reduction <add>, %447, %cst_208 [1] : vector<8x32xf32> to vector<8xf32>
    %453 = vector.shape_cast %452 : vector<8xf32> to vector<8x1xf32>
    %cst_209 = arith.constant 3.200000e+01 : f32
    %454 = vector.broadcast %cst_209 : f32 to vector<8x1xf32>
    %455 = arith.divf %453, %454 : vector<8x1xf32>
    %456 = vector.broadcast %455 : vector<8x1xf32> to vector<8x32xf32>
    %457 = arith.subf %447, %456 : vector<8x32xf32>
    %458 = arith.mulf %457, %457 : vector<8x32xf32>
    %cst_210 = arith.constant dense<0.000000e+00> : vector<8xf32>
    %459 = vector.multi_reduction <add>, %458, %cst_210 [1] : vector<8x32xf32> to vector<8xf32>
    %460 = vector.shape_cast %459 : vector<8xf32> to vector<8x1xf32>
    %cst_211 = arith.constant 3.200000e+01 : f32
    %461 = vector.broadcast %cst_211 : f32 to vector<8x1xf32>
    %462 = arith.divf %460, %461 : vector<8x1xf32>
    %463 = vector.broadcast %455 : vector<8x1xf32> to vector<8x32xf32>
    %464 = arith.subf %447, %463 : vector<8x32xf32>
    %cst_212 = arith.constant 9.99999974E-6 : f32
    %465 = vector.broadcast %cst_212 : f32 to vector<8x1xf32>
    %466 = arith.addf %462, %465 : vector<8x1xf32>
    %467 = math.rsqrt %466 : vector<8x1xf32>
    %468 = vector.broadcast %467 : vector<8x1xf32> to vector<8x32xf32>
    %469 = arith.mulf %464, %468 : vector<8x32xf32>
    %470 = vector.broadcast %449 : vector<1x32xf32> to vector<8x32xf32>
    %471 = arith.mulf %469, %470 : vector<8x32xf32>
    %472 = vector.broadcast %451 : vector<1x32xf32> to vector<8x32xf32>
    %473 = arith.addf %471, %472 : vector<8x32xf32>
    %474 = arith.addf %473, %5 : vector<8x32xf32>
    %c1_213 = arith.constant 1 : index
    %c0_214 = arith.constant 0 : index
    %c0_215 = arith.constant 0 : index
    %475 = vector.load %arg17[%c1_213, %c0_214, %c0_215] : memref<2x32x96xbf16, #tpu.memory_space<vmem>>, vector<1x32x96xbf16>
    %476 = vector.shape_cast %475 : vector<1x32x96xbf16> to vector<32x96xbf16>
    %c1_216 = arith.constant 1 : index
    %c0_217 = arith.constant 0 : index
    %c0_218 = arith.constant 0 : index
    %477 = vector.load %arg18[%c1_216, %c0_217, %c0_218] : memref<2x1x96xf32, #tpu.memory_space<vmem>>, vector<1x1x96xf32>
    %478 = vector.shape_cast %477 : vector<1x1x96xf32> to vector<1x96xf32>
    %c1_219 = arith.constant 1 : index
    %c0_220 = arith.constant 0 : index
    %c0_221 = arith.constant 0 : index
    %479 = vector.load %arg19[%c1_219, %c0_220, %c0_221] : memref<2x32x32xbf16, #tpu.memory_space<vmem>>, vector<1x32x32xbf16>
    %480 = vector.shape_cast %479 : vector<1x32x32xbf16> to vector<32x32xbf16>
    %c1_222 = arith.constant 1 : index
    %c0_223 = arith.constant 0 : index
    %c0_224 = arith.constant 0 : index
    %481 = vector.load %arg20[%c1_222, %c0_223, %c0_224] : memref<2x1x32xf32, #tpu.memory_space<vmem>>, vector<1x1x32xf32>
    %482 = vector.shape_cast %481 : vector<1x1x32xf32> to vector<1x32xf32>
    %483 = arith.truncf %474 : vector<8x32xf32> to vector<8x32xbf16>
    %484 = arith.truncf %473 : vector<8x32xf32> to vector<8x32xbf16>
    %485 = vector.extract_strided_slice %476 {offsets = [0, 0], sizes = [32, 64], strides = [1, 1]} : vector<32x96xbf16> to vector<32x64xbf16>
    %cst_225 = arith.constant dense<0.000000e+00> : vector<8x64xf32>
    %486 = tpu.matmul %483, %485, %cst_225 {dimension_numbers = #tpu.dot_dimension_numbers<[1], [0], [0], [1], [0, 0, 1, 1], [], []>} : vector<8x32xbf16>, vector<32x64xbf16>, vector<8x64xf32> -> vector<8x64xf32>
    %487 = vector.extract_strided_slice %478 {offsets = [0, 0], sizes = [1, 64], strides = [1, 1]} : vector<1x96xf32> to vector<1x64xf32>
    %488 = vector.broadcast %487 : vector<1x64xf32> to vector<8x64xf32>
    %489 = arith.addf %486, %488 : vector<8x64xf32>
    %490 = vector.extract_strided_slice %489 {offsets = [0, 0], sizes = [8, 32], strides = [1, 1]} : vector<8x64xf32> to vector<8x32xf32>
    %491 = vector.extract_strided_slice %489 {offsets = [0, 32], sizes = [8, 32], strides = [1, 1]} : vector<8x64xf32> to vector<8x32xf32>
    %492 = vector.extract_strided_slice %476 {offsets = [0, 64], sizes = [32, 32], strides = [1, 1]} : vector<32x96xbf16> to vector<32x32xbf16>
    %cst_226 = arith.constant dense<0.000000e+00> : vector<8x32xf32>
    %493 = tpu.matmul %484, %492, %cst_226 {dimension_numbers = #tpu.dot_dimension_numbers<[1], [0], [0], [1], [0, 0, 1, 1], [], []>} : vector<8x32xbf16>, vector<32x32xbf16>, vector<8x32xf32> -> vector<8x32xf32>
    %494 = vector.extract_strided_slice %478 {offsets = [0, 64], sizes = [1, 32], strides = [1, 1]} : vector<1x96xf32> to vector<1x32xf32>
    %495 = vector.broadcast %494 : vector<1x32xf32> to vector<8x32xf32>
    %496 = arith.addf %493, %495 : vector<8x32xf32>
    %497 = vector.shape_cast %490 : vector<8x32xf32> to vector<8x4x8xf32>
    %498 = tpu.transpose %497, [1, 0, 2] : vector<8x4x8xf32> -> vector<4x8x8xf32>
    %499 = arith.truncf %498 : vector<4x8x8xf32> to vector<4x8x8xbf16>
    %500 = vector.shape_cast %491 : vector<8x32xf32> to vector<8x4x8xf32>
    %501 = tpu.transpose %500, [1, 0, 2] : vector<8x4x8xf32> -> vector<4x8x8xf32>
    %502 = arith.truncf %501 : vector<4x8x8xf32> to vector<4x8x8xbf16>
    %503 = vector.shape_cast %496 : vector<8x32xf32> to vector<8x4x8xf32>
    %504 = tpu.transpose %503, [1, 0, 2] : vector<8x4x8xf32> -> vector<4x8x8xf32>
    %505 = arith.truncf %504 : vector<4x8x8xf32> to vector<4x8x8xbf16>
    "tpu.trace_start"() <{level = 10 : i32, message = "hqd,hkd->hqk"}> : () -> ()
    %cst_227 = arith.constant dense<0.000000e+00> : vector<4x8x8xf32>
    %506 = tpu.matmul %499, %502, %cst_227 {dimension_numbers = #tpu.dot_dimension_numbers<[2], [2], [1], [1], [0, 0, 0, 1, 1, 1], [0], [0]>} : vector<4x8x8xbf16>, vector<4x8x8xbf16>, vector<4x8x8xf32> -> vector<4x8x8xf32>
    "tpu.trace_stop"() : () -> ()
    %cst_228 = arith.constant 0.353553385 : f32
    %507 = vector.broadcast %cst_228 : f32 to vector<4x8x8xf32>
    %508 = arith.mulf %506, %507 : vector<4x8x8xf32>
    %cst_229 = arith.constant dense<0xFF800000> : vector<4x8xf32>
    %509 = vector.multi_reduction <maximumf>, %508, %cst_229 [2] : vector<4x8x8xf32> to vector<4x8xf32>
    %510 = vector.shape_cast %509 : vector<4x8xf32> to vector<4x8x1xf32>
    %511 = vector.broadcast %510 : vector<4x8x1xf32> to vector<4x8x8xf32>
    %512 = arith.subf %508, %511 : vector<4x8x8xf32>
    %513 = math.exp %512 : vector<4x8x8xf32>
    %cst_230 = arith.constant dense<0.000000e+00> : vector<4x8xf32>
    %514 = vector.multi_reduction <add>, %513, %cst_230 [2] : vector<4x8x8xf32> to vector<4x8xf32>
    %515 = vector.shape_cast %514 : vector<4x8xf32> to vector<4x8x1xf32>
    %516 = tpu.reciprocal %515 {approx = true} : vector<4x8x1xf32> -> vector<4x8x1xf32>
    %517 = vector.broadcast %516 : vector<4x8x1xf32> to vector<4x8x8xf32>
    %518 = arith.mulf %513, %517 : vector<4x8x8xf32>
    %519 = arith.truncf %518 : vector<4x8x8xf32> to vector<4x8x8xbf16>
    "tpu.trace_start"() <{level = 10 : i32, message = "hqk,hkd->hqd"}> : () -> ()
    %cst_231 = arith.constant dense<0.000000e+00> : vector<4x8x8xf32>
    %520 = tpu.matmul %519, %505, %cst_231 {dimension_numbers = #tpu.dot_dimension_numbers<[2], [1], [1], [2], [0, 0, 0, 1, 1, 2], [0], [0]>} : vector<4x8x8xbf16>, vector<4x8x8xbf16>, vector<4x8x8xf32> -> vector<4x8x8xf32>
    "tpu.trace_stop"() : () -> ()
    %521 = tpu.transpose %520, [1, 0, 2] : vector<4x8x8xf32> -> vector<8x4x8xf32>
    %522 = vector.shape_cast %521 : vector<8x4x8xf32> to vector<8x32xf32>
    %523 = arith.truncf %522 : vector<8x32xf32> to vector<8x32xbf16>
    %cst_232 = arith.constant dense<0.000000e+00> : vector<8x32xf32>
    %524 = tpu.matmul %523, %480, %cst_232 {dimension_numbers = #tpu.dot_dimension_numbers<[1], [0], [0], [1], [0, 0, 1, 1], [], []>} : vector<8x32xbf16>, vector<32x32xbf16>, vector<8x32xf32> -> vector<8x32xf32>
    %525 = vector.broadcast %482 : vector<1x32xf32> to vector<8x32xf32>
    %526 = arith.addf %524, %525 : vector<8x32xf32>
    %527 = arith.addf %473, %526 : vector<8x32xf32>
    %c1_233 = arith.constant 1 : index
    %c0_234 = arith.constant 0 : index
    %c0_235 = arith.constant 0 : index
    %528 = vector.load %arg29[%c1_233, %c0_234, %c0_235] : memref<2x1x32xf32, #tpu.memory_space<vmem>>, vector<1x1x32xf32>
    %529 = vector.shape_cast %528 : vector<1x1x32xf32> to vector<1x32xf32>
    %c1_236 = arith.constant 1 : index
    %c0_237 = arith.constant 0 : index
    %c0_238 = arith.constant 0 : index
    %530 = vector.load %arg30[%c1_236, %c0_237, %c0_238] : memref<2x1x32xf32, #tpu.memory_space<vmem>>, vector<1x1x32xf32>
    %531 = vector.shape_cast %530 : vector<1x1x32xf32> to vector<1x32xf32>
    %cst_239 = arith.constant dense<0.000000e+00> : vector<8xf32>
    %532 = vector.multi_reduction <add>, %527, %cst_239 [1] : vector<8x32xf32> to vector<8xf32>
    %533 = vector.shape_cast %532 : vector<8xf32> to vector<8x1xf32>
    %cst_240 = arith.constant 3.200000e+01 : f32
    %534 = vector.broadcast %cst_240 : f32 to vector<8x1xf32>
    %535 = arith.divf %533, %534 : vector<8x1xf32>
    %536 = vector.broadcast %535 : vector<8x1xf32> to vector<8x32xf32>
    %537 = arith.subf %527, %536 : vector<8x32xf32>
    %538 = arith.mulf %537, %537 : vector<8x32xf32>
    %cst_241 = arith.constant dense<0.000000e+00> : vector<8xf32>
    %539 = vector.multi_reduction <add>, %538, %cst_241 [1] : vector<8x32xf32> to vector<8xf32>
    %540 = vector.shape_cast %539 : vector<8xf32> to vector<8x1xf32>
    %cst_242 = arith.constant 3.200000e+01 : f32
    %541 = vector.broadcast %cst_242 : f32 to vector<8x1xf32>
    %542 = arith.divf %540, %541 : vector<8x1xf32>
    %543 = vector.broadcast %535 : vector<8x1xf32> to vector<8x32xf32>
    %544 = arith.subf %527, %543 : vector<8x32xf32>
    %cst_243 = arith.constant 9.99999974E-6 : f32
    %545 = vector.broadcast %cst_243 : f32 to vector<8x1xf32>
    %546 = arith.addf %542, %545 : vector<8x1xf32>
    %547 = math.rsqrt %546 : vector<8x1xf32>
    %548 = vector.broadcast %547 : vector<8x1xf32> to vector<8x32xf32>
    %549 = arith.mulf %544, %548 : vector<8x32xf32>
    %550 = vector.broadcast %529 : vector<1x32xf32> to vector<8x32xf32>
    %551 = arith.mulf %549, %550 : vector<8x32xf32>
    %552 = vector.broadcast %531 : vector<1x32xf32> to vector<8x32xf32>
    %553 = arith.addf %551, %552 : vector<8x32xf32>
    %554 = arith.addf %553, %5 : vector<8x32xf32>
    %555 = arith.addf %260, %3 : vector<16x32xf32>
    %c1_244 = arith.constant 1 : index
    %c0_245 = arith.constant 0 : index
    %c0_246 = arith.constant 0 : index
    %556 = vector.load %arg21[%c1_244, %c0_245, %c0_246] : memref<2x32x96xbf16, #tpu.memory_space<vmem>>, vector<1x32x96xbf16>
    %557 = vector.shape_cast %556 : vector<1x32x96xbf16> to vector<32x96xbf16>
    %c1_247 = arith.constant 1 : index
    %c0_248 = arith.constant 0 : index
    %c0_249 = arith.constant 0 : index
    %558 = vector.load %arg22[%c1_247, %c0_248, %c0_249] : memref<2x1x96xf32, #tpu.memory_space<vmem>>, vector<1x1x96xf32>
    %559 = vector.shape_cast %558 : vector<1x1x96xf32> to vector<1x96xf32>
    %c1_250 = arith.constant 1 : index
    %c0_251 = arith.constant 0 : index
    %c0_252 = arith.constant 0 : index
    %560 = vector.load %arg23[%c1_250, %c0_251, %c0_252] : memref<2x32x32xbf16, #tpu.memory_space<vmem>>, vector<1x32x32xbf16>
    %561 = vector.shape_cast %560 : vector<1x32x32xbf16> to vector<32x32xbf16>
    %c1_253 = arith.constant 1 : index
    %c0_254 = arith.constant 0 : index
    %c0_255 = arith.constant 0 : index
    %562 = vector.load %arg24[%c1_253, %c0_254, %c0_255] : memref<2x1x32xf32, #tpu.memory_space<vmem>>, vector<1x1x32xf32>
    %563 = vector.shape_cast %562 : vector<1x1x32xf32> to vector<1x32xf32>
    %564 = arith.truncf %554 : vector<8x32xf32> to vector<8x32xbf16>
    %565 = arith.truncf %260 : vector<16x32xf32> to vector<16x32xbf16>
    %566 = arith.truncf %555 : vector<16x32xf32> to vector<16x32xbf16>
    %567 = vector.extract_strided_slice %557 {offsets = [0, 0], sizes = [32, 32], strides = [1, 1]} : vector<32x96xbf16> to vector<32x32xbf16>
    %cst_256 = arith.constant dense<0.000000e+00> : vector<8x32xf32>
    %568 = tpu.matmul %564, %567, %cst_256 {dimension_numbers = #tpu.dot_dimension_numbers<[1], [0], [0], [1], [0, 0, 1, 1], [], []>} : vector<8x32xbf16>, vector<32x32xbf16>, vector<8x32xf32> -> vector<8x32xf32>
    %569 = vector.extract_strided_slice %559 {offsets = [0, 0], sizes = [1, 32], strides = [1, 1]} : vector<1x96xf32> to vector<1x32xf32>
    %570 = vector.broadcast %569 : vector<1x32xf32> to vector<8x32xf32>
    %571 = arith.addf %568, %570 : vector<8x32xf32>
    %572 = vector.extract_strided_slice %557 {offsets = [0, 32], sizes = [32, 32], strides = [1, 1]} : vector<32x96xbf16> to vector<32x32xbf16>
    %cst_257 = arith.constant dense<0.000000e+00> : vector<16x32xf32>
    %573 = tpu.matmul %566, %572, %cst_257 {dimension_numbers = #tpu.dot_dimension_numbers<[1], [0], [0], [1], [0, 0, 1, 1], [], []>} : vector<16x32xbf16>, vector<32x32xbf16>, vector<16x32xf32> -> vector<16x32xf32>
    %574 = vector.extract_strided_slice %559 {offsets = [0, 32], sizes = [1, 32], strides = [1, 1]} : vector<1x96xf32> to vector<1x32xf32>
    %575 = vector.broadcast %574 : vector<1x32xf32> to vector<16x32xf32>
    %576 = arith.addf %573, %575 : vector<16x32xf32>
    %577 = vector.extract_strided_slice %557 {offsets = [0, 64], sizes = [32, 32], strides = [1, 1]} : vector<32x96xbf16> to vector<32x32xbf16>
    %cst_258 = arith.constant dense<0.000000e+00> : vector<16x32xf32>
    %578 = tpu.matmul %565, %577, %cst_258 {dimension_numbers = #tpu.dot_dimension_numbers<[1], [0], [0], [1], [0, 0, 1, 1], [], []>} : vector<16x32xbf16>, vector<32x32xbf16>, vector<16x32xf32> -> vector<16x32xf32>
    %579 = vector.extract_strided_slice %559 {offsets = [0, 64], sizes = [1, 32], strides = [1, 1]} : vector<1x96xf32> to vector<1x32xf32>
    %580 = vector.broadcast %579 : vector<1x32xf32> to vector<16x32xf32>
    %581 = arith.addf %578, %580 : vector<16x32xf32>
    %582 = vector.shape_cast %571 : vector<8x32xf32> to vector<8x4x8xf32>
    %583 = tpu.transpose %582, [1, 0, 2] : vector<8x4x8xf32> -> vector<4x8x8xf32>
    %584 = arith.truncf %583 : vector<4x8x8xf32> to vector<4x8x8xbf16>
    %585 = vector.shape_cast %576 : vector<16x32xf32> to vector<16x4x8xf32>
    %586 = tpu.transpose %585, [1, 0, 2] : vector<16x4x8xf32> -> vector<4x16x8xf32>
    %587 = arith.truncf %586 : vector<4x16x8xf32> to vector<4x16x8xbf16>
    %588 = vector.shape_cast %581 : vector<16x32xf32> to vector<16x4x8xf32>
    %589 = tpu.transpose %588, [1, 0, 2] : vector<16x4x8xf32> -> vector<4x16x8xf32>
    %590 = arith.truncf %589 : vector<4x16x8xf32> to vector<4x16x8xbf16>
    "tpu.trace_start"() <{level = 10 : i32, message = "hqd,hkd->hqk"}> : () -> ()
    %cst_259 = arith.constant dense<0.000000e+00> : vector<4x8x16xf32>
    %591 = tpu.matmul %584, %587, %cst_259 {dimension_numbers = #tpu.dot_dimension_numbers<[2], [2], [1], [1], [0, 0, 0, 1, 1, 1], [0], [0]>} : vector<4x8x8xbf16>, vector<4x16x8xbf16>, vector<4x8x16xf32> -> vector<4x8x16xf32>
    "tpu.trace_stop"() : () -> ()
    %cst_260 = arith.constant 0.353553385 : f32
    %592 = vector.broadcast %cst_260 : f32 to vector<4x8x16xf32>
    %593 = arith.mulf %591, %592 : vector<4x8x16xf32>
    %594 = vector.broadcast %6 : vector<1x1x16xf32> to vector<4x8x16xf32>
    %595 = arith.addf %593, %594 : vector<4x8x16xf32>
    %cst_261 = arith.constant dense<0xFF800000> : vector<4x8xf32>
    %596 = vector.multi_reduction <maximumf>, %595, %cst_261 [2] : vector<4x8x16xf32> to vector<4x8xf32>
    %597 = vector.shape_cast %596 : vector<4x8xf32> to vector<4x8x1xf32>
    %598 = vector.broadcast %597 : vector<4x8x1xf32> to vector<4x8x16xf32>
    %599 = arith.subf %595, %598 : vector<4x8x16xf32>
    %600 = math.exp %599 : vector<4x8x16xf32>
    %cst_262 = arith.constant dense<0.000000e+00> : vector<4x8xf32>
    %601 = vector.multi_reduction <add>, %600, %cst_262 [2] : vector<4x8x16xf32> to vector<4x8xf32>
    %602 = vector.shape_cast %601 : vector<4x8xf32> to vector<4x8x1xf32>
    %603 = tpu.reciprocal %602 {approx = true} : vector<4x8x1xf32> -> vector<4x8x1xf32>
    %604 = vector.broadcast %603 : vector<4x8x1xf32> to vector<4x8x16xf32>
    %605 = arith.mulf %600, %604 : vector<4x8x16xf32>
    %606 = arith.truncf %605 : vector<4x8x16xf32> to vector<4x8x16xbf16>
    "tpu.trace_start"() <{level = 10 : i32, message = "hqk,hkd->hqd"}> : () -> ()
    %cst_263 = arith.constant dense<0.000000e+00> : vector<4x8x8xf32>
    %607 = tpu.matmul %606, %590, %cst_263 {dimension_numbers = #tpu.dot_dimension_numbers<[2], [1], [1], [2], [0, 0, 0, 1, 1, 2], [0], [0]>} : vector<4x8x16xbf16>, vector<4x16x8xbf16>, vector<4x8x8xf32> -> vector<4x8x8xf32>
    "tpu.trace_stop"() : () -> ()
    %608 = tpu.transpose %607, [1, 0, 2] : vector<4x8x8xf32> -> vector<8x4x8xf32>
    %609 = vector.shape_cast %608 : vector<8x4x8xf32> to vector<8x32xf32>
    %610 = arith.truncf %609 : vector<8x32xf32> to vector<8x32xbf16>
    %cst_264 = arith.constant dense<0.000000e+00> : vector<8x32xf32>
    %611 = tpu.matmul %610, %561, %cst_264 {dimension_numbers = #tpu.dot_dimension_numbers<[1], [0], [0], [1], [0, 0, 1, 1], [], []>} : vector<8x32xbf16>, vector<32x32xbf16>, vector<8x32xf32> -> vector<8x32xf32>
    %612 = vector.broadcast %563 : vector<1x32xf32> to vector<8x32xf32>
    %613 = arith.addf %611, %612 : vector<8x32xf32>
    %614 = arith.addf %553, %613 : vector<8x32xf32>
    %c1_265 = arith.constant 1 : index
    %c0_266 = arith.constant 0 : index
    %c0_267 = arith.constant 0 : index
    %615 = vector.load %arg31[%c1_265, %c0_266, %c0_267] : memref<2x1x32xf32, #tpu.memory_space<vmem>>, vector<1x1x32xf32>
    %616 = vector.shape_cast %615 : vector<1x1x32xf32> to vector<1x32xf32>
    %c1_268 = arith.constant 1 : index
    %c0_269 = arith.constant 0 : index
    %c0_270 = arith.constant 0 : index
    %617 = vector.load %arg32[%c1_268, %c0_269, %c0_270] : memref<2x1x32xf32, #tpu.memory_space<vmem>>, vector<1x1x32xf32>
    %618 = vector.shape_cast %617 : vector<1x1x32xf32> to vector<1x32xf32>
    %cst_271 = arith.constant dense<0.000000e+00> : vector<8xf32>
    %619 = vector.multi_reduction <add>, %614, %cst_271 [1] : vector<8x32xf32> to vector<8xf32>
    %620 = vector.shape_cast %619 : vector<8xf32> to vector<8x1xf32>
    %cst_272 = arith.constant 3.200000e+01 : f32
    %621 = vector.broadcast %cst_272 : f32 to vector<8x1xf32>
    %622 = arith.divf %620, %621 : vector<8x1xf32>
    %623 = vector.broadcast %622 : vector<8x1xf32> to vector<8x32xf32>
    %624 = arith.subf %614, %623 : vector<8x32xf32>
    %625 = arith.mulf %624, %624 : vector<8x32xf32>
    %cst_273 = arith.constant dense<0.000000e+00> : vector<8xf32>
    %626 = vector.multi_reduction <add>, %625, %cst_273 [1] : vector<8x32xf32> to vector<8xf32>
    %627 = vector.shape_cast %626 : vector<8xf32> to vector<8x1xf32>
    %cst_274 = arith.constant 3.200000e+01 : f32
    %628 = vector.broadcast %cst_274 : f32 to vector<8x1xf32>
    %629 = arith.divf %627, %628 : vector<8x1xf32>
    %630 = vector.broadcast %622 : vector<8x1xf32> to vector<8x32xf32>
    %631 = arith.subf %614, %630 : vector<8x32xf32>
    %cst_275 = arith.constant 9.99999974E-6 : f32
    %632 = vector.broadcast %cst_275 : f32 to vector<8x1xf32>
    %633 = arith.addf %629, %632 : vector<8x1xf32>
    %634 = math.rsqrt %633 : vector<8x1xf32>
    %635 = vector.broadcast %634 : vector<8x1xf32> to vector<8x32xf32>
    %636 = arith.mulf %631, %635 : vector<8x32xf32>
    %637 = vector.broadcast %616 : vector<1x32xf32> to vector<8x32xf32>
    %638 = arith.mulf %636, %637 : vector<8x32xf32>
    %639 = vector.broadcast %618 : vector<1x32xf32> to vector<8x32xf32>
    %640 = arith.addf %638, %639 : vector<8x32xf32>
    %641 = arith.truncf %640 : vector<8x32xf32> to vector<8x32xbf16>
    %c1_276 = arith.constant 1 : index
    %c0_277 = arith.constant 0 : index
    %c0_278 = arith.constant 0 : index
    %642 = vector.load %arg25[%c1_276, %c0_277, %c0_278] : memref<2x32x64xbf16, #tpu.memory_space<vmem>>, vector<1x32x64xbf16>
    %643 = vector.shape_cast %642 : vector<1x32x64xbf16> to vector<32x64xbf16>
    %cst_279 = arith.constant dense<0.000000e+00> : vector<8x64xf32>
    %644 = tpu.matmul %641, %643, %cst_279 {dimension_numbers = #tpu.dot_dimension_numbers<[1], [0], [0], [1], [0, 0, 1, 1], [], []>} : vector<8x32xbf16>, vector<32x64xbf16>, vector<8x64xf32> -> vector<8x64xf32>
    %c1_280 = arith.constant 1 : index
    %c0_281 = arith.constant 0 : index
    %c0_282 = arith.constant 0 : index
    %645 = vector.load %arg26[%c1_280, %c0_281, %c0_282] : memref<2x1x64xf32, #tpu.memory_space<vmem>>, vector<1x1x64xf32>
    %646 = vector.shape_cast %645 : vector<1x1x64xf32> to vector<1x64xf32>
    %647 = vector.broadcast %646 : vector<1x64xf32> to vector<8x64xf32>
    %648 = arith.addf %644, %647 : vector<8x64xf32>
    %cst_283 = arith.constant 0.000000e+00 : f32
    %649 = vector.broadcast %cst_283 : f32 to vector<8x64xf32>
    %650 = arith.maximumf %648, %649 : vector<8x64xf32>
    %651 = arith.truncf %650 : vector<8x64xf32> to vector<8x64xbf16>
    %c1_284 = arith.constant 1 : index
    %c0_285 = arith.constant 0 : index
    %c0_286 = arith.constant 0 : index
    %652 = vector.load %arg27[%c1_284, %c0_285, %c0_286] : memref<2x64x32xbf16, #tpu.memory_space<vmem>>, vector<1x64x32xbf16>
    %653 = vector.shape_cast %652 : vector<1x64x32xbf16> to vector<64x32xbf16>
    %cst_287 = arith.constant dense<0.000000e+00> : vector<8x32xf32>
    %654 = tpu.matmul %651, %653, %cst_287 {dimension_numbers = #tpu.dot_dimension_numbers<[1], [0], [0], [1], [0, 0, 1, 1], [], []>} : vector<8x64xbf16>, vector<64x32xbf16>, vector<8x32xf32> -> vector<8x32xf32>
    %c1_288 = arith.constant 1 : index
    %c0_289 = arith.constant 0 : index
    %c0_290 = arith.constant 0 : index
    %655 = vector.load %arg28[%c1_288, %c0_289, %c0_290] : memref<2x1x32xf32, #tpu.memory_space<vmem>>, vector<1x1x32xf32>
    %656 = vector.shape_cast %655 : vector<1x1x32xf32> to vector<1x32xf32>
    %657 = vector.broadcast %656 : vector<1x32xf32> to vector<8x32xf32>
    %658 = arith.addf %654, %657 : vector<8x32xf32>
    %659 = arith.addf %640, %658 : vector<8x32xf32>
    %c1_291 = arith.constant 1 : index
    %c0_292 = arith.constant 0 : index
    %c0_293 = arith.constant 0 : index
    %660 = vector.load %arg33[%c1_291, %c0_292, %c0_293] : memref<2x1x32xf32, #tpu.memory_space<vmem>>, vector<1x1x32xf32>
    %661 = vector.shape_cast %660 : vector<1x1x32xf32> to vector<1x32xf32>
    %c1_294 = arith.constant 1 : index
    %c0_295 = arith.constant 0 : index
    %c0_296 = arith.constant 0 : index
    %662 = vector.load %arg34[%c1_294, %c0_295, %c0_296] : memref<2x1x32xf32, #tpu.memory_space<vmem>>, vector<1x1x32xf32>
    %663 = vector.shape_cast %662 : vector<1x1x32xf32> to vector<1x32xf32>
    %cst_297 = arith.constant dense<0.000000e+00> : vector<8xf32>
    %664 = vector.multi_reduction <add>, %659, %cst_297 [1] : vector<8x32xf32> to vector<8xf32>
    %665 = vector.shape_cast %664 : vector<8xf32> to vector<8x1xf32>
    %cst_298 = arith.constant 3.200000e+01 : f32
    %666 = vector.broadcast %cst_298 : f32 to vector<8x1xf32>
    %667 = arith.divf %665, %666 : vector<8x1xf32>
    %668 = vector.broadcast %667 : vector<8x1xf32> to vector<8x32xf32>
    %669 = arith.subf %659, %668 : vector<8x32xf32>
    %670 = arith.mulf %669, %669 : vector<8x32xf32>
    %cst_299 = arith.constant dense<0.000000e+00> : vector<8xf32>
    %671 = vector.multi_reduction <add>, %670, %cst_299 [1] : vector<8x32xf32> to vector<8xf32>
    %672 = vector.shape_cast %671 : vector<8xf32> to vector<8x1xf32>
    %cst_300 = arith.constant 3.200000e+01 : f32
    %673 = vector.broadcast %cst_300 : f32 to vector<8x1xf32>
    %674 = arith.divf %672, %673 : vector<8x1xf32>
    %675 = vector.broadcast %667 : vector<8x1xf32> to vector<8x32xf32>
    %676 = arith.subf %659, %675 : vector<8x32xf32>
    %cst_301 = arith.constant 9.99999974E-6 : f32
    %677 = vector.broadcast %cst_301 : f32 to vector<8x1xf32>
    %678 = arith.addf %674, %677 : vector<8x1xf32>
    %679 = math.rsqrt %678 : vector<8x1xf32>
    %680 = vector.broadcast %679 : vector<8x1xf32> to vector<8x32xf32>
    %681 = arith.mulf %676, %680 : vector<8x32xf32>
    %682 = vector.broadcast %661 : vector<1x32xf32> to vector<8x32xf32>
    %683 = arith.mulf %681, %682 : vector<8x32xf32>
    %684 = vector.broadcast %663 : vector<1x32xf32> to vector<8x32xf32>
    %685 = arith.addf %683, %684 : vector<8x32xf32>
    %c0_302 = arith.constant 0 : index
    %c0_303 = arith.constant 0 : index
    %686 = vector.load %arg35[%c0_302, %c0_303] : memref<1x32xf32, #tpu.memory_space<vmem>>, vector<1x32xf32>
    %c0_304 = arith.constant 0 : index
    %c0_305 = arith.constant 0 : index
    %687 = vector.load %arg36[%c0_304, %c0_305] : memref<1x32xf32, #tpu.memory_space<vmem>>, vector<1x32xf32>
    %cst_306 = arith.constant dense<0.000000e+00> : vector<8xf32>
    %688 = vector.multi_reduction <add>, %685, %cst_306 [1] : vector<8x32xf32> to vector<8xf32>
    %689 = vector.shape_cast %688 : vector<8xf32> to vector<8x1xf32>
    %cst_307 = arith.constant 3.200000e+01 : f32
    %690 = vector.broadcast %cst_307 : f32 to vector<8x1xf32>
    %691 = arith.divf %689, %690 : vector<8x1xf32>
    %692 = vector.broadcast %691 : vector<8x1xf32> to vector<8x32xf32>
    %693 = arith.subf %685, %692 : vector<8x32xf32>
    %694 = arith.mulf %693, %693 : vector<8x32xf32>
    %cst_308 = arith.constant dense<0.000000e+00> : vector<8xf32>
    %695 = vector.multi_reduction <add>, %694, %cst_308 [1] : vector<8x32xf32> to vector<8xf32>
    %696 = vector.shape_cast %695 : vector<8xf32> to vector<8x1xf32>
    %cst_309 = arith.constant 3.200000e+01 : f32
    %697 = vector.broadcast %cst_309 : f32 to vector<8x1xf32>
    %698 = arith.divf %696, %697 : vector<8x1xf32>
    %699 = vector.broadcast %691 : vector<8x1xf32> to vector<8x32xf32>
    %700 = arith.subf %685, %699 : vector<8x32xf32>
    %cst_310 = arith.constant 9.99999974E-6 : f32
    %701 = vector.broadcast %cst_310 : f32 to vector<8x1xf32>
    %702 = arith.addf %698, %701 : vector<8x1xf32>
    %703 = math.rsqrt %702 : vector<8x1xf32>
    %704 = vector.broadcast %703 : vector<8x1xf32> to vector<8x32xf32>
    %705 = arith.mulf %700, %704 : vector<8x32xf32>
    %706 = vector.broadcast %686 : vector<1x32xf32> to vector<8x32xf32>
    %707 = arith.mulf %705, %706 : vector<8x32xf32>
    %708 = vector.broadcast %687 : vector<1x32xf32> to vector<8x32xf32>
    %709 = arith.addf %707, %708 : vector<8x32xf32>
    %c0_311 = arith.constant 0 : index
    %c0_312 = arith.constant 0 : index
    %c0_313 = arith.constant 0 : index
    %710 = vector.load %arg37[%c0_311, %c0_312, %c0_313] : memref<1x8x32xf32, #tpu.memory_space<vmem>>, vector<1x8x32xf32>
    %711 = vector.shape_cast %710 : vector<1x8x32xf32> to vector<8x32xf32>
    %712 = vector.shape_cast %709 : vector<8x32xf32> to vector<1x8x32xf32>
    tpu.vector_store %arg37[%c0_311, %c0_312, %c0_313], %712 {strides = array<i32>} : memref<1x8x32xf32, #tpu.memory_space<vmem>>, vector<1x8x32xf32>,
    return
  }
  func.func @transform_0(%arg0: i32) -> (i32, i32, i32) {
    %c0_i32 = arith.constant 0 : i32
    %c0_i32_0 = arith.constant 0 : i32
    %c0_i32_1 = arith.constant 0 : i32
    return %arg0, %c0_i32, %c0_i32_0 : i32, i32, i32
  }
  func.func @transform_1(%arg0: i32) -> (i32, i32, i32) {
    %c0_i32 = arith.constant 0 : i32
    %c0_i32_0 = arith.constant 0 : i32
    %c0_i32_1 = arith.constant 0 : i32
    return %arg0, %c0_i32, %c0_i32_0 : i32, i32, i32
  }
  func.func @transform_2(%arg0: i32) -> (i32, i32, i32) {
    %c0_i32 = arith.constant 0 : i32
    %c0_i32_0 = arith.constant 0 : i32
    %c0_i32_1 = arith.constant 0 : i32
    return %arg0, %c0_i32, %c0_i32_0 : i32, i32, i32
  }
  func.func @transform_3(%arg0: i32) -> (i32, i32, i32) {
    %c0_i32 = arith.constant 0 : i32
    %c0_i32_0 = arith.constant 0 : i32
    %c0_i32_1 = arith.constant 0 : i32
    return %arg0, %c0_i32, %c0_i32_0 : i32, i32, i32
  }
  func.func @transform_4(%arg0: i32) -> (i32, i32, i32) {
    %c0_i32 = arith.constant 0 : i32
    %c0_i32_0 = arith.constant 0 : i32
    %c0_i32_1 = arith.constant 0 : i32
    %c0_i32_2 = arith.constant 0 : i32
    return %c0_i32, %c0_i32_0, %c0_i32_1 : i32, i32, i32
  }
  func.func @transform_5(%arg0: i32) -> (i32, i32, i32) {
    %c0_i32 = arith.constant 0 : i32
    %c0_i32_0 = arith.constant 0 : i32
    %c0_i32_1 = arith.constant 0 : i32
    %c0_i32_2 = arith.constant 0 : i32
    return %c0_i32, %c0_i32_0, %c0_i32_1 : i32, i32, i32
  }
  func.func @transform_6(%arg0: i32) -> (i32, i32, i32) {
    %c0_i32 = arith.constant 0 : i32
    %c0_i32_0 = arith.constant 0 : i32
    %c0_i32_1 = arith.constant 0 : i32
    %c0_i32_2 = arith.constant 0 : i32
    return %c0_i32, %c0_i32_0, %c0_i32_1 : i32, i32, i32
  }
  func.func @transform_7(%arg0: i32) -> (i32, i32, i32) {
    %c0_i32 = arith.constant 0 : i32
    %c0_i32_0 = arith.constant 0 : i32
    %c0_i32_1 = arith.constant 0 : i32
    %c0_i32_2 = arith.constant 0 : i32
    return %c0_i32, %c0_i32_0, %c0_i32_1 : i32, i32, i32
  }
  func.func @transform_8(%arg0: i32) -> (i32, i32, i32) {
    %c0_i32 = arith.constant 0 : i32
    %c0_i32_0 = arith.constant 0 : i32
    %c0_i32_1 = arith.constant 0 : i32
    %c0_i32_2 = arith.constant 0 : i32
    return %c0_i32, %c0_i32_0, %c0_i32_1 : i32, i32, i32
  }
  func.func @transform_9(%arg0: i32) -> (i32, i32, i32) {
    %c0_i32 = arith.constant 0 : i32
    %c0_i32_0 = arith.constant 0 : i32
    %c0_i32_1 = arith.constant 0 : i32
    %c0_i32_2 = arith.constant 0 : i32
    return %c0_i32, %c0_i32_0, %c0_i32_1 : i32, i32, i32
  }
  func.func @transform_10(%arg0: i32) -> (i32, i32, i32) {
    %c0_i32 = arith.constant 0 : i32
    %c0_i32_0 = arith.constant 0 : i32
    %c0_i32_1 = arith.constant 0 : i32
    %c0_i32_2 = arith.constant 0 : i32
    return %c0_i32, %c0_i32_0, %c0_i32_1 : i32, i32, i32
  }
  func.func @transform_11(%arg0: i32) -> (i32, i32, i32) {
    %c0_i32 = arith.constant 0 : i32
    %c0_i32_0 = arith.constant 0 : i32
    %c0_i32_1 = arith.constant 0 : i32
    %c0_i32_2 = arith.constant 0 : i32
    return %c0_i32, %c0_i32_0, %c0_i32_1 : i32, i32, i32
  }
  func.func @transform_12(%arg0: i32) -> (i32, i32, i32) {
    %c0_i32 = arith.constant 0 : i32
    %c0_i32_0 = arith.constant 0 : i32
    %c0_i32_1 = arith.constant 0 : i32
    %c0_i32_2 = arith.constant 0 : i32
    return %c0_i32, %c0_i32_0, %c0_i32_1 : i32, i32, i32
  }
  func.func @transform_13(%arg0: i32) -> (i32, i32, i32) {
    %c0_i32 = arith.constant 0 : i32
    %c0_i32_0 = arith.constant 0 : i32
    %c0_i32_1 = arith.constant 0 : i32
    %c0_i32_2 = arith.constant 0 : i32
    return %c0_i32, %c0_i32_0, %c0_i32_1 : i32, i32, i32
  }
  func.func @transform_14(%arg0: i32) -> (i32, i32, i32) {
    %c0_i32 = arith.constant 0 : i32
    %c0_i32_0 = arith.constant 0 : i32
    %c0_i32_1 = arith.constant 0 : i32
    %c0_i32_2 = arith.constant 0 : i32
    return %c0_i32, %c0_i32_0, %c0_i32_1 : i32, i32, i32
  }
  func.func @transform_15(%arg0: i32) -> (i32, i32, i32) {
    %c0_i32 = arith.constant 0 : i32
    %c0_i32_0 = arith.constant 0 : i32
    %c0_i32_1 = arith.constant 0 : i32
    %c0_i32_2 = arith.constant 0 : i32
    return %c0_i32, %c0_i32_0, %c0_i32_1 : i32, i32, i32
  }
  func.func @transform_16(%arg0: i32) -> (i32, i32, i32) {
    %c0_i32 = arith.constant 0 : i32
    %c0_i32_0 = arith.constant 0 : i32
    %c0_i32_1 = arith.constant 0 : i32
    %c0_i32_2 = arith.constant 0 : i32
    return %c0_i32, %c0_i32_0, %c0_i32_1 : i32, i32, i32
  }
  func.func @transform_17(%arg0: i32) -> (i32, i32, i32) {
    %c0_i32 = arith.constant 0 : i32
    %c0_i32_0 = arith.constant 0 : i32
    %c0_i32_1 = arith.constant 0 : i32
    %c0_i32_2 = arith.constant 0 : i32
    return %c0_i32, %c0_i32_0, %c0_i32_1 : i32, i32, i32
  }
  func.func @transform_18(%arg0: i32) -> (i32, i32, i32) {
    %c0_i32 = arith.constant 0 : i32
    %c0_i32_0 = arith.constant 0 : i32
    %c0_i32_1 = arith.constant 0 : i32
    %c0_i32_2 = arith.constant 0 : i32
    return %c0_i32, %c0_i32_0, %c0_i32_1 : i32, i32, i32
  }
  func.func @transform_19(%arg0: i32) -> (i32, i32, i32) {
    %c0_i32 = arith.constant 0 : i32
    %c0_i32_0 = arith.constant 0 : i32
    %c0_i32_1 = arith.constant 0 : i32
    %c0_i32_2 = arith.constant 0 : i32
    return %c0_i32, %c0_i32_0, %c0_i32_1 : i32, i32, i32
  }
  func.func @transform_20(%arg0: i32) -> (i32, i32, i32) {
    %c0_i32 = arith.constant 0 : i32
    %c0_i32_0 = arith.constant 0 : i32
    %c0_i32_1 = arith.constant 0 : i32
    %c0_i32_2 = arith.constant 0 : i32
    return %c0_i32, %c0_i32_0, %c0_i32_1 : i32, i32, i32
  }
  func.func @transform_21(%arg0: i32) -> (i32, i32, i32) {
    %c0_i32 = arith.constant 0 : i32
    %c0_i32_0 = arith.constant 0 : i32
    %c0_i32_1 = arith.constant 0 : i32
    %c0_i32_2 = arith.constant 0 : i32
    return %c0_i32, %c0_i32_0, %c0_i32_1 : i32, i32, i32
  }
  func.func @transform_22(%arg0: i32) -> (i32, i32, i32) {
    %c0_i32 = arith.constant 0 : i32
    %c0_i32_0 = arith.constant 0 : i32
    %c0_i32_1 = arith.constant 0 : i32
    %c0_i32_2 = arith.constant 0 : i32
    return %c0_i32, %c0_i32_0, %c0_i32_1 : i32, i32, i32
  }
  func.func @transform_23(%arg0: i32) -> (i32, i32, i32) {
    %c0_i32 = arith.constant 0 : i32
    %c0_i32_0 = arith.constant 0 : i32
    %c0_i32_1 = arith.constant 0 : i32
    %c0_i32_2 = arith.constant 0 : i32
    return %c0_i32, %c0_i32_0, %c0_i32_1 : i32, i32, i32
  }
  func.func @transform_24(%arg0: i32) -> (i32, i32, i32) {
    %c0_i32 = arith.constant 0 : i32
    %c0_i32_0 = arith.constant 0 : i32
    %c0_i32_1 = arith.constant 0 : i32
    %c0_i32_2 = arith.constant 0 : i32
    return %c0_i32, %c0_i32_0, %c0_i32_1 : i32, i32, i32
  }
  func.func @transform_25(%arg0: i32) -> (i32, i32, i32) {
    %c0_i32 = arith.constant 0 : i32
    %c0_i32_0 = arith.constant 0 : i32
    %c0_i32_1 = arith.constant 0 : i32
    %c0_i32_2 = arith.constant 0 : i32
    return %c0_i32, %c0_i32_0, %c0_i32_1 : i32, i32, i32
  }
  func.func @transform_26(%arg0: i32) -> (i32, i32, i32) {
    %c0_i32 = arith.constant 0 : i32
    %c0_i32_0 = arith.constant 0 : i32
    %c0_i32_1 = arith.constant 0 : i32
    %c0_i32_2 = arith.constant 0 : i32
    return %c0_i32, %c0_i32_0, %c0_i32_1 : i32, i32, i32
  }
  func.func @transform_27(%arg0: i32) -> (i32, i32, i32) {
    %c0_i32 = arith.constant 0 : i32
    %c0_i32_0 = arith.constant 0 : i32
    %c0_i32_1 = arith.constant 0 : i32
    %c0_i32_2 = arith.constant 0 : i32
    return %c0_i32, %c0_i32_0, %c0_i32_1 : i32, i32, i32
  }
  func.func @transform_28(%arg0: i32) -> (i32, i32, i32) {
    %c0_i32 = arith.constant 0 : i32
    %c0_i32_0 = arith.constant 0 : i32
    %c0_i32_1 = arith.constant 0 : i32
    %c0_i32_2 = arith.constant 0 : i32
    return %c0_i32, %c0_i32_0, %c0_i32_1 : i32, i32, i32
  }
  func.func @transform_29(%arg0: i32) -> (i32, i32, i32) {
    %c0_i32 = arith.constant 0 : i32
    %c0_i32_0 = arith.constant 0 : i32
    %c0_i32_1 = arith.constant 0 : i32
    %c0_i32_2 = arith.constant 0 : i32
    return %c0_i32, %c0_i32_0, %c0_i32_1 : i32, i32, i32
  }
  func.func @transform_30(%arg0: i32) -> (i32, i32, i32) {
    %c0_i32 = arith.constant 0 : i32
    %c0_i32_0 = arith.constant 0 : i32
    %c0_i32_1 = arith.constant 0 : i32
    %c0_i32_2 = arith.constant 0 : i32
    return %c0_i32, %c0_i32_0, %c0_i32_1 : i32, i32, i32
  }
  func.func @transform_31(%arg0: i32) -> (i32, i32, i32) {
    %c0_i32 = arith.constant 0 : i32
    %c0_i32_0 = arith.constant 0 : i32
    %c0_i32_1 = arith.constant 0 : i32
    %c0_i32_2 = arith.constant 0 : i32
    return %c0_i32, %c0_i32_0, %c0_i32_1 : i32, i32, i32
  }
  func.func @transform_32(%arg0: i32) -> (i32, i32, i32) {
    %c0_i32 = arith.constant 0 : i32
    %c0_i32_0 = arith.constant 0 : i32
    %c0_i32_1 = arith.constant 0 : i32
    %c0_i32_2 = arith.constant 0 : i32
    return %c0_i32, %c0_i32_0, %c0_i32_1 : i32, i32, i32
  }
  func.func @transform_33(%arg0: i32) -> (i32, i32, i32) {
    %c0_i32 = arith.constant 0 : i32
    %c0_i32_0 = arith.constant 0 : i32
    %c0_i32_1 = arith.constant 0 : i32
    %c0_i32_2 = arith.constant 0 : i32
    return %c0_i32, %c0_i32_0, %c0_i32_1 : i32, i32, i32
  }
  func.func @transform_34(%arg0: i32) -> (i32, i32) {
    %c0_i32 = arith.constant 0 : i32
    %c0_i32_0 = arith.constant 0 : i32
    %c0_i32_1 = arith.constant 0 : i32
    return %c0_i32, %c0_i32_0 : i32, i32
  }
  func.func @transform_35(%arg0: i32) -> (i32, i32) {
    %c0_i32 = arith.constant 0 : i32
    %c0_i32_0 = arith.constant 0 : i32
    %c0_i32_1 = arith.constant 0 : i32
    return %c0_i32, %c0_i32_0 : i32, i32
  }
  func.func @transform_36(%arg0: i32) -> (i32, i32, i32) {
    %c0_i32 = arith.constant 0 : i32
    %c0_i32_0 = arith.constant 0 : i32
    %c0_i32_1 = arith.constant 0 : i32
    return %arg0, %c0_i32, %c0_i32_0 : i32, i32, i32
  }
}

</mosaic_0001>

<llo_original>
// kernel: transformer_forward.1
$region0: #{transformer_forward.1}
  #allocation0 [shape = 'u32[]', space=smem, size = 0x4, offset = 0x4, fixed_abs, tag = 'smem constant byte address 0x4 - core index']
  #allocation1 [shape = 'u32[72,128]{1,0:T(1,128)}', space=vmem, size = 0x9000, scoped, tag = 'internal scratch']
  %s0 = inlined_call_operand.smem [shape: u32[37], index: -1, kind: input, shape index: {}]
  %s1 = sld [smem:[%s0]]
  %s2 = scalar_lea.smem %s0, 1
  %s3 = sld [smem:[%s2]]
  %s4 = scalar_lea.smem %s0, 2
  %s5 = sld [smem:[%s4]]
  %s6 = scalar_lea.smem %s0, 3
  %s7 = sld [smem:[%s6]]
  %s8 = scalar_lea.smem %s0, 4
  %s9 = sld [smem:[%s8]]
  %s10 = scalar_lea.smem %s0, 5
  %s11 = sld [smem:[%s10]]
  %s12 = scalar_lea.smem %s0, 6
  %s13 = sld [smem:[%s12]]
  %s14 = scalar_lea.smem %s0, 7
  %s15 = sld [smem:[%s14]]
  %s16 = scalar_lea.smem %s0, 8
  %s17 = sld [smem:[%s16]]
  %s18 = scalar_lea.smem %s0, 9
  %s19 = sld [smem:[%s18]]
  %s20 = scalar_lea.smem %s0, 10
  %s21 = sld [smem:[%s20]]
  %s22 = scalar_lea.smem %s0, 11
  %s23 = sld [smem:[%s22]]
  %s24 = scalar_lea.smem %s0, 12
  %s25 = sld [smem:[%s24]]
  %s26 = scalar_lea.smem %s0, 13
  %s27 = sld [smem:[%s26]]
  %s28 = scalar_lea.smem %s0, 14
  %s29 = sld [smem:[%s28]]
  %s30 = scalar_lea.smem %s0, 15
  %s31 = sld [smem:[%s30]]
  %s32 = scalar_lea.smem %s0, 16
  %s33 = sld [smem:[%s32]]
  %s34 = scalar_lea.smem %s0, 17
  %s35 = sld [smem:[%s34]]
  %s36 = scalar_lea.smem %s0, 18
  %s37 = sld [smem:[%s36]]
  %s38 = scalar_lea.smem %s0, 19
  %s39 = sld [smem:[%s38]]
  %s40 = scalar_lea.smem %s0, 20
  %s41 = sld [smem:[%s40]]
  %s42 = scalar_lea.smem %s0, 21
  %s43 = sld [smem:[%s42]]
  %s44 = scalar_lea.smem %s0, 22
  %s45 = sld [smem:[%s44]]
  %s46 = scalar_lea.smem %s0, 23
  %s47 = sld [smem:[%s46]]
  %s48 = scalar_lea.smem %s0, 24
  %s49 = sld [smem:[%s48]]
  %s50 = scalar_lea.smem %s0, 25
  %s51 = sld [smem:[%s50]]
  %s52 = scalar_lea.smem %s0, 26
  %s53 = sld [smem:[%s52]]
  %s54 = scalar_lea.smem %s0, 27
  %s55 = sld [smem:[%s54]]
  %s56 = scalar_lea.smem %s0, 28
  %s57 = sld [smem:[%s56]]
  %s58 = scalar_lea.smem %s0, 29
  %s59 = sld [smem:[%s58]]
  %s60 = scalar_lea.smem %s0, 30
  %s61 = sld [smem:[%s60]]
  %s62 = scalar_lea.smem %s0, 31
  %s63 = sld [smem:[%s62]]
  %s64 = scalar_lea.smem %s0, 32
  %s65 = sld [smem:[%s64]]
  %s66 = scalar_lea.smem %s0, 33
  %s67 = sld [smem:[%s66]]
  %s68 = scalar_lea.smem %s0, 34
  %s69 = sld [smem:[%s68]]
  %s70 = scalar_lea.smem %s0, 35
  %s71 = sld [smem:[%s70]]
  %s72 = scalar_lea.smem %s0, 36
  %s73 = sld [smem:[%s72]]
  %s74 = sld [smem:[#allocation0]]
  $region177: #{transformer_forward.1} parent=0
    _
  %s76 = ssub.s32 1, %s74
  %s77 = scalar_select 0, %s76, %s74
  $region1: #{transformer_forward.1} parent=0
    #allocation2 [shape = 'u8[8192]{0}', space=vmem, size = 0x2000, scoped, tag = 'output window, operand 0']
    #allocation3 [shape = 's32[2]{0}', space=sflag, size = 0x8, scoped, tag = 'scoped memory for transformer_forward.1']
    %78 = vsyncpa [#allocation3], 0
    %s79 = scalar_lea.sflag [#allocation3], 1
    %80 = vsyncpa %s79, 0
    loop: start=0, step=1, limit=4
    $region2: #{transformer_forward.1} parent=1 // loop_pre_header
      _
    $region3: #{transformer_forward.1} parent=1 // loop_header
      %s82 = sphi 0, %s86
      %p83 = scmp.ge.s32.totalorder %s82, 4
      %s92 = sphi 0, %s94
      %s95 = sphi 0, %s92
      %s96 = sphi 0, %s95
      %s112 = sphi 0, %s96
      %s118 = sphi 0, %s120
      %s121 = sphi 0, %s118
      %s122 = sphi 0, %s121
      %s138 = sphi 0, %s122
      %s144 = sphi 0, %s146
      %s147 = sphi 0, %s144
      %s148 = sphi 0, %s147
      %s164 = sphi 0, %s148
      %s170 = sphi 0, %s172
      %s173 = sphi 0, %s170
      %s174 = sphi 0, %s173
      %s190 = sphi 0, %s174
      %s194 = sphi 0, %s194
      %s196 = sphi 0, %s194
      %s197 = sphi 0, %s196
      %s211 = sphi 0, %s197
      %s215 = sphi 0, %s215
      %s217 = sphi 0, %s215
      %s218 = sphi 0, %s217
      %s232 = sphi 0, %s218
      %s236 = sphi 0, %s236
      %s238 = sphi 0, %s236
      %s239 = sphi 0, %s238
      %s253 = sphi 0, %s239
      %s257 = sphi 0, %s257
      %s259 = sphi 0, %s257
      %s260 = sphi 0, %s259
      %s274 = sphi 0, %s260
      %s278 = sphi 0, %s278
      %s280 = sphi 0, %s278
      %s281 = sphi 0, %s280
      %s295 = sphi 0, %s281
      %s299 = sphi 0, %s299
      %s301 = sphi 0, %s299
      %s302 = sphi 0, %s301
      %s316 = sphi 0, %s302
      %s320 = sphi 0, %s320
      %s322 = sphi 0, %s320
      %s323 = sphi 0, %s322
      %s337 = sphi 0, %s323
      %s341 = sphi 0, %s341
      %s343 = sphi 0, %s341
      %s344 = sphi 0, %s343
      %s358 = sphi 0, %s344
      %s362 = sphi 0, %s362
      %s364 = sphi 0, %s362
      %s365 = sphi 0, %s364
      %s379 = sphi 0, %s365
      %s383 = sphi 0, %s383
      %s385 = sphi 0, %s383
      %s386 = sphi 0, %s385
      %s400 = sphi 0, %s386
      %s404 = sphi 0, %s404
      %s406 = sphi 0, %s404
      %s407 = sphi 0, %s406
      %s421 = sphi 0, %s407
      %s425 = sphi 0, %s425
      %s427 = sphi 0, %s425
      %s428 = sphi 0, %s427
      %s442 = sphi 0, %s428
      %s446 = sphi 0, %s446
      %s448 = sphi 0, %s446
      %s449 = sphi 0, %s448
      %s463 = sphi 0, %s449
      %s467 = sphi 0, %s467
      %s469 = sphi 0, %s467
      %s470 = sphi 0, %s469
      %s484 = sphi 0, %s470
      %s488 = sphi 0, %s488
      %s490 = sphi 0, %s488
      %s491 = sphi 0, %s490
      %s505 = sphi 0, %s491
      %s509 = sphi 0, %s509
      %s511 = sphi 0, %s509
      %s512 = sphi 0, %s511
      %s526 = sphi 0, %s512
      %s530 = sphi 0, %s530
      %s532 = sphi 0, %s530
      %s533 = sphi 0, %s532
      %s547 = sphi 0, %s533
      %s551 = sphi 0, %s551
      %s553 = sphi 0, %s551
      %s554 = sphi 0, %s553
      %s568 = sphi 0, %s554
      %s572 = sphi 0, %s572
      %s574 = sphi 0, %s572
      %s575 = sphi 0, %s574
      %s589 = sphi 0, %s575
      %s593 = sphi 0, %s593
      %s595 = sphi 0, %s593
      %s596 = sphi 0, %s595
      %s610 = sphi 0, %s596
      %s614 = sphi 0, %s614
      %s616 = sphi 0, %s614
      %s617 = sphi 0, %s616
      %s631 = sphi 0, %s617
      %s635 = sphi 0, %s635
      %s637 = sphi 0, %s635
      %s638 = sphi 0, %s637
      %s652 = sphi 0, %s638
      %s656 = sphi 0, %s656
      %s658 = sphi 0, %s656
      %s659 = sphi 0, %s658
      %s673 = sphi 0, %s659
      %s677 = sphi 0, %s677
      %s679 = sphi 0, %s677
      %s680 = sphi 0, %s679
      %s694 = sphi 0, %s680
      %s698 = sphi 0, %s698
      %s700 = sphi 0, %s698
      %s701 = sphi 0, %s700
      %s715 = sphi 0, %s701
      %s719 = sphi 0, %s719
      %s721 = sphi 0, %s719
      %s722 = sphi 0, %s721
      %s736 = sphi 0, %s722
      %s740 = sphi 0, %s740
      %s742 = sphi 0, %s740
      %s743 = sphi 0, %s742
      %s757 = sphi 0, %s743
      %s761 = sphi 0, %s761
      %s763 = sphi 0, %s761
      %s764 = sphi 0, %s763
      %s778 = sphi 0, %s764
      %s782 = sphi 0, %s782
      %s784 = sphi 0, %s782
      %s785 = sphi 0, %s784
      %s799 = sphi 0, %s785
      %s803 = sphi 0, %s803
      %s805 = sphi 0, %s803
      %s806 = sphi 0, %s805
      %s820 = sphi 0, %s806
      %s824 = sphi 0, %s824
      %s826 = sphi 0, %s824
      %s827 = sphi 0, %s826
      %s841 = sphi 0, %s827
      %s845 = sphi 0, %s845
      %s847 = sphi 0, %s845
      %s848 = sphi 0, %s847
      %s862 = sphi 0, %s848
      %s868 = sphi 0, %s870
      %s871 = sphi 0, %s868
      %s872 = sphi 0, %s871
      %s888 = sphi 0, %s872
    $region4: #{transformer_forward.1} parent=1 // loop_header_branch
      %85 = sbr.rel (%p83) target = $region8
    $region5: #{transformer_forward.1} parent=1 // loop_body
      %s87 = ssub.s32 %s82, 1
      %s88 = ssub.s32 %s82, 2
      %s89 = sadd.s32 %s82, 1
      %s90 = ssub.s32 %s82, %s89
      %p91 = scmp.eq.s32.totalorder %s90, 0
      %s93 = sadd.s32 %s92, 1
      %s94 = scalar_select %p91, %s92, %s93
      %p97 = pneg %p91
      %p98 = scmp.eq.s32.totalorder %s82, 1
      %p99 = por %p97, %p98
      %p100 = scmp.ne.s32.totalorder %s92, %s95
      %p101 = scmp.eq.s32.totalorder %s82, 0
      %p102 = por %p100, %p101
      %p103 = scmp.ne.s32.totalorder %s92, %s95
      %p104 = scmp.eq.s32.totalorder %s87, 1
      %p105 = por %p103, %p104
      %p106 = scmp.ne.s32.totalorder %s95, %s96
      %p107 = scmp.eq.s32.totalorder %s87, 0
      %p108 = por %p106, %p107
      %p109 = scmp.ne.s32.totalorder %s95, %s96
      %p110 = scmp.eq.s32.totalorder %s88, 1
      %p111 = por %p109, %p110
      %p113 = scmp.ne.s32.totalorder %s96, %s112
      %p114 = scmp.eq.s32.totalorder %s88, 0
      %p115 = por %p113, %p114
      %s116 = ssub.s32 %s82, %s89
      %p117 = scmp.eq.s32.totalorder %s116, 0
      %s119 = sadd.s32 %s118, 1
      %s120 = scalar_select %p117, %s118, %s119
      %p123 = pneg %p117
      %p124 = scmp.eq.s32.totalorder %s82, 1
      %p125 = por %p123, %p124
      %p126 = scmp.ne.s32.totalorder %s118, %s121
      %p127 = scmp.eq.s32.totalorder %s82, 0
      %p128 = por %p126, %p127
      %p129 = scmp.ne.s32.totalorder %s118, %s121
      %p130 = scmp.eq.s32.totalorder %s87, 1
      %p131 = por %p129, %p130
      %p132 = scmp.ne.s32.totalorder %s121, %s122
      %p133 = scmp.eq.s32.totalorder %s87, 0
      %p134 = por %p132, %p133
      %p135 = scmp.ne.s32.totalorder %s121, %s122
      %p136 = scmp.eq.s32.totalorder %s88, 1
      %p137 = por %p135, %p136
      %p139 = scmp.ne.s32.totalorder %s122, %s138
      %p140 = scmp.eq.s32.totalorder %s88, 0
      %p141 = por %p139, %p140
      %s142 = ssub.s32 %s82, %s89
      %p143 = scmp.eq.s32.totalorder %s142, 0
      %s145 = sadd.s32 %s144, 1
      %s146 = scalar_select %p143, %s144, %s145
      %p149 = pneg %p143
      %p150 = scmp.eq.s32.totalorder %s82, 1
      %p151 = por %p149, %p150
      %p152 = scmp.ne.s32.totalorder %s144, %s147
      %p153 = scmp.eq.s32.totalorder %s82, 0
      %p154 = por %p152, %p153
      %p155 = scmp.ne.s32.totalorder %s144, %s147
      %p156 = scmp.eq.s32.totalorder %s87, 1
      %p157 = por %p155, %p156
      %p158 = scmp.ne.s32.totalorder %s147, %s148
      %p159 = scmp.eq.s32.totalorder %s87, 0
      %p160 = por %p158, %p159
      %p161 = scmp.ne.s32.totalorder %s147, %s148
      %p162 = scmp.eq.s32.totalorder %s88, 1
      %p163 = por %p161, %p162
      %p165 = scmp.ne.s32.totalorder %s148, %s164
      %p166 = scmp.eq.s32.totalorder %s88, 0
      %p167 = por %p165, %p166
      %s168 = ssub.s32 %s82, %s89
      %p169 = scmp.eq.s32.totalorder %s168, 0
      %s171 = sadd.s32 %s170, 1
      %s172 = scalar_select %p169, %s170, %s171
      %p175 = pneg %p169
      %p176 = scmp.eq.s32.totalorder %s82, 1
      %p177 = por %p175, %p176
      %p178 = scmp.ne.s32.totalorder %s170, %s173
      %p179 = scmp.eq.s32.totalorder %s82, 0
      %p180 = por %p178, %p179
      %p181 = scmp.ne.s32.totalorder %s170, %s173
      %p182 = scmp.eq.s32.totalorder %s87, 1
      %p183 = por %p181, %p182
      %p184 = scmp.ne.s32.totalorder %s173, %s174
      %p185 = scmp.eq.s32.totalorder %s87, 0
      %p186 = por %p184, %p185
      %p187 = scmp.ne.s32.totalorder %s173, %s174
      %p188 = scmp.eq.s32.totalorder %s88, 1
      %p189 = por %p187, %p188
      %p191 = scmp.ne.s32.totalorder %s174, %s190
      %p192 = scmp.eq.s32.totalorder %s88, 0
      %p193 = por %p191, %p192
      %s195 = sadd.s32 %s194, 1
      %p198 = scmp.eq.s32.totalorder %s82, 1
      %p199 = scmp.ne.s32.totalorder %s194, %s196
      %p200 = scmp.eq.s32.totalorder %s82, 0
      %p201 = por %p199, %p200
      %p202 = scmp.ne.s32.totalorder %s194, %s196
      %p203 = scmp.eq.s32.totalorder %s87, 1
      %p204 = por %p202, %p203
      %p205 = scmp.ne.s32.totalorder %s196, %s197
      %p206 = scmp.eq.s32.totalorder %s87, 0
      %p207 = por %p205, %p206
      %p208 = scmp.ne.s32.totalorder %s196, %s197
      %p209 = scmp.eq.s32.totalorder %s88, 1
      %p210 = por %p208, %p209
      %p212 = scmp.ne.s32.totalorder %s197, %s211
      %p213 = scmp.eq.s32.totalorder %s88, 0
      %p214 = por %p212, %p213
      %s216 = sadd.s32 %s215, 1
      %p219 = scmp.eq.s32.totalorder %s82, 1
      %p220 = scmp.ne.s32.totalorder %s215, %s217
      %p221 = scmp.eq.s32.totalorder %s82, 0
      %p222 = por %p220, %p221
      %p223 = scmp.ne.s32.totalorder %s215, %s217
      %p224 = scmp.eq.s32.totalorder %s87, 1
      %p225 = por %p223, %p224
      %p226 = scmp.ne.s32.totalorder %s217, %s218
      %p227 = scmp.eq.s32.totalorder %s87, 0
      %p228 = por %p226, %p227
      %p229 = scmp.ne.s32.totalorder %s217, %s218
      %p230 = scmp.eq.s32.totalorder %s88, 1
      %p231 = por %p229, %p230
      %p233 = scmp.ne.s32.totalorder %s218, %s232
      %p234 = scmp.eq.s32.totalorder %s88, 0
      %p235 = por %p233, %p234
      %s237 = sadd.s32 %s236, 1
      %p240 = scmp.eq.s32.totalorder %s82, 1
      %p241 = scmp.ne.s32.totalorder %s236, %s238
      %p242 = scmp.eq.s32.totalorder %s82, 0
      %p243 = por %p241, %p242
      %p244 = scmp.ne.s32.totalorder %s236, %s238
      %p245 = scmp.eq.s32.totalorder %s87, 1
      %p246 = por %p244, %p245
      %p247 = scmp.ne.s32.totalorder %s238, %s239
      %p248 = scmp.eq.s32.totalorder %s87, 0
      %p249 = por %p247, %p248
      %p250 = scmp.ne.s32.totalorder %s238, %s239
      %p251 = scmp.eq.s32.totalorder %s88, 1
      %p252 = por %p250, %p251
      %p254 = scmp.ne.s32.totalorder %s239, %s253
      %p255 = scmp.eq.s32.totalorder %s88, 0
      %p256 = por %p254, %p255
      %s258 = sadd.s32 %s257, 1
      %p261 = scmp.eq.s32.totalorder %s82, 1
      %p262 = scmp.ne.s32.totalorder %s257, %s259
      %p263 = scmp.eq.s32.totalorder %s82, 0
      %p264 = por %p262, %p263
      %p265 = scmp.ne.s32.totalorder %s257, %s259
      %p266 = scmp.eq.s32.totalorder %s87, 1
      %p267 = por %p265, %p266
      %p268 = scmp.ne.s32.totalorder %s259, %s260
      %p269 = scmp.eq.s32.totalorder %s87, 0
      %p270 = por %p268, %p269
      %p271 = scmp.ne.s32.totalorder %s259, %s260
      %p272 = scmp.eq.s32.totalorder %s88, 1
      %p273 = por %p271, %p272
      %p275 = scmp.ne.s32.totalorder %s260, %s274
      %p276 = scmp.eq.s32.totalorder %s88, 0
      %p277 = por %p275, %p276
      %s279 = sadd.s32 %s278, 1
      %p282 = scmp.eq.s32.totalorder %s82, 1
      %p283 = scmp.ne.s32.totalorder %s278, %s280
      %p284 = scmp.eq.s32.totalorder %s82, 0
      %p285 = por %p283, %p284
      %p286 = scmp.ne.s32.totalorder %s278, %s280
      %p287 = scmp.eq.s32.totalorder %s87, 1
      %p288 = por %p286, %p287
      %p289 = scmp.ne.s32.totalorder %s280, %s281
      %p290 = scmp.eq.s32.totalorder %s87, 0
      %p291 = por %p289, %p290
      %p292 = scmp.ne.s32.totalorder %s280, %s281
      %p293 = scmp.eq.s32.totalorder %s88, 1
      %p294 = por %p292, %p293
      %p296 = scmp.ne.s32.totalorder %s281, %s295
      %p297 = scmp.eq.s32.totalorder %s88, 0
      %p298 = por %p296, %p297
      %s300 = sadd.s32 %s299, 1
      %p303 = scmp.eq.s32.totalorder %s82, 1
      %p304 = scmp.ne.s32.totalorder %s299, %s301
      %p305 = scmp.eq.s32.totalorder %s82, 0
      %p306 = por %p304, %p305
      %p307 = scmp.ne.s32.totalorder %s299, %s301
      %p308 = scmp.eq.s32.totalorder %s87, 1
      %p309 = por %p307, %p308
      %p310 = scmp.ne.s32.totalorder %s301, %s302
      %p311 = scmp.eq.s32.totalorder %s87, 0
      %p312 = por %p310, %p311
      %p313 = scmp.ne.s32.totalorder %s301, %s302
      %p314 = scmp.eq.s32.totalorder %s88, 1
      %p315 = por %p313, %p314
      %p317 = scmp.ne.s32.totalorder %s302, %s316
      %p318 = scmp.eq.s32.totalorder %s88, 0
      %p319 = por %p317, %p318
      %s321 = sadd.s32 %s320, 1
      %p324 = scmp.eq.s32.totalorder %s82, 1
      %p325 = scmp.ne.s32.totalorder %s320, %s322
      %p326 = scmp.eq.s32.totalorder %s82, 0
      %p327 = por %p325, %p326
      %p328 = scmp.ne.s32.totalorder %s320, %s322
      %p329 = scmp.eq.s32.totalorder %s87, 1
      %p330 = por %p328, %p329
      %p331 = scmp.ne.s32.totalorder %s322, %s323
      %p332 = scmp.eq.s32.totalorder %s87, 0
      %p333 = por %p331, %p332
      %p334 = scmp.ne.s32.totalorder %s322, %s323
      %p335 = scmp.eq.s32.totalorder %s88, 1
      %p336 = por %p334, %p335
      %p338 = scmp.ne.s32.totalorder %s323, %s337
      %p339 = scmp.eq.s32.totalorder %s88, 0
      %p340 = por %p338, %p339
      %s342 = sadd.s32 %s341, 1
      %p345 = scmp.eq.s32.totalorder %s82, 1
      %p346 = scmp.ne.s32.totalorder %s341, %s343
      %p347 = scmp.eq.s32.totalorder %s82, 0
      %p348 = por %p346, %p347
      %p349 = scmp.ne.s32.totalorder %s341, %s343
      %p350 = scmp.eq.s32.totalorder %s87, 1
      %p351 = por %p349, %p350
      %p352 = scmp.ne.s32.totalorder %s343, %s344
      %p353 = scmp.eq.s32.totalorder %s87, 0
      %p354 = por %p352, %p353
      %p355 = scmp.ne.s32.totalorder %s343, %s344
      %p356 = scmp.eq.s32.totalorder %s88, 1
      %p357 = por %p355, %p356
      %p359 = scmp.ne.s32.totalorder %s344, %s358
      %p360 = scmp.eq.s32.totalorder %s88, 0
      %p361 = por %p359, %p360
      %s363 = sadd.s32 %s362, 1
      %p366 = scmp.eq.s32.totalorder %s82, 1
      %p367 = scmp.ne.s32.totalorder %s362, %s364
      %p368 = scmp.eq.s32.totalorder %s82, 0
      %p369 = por %p367, %p368
      %p370 = scmp.ne.s32.totalorder %s362, %s364
      %p371 = scmp.eq.s32.totalorder %s87, 1
      %p372 = por %p370, %p371
      %p373 = scmp.ne.s32.totalorder %s364, %s365
      %p374 = scmp.eq.s32.totalorder %s87, 0
      %p375 = por %p373, %p374
      %p376 = scmp.ne.s32.totalorder %s364, %s365
      %p377 = scmp.eq.s32.totalorder %s88, 1
      %p378 = por %p376, %p377
      %p380 = scmp.ne.s32.totalorder %s365, %s379
      %p381 = scmp.eq.s32.totalorder %s88, 0
      %p382 = por %p380, %p381
      %s384 = sadd.s32 %s383, 1
      %p387 = scmp.eq.s32.totalorder %s82, 1
      %p388 = scmp.ne.s32.totalorder %s383, %s385
      %p389 = scmp.eq.s32.totalorder %s82, 0
      %p390 = por %p388, %p389
      %p391 = scmp.ne.s32.totalorder %s383, %s385
      %p392 = scmp.eq.s32.totalorder %s87, 1
      %p393 = por %p391, %p392
      %p394 = scmp.ne.s32.totalorder %s385, %s386
      %p395 = scmp.eq.s32.totalorder %s87, 0
      %p396 = por %p394, %p395
      %p397 = scmp.ne.s32.totalorder %s385, %s386
      %p398 = scmp.eq.s32.totalorder %s88, 1
      %p399 = por %p397, %p398
      %p401 = scmp.ne.s32.totalorder %s386, %s400
      %p402 = scmp.eq.s32.totalorder %s88, 0
      %p403 = por %p401, %p402
      %s405 = sadd.s32 %s404, 1
      %p408 = scmp.eq.s32.totalorder %s82, 1
      %p409 = scmp.ne.s32.totalorder %s404, %s406
      %p410 = scmp.eq.s32.totalorder %s82, 0
      %p411 = por %p409, %p410
      %p412 = scmp.ne.s32.totalorder %s404, %s406
      %p413 = scmp.eq.s32.totalorder %s87, 1
      %p414 = por %p412, %p413
      %p415 = scmp.ne.s32.totalorder %s406, %s407
      %p416 = scmp.eq.s32.totalorder %s87, 0
      %p417 = por %p415, %p416
      %p418 = scmp.ne.s32.totalorder %s406, %s407
      %p419 = scmp.eq.s32.totalorder %s88, 1
      %p420 = por %p418, %p419
      %p422 = scmp.ne.s32.totalorder %s407, %s421
      %p423 = scmp.eq.s32.totalorder %s88, 0
      %p424 = por %p422, %p423
      %s426 = sadd.s32 %s425, 1
      %p429 = scmp.eq.s32.totalorder %s82, 1
      %p430 = scmp.ne.s32.totalorder %s425, %s427
      %p431 = scmp.eq.s32.totalorder %s82, 0
      %p432 = por %p430, %p431
      %p433 = scmp.ne.s32.totalorder %s425, %s427
      %p434 = scmp.eq.s32.totalorder %s87, 1
      %p435 = por %p433, %p434
      %p436 = scmp.ne.s32.totalorder %s427, %s428
      %p437 = scmp.eq.s32.totalorder %s87, 0
      %p438 = por %p436, %p437
      %p439 = scmp.ne.s32.totalorder %s427, %s428
      %p440 = scmp.eq.s32.totalorder %s88, 1
      %p441 = por %p439, %p440
      %p443 = scmp.ne.s32.totalorder %s428, %s442
      %p444 = scmp.eq.s32.totalorder %s88, 0
      %p445 = por %p443, %p444
      %s447 = sadd.s32 %s446, 1
      %p450 = scmp.eq.s32.totalorder %s82, 1
      %p451 = scmp.ne.s32.totalorder %s446, %s448
      %p452 = scmp.eq.s32.totalorder %s82, 0
      %p453 = por %p451, %p452
      %p454 = scmp.ne.s32.totalorder %s446, %s448
      %p455 = scmp.eq.s32.totalorder %s87, 1
      %p456 = por %p454, %p455
      %p457 = scmp.ne.s32.totalorder %s448, %s449
      %p458 = scmp.eq.s32.totalorder %s87, 0
      %p459 = por %p457, %p458
      %p460 = scmp.ne.s32.totalorder %s448, %s449
      %p461 = scmp.eq.s32.totalorder %s88, 1
      %p462 = por %p460, %p461
      %p464 = scmp.ne.s32.totalorder %s449, %s463
      %p465 = scmp.eq.s32.totalorder %s88, 0
      %p466 = por %p464, %p465
      %s468 = sadd.s32 %s467, 1
      %p471 = scmp.eq.s32.totalorder %s82, 1
      %p472 = scmp.ne.s32.totalorder %s467, %s469
      %p473 = scmp.eq.s32.totalorder %s82, 0
      %p474 = por %p472, %p473
      %p475 = scmp.ne.s32.totalorder %s467, %s469
      %p476 = scmp.eq.s32.totalorder %s87, 1
      %p477 = por %p475, %p476
      %p478 = scmp.ne.s32.totalorder %s469, %s470
      %p479 = scmp.eq.s32.totalorder %s87, 0
      %p480 = por %p478, %p479
      %p481 = scmp.ne.s32.totalorder %s469, %s470
      %p482 = scmp.eq.s32.totalorder %s88, 1
      %p483 = por %p481, %p482
      %p485 = scmp.ne.s32.totalorder %s470, %s484
      %p486 = scmp.eq.s32.totalorder %s88, 0
      %p487 = por %p485, %p486
      %s489 = sadd.s32 %s488, 1
      %p492 = scmp.eq.s32.totalorder %s82, 1
      %p493 = scmp.ne.s32.totalorder %s488, %s490
      %p494 = scmp.eq.s32.totalorder %s82, 0
      %p495 = por %p493, %p494
      %p496 = scmp.ne.s32.totalorder %s488, %s490
      %p497 = scmp.eq.s32.totalorder %s87, 1
      %p498 = por %p496, %p497
      %p499 = scmp.ne.s32.totalorder %s490, %s491
      %p500 = scmp.eq.s32.totalorder %s87, 0
      %p501 = por %p499, %p500
      %p502 = scmp.ne.s32.totalorder %s490, %s491
      %p503 = scmp.eq.s32.totalorder %s88, 1
      %p504 = por %p502, %p503
      %p506 = scmp.ne.s32.totalorder %s491, %s505
      %p507 = scmp.eq.s32.totalorder %s88, 0
      %p508 = por %p506, %p507
      %s510 = sadd.s32 %s509, 1
      %p513 = scmp.eq.s32.totalorder %s82, 1
      %p514 = scmp.ne.s32.totalorder %s509, %s511
      %p515 = scmp.eq.s32.totalorder %s82, 0
      %p516 = por %p514, %p515
      %p517 = scmp.ne.s32.totalorder %s509, %s511
      %p518 = scmp.eq.s32.totalorder %s87, 1
      %p519 = por %p517, %p518
      %p520 = scmp.ne.s32.totalorder %s511, %s512
      %p521 = scmp.eq.s32.totalorder %s87, 0
      %p522 = por %p520, %p521
      %p523 = scmp.ne.s32.totalorder %s511, %s512
      %p524 = scmp.eq.s32.totalorder %s88, 1
      %p525 = por %p523, %p524
      %p527 = scmp.ne.s32.totalorder %s512, %s526
      %p528 = scmp.eq.s32.totalorder %s88, 0
      %p529 = por %p527, %p528
      %s531 = sadd.s32 %s530, 1
      %p534 = scmp.eq.s32.totalorder %s82, 1
      %p535 = scmp.ne.s32.totalorder %s530, %s532
      %p536 = scmp.eq.s32.totalorder %s82, 0
      %p537 = por %p535, %p536
      %p538 = scmp.ne.s32.totalorder %s530, %s532
      %p539 = scmp.eq.s32.totalorder %s87, 1
      %p540 = por %p538, %p539
      %p541 = scmp.ne.s32.totalorder %s532, %s533
      %p542 = scmp.eq.s32.totalorder %s87, 0
      %p543 = por %p541, %p542
      %p544 = scmp.ne.s32.totalorder %s532, %s533
      %p545 = scmp.eq.s32.totalorder %s88, 1
      %p546 = por %p544, %p545
      %p548 = scmp.ne.s32.totalorder %s533, %s547
      %p549 = scmp.eq.s32.totalorder %s88, 0
      %p550 = por %p548, %p549
      %s552 = sadd.s32 %s551, 1
      %p555 = scmp.eq.s32.totalorder %s82, 1
      %p556 = scmp.ne.s32.totalorder %s551, %s553
      %p557 = scmp.eq.s32.totalorder %s82, 0
      %p558 = por %p556, %p557
      %p559 = scmp.ne.s32.totalorder %s551, %s553
      %p560 = scmp.eq.s32.totalorder %s87, 1
      %p561 = por %p559, %p560
      %p562 = scmp.ne.s32.totalorder %s553, %s554
      %p563 = scmp.eq.s32.totalorder %s87, 0
      %p564 = por %p562, %p563
      %p565 = scmp.ne.s32.totalorder %s553, %s554
      %p566 = scmp.eq.s32.totalorder %s88, 1
      %p567 = por %p565, %p566
      %p569 = scmp.ne.s32.totalorder %s554, %s568
      %p570 = scmp.eq.s32.totalorder %s88, 0
      %p571 = por %p569, %p570
      %s573 = sadd.s32 %s572, 1
      %p576 = scmp.eq.s32.totalorder %s82, 1
      %p577 = scmp.ne.s32.totalorder %s572, %s574
      %p578 = scmp.eq.s32.totalorder %s82, 0
      %p579 = por %p577, %p578
      %p580 = scmp.ne.s32.totalorder %s572, %s574
      %p581 = scmp.eq.s32.totalorder %s87, 1
      %p582 = por %p580, %p581
      %p583 = scmp.ne.s32.totalorder %s574, %s575
      %p584 = scmp.eq.s32.totalorder %s87, 0
      %p585 = por %p583, %p584
      %p586 = scmp.ne.s32.totalorder %s574, %s575
      %p587 = scmp.eq.s32.totalorder %s88, 1
      %p588 = por %p586, %p587
      %p590 = scmp.ne.s32.totalorder %s575, %s589
      %p591 = scmp.eq.s32.totalorder %s88, 0
      %p592 = por %p590, %p591
      %s594 = sadd.s32 %s593, 1
      %p597 = scmp.eq.s32.totalorder %s82, 1
      %p598 = scmp.ne.s32.totalorder %s593, %s595
      %p599 = scmp.eq.s32.totalorder %s82, 0
      %p600 = por %p598, %p599
      %p601 = scmp.ne.s32.totalorder %s593, %s595
      %p602 = scmp.eq.s32.totalorder %s87, 1
      %p603 = por %p601, %p602
      %p604 = scmp.ne.s32.totalorder %s595, %s596
      %p605 = scmp.eq.s32.totalorder %s87, 0
      %p606 = por %p604, %p605
      %p607 = scmp.ne.s32.totalorder %s595, %s596
      %p608 = scmp.eq.s32.totalorder %s88, 1
      %p609 = por %p607, %p608
      %p611 = scmp.ne.s32.totalorder %s596, %s610
      %p612 = scmp.eq.s32.totalorder %s88, 0
      %p613 = por %p611, %p612
      %s615 = sadd.s32 %s614, 1
      %p618 = scmp.eq.s32.totalorder %s82, 1
      %p619 = scmp.ne.s32.totalorder %s614, %s616
      %p620 = scmp.eq.s32.totalorder %s82, 0
      %p621 = por %p619, %p620
      %p622 = scmp.ne.s32.totalorder %s614, %s616
      %p623 = scmp.eq.s32.totalorder %s87, 1
      %p624 = por %p622, %p623
      %p625 = scmp.ne.s32.totalorder %s616, %s617
      %p626 = scmp.eq.s32.totalorder %s87, 0
      %p627 = por %p625, %p626
      %p628 = scmp.ne.s32.totalorder %s616, %s617
      %p629 = scmp.eq.s32.totalorder %s88, 1
      %p630 = por %p628, %p629
      %p632 = scmp.ne.s32.totalorder %s617, %s631
      %p633 = scmp.eq.s32.totalorder %s88, 0
      %p634 = por %p632, %p633
      %s636 = sadd.s32 %s635, 1
      %p639 = scmp.eq.s32.totalorder %s82, 1
      %p640 = scmp.ne.s32.totalorder %s635, %s637
      %p641 = scmp.eq.s32.totalorder %s82, 0
      %p642 = por %p640, %p641
      %p643 = scmp.ne.s32.totalorder %s635, %s637
      %p644 = scmp.eq.s32.totalorder %s87, 1
      %p645 = por %p643, %p644
      %p646 = scmp.ne.s32.totalorder %s637, %s638
      %p647 = scmp.eq.s32.totalorder %s87, 0
      %p648 = por %p646, %p647
      %p649 = scmp.ne.s32.totalorder %s637, %s638
      %p650 = scmp.eq.s32.totalorder %s88, 1
      %p651 = por %p649, %p650
      %p653 = scmp.ne.s32.totalorder %s638, %s652
      %p654 = scmp.eq.s32.totalorder %s88, 0
      %p655 = por %p653, %p654
      %s657 = sadd.s32 %s656, 1
      %p660 = scmp.eq.s32.totalorder %s82, 1
      %p661 = scmp.ne.s32.totalorder %s656, %s658
      %p662 = scmp.eq.s32.totalorder %s82, 0
      %p663 = por %p661, %p662
      %p664 = scmp.ne.s32.totalorder %s656, %s658
      %p665 = scmp.eq.s32.totalorder %s87, 1
      %p666 = por %p664, %p665
      %p667 = scmp.ne.s32.totalorder %s658, %s659
      %p668 = scmp.eq.s32.totalorder %s87, 0
      %p669 = por %p667, %p668
      %p670 = scmp.ne.s32.totalorder %s658, %s659
      %p671 = scmp.eq.s32.totalorder %s88, 1
      %p672 = por %p670, %p671
      %p674 = scmp.ne.s32.totalorder %s659, %s673
      %p675 = scmp.eq.s32.totalorder %s88, 0
      %p676 = por %p674, %p675
      %s678 = sadd.s32 %s677, 1
      %p681 = scmp.eq.s32.totalorder %s82, 1
      %p682 = scmp.ne.s32.totalorder %s677, %s679
      %p683 = scmp.eq.s32.totalorder %s82, 0
      %p684 = por %p682, %p683
      %p685 = scmp.ne.s32.totalorder %s677, %s679
      %p686 = scmp.eq.s32.totalorder %s87, 1
      %p687 = por %p685, %p686
      %p688 = scmp.ne.s32.totalorder %s679, %s680
      %p689 = scmp.eq.s32.totalorder %s87, 0
      %p690 = por %p688, %p689
      %p691 = scmp.ne.s32.totalorder %s679, %s680
      %p692 = scmp.eq.s32.totalorder %s88, 1
      %p693 = por %p691, %p692
      %p695 = scmp.ne.s32.totalorder %s680, %s694
      %p696 = scmp.eq.s32.totalorder %s88, 0
      %p697 = por %p695, %p696
      %s699 = sadd.s32 %s698, 1
      %p702 = scmp.eq.s32.totalorder %s82, 1
      %p703 = scmp.ne.s32.totalorder %s698, %s700
      %p704 = scmp.eq.s32.totalorder %s82, 0
      %p705 = por %p703, %p704
      %p706 = scmp.ne.s32.totalorder %s698, %s700
      %p707 = scmp.eq.s32.totalorder %s87, 1
      %p708 = por %p706, %p707
      %p709 = scmp.ne.s32.totalorder %s700, %s701
      %p710 = scmp.eq.s32.totalorder %s87, 0
      %p711 = por %p709, %p710
      %p712 = scmp.ne.s32.totalorder %s700, %s701
      %p713 = scmp.eq.s32.totalorder %s88, 1
      %p714 = por %p712, %p713
      %p716 = scmp.ne.s32.totalorder %s701, %s715
      %p717 = scmp.eq.s32.totalorder %s88, 0
      %p718 = por %p716, %p717
      %s720 = sadd.s32 %s719, 1
      %p723 = scmp.eq.s32.totalorder %s82, 1
      %p724 = scmp.ne.s32.totalorder %s719, %s721
      %p725 = scmp.eq.s32.totalorder %s82, 0
      %p726 = por %p724, %p725
      %p727 = scmp.ne.s32.totalorder %s719, %s721
      %p728 = scmp.eq.s32.totalorder %s87, 1
      %p729 = por %p727, %p728
      %p730 = scmp.ne.s32.totalorder %s721, %s722
      %p731 = scmp.eq.s32.totalorder %s87, 0
      %p732 = por %p730, %p731
      %p733 = scmp.ne.s32.totalorder %s721, %s722
      %p734 = scmp.eq.s32.totalorder %s88, 1
      %p735 = por %p733, %p734
      %p737 = scmp.ne.s32.totalorder %s722, %s736
      %p738 = scmp.eq.s32.totalorder %s88, 0
      %p739 = por %p737, %p738
      %s741 = sadd.s32 %s740, 1
      %p744 = scmp.eq.s32.totalorder %s82, 1
      %p745 = scmp.ne.s32.totalorder %s740, %s742
      %p746 = scmp.eq.s32.totalorder %s82, 0
      %p747 = por %p745, %p746
      %p748 = scmp.ne.s32.totalorder %s740, %s742
      %p749 = scmp.eq.s32.totalorder %s87, 1
      %p750 = por %p748, %p749
      %p751 = scmp.ne.s32.totalorder %s742, %s743
      %p752 = scmp.eq.s32.totalorder %s87, 0
      %p753 = por %p751, %p752
      %p754 = scmp.ne.s32.totalorder %s742, %s743
      %p755 = scmp.eq.s32.totalorder %s88, 1
      %p756 = por %p754, %p755
      %p758 = scmp.ne.s32.totalorder %s743, %s757
      %p759 = scmp.eq.s32.totalorder %s88, 0
      %p760 = por %p758, %p759
      %s762 = sadd.s32 %s761, 1
      %p765 = scmp.eq.s32.totalorder %s82, 1
      %p766 = scmp.ne.s32.totalorder %s761, %s763
      %p767 = scmp.eq.s32.totalorder %s82, 0
      %p768 = por %p766, %p767
      %p769 = scmp.ne.s32.totalorder %s761, %s763
      %p770 = scmp.eq.s32.totalorder %s87, 1
      %p771 = por %p769, %p770
      %p772 = scmp.ne.s32.totalorder %s763, %s764
      %p773 = scmp.eq.s32.totalorder %s87, 0
      %p774 = por %p772, %p773
      %p775 = scmp.ne.s32.totalorder %s763, %s764
      %p776 = scmp.eq.s32.totalorder %s88, 1
      %p777 = por %p775, %p776
      %p779 = scmp.ne.s32.totalorder %s764, %s778
      %p780 = scmp.eq.s32.totalorder %s88, 0
      %p781 = por %p779, %p780
      %s783 = sadd.s32 %s782, 1
      %p786 = scmp.eq.s32.totalorder %s82, 1
      %p787 = scmp.ne.s32.totalorder %s782, %s784
      %p788 = scmp.eq.s32.totalorder %s82, 0
      %p789 = por %p787, %p788
      %p790 = scmp.ne.s32.totalorder %s782, %s784
      %p791 = scmp.eq.s32.totalorder %s87, 1
      %p792 = por %p790, %p791
      %p793 = scmp.ne.s32.totalorder %s784, %s785
      %p794 = scmp.eq.s32.totalorder %s87, 0
      %p795 = por %p793, %p794
      %p796 = scmp.ne.s32.totalorder %s784, %s785
      %p797 = scmp.eq.s32.totalorder %s88, 1
      %p798 = por %p796, %p797
      %p800 = scmp.ne.s32.totalorder %s785, %s799
      %p801 = scmp.eq.s32.totalorder %s88, 0
      %p802 = por %p800, %p801
      %s804 = sadd.s32 %s803, 1
      %p807 = scmp.eq.s32.totalorder %s82, 1
      %p808 = scmp.ne.s32.totalorder %s803, %s805
      %p809 = scmp.eq.s32.totalorder %s82, 0
      %p810 = por %p808, %p809
      %p811 = scmp.ne.s32.totalorder %s803, %s805
      %p812 = scmp.eq.s32.totalorder %s87, 1
      %p813 = por %p811, %p812
      %p814 = scmp.ne.s32.totalorder %s805, %s806
      %p815 = scmp.eq.s32.totalorder %s87, 0
      %p816 = por %p814, %p815
      %p817 = scmp.ne.s32.totalorder %s805, %s806
      %p818 = scmp.eq.s32.totalorder %s88, 1
      %p819 = por %p817, %p818
      %p821 = scmp.ne.s32.totalorder %s806, %s820
      %p822 = scmp.eq.s32.totalorder %s88, 0
      %p823 = por %p821, %p822
      %s825 = sadd.s32 %s824, 1
      %p828 = scmp.eq.s32.totalorder %s82, 1
      %p829 = scmp.ne.s32.totalorder %s824, %s826
      %p830 = scmp.eq.s32.totalorder %s82, 0
      %p831 = por %p829, %p830
      %p832 = scmp.ne.s32.totalorder %s824, %s826
      %p833 = scmp.eq.s32.totalorder %s87, 1
      %p834 = por %p832, %p833
      %p835 = scmp.ne.s32.totalorder %s826, %s827
      %p836 = scmp.eq.s32.totalorder %s87, 0
      %p837 = por %p835, %p836
      %p838 = scmp.ne.s32.totalorder %s826, %s827
      %p839 = scmp.eq.s32.totalorder %s88, 1
      %p840 = por %p838, %p839
      %p842 = scmp.ne.s32.totalorder %s827, %s841
      %p843 = scmp.eq.s32.totalorder %s88, 0
      %p844 = por %p842, %p843
      %s846 = sadd.s32 %s845, 1
      %p849 = scmp.eq.s32.totalorder %s82, 1
      %p850 = scmp.ne.s32.totalorder %s845, %s847
      %p851 = scmp.eq.s32.totalorder %s82, 0
      %p852 = por %p850, %p851
      %p853 = scmp.ne.s32.totalorder %s845, %s847
      %p854 = scmp.eq.s32.totalorder %s87, 1
      %p855 = por %p853, %p854
      %p856 = scmp.ne.s32.totalorder %s847, %s848
      %p857 = scmp.eq.s32.totalorder %s87, 0
      %p858 = por %p856, %p857
      %p859 = scmp.ne.s32.totalorder %s847, %s848
      %p860 = scmp.eq.s32.totalorder %s88, 1
      %p861 = por %p859, %p860
      %p863 = scmp.ne.s32.totalorder %s848, %s862
      %p864 = scmp.eq.s32.totalorder %s88, 0
      %p865 = por %p863, %p864
      %s866 = ssub.s32 %s82, %s89
      %p867 = scmp.eq.s32.totalorder %s866, 0
      %s869 = sadd.s32 %s868, 1
      %s870 = scalar_select %p867, %s868, %s869
      %p873 = pneg %p867
      %p874 = scmp.eq.s32.totalorder %s82, 1
      %p875 = por %p873, %p874
      %p876 = scmp.ne.s32.totalorder %s868, %s871
      %p877 = scmp.eq.s32.totalorder %s82, 0
      %p878 = por %p876, %p877
      %p879 = scmp.ne.s32.totalorder %s868, %s871
      %p880 = scmp.eq.s32.totalorder %s87, 1
      %p881 = por %p879, %p880
      %p882 = scmp.ne.s32.totalorder %s871, %s872
      %p883 = scmp.eq.s32.totalorder %s87, 0
      %p884 = por %p882, %p883
      %p885 = scmp.ne.s32.totalorder %s871, %s872
      %p886 = scmp.eq.s32.totalorder %s88, 1
      %p887 = por %p885, %p886
      %p889 = scmp.ne.s32.totalorder %s872, %s888
      %p890 = scmp.eq.s32.totalorder %s88, 0
      %p891 = por %p889, %p890
      %p892 = scmp.le.s32.totalorder 1, %s82
      %p893 = scmp.lt.s32.totalorder %s82, 3
      %p894 = pnand %p892, %p893
      %p895 = pneg %p894
      // Predicated region
      $region9: #{transformer_forward.1} parent=5 // pred_check
        _
      $region10: #{transformer_forward.1} parent=5 // pred_check_branch
        %897 = sbr.rel (%p894) target = $region12
      $region11: #{transformer_forward.1} parent=5 // pred_region
        %s898 = ssub.s32 %s82, 1
        // Predicated region
        $region13: #{transformer_forward.1} parent=11 // pred_check
          %p899 = pneg %p207
        $region14: #{transformer_forward.1} parent=11 // pred_check_branch
          %901 = sbr.rel (%p899) target = $region16
        $region15: #{transformer_forward.1} parent=11 // pred_region
          _
        $region16: #{transformer_forward.1} parent=11 // pred_fallthru
          _
        // Predicated region
        $region17: #{transformer_forward.1} parent=11 // pred_check
          %p902 = pneg %p228
        $region18: #{transformer_forward.1} parent=11 // pred_check_branch
          %904 = sbr.rel (%p902) target = $region20
        $region19: #{transformer_forward.1} parent=11 // pred_region
          _
        $region20: #{transformer_forward.1} parent=11 // pred_fallthru
          _
        // Predicated region
        $region21: #{transformer_forward.1} parent=11 // pred_check
          %p905 = pneg %p249
        $region22: #{transformer_forward.1} parent=11 // pred_check_branch
          %907 = sbr.rel (%p905) target = $region24
        $region23: #{transformer_forward.1} parent=11 // pred_region
          _
        $region24: #{transformer_forward.1} parent=11 // pred_fallthru
          _
        // Predicated region
        $region25: #{transformer_forward.1} parent=11 // pred_check
          %p908 = pneg %p270
        $region26: #{transformer_forward.1} parent=11 // pred_check_branch
          %910 = sbr.rel (%p908) target = $region28
        $region27: #{transformer_forward.1} parent=11 // pred_region
          _
        $region28: #{transformer_forward.1} parent=11 // pred_fallthru
          _
        // Predicated region
        $region29: #{transformer_forward.1} parent=11 // pred_check
          %p911 = pneg %p291
        $region30: #{transformer_forward.1} parent=11 // pred_check_branch
          %913 = sbr.rel (%p911) target = $region32
        $region31: #{transformer_forward.1} parent=11 // pred_region
          _
        $region32: #{transformer_forward.1} parent=11 // pred_fallthru
          _
        // Predicated region
        $region33: #{transformer_forward.1} parent=11 // pred_check
          %p914 = pneg %p312
        $region34: #{transformer_forward.1} parent=11 // pred_check_branch
          %916 = sbr.rel (%p914) target = $region36
        $region35: #{transformer_forward.1} parent=11 // pred_region
          _
        $region36: #{transformer_forward.1} parent=11 // pred_fallthru
          _
        // Predicated region
        $region37: #{transformer_forward.1} parent=11 // pred_check
          %p917 = pneg %p333
        $region38: #{transformer_forward.1} parent=11 // pred_check_branch
          %919 = sbr.rel (%p917) target = $region40
        $region39: #{transformer_forward.1} parent=11 // pred_region
          _
        $region40: #{transformer_forward.1} parent=11 // pred_fallthru
          _
        // Predicated region
        $region41: #{transformer_forward.1} parent=11 // pred_check
          %p920 = pneg %p354
        $region42: #{transformer_forward.1} parent=11 // pred_check_branch
          %922 = sbr.rel (%p920) target = $region44
        $region43: #{transformer_forward.1} parent=11 // pred_region
          _
        $region44: #{transformer_forward.1} parent=11 // pred_fallthru
          _
        // Predicated region
        $region45: #{transformer_forward.1} parent=11 // pred_check
          %p923 = pneg %p375
        $region46: #{transformer_forward.1} parent=11 // pred_check_branch
          %925 = sbr.rel (%p923) target = $region48
        $region47: #{transformer_forward.1} parent=11 // pred_region
          _
        $region48: #{transformer_forward.1} parent=11 // pred_fallthru
          _
        // Predicated region
        $region49: #{transformer_forward.1} parent=11 // pred_check
          %p926 = pneg %p396
        $region50: #{transformer_forward.1} parent=11 // pred_check_branch
          %928 = sbr.rel (%p926) target = $region52
        $region51: #{transformer_forward.1} parent=11 // pred_region
          _
        $region52: #{transformer_forward.1} parent=11 // pred_fallthru
          _
        // Predicated region
        $region53: #{transformer_forward.1} parent=11 // pred_check
          %p929 = pneg %p417
        $region54: #{transformer_forward.1} parent=11 // pred_check_branch
          %931 = sbr.rel (%p929) target = $region56
        $region55: #{transformer_forward.1} parent=11 // pred_region
          _
        $region56: #{transformer_forward.1} parent=11 // pred_fallthru
          _
        // Predicated region
        $region57: #{transformer_forward.1} parent=11 // pred_check
          %p932 = pneg %p438
        $region58: #{transformer_forward.1} parent=11 // pred_check_branch
          %934 = sbr.rel (%p932) target = $region60
        $region59: #{transformer_forward.1} parent=11 // pred_region
          _
        $region60: #{transformer_forward.1} parent=11 // pred_fallthru
          _
        // Predicated region
        $region61: #{transformer_forward.1} parent=11 // pred_check
          %p935 = pneg %p459
        $region62: #{transformer_forward.1} parent=11 // pred_check_branch
          %937 = sbr.rel (%p935) target = $region64
        $region63: #{transformer_forward.1} parent=11 // pred_region
          _
        $region64: #{transformer_forward.1} parent=11 // pred_fallthru
          _
        // Predicated region
        $region65: #{transformer_forward.1} parent=11 // pred_check
          %p938 = pneg %p480
        $region66: #{transformer_forward.1} parent=11 // pred_check_branch
          %940 = sbr.rel (%p938) target = $region68
        $region67: #{transformer_forward.1} parent=11 // pred_region
          _
        $region68: #{transformer_forward.1} parent=11 // pred_fallthru
          _
        // Predicated region
        $region69: #{transformer_forward.1} parent=11 // pred_check
          %p941 = pneg %p501
        $region70: #{transformer_forward.1} parent=11 // pred_check_branch
          %943 = sbr.rel (%p941) target = $region72
        $region71: #{transformer_forward.1} parent=11 // pred_region
          _
        $region72: #{transformer_forward.1} parent=11 // pred_fallthru
          _
        // Predicated region
        $region73: #{transformer_forward.1} parent=11 // pred_check
          %p944 = pneg %p522
        $region74: #{transformer_forward.1} parent=11 // pred_check_branch
          %946 = sbr.rel (%p944) target = $region76
        $region75: #{transformer_forward.1} parent=11 // pred_region
          _
        $region76: #{transformer_forward.1} parent=11 // pred_fallthru
          _
        // Predicated region
        $region77: #{transformer_forward.1} parent=11 // pred_check
          %p947 = pneg %p543
        $region78: #{transformer_forward.1} parent=11 // pred_check_branch
          %949 = sbr.rel (%p947) target = $region80
        $region79: #{transformer_forward.1} parent=11 // pred_region
          _
        $region80: #{transformer_forward.1} parent=11 // pred_fallthru
          _
        // Predicated region
        $region81: #{transformer_forward.1} parent=11 // pred_check
          %p950 = pneg %p564
        $region82: #{transformer_forward.1} parent=11 // pred_check_branch
          %952 = sbr.rel (%p950) target = $region84
        $region83: #{transformer_forward.1} parent=11 // pred_region
          _
        $region84: #{transformer_forward.1} parent=11 // pred_fallthru
          _
        // Predicated region
        $region85: #{transformer_forward.1} parent=11 // pred_check
          %p953 = pneg %p585
        $region86: #{transformer_forward.1} parent=11 // pred_check_branch
          %955 = sbr.rel (%p953) target = $region88
        $region87: #{transformer_forward.1} parent=11 // pred_region
          _
        $region88: #{transformer_forward.1} parent=11 // pred_fallthru
          _
        // Predicated region
        $region89: #{transformer_forward.1} parent=11 // pred_check
          %p956 = pneg %p606
        $region90: #{transformer_forward.1} parent=11 // pred_check_branch
          %958 = sbr.rel (%p956) target = $region92
        $region91: #{transformer_forward.1} parent=11 // pred_region
          _
        $region92: #{transformer_forward.1} parent=11 // pred_fallthru
          _
        // Predicated region
        $region93: #{transformer_forward.1} parent=11 // pred_check
          %p959 = pneg %p627
        $region94: #{transformer_forward.1} parent=11 // pred_check_branch
          %961 = sbr.rel (%p959) target = $region96
        $region95: #{transformer_forward.1} parent=11 // pred_region
          _
        $region96: #{transformer_forward.1} parent=11 // pred_fallthru
          _
        // Predicated region
        $region97: #{transformer_forward.1} parent=11 // pred_check
          %p962 = pneg %p648
        $region98: #{transformer_forward.1} parent=11 // pred_check_branch
          %964 = sbr.rel (%p962) target = $region100
        $region99: #{transformer_forward.1} parent=11 // pred_region
          _
        $region100: #{transformer_forward.1} parent=11 // pred_fallthru
          _
        // Predicated region
        $region101: #{transformer_forward.1} parent=11 // pred_check
          %p965 = pneg %p669
        $region102: #{transformer_forward.1} parent=11 // pred_check_branch
          %967 = sbr.rel (%p965) target = $region104
        $region103: #{transformer_forward.1} parent=11 // pred_region
          _
        $region104: #{transformer_forward.1} parent=11 // pred_fallthru
          _
        // Predicated region
        $region105: #{transformer_forward.1} parent=11 // pred_check
          %p968 = pneg %p690
        $region106: #{transformer_forward.1} parent=11 // pred_check_branch
          %970 = sbr.rel (%p968) target = $region108
        $region107: #{transformer_forward.1} parent=11 // pred_region
          _
        $region108: #{transformer_forward.1} parent=11 // pred_fallthru
          _
        // Predicated region
        $region109: #{transformer_forward.1} parent=11 // pred_check
          %p971 = pneg %p711
        $region110: #{transformer_forward.1} parent=11 // pred_check_branch
          %973 = sbr.rel (%p971) target = $region112
        $region111: #{transformer_forward.1} parent=11 // pred_region
          _
        $region112: #{transformer_forward.1} parent=11 // pred_fallthru
          _
        // Predicated region
        $region113: #{transformer_forward.1} parent=11 // pred_check
          %p974 = pneg %p732
        $region114: #{transformer_forward.1} parent=11 // pred_check_branch
          %976 = sbr.rel (%p974) target = $region116
        $region115: #{transformer_forward.1} parent=11 // pred_region
          _
        $region116: #{transformer_forward.1} parent=11 // pred_fallthru
          _
        // Predicated region
        $region117: #{transformer_forward.1} parent=11 // pred_check
          %p977 = pneg %p753
        $region118: #{transformer_forward.1} parent=11 // pred_check_branch
          %979 = sbr.rel (%p977) target = $region120
        $region119: #{transformer_forward.1} parent=11 // pred_region
          _
        $region120: #{transformer_forward.1} parent=11 // pred_fallthru
          _
        // Predicated region
        $region121: #{transformer_forward.1} parent=11 // pred_check
          %p980 = pneg %p774
        $region122: #{transformer_forward.1} parent=11 // pred_check_branch
          %982 = sbr.rel (%p980) target = $region124
        $region123: #{transformer_forward.1} parent=11 // pred_region
          _
        $region124: #{transformer_forward.1} parent=11 // pred_fallthru
          _
        // Predicated region
        $region125: #{transformer_forward.1} parent=11 // pred_check
          %p983 = pneg %p795
        $region126: #{transformer_forward.1} parent=11 // pred_check_branch
          %985 = sbr.rel (%p983) target = $region128
        $region127: #{transformer_forward.1} parent=11 // pred_region
          _
        $region128: #{transformer_forward.1} parent=11 // pred_fallthru
          _
        // Predicated region
        $region129: #{transformer_forward.1} parent=11 // pred_check
          %p986 = pneg %p816
        $region130: #{transformer_forward.1} parent=11 // pred_check_branch
          %988 = sbr.rel (%p986) target = $region132
        $region131: #{transformer_forward.1} parent=11 // pred_region
          _
        $region132: #{transformer_forward.1} parent=11 // pred_fallthru
          _
        // Predicated region
        $region133: #{transformer_forward.1} parent=11 // pred_check
          %p989 = pneg %p837
        $region134: #{transformer_forward.1} parent=11 // pred_check_branch
          %991 = sbr.rel (%p989) target = $region136
        $region135: #{transformer_forward.1} parent=11 // pred_region
          _
        $region136: #{transformer_forward.1} parent=11 // pred_fallthru
          _
        // Predicated region
        $region137: #{transformer_forward.1} parent=11 // pred_check
          %p992 = pneg %p858
        $region138: #{transformer_forward.1} parent=11 // pred_check_branch
          %994 = sbr.rel (%p992) target = $region140
        $region139: #{transformer_forward.1} parent=11 // pred_region
          _
        $region140: #{transformer_forward.1} parent=11 // pred_fallthru
          _
      $region12: #{transformer_forward.1} parent=5 // pred_fallthru
        _
      %p995 = scmp.lt.s32.totalorder %s82, 2
      // Predicated region
      $region141: #{transformer_forward.1} parent=5 // pred_check
        %p996 = pneg %p995
      $region142: #{transformer_forward.1} parent=5 // pred_check_branch
        %998 = sbr.rel (%p996) target = $region144
      $region143: #{transformer_forward.1} parent=5 // pred_region
        // Predicated region
        $region145: #{transformer_forward.1} parent=143 // pred_check
          %p999 = pneg %p102
        $region146: #{transformer_forward.1} parent=143 // pred_check_branch
          %1001 = sbr.rel (%p999) target = $region148
        $region147: #{transformer_forward.1} parent=143 // pred_region
          %p1002 = scmp.lt.s32.totalorder %s82, 1
          %s1003 = scalar_select %p1002, %s82, 1
          %s1004 = smul.addr %s1003, 2
          %s1005 = smul.addr %s1004, 8
          %s1006 = scalar_lea.vmem %s1, %s1005
        $region148: #{transformer_forward.1} parent=143 // pred_fallthru
          _
        // Predicated region
        $region149: #{transformer_forward.1} parent=143 // pred_check
          %p1007 = pneg %p128
        $region150: #{transformer_forward.1} parent=143 // pred_check_branch
          %1009 = sbr.rel (%p1007) target = $region152
        $region151: #{transformer_forward.1} parent=143 // pred_region
          %p1010 = scmp.lt.s32.totalorder %s82, 1
          %s1011 = scalar_select %p1010, %s82, 1
          %s1012 = smul.addr %s1011, 2
          %s1013 = smul.addr %s1012, 8
          %s1014 = scalar_lea.vmem %s3, %s1013
        $region152: #{transformer_forward.1} parent=143 // pred_fallthru
          _
        // Predicated region
        $region153: #{transformer_forward.1} parent=143 // pred_check
          %p1015 = pneg %p154
        $region154: #{transformer_forward.1} parent=143 // pred_check_branch
          %1017 = sbr.rel (%p1015) target = $region156
        $region155: #{transformer_forward.1} parent=143 // pred_region
          %p1018 = scmp.lt.s32.totalorder %s82, 1
          %s1019 = scalar_select %p1018, %s82, 1
          %s1020 = smul.addr %s1019, 8
          %s1021 = scalar_lea.vmem %s5, %s1020
        $region156: #{transformer_forward.1} parent=143 // pred_fallthru
          _
        // Predicated region
        $region157: #{transformer_forward.1} parent=143 // pred_check
          %p1022 = pneg %p180
        $region158: #{transformer_forward.1} parent=143 // pred_check_branch
          %1024 = sbr.rel (%p1022) target = $region160
        $region159: #{transformer_forward.1} parent=143 // pred_region
          %p1025 = scmp.lt.s32.totalorder %s82, 1
          %s1026 = scalar_select %p1025, %s82, 1
          %s1027 = scalar_lea.vmem %s7, %s1026
        $region160: #{transformer_forward.1} parent=143 // pred_fallthru
          _
      $region144: #{transformer_forward.1} parent=5 // pred_fallthru
        _
      %p1028 = scmp.le.s32.totalorder 1, %s82
      %p1029 = scmp.lt.s32.totalorder %s82, 3
      %p1030 = pnand %p1028, %p1029
      %p1031 = pneg %p1030
      // Predicated region
      $region161: #{transformer_forward.1} parent=5 // pred_check
        _
      $region162: #{transformer_forward.1} parent=5 // pred_check_branch
        %1033 = sbr.rel (%p1030) target = $region164
      $region163: #{transformer_forward.1} parent=5 // pred_region
        %s1034 = ssub.s32 %s82, 1
        %p1035 = scmp.lt.s32.totalorder %s87, 1
        %s1036 = scalar_select %p1035, %s87, 1
        %s1037 = smul.addr %s1036, 2
        %s1038 = smul.addr %s1037, 8
        %s1039 = scalar_lea.vmem %s1, %s1038
        %p1040 = pneg %p108
        %p1041 = pneg %p105
        %p1042 = scmp.lt.s32.totalorder %s87, 1
        %s1043 = scalar_select %p1042, %s87, 1
        %s1044 = smul.addr %s1043, 2
        %s1045 = smul.addr %s1044, 8
        %s1046 = scalar_lea.vmem %s3, %s1045
        %p1047 = pneg %p134
        %p1048 = pneg %p131
        %p1049 = scmp.lt.s32.totalorder %s87, 1
        %s1050 = scalar_select %p1049, %s87, 1
        %s1051 = smul.addr %s1050, 8
        %s1052 = scalar_lea.vmem %s5, %s1051
        %p1053 = pneg %p160
        %p1054 = pneg %p157
        %p1055 = scmp.lt.s32.totalorder %s87, 1
        %s1056 = scalar_select %p1055, %s87, 1
        %s1057 = scalar_lea.vmem %s7, %s1056
        %p1058 = pneg %p186
        %p1059 = pneg %p183
        %p1060 = pneg %p207
        %p1061 = pneg %p204
        %p1062 = pneg %p228
        %p1063 = pneg %p225
        %p1064 = pneg %p249
        %p1065 = pneg %p246
        %p1066 = pneg %p270
        %p1067 = pneg %p267
        %p1068 = pneg %p291
        %p1069 = pneg %p288
        %p1070 = pneg %p312
        %p1071 = pneg %p309
        %p1072 = pneg %p333
        %p1073 = pneg %p330
        %p1074 = pneg %p354
        %p1075 = pneg %p351
        %p1076 = pneg %p375
        %p1077 = pneg %p372
        %p1078 = pneg %p396
        %p1079 = pneg %p393
        %p1080 = pneg %p417
        %p1081 = pneg %p414
        %p1082 = pneg %p438
        %p1083 = pneg %p435
        %p1084 = pneg %p459
        %p1085 = pneg %p456
        %p1086 = pneg %p480
        %p1087 = pneg %p477
        %p1088 = pneg %p501
        %p1089 = pneg %p498
        %p1090 = pneg %p522
        %p1091 = pneg %p519
        %p1092 = pneg %p543
        %p1093 = pneg %p540
        %p1094 = pneg %p564
        %p1095 = pneg %p561
        %p1096 = pneg %p585
        %p1097 = pneg %p582
        %p1098 = pneg %p606
        %p1099 = pneg %p603
        %p1100 = pneg %p627
        %p1101 = pneg %p624
        %p1102 = pneg %p648
        %p1103 = pneg %p645
        %p1104 = pneg %p669
        %p1105 = pneg %p666
        %p1106 = pneg %p690
        %p1107 = pneg %p687
        %p1108 = pneg %p711
        %p1109 = pneg %p708
        %p1110 = pneg %p732
        %p1111 = pneg %p729
        %p1112 = pneg %p753
        %p1113 = pneg %p750
        %p1114 = pneg %p774
        %p1115 = pneg %p771
        %p1116 = pneg %p795
        %p1117 = pneg %p792
        %p1118 = pneg %p816
        %p1119 = pneg %p813
        %p1120 = pneg %p837
        %p1121 = pneg %p834
        %p1122 = pneg %p858
        %p1123 = pneg %p855
        %p1124 = pneg %p884
        %p1125 = pneg %p881
        %s1126 = sand.u32 %s871, 1
        %s1127 = scalar_lea.sflag [#allocation3], %s1126
        %s1128 = sand.u32 %s871, 1
        %s1129 = smul.addr %s1128, 8
        %s1130 = scalar_lea.vmem [#allocation2], %s1129
        %p1131 = scmp.lt.s32.totalorder %s87, 1
        %s1132 = scalar_select %p1131, %s87, 1
        %s1133 = smul.addr %s1132, 2
        %s1134 = smul.addr %s1133, 8
        %s1135 = scalar_lea.vmem %s1, %s1134
        %p1136 = scmp.lt.s32.totalorder %s87, 1
        %s1137 = scalar_select %p1136, %s87, 1
        %s1138 = smul.addr %s1137, 2
        %s1139 = smul.addr %s1138, 8
        %s1140 = scalar_lea.vmem %s3, %s1139
        %p1141 = scmp.lt.s32.totalorder %s87, 1
        %s1142 = scalar_select %p1141, %s87, 1
        %s1143 = smul.addr %s1142, 8
        %s1144 = scalar_lea.vmem %s5, %s1143
        %p1145 = scmp.lt.s32.totalorder %s87, 1
        %s1146 = scalar_select %p1145, %s87, 1
        %s1147 = scalar_lea.vmem %s7, %s1146
        %v1149 = vld [vmem:[%s1135] sm:$0xff]
        %v1150 = vld [vmem:[%s1135 + $0x8] sm:$0xff]
        %v1151 = vld [vmem:[%s1140] sm:$0xff]
        %v1152 = vld [vmem:[%s1140 + $0x8] sm:$0xff]
        %v1153 = vld [vmem:[%s1144] sm:$0xff]
        %v1154 = vld [vmem:[%s1147] sm:$0x1]
        %v1155 = vadd.f32 %v1149, %v1151
        %v1156 = vadd.f32 %v1150, %v1152
        %v1157 = vld [vmem:[%s9] sm:$0xf]
        %v1158 = vld [vmem:[%s9 + $0x4] sm:$0xf]
        %v1159 = vld [vmem:[%s9 + $0x8] sm:$0xf]
        %v1160 = vld [vmem:[%s9 + $0xc] sm:$0xf]
        %v1161 = vld [vmem:[%s11] sm:$0x1]
        %v1162 = vld [vmem:[%s13] sm:$0xf]
        %v1163 = vld [vmem:[%s13 + $0x4] sm:$0xf]
        %v1164 = vld [vmem:[%s13 + $0x8] sm:$0xf]
        %v1165 = vld [vmem:[%s13 + $0xc] sm:$0xf]
        %v1166 = vld [vmem:[%s15] sm:$0x1]
        %v1167 = vpack.c.bf16 %v1156, %v1155
        %v1168 = vpack.c.bf16 %v1150, %v1149
        %v1170 = vperm.slane %v1161, 0
        %v1176 = vunpack.c.l.b16 %v1157
        %v1177 = vunpack.c.l.b16 %v1158
        %v1178 = vunpack.c.l.b16 %v1159
        %v1179 = vunpack.c.l.b16 %v1160
        %v1180 = vpack.c.b16 %v1177, %v1176
        %v1181 = vpack.c.b16 %v1179, %v1178
        %vm1184 = vcmask 261120
        %v1186 = vsel %vm1184, %v1167, 0
        %1188 = vmatpush.bf16.msra.mxu0 0
        %1189 = vmatpush.bf16.msra.mxu0 0
        %1190 = vmatpush.bf16.msra.mxu0 0
        %1191 = vmatpush.bf16.msra.mxu0 0
        %1192 = vmatpush.bf16.msra.mxu0 0
        %1193 = vmatpush.bf16.msra.mxu0 0
        %1194 = vmatpush.bf16.msra.mxu0 %v1181
        %1195 = vmatpush.bf16.msra.mxu0 %v1180
        %1196 = vmatmul.bf16.gmra.mxu0 %v1186
        %v1197 = vpop.f32.mrf.mxu0
        %v1198 = vadd.f32 %v1170, %v1197
        %v1199 = vpop.f32.mrf.mxu0
        %v1200 = vadd.f32 %v1170, %v1199
        %1201 = vdwg.mxu0
        %1202 = vrot.lane.b32.xlu0 %v1180, 64
        %v1203 = vpop.permute.xlu0 %1202
        %1204 = vrot.lane.b32.xlu0 %v1181, 64
        %v1205 = vpop.permute.xlu0 %1204
        %1208 = vrot.lane.b32.xlu0 %v1170, 64
        %v1209 = vpop.permute.xlu0 %1208
        %v1212 = vsel %vm1184, %v1168, 0
        %1214 = vmatpush.bf16.msra.mxu0 0
        %1215 = vmatpush.bf16.msra.mxu0 0
        %1216 = vmatpush.bf16.msra.mxu0 0
        %1217 = vmatpush.bf16.msra.mxu0 0
        %1218 = vmatpush.bf16.msra.mxu0 0
        %1219 = vmatpush.bf16.msra.mxu0 0
        %1220 = vmatpush.bf16.msra.mxu0 %v1205
        %1221 = vmatpush.bf16.msra.mxu0 %v1203
        %1222 = vmatmul.bf16.gmra.mxu0 %v1212
        %v1223 = vpop.f32.mrf.mxu0
        %v1224 = vadd.f32 %v1209, %v1223
        %v1225 = vpop.f32.mrf.mxu0
        %v1226 = vadd.f32 %v1209, %v1225
        %1227 = vdwg.mxu0
        %1230 = vrot.lane.b32.xlu0 %v1198, 120
        %v1231 = vpop.permute.xlu0 %1230
        %1232 = vrot.lane.b32.xlu0 %v1200, 120
        %v1233 = vpop.permute.xlu0 %1232
        %1236 = vrot.lane.b32.xlu0 %v1198, 112
        %v1237 = vpop.permute.xlu0 %1236
        %1238 = vrot.lane.b32.xlu0 %v1200, 112
        %v1239 = vpop.permute.xlu0 %1238
        %1242 = vrot.lane.b32.xlu0 %v1198, 104
        %v1243 = vpop.permute.xlu0 %1242
        %1244 = vrot.lane.b32.xlu0 %v1200, 104
        %v1245 = vpop.permute.xlu0 %1244
        %v1248 = vrot.slane %v1237, 4
        %vm1249 = vcmask 1047556
        %v1250 = vsel %vm1249, %v1248, %v1198
        %v1251 = vrot.slane %v1198, 4
        %v1252 = vsel %vm1249, %v1237, %v1251
        %v1254 = vunpack.c.l.s4 1983009808
        %v1255 = vunpack.c.0.s8 %v1254
        %v1256 = vperm.slane %v1250, %v1255
        %v1258 = vunpack.c.l.s4 1983009808
        %v1259 = vunpack.c.0.s8 %v1258
        %v1260 = vperm.slane %v1252, %v1259
        %v1261 = vrot.slane %v1243, 4
        %v1262 = vsel %vm1249, %v1261, %v1231
        %v1263 = vrot.slane %v1231, 4
        %v1264 = vsel %vm1249, %v1243, %v1263
        %v1266 = vunpack.c.l.s4 1983009808
        %v1267 = vunpack.c.0.s8 %v1266
        %v1268 = vperm.slane %v1262, %v1267
        %v1270 = vunpack.c.l.s4 1983009808
        %v1271 = vunpack.c.0.s8 %v1270
        %v1272 = vperm.slane %v1264, %v1271
        %v1273 = vrot.slane %v1268, 4
        %v1274 = vsel %vm1249, %v1273, %v1256
        %v1275 = vrot.slane %v1256, 4
        %v1276 = vsel %vm1249, %v1268, %v1275
        %v1278 = vunpack.c.l.s4 1934713408
        %v1279 = vunpack.c.0.s8 %v1278
        %v1280 = vperm.slane %v1274, %v1279
        %v1282 = vunpack.c.l.s4 1934713408
        %v1283 = vunpack.c.0.s8 %v1282
        %v1284 = vperm.slane %v1276, %v1283
        %v1285 = vrot.slane %v1272, 4
        %v1286 = vsel %vm1249, %v1285, %v1260
        %v1287 = vrot.slane %v1260, 4
        %v1288 = vsel %vm1249, %v1272, %v1287
        %v1290 = vunpack.c.l.s4 1934713408
        %v1291 = vunpack.c.0.s8 %v1290
        %v1292 = vperm.slane %v1286, %v1291
        %v1294 = vunpack.c.l.s4 1934713408
        %v1295 = vunpack.c.0.s8 %v1294
        %v1296 = vperm.slane %v1288, %v1295
        %v1297 = vrot.slane %v1280, 4
        %v1298 = vsel %vm1249, 0.0, %v1297
        %v1299 = vrot.slane %v1284, 4
        %v1300 = vsel %vm1249, 0.0, %v1299
        %v1301 = vrot.slane %v1292, 4
        %v1302 = vsel %vm1249, 0.0, %v1301
        %v1303 = vrot.slane %v1296, 4
        %v1304 = vsel %vm1249, 0.0, %v1303
        %v1305 = vrot.slane %v1239, 4
        %v1306 = vsel %vm1249, %v1305, %v1200
        %v1307 = vrot.slane %v1200, 4
        %v1308 = vsel %vm1249, %v1239, %v1307
        %v1310 = vunpack.c.l.s4 1983009808
        %v1311 = vunpack.c.0.s8 %v1310
        %v1312 = vperm.slane %v1306, %v1311
        %v1314 = vunpack.c.l.s4 1983009808
        %v1315 = vunpack.c.0.s8 %v1314
        %v1316 = vperm.slane %v1308, %v1315
        %v1317 = vrot.slane %v1245, 4
        %v1318 = vsel %vm1249, %v1317, %v1233
        %v1319 = vrot.slane %v1233, 4
        %v1320 = vsel %vm1249, %v1245, %v1319
        %v1322 = vunpack.c.l.s4 1983009808
        %v1323 = vunpack.c.0.s8 %v1322
        %v1324 = vperm.slane %v1318, %v1323
        %v1326 = vunpack.c.l.s4 1983009808
        %v1327 = vunpack.c.0.s8 %v1326
        %v1328 = vperm.slane %v1320, %v1327
        %v1329 = vrot.slane %v1324, 4
        %v1330 = vsel %vm1249, %v1329, %v1312
        %v1331 = vrot.slane %v1312, 4
        %v1332 = vsel %vm1249, %v1324, %v1331
        %v1334 = vunpack.c.l.s4 1934713408
        %v1335 = vunpack.c.0.s8 %v1334
        %v1336 = vperm.slane %v1330, %v1335
        %v1338 = vunpack.c.l.s4 1934713408
        %v1339 = vunpack.c.0.s8 %v1338
        %v1340 = vperm.slane %v1332, %v1339
        %v1341 = vrot.slane %v1328, 4
        %v1342 = vsel %vm1249, %v1341, %v1316
        %v1343 = vrot.slane %v1316, 4
        %v1344 = vsel %vm1249, %v1328, %v1343
        %v1346 = vunpack.c.l.s4 1934713408
        %v1347 = vunpack.c.0.s8 %v1346
        %v1348 = vperm.slane %v1342, %v1347
        %v1350 = vunpack.c.l.s4 1934713408
        %v1351 = vunpack.c.0.s8 %v1350
        %v1352 = vperm.slane %v1344, %v1351
        %v1353 = vrot.slane %v1336, 4
        %v1354 = vsel %vm1249, 0.0, %v1353
        %v1355 = vrot.slane %v1340, 4
        %v1356 = vsel %vm1249, 0.0, %v1355
        %v1357 = vrot.slane %v1348, 4
        %v1358 = vsel %vm1249, 0.0, %v1357
        %v1359 = vrot.slane %v1352, 4
        %v1360 = vsel %vm1249, 0.0, %v1359
        %v1361 = vsel %vm1249, %v1299, %v1280
        %v1363 = vunpack.c.l.s4 1983009808
        %v1364 = vunpack.c.0.s8 %v1363
        %v1365 = vperm.slane %v1361, %v1364
        %v1366 = vrot.slane %v1300, 4
        %v1367 = vsel %vm1249, %v1366, %v1298
        %v1369 = vunpack.c.l.s4 1983009808
        %v1370 = vunpack.c.0.s8 %v1369
        %v1371 = vperm.slane %v1367, %v1370
        %v1372 = vsel %vm1249, %v1303, %v1292
        %v1374 = vunpack.c.l.s4 1983009808
        %v1375 = vunpack.c.0.s8 %v1374
        %v1376 = vperm.slane %v1372, %v1375
        %v1377 = vrot.slane %v1304, 4
        %v1378 = vsel %vm1249, %v1377, %v1302
        %v1380 = vunpack.c.l.s4 1983009808
        %v1381 = vunpack.c.0.s8 %v1380
        %v1382 = vperm.slane %v1378, %v1381
        %v1383 = vrot.slane %v1371, 4
        %v1384 = vsel %vm1249, %v1383, %v1365
        %v1385 = vrot.slane %v1365, 4
        %v1386 = vsel %vm1249, %v1371, %v1385
        %v1388 = vunpack.c.l.s4 1934713408
        %v1389 = vunpack.c.0.s8 %v1388
        %v1390 = vperm.slane %v1384, %v1389
        %v1392 = vunpack.c.l.s4 1934713408
        %v1393 = vunpack.c.0.s8 %v1392
        %v1394 = vperm.slane %v1386, %v1393
        %v1395 = vrot.slane %v1382, 4
        %v1396 = vsel %vm1249, %v1395, %v1376
        %v1397 = vrot.slane %v1376, 4
        %v1398 = vsel %vm1249, %v1382, %v1397
        %v1400 = vunpack.c.l.s4 1934713408
        %v1401 = vunpack.c.0.s8 %v1400
        %v1402 = vperm.slane %v1396, %v1401
        %v1404 = vunpack.c.l.s4 1934713408
        %v1405 = vunpack.c.0.s8 %v1404
        %v1406 = vperm.slane %v1398, %v1405
        %v1407 = vrot.slane %v1402, 4
        %v1408 = vsel %vm1249, %v1407, %v1390
        %v1409 = vrot.slane %v1390, 4
        %v1410 = vsel %vm1249, %v1402, %v1409
        %v1411 = vrot.slane %v1406, 4
        %v1412 = vsel %vm1249, %v1411, %v1394
        %v1413 = vrot.slane %v1394, 4
        %v1414 = vsel %vm1249, %v1406, %v1413
        %v1415 = vsel %vm1249, %v1355, %v1336
        %v1417 = vunpack.c.l.s4 1983009808
        %v1418 = vunpack.c.0.s8 %v1417
        %v1419 = vperm.slane %v1415, %v1418
        %v1420 = vrot.slane %v1356, 4
        %v1421 = vsel %vm1249, %v1420, %v1354
        %v1423 = vunpack.c.l.s4 1983009808
        %v1424 = vunpack.c.0.s8 %v1423
        %v1425 = vperm.slane %v1421, %v1424
        %v1426 = vsel %vm1249, %v1359, %v1348
        %v1428 = vunpack.c.l.s4 1983009808
        %v1429 = vunpack.c.0.s8 %v1428
        %v1430 = vperm.slane %v1426, %v1429
        %v1431 = vrot.slane %v1360, 4
        %v1432 = vsel %vm1249, %v1431, %v1358
        %v1434 = vunpack.c.l.s4 1983009808
        %v1435 = vunpack.c.0.s8 %v1434
        %v1436 = vperm.slane %v1432, %v1435
        %v1437 = vrot.slane %v1425, 4
        %v1438 = vsel %vm1249, %v1437, %v1419
        %v1439 = vrot.slane %v1419, 4
        %v1440 = vsel %vm1249, %v1425, %v1439
        %v1442 = vunpack.c.l.s4 1934713408
        %v1443 = vunpack.c.0.s8 %v1442
        %v1444 = vperm.slane %v1438, %v1443
        %v1446 = vunpack.c.l.s4 1934713408
        %v1447 = vunpack.c.0.s8 %v1446
        %v1448 = vperm.slane %v1440, %v1447
        %v1449 = vrot.slane %v1436, 4
        %v1450 = vsel %vm1249, %v1449, %v1430
        %v1451 = vrot.slane %v1430, 4
        %v1452 = vsel %vm1249, %v1436, %v1451
        %v1454 = vunpack.c.l.s4 1934713408
        %v1455 = vunpack.c.0.s8 %v1454
        %v1456 = vperm.slane %v1450, %v1455
        %v1458 = vunpack.c.l.s4 1934713408
        %v1459 = vunpack.c.0.s8 %v1458
        %v1460 = vperm.slane %v1452, %v1459
        %v1461 = vrot.slane %v1456, 4
        %v1462 = vsel %vm1249, %v1461, %v1444
        %v1463 = vrot.slane %v1444, 4
        %v1464 = vsel %vm1249, %v1456, %v1463
        %v1465 = vrot.slane %v1460, 4
        %v1466 = vsel %vm1249, %v1465, %v1448
        %v1467 = vrot.slane %v1448, 4
        %v1468 = vsel %vm1249, %v1460, %v1467
        %v1469 = vpack.c.bf16 %v1408, %v1408
        %v1470 = vpack.c.bf16 %v1462, %v1462
        %v1471 = vpack.c.bf16 %v1410, %v1410
        %v1472 = vpack.c.bf16 %v1464, %v1464
        %v1473 = vpack.c.bf16 %v1412, %v1412
        %v1474 = vpack.c.bf16 %v1466, %v1466
        %v1475 = vpack.c.bf16 %v1414, %v1414
        %v1476 = vpack.c.bf16 %v1468, %v1468
        %1477 = vrot.lane.b32.xlu0 %v1198, 96
        %v1478 = vpop.permute.xlu0 %1477
        %1479 = vrot.lane.b32.xlu0 %v1200, 96
        %v1480 = vpop.permute.xlu0 %1479
        %1481 = vrot.lane.b32.xlu0 %v1231, 96
        %v1482 = vpop.permute.xlu0 %1481
        %1483 = vrot.lane.b32.xlu0 %v1233, 96
        %v1484 = vpop.permute.xlu0 %1483
        %1485 = vrot.lane.b32.xlu0 %v1237, 96
        %v1486 = vpop.permute.xlu0 %1485
        %1487 = vrot.lane.b32.xlu0 %v1239, 96
        %v1488 = vpop.permute.xlu0 %1487
        %1489 = vrot.lane.b32.xlu0 %v1243, 96
        %v1490 = vpop.permute.xlu0 %1489
        %1491 = vrot.lane.b32.xlu0 %v1245, 96
        %v1492 = vpop.permute.xlu0 %1491
        %v1501 = vrot.slane %v1486, 4
        %v1502 = vsel %vm1249, %v1501, %v1478
        %v1503 = vrot.slane %v1478, 4
        %v1504 = vsel %vm1249, %v1486, %v1503
        %v1506 = vunpack.c.l.s4 1983009808
        %v1507 = vunpack.c.0.s8 %v1506
        %v1508 = vperm.slane %v1502, %v1507
        %v1510 = vunpack.c.l.s4 1983009808
        %v1511 = vunpack.c.0.s8 %v1510
        %v1512 = vperm.slane %v1504, %v1511
        %v1513 = vrot.slane %v1490, 4
        %v1514 = vsel %vm1249, %v1513, %v1482
        %v1515 = vrot.slane %v1482, 4
        %v1516 = vsel %vm1249, %v1490, %v1515
        %v1518 = vunpack.c.l.s4 1983009808
        %v1519 = vunpack.c.0.s8 %v1518
        %v1520 = vperm.slane %v1514, %v1519
        %v1522 = vunpack.c.l.s4 1983009808
        %v1523 = vunpack.c.0.s8 %v1522
        %v1524 = vperm.slane %v1516, %v1523
        %v1525 = vrot.slane %v1520, 4
        %v1526 = vsel %vm1249, %v1525, %v1508
        %v1527 = vrot.slane %v1508, 4
        %v1528 = vsel %vm1249, %v1520, %v1527
        %v1530 = vunpack.c.l.s4 1934713408
        %v1531 = vunpack.c.0.s8 %v1530
        %v1532 = vperm.slane %v1526, %v1531
        %v1534 = vunpack.c.l.s4 1934713408
        %v1535 = vunpack.c.0.s8 %v1534
        %v1536 = vperm.slane %v1528, %v1535
        %v1537 = vrot.slane %v1524, 4
        %v1538 = vsel %vm1249, %v1537, %v1512
        %v1539 = vrot.slane %v1512, 4
        %v1540 = vsel %vm1249, %v1524, %v1539
        %v1542 = vunpack.c.l.s4 1934713408
        %v1543 = vunpack.c.0.s8 %v1542
        %v1544 = vperm.slane %v1538, %v1543
        %v1546 = vunpack.c.l.s4 1934713408
        %v1547 = vunpack.c.0.s8 %v1546
        %v1548 = vperm.slane %v1540, %v1547
        %v1549 = vrot.slane %v1532, 4
        %v1550 = vsel %vm1249, 0.0, %v1549
        %v1551 = vrot.slane %v1536, 4
        %v1552 = vsel %vm1249, 0.0, %v1551
        %v1553 = vrot.slane %v1544, 4
        %v1554 = vsel %vm1249, 0.0, %v1553
        %v1555 = vrot.slane %v1548, 4
        %v1556 = vsel %vm1249, 0.0, %v1555
        %v1557 = vrot.slane %v1488, 4
        %v1558 = vsel %vm1249, %v1557, %v1480
        %v1559 = vrot.slane %v1480, 4
        %v1560 = vsel %vm1249, %v1488, %v1559
        %v1562 = vunpack.c.l.s4 1983009808
        %v1563 = vunpack.c.0.s8 %v1562
        %v1564 = vperm.slane %v1558, %v1563
        %v1566 = vunpack.c.l.s4 1983009808
        %v1567 = vunpack.c.0.s8 %v1566
        %v1568 = vperm.slane %v1560, %v1567
        %v1569 = vrot.slane %v1492, 4
        %v1570 = vsel %vm1249, %v1569, %v1484
        %v1571 = vrot.slane %v1484, 4
        %v1572 = vsel %vm1249, %v1492, %v1571
        %v1574 = vunpack.c.l.s4 1983009808
        %v1575 = vunpack.c.0.s8 %v1574
        %v1576 = vperm.slane %v1570, %v1575
        %v1578 = vunpack.c.l.s4 1983009808
        %v1579 = vunpack.c.0.s8 %v1578
        %v1580 = vperm.slane %v1572, %v1579
        %v1581 = vrot.slane %v1576, 4
        %v1582 = vsel %vm1249, %v1581, %v1564
        %v1583 = vrot.slane %v1564, 4
        %v1584 = vsel %vm1249, %v1576, %v1583
        %v1586 = vunpack.c.l.s4 1934713408
        %v1587 = vunpack.c.0.s8 %v1586
        %v1588 = vperm.slane %v1582, %v1587
        %v1590 = vunpack.c.l.s4 1934713408
        %v1591 = vunpack.c.0.s8 %v1590
        %v1592 = vperm.slane %v1584, %v1591
        %v1593 = vrot.slane %v1580, 4
        %v1594 = vsel %vm1249, %v1593, %v1568
        %v1595 = vrot.slane %v1568, 4
        %v1596 = vsel %vm1249, %v1580, %v1595
        %v1598 = vunpack.c.l.s4 1934713408
        %v1599 = vunpack.c.0.s8 %v1598
        %v1600 = vperm.slane %v1594, %v1599
        %v1602 = vunpack.c.l.s4 1934713408
        %v1603 = vunpack.c.0.s8 %v1602
        %v1604 = vperm.slane %v1596, %v1603
        %v1605 = vrot.slane %v1588, 4
        %v1606 = vsel %vm1249, 0.0, %v1605
        %v1607 = vrot.slane %v1592, 4
        %v1608 = vsel %vm1249, 0.0, %v1607
        %v1609 = vrot.slane %v1600, 4
        %v1610 = vsel %vm1249, 0.0, %v1609
        %v1611 = vrot.slane %v1604, 4
        %v1612 = vsel %vm1249, 0.0, %v1611
        %v1613 = vsel %vm1249, %v1551, %v1532
        %v1615 = vunpack.c.l.s4 1983009808
        %v1616 = vunpack.c.0.s8 %v1615
        %v1617 = vperm.slane %v1613, %v1616
        %v1618 = vrot.slane %v1552, 4
        %v1619 = vsel %vm1249, %v1618, %v1550
        %v1621 = vunpack.c.l.s4 1983009808
        %v1622 = vunpack.c.0.s8 %v1621
        %v1623 = vperm.slane %v1619, %v1622
        %v1624 = vsel %vm1249, %v1555, %v1544
        %v1626 = vunpack.c.l.s4 1983009808
        %v1627 = vunpack.c.0.s8 %v1626
        %v1628 = vperm.slane %v1624, %v1627
        %v1629 = vrot.slane %v1556, 4
        %v1630 = vsel %vm1249, %v1629, %v1554
        %v1632 = vunpack.c.l.s4 1983009808
        %v1633 = vunpack.c.0.s8 %v1632
        %v1634 = vperm.slane %v1630, %v1633
        %v1635 = vrot.slane %v1623, 4
        %v1636 = vsel %vm1249, %v1635, %v1617
        %v1637 = vrot.slane %v1617, 4
        %v1638 = vsel %vm1249, %v1623, %v1637
        %v1640 = vunpack.c.l.s4 1934713408
        %v1641 = vunpack.c.0.s8 %v1640
        %v1642 = vperm.slane %v1636, %v1641
        %v1644 = vunpack.c.l.s4 1934713408
        %v1645 = vunpack.c.0.s8 %v1644
        %v1646 = vperm.slane %v1638, %v1645
        %v1647 = vrot.slane %v1634, 4
        %v1648 = vsel %vm1249, %v1647, %v1628
        %v1649 = vrot.slane %v1628, 4
        %v1650 = vsel %vm1249, %v1634, %v1649
        %v1652 = vunpack.c.l.s4 1934713408
        %v1653 = vunpack.c.0.s8 %v1652
        %v1654 = vperm.slane %v1648, %v1653
        %v1656 = vunpack.c.l.s4 1934713408
        %v1657 = vunpack.c.0.s8 %v1656
        %v1658 = vperm.slane %v1650, %v1657
        %v1659 = vrot.slane %v1654, 4
        %v1660 = vsel %vm1249, %v1659, %v1642
        %v1661 = vrot.slane %v1642, 4
        %v1662 = vsel %vm1249, %v1654, %v1661
        %v1663 = vrot.slane %v1658, 4
        %v1664 = vsel %vm1249, %v1663, %v1646
        %v1665 = vrot.slane %v1646, 4
        %v1666 = vsel %vm1249, %v1658, %v1665
        %v1667 = vsel %vm1249, %v1607, %v1588
        %v1669 = vunpack.c.l.s4 1983009808
        %v1670 = vunpack.c.0.s8 %v1669
        %v1671 = vperm.slane %v1667, %v1670
        %v1672 = vrot.slane %v1608, 4
        %v1673 = vsel %vm1249, %v1672, %v1606
        %v1675 = vunpack.c.l.s4 1983009808
        %v1676 = vunpack.c.0.s8 %v1675
        %v1677 = vperm.slane %v1673, %v1676
        %v1678 = vsel %vm1249, %v1611, %v1600
        %v1680 = vunpack.c.l.s4 1983009808
        %v1681 = vunpack.c.0.s8 %v1680
        %v1682 = vperm.slane %v1678, %v1681
        %v1683 = vrot.slane %v1612, 4
        %v1684 = vsel %vm1249, %v1683, %v1610
        %v1686 = vunpack.c.l.s4 1983009808
        %v1687 = vunpack.c.0.s8 %v1686
        %v1688 = vperm.slane %v1684, %v1687
        %v1689 = vrot.slane %v1677, 4
        %v1690 = vsel %vm1249, %v1689, %v1671
        %v1691 = vrot.slane %v1671, 4
        %v1692 = vsel %vm1249, %v1677, %v1691
        %v1694 = vunpack.c.l.s4 1934713408
        %v1695 = vunpack.c.0.s8 %v1694
        %v1696 = vperm.slane %v1690, %v1695
        %v1698 = vunpack.c.l.s4 1934713408
        %v1699 = vunpack.c.0.s8 %v1698
        %v1700 = vperm.slane %v1692, %v1699
        %v1701 = vrot.slane %v1688, 4
        %v1702 = vsel %vm1249, %v1701, %v1682
        %v1703 = vrot.slane %v1682, 4
        %v1704 = vsel %vm1249, %v1688, %v1703
        %v1706 = vunpack.c.l.s4 1934713408
        %v1707 = vunpack.c.0.s8 %v1706
        %v1708 = vperm.slane %v1702, %v1707
        %v1710 = vunpack.c.l.s4 1934713408
        %v1711 = vunpack.c.0.s8 %v1710
        %v1712 = vperm.slane %v1704, %v1711
        %v1713 = vrot.slane %v1708, 4
        %v1714 = vsel %vm1249, %v1713, %v1696
        %v1715 = vrot.slane %v1696, 4
        %v1716 = vsel %vm1249, %v1708, %v1715
        %v1717 = vrot.slane %v1712, 4
        %v1718 = vsel %vm1249, %v1717, %v1700
        %v1719 = vrot.slane %v1700, 4
        %v1720 = vsel %vm1249, %v1712, %v1719
        %v1721 = vpack.c.bf16 %v1660, %v1660
        %v1722 = vpack.c.bf16 %v1714, %v1714
        %v1723 = vpack.c.bf16 %v1662, %v1662
        %v1724 = vpack.c.bf16 %v1716, %v1716
        %v1725 = vpack.c.bf16 %v1664, %v1664
        %v1726 = vpack.c.bf16 %v1718, %v1718
        %v1727 = vpack.c.bf16 %v1666, %v1666
        %v1728 = vpack.c.bf16 %v1720, %v1720
        %1731 = vrot.lane.b32.xlu0 %v1224, 120
        %v1732 = vpop.permute.xlu0 %1731
        %1733 = vrot.lane.b32.xlu0 %v1226, 120
        %v1734 = vpop.permute.xlu0 %1733
        %1737 = vrot.lane.b32.xlu0 %v1224, 112
        %v1738 = vpop.permute.xlu0 %1737
        %1739 = vrot.lane.b32.xlu0 %v1226, 112
        %v1740 = vpop.permute.xlu0 %1739
        %1743 = vrot.lane.b32.xlu0 %v1224, 104
        %v1744 = vpop.permute.xlu0 %1743
        %1745 = vrot.lane.b32.xlu0 %v1226, 104
        %v1746 = vpop.permute.xlu0 %1745
        %v1749 = vrot.slane %v1738, 4
        %v1750 = vsel %vm1249, %v1749, %v1224
        %v1751 = vrot.slane %v1224, 4
        %v1752 = vsel %vm1249, %v1738, %v1751
        %v1754 = vunpack.c.l.s4 1983009808
        %v1755 = vunpack.c.0.s8 %v1754
        %v1756 = vperm.slane %v1750, %v1755
        %v1758 = vunpack.c.l.s4 1983009808
        %v1759 = vunpack.c.0.s8 %v1758
        %v1760 = vperm.slane %v1752, %v1759
        %v1761 = vrot.slane %v1744, 4
        %v1762 = vsel %vm1249, %v1761, %v1732
        %v1763 = vrot.slane %v1732, 4
        %v1764 = vsel %vm1249, %v1744, %v1763
        %v1766 = vunpack.c.l.s4 1983009808
        %v1767 = vunpack.c.0.s8 %v1766
        %v1768 = vperm.slane %v1762, %v1767
        %v1770 = vunpack.c.l.s4 1983009808
        %v1771 = vunpack.c.0.s8 %v1770
        %v1772 = vperm.slane %v1764, %v1771
        %v1773 = vrot.slane %v1768, 4
        %v1774 = vsel %vm1249, %v1773, %v1756
        %v1775 = vrot.slane %v1756, 4
        %v1776 = vsel %vm1249, %v1768, %v1775
        %v1778 = vunpack.c.l.s4 1934713408
        %v1779 = vunpack.c.0.s8 %v1778
        %v1780 = vperm.slane %v1774, %v1779
        %v1782 = vunpack.c.l.s4 1934713408
        %v1783 = vunpack.c.0.s8 %v1782
        %v1784 = vperm.slane %v1776, %v1783
        %v1785 = vrot.slane %v1772, 4
        %v1786 = vsel %vm1249, %v1785, %v1760
        %v1787 = vrot.slane %v1760, 4
        %v1788 = vsel %vm1249, %v1772, %v1787
        %v1790 = vunpack.c.l.s4 1934713408
        %v1791 = vunpack.c.0.s8 %v1790
        %v1792 = vperm.slane %v1786, %v1791
        %v1794 = vunpack.c.l.s4 1934713408
        %v1795 = vunpack.c.0.s8 %v1794
        %v1796 = vperm.slane %v1788, %v1795
        %v1797 = vrot.slane %v1780, 4
        %v1798 = vsel %vm1249, 0.0, %v1797
        %v1799 = vrot.slane %v1784, 4
        %v1800 = vsel %vm1249, 0.0, %v1799
        %v1801 = vrot.slane %v1792, 4
        %v1802 = vsel %vm1249, 0.0, %v1801
        %v1803 = vrot.slane %v1796, 4
        %v1804 = vsel %vm1249, 0.0, %v1803
        %v1805 = vrot.slane %v1740, 4
        %v1806 = vsel %vm1249, %v1805, %v1226
        %v1807 = vrot.slane %v1226, 4
        %v1808 = vsel %vm1249, %v1740, %v1807
        %v1810 = vunpack.c.l.s4 1983009808
        %v1811 = vunpack.c.0.s8 %v1810
        %v1812 = vperm.slane %v1806, %v1811
        %v1814 = vunpack.c.l.s4 1983009808
        %v1815 = vunpack.c.0.s8 %v1814
        %v1816 = vperm.slane %v1808, %v1815
        %v1817 = vrot.slane %v1746, 4
        %v1818 = vsel %vm1249, %v1817, %v1734
        %v1819 = vrot.slane %v1734, 4
        %v1820 = vsel %vm1249, %v1746, %v1819
        %v1822 = vunpack.c.l.s4 1983009808
        %v1823 = vunpack.c.0.s8 %v1822
        %v1824 = vperm.slane %v1818, %v1823
        %v1826 = vunpack.c.l.s4 1983009808
        %v1827 = vunpack.c.0.s8 %v1826
        %v1828 = vperm.slane %v1820, %v1827
        %v1829 = vrot.slane %v1824, 4
        %v1830 = vsel %vm1249, %v1829, %v1812
        %v1831 = vrot.slane %v1812, 4
        %v1832 = vsel %vm1249, %v1824, %v1831
        %v1834 = vunpack.c.l.s4 1934713408
        %v1835 = vunpack.c.0.s8 %v1834
        %v1836 = vperm.slane %v1830, %v1835
        %v1838 = vunpack.c.l.s4 1934713408
        %v1839 = vunpack.c.0.s8 %v1838
        %v1840 = vperm.slane %v1832, %v1839
        %v1841 = vrot.slane %v1828, 4
        %v1842 = vsel %vm1249, %v1841, %v1816
        %v1843 = vrot.slane %v1816, 4
        %v1844 = vsel %vm1249, %v1828, %v1843
        %v1846 = vunpack.c.l.s4 1934713408
        %v1847 = vunpack.c.0.s8 %v1846
        %v1848 = vperm.slane %v1842, %v1847
        %v1850 = vunpack.c.l.s4 1934713408
        %v1851 = vunpack.c.0.s8 %v1850
        %v1852 = vperm.slane %v1844, %v1851
        %v1853 = vrot.slane %v1836, 4
        %v1854 = vsel %vm1249, 0.0, %v1853
        %v1855 = vrot.slane %v1840, 4
        %v1856 = vsel %vm1249, 0.0, %v1855
        %v1857 = vrot.slane %v1848, 4
        %v1858 = vsel %vm1249, 0.0, %v1857
        %v1859 = vrot.slane %v1852, 4
        %v1860 = vsel %vm1249, 0.0, %v1859
        %v1861 = vsel %vm1249, %v1799, %v1780
        %v1863 = vunpack.c.l.s4 1983009808
        %v1864 = vunpack.c.0.s8 %v1863
        %v1865 = vperm.slane %v1861, %v1864
        %v1866 = vrot.slane %v1800, 4
        %v1867 = vsel %vm1249, %v1866, %v1798
        %v1869 = vunpack.c.l.s4 1983009808
        %v1870 = vunpack.c.0.s8 %v1869
        %v1871 = vperm.slane %v1867, %v1870
        %v1872 = vsel %vm1249, %v1803, %v1792
        %v1874 = vunpack.c.l.s4 1983009808
        %v1875 = vunpack.c.0.s8 %v1874
        %v1876 = vperm.slane %v1872, %v1875
        %v1877 = vrot.slane %v1804, 4
        %v1878 = vsel %vm1249, %v1877, %v1802
        %v1880 = vunpack.c.l.s4 1983009808
        %v1881 = vunpack.c.0.s8 %v1880
        %v1882 = vperm.slane %v1878, %v1881
        %v1883 = vrot.slane %v1871, 4
        %v1884 = vsel %vm1249, %v1883, %v1865
        %v1885 = vrot.slane %v1865, 4
        %v1886 = vsel %vm1249, %v1871, %v1885
        %v1888 = vunpack.c.l.s4 1934713408
        %v1889 = vunpack.c.0.s8 %v1888
        %v1890 = vperm.slane %v1884, %v1889
        %v1892 = vunpack.c.l.s4 1934713408
        %v1893 = vunpack.c.0.s8 %v1892
        %v1894 = vperm.slane %v1886, %v1893
        %v1895 = vrot.slane %v1882, 4
        %v1896 = vsel %vm1249, %v1895, %v1876
        %v1897 = vrot.slane %v1876, 4
        %v1898 = vsel %vm1249, %v1882, %v1897
        %v1900 = vunpack.c.l.s4 1934713408
        %v1901 = vunpack.c.0.s8 %v1900
        %v1902 = vperm.slane %v1896, %v1901
        %v1904 = vunpack.c.l.s4 1934713408
        %v1905 = vunpack.c.0.s8 %v1904
        %v1906 = vperm.slane %v1898, %v1905
        %v1907 = vrot.slane %v1902, 4
        %v1908 = vsel %vm1249, %v1907, %v1890
        %v1909 = vrot.slane %v1890, 4
        %v1910 = vsel %vm1249, %v1902, %v1909
        %v1911 = vrot.slane %v1906, 4
        %v1912 = vsel %vm1249, %v1911, %v1894
        %v1913 = vrot.slane %v1894, 4
        %v1914 = vsel %vm1249, %v1906, %v1913
        %v1915 = vsel %vm1249, %v1855, %v1836
        %v1917 = vunpack.c.l.s4 1983009808
        %v1918 = vunpack.c.0.s8 %v1917
        %v1919 = vperm.slane %v1915, %v1918
        %v1920 = vrot.slane %v1856, 4
        %v1921 = vsel %vm1249, %v1920, %v1854
        %v1923 = vunpack.c.l.s4 1983009808
        %v1924 = vunpack.c.0.s8 %v1923
        %v1925 = vperm.slane %v1921, %v1924
        %v1926 = vsel %vm1249, %v1859, %v1848
        %v1928 = vunpack.c.l.s4 1983009808
        %v1929 = vunpack.c.0.s8 %v1928
        %v1930 = vperm.slane %v1926, %v1929
        %v1931 = vrot.slane %v1860, 4
        %v1932 = vsel %vm1249, %v1931, %v1858
        %v1934 = vunpack.c.l.s4 1983009808
        %v1935 = vunpack.c.0.s8 %v1934
        %v1936 = vperm.slane %v1932, %v1935
        %v1937 = vrot.slane %v1925, 4
        %v1938 = vsel %vm1249, %v1937, %v1919
        %v1939 = vrot.slane %v1919, 4
        %v1940 = vsel %vm1249, %v1925, %v1939
        %v1942 = vunpack.c.l.s4 1934713408
        %v1943 = vunpack.c.0.s8 %v1942
        %v1944 = vperm.slane %v1938, %v1943
        %v1946 = vunpack.c.l.s4 1934713408
        %v1947 = vunpack.c.0.s8 %v1946
        %v1948 = vperm.slane %v1940, %v1947
        %v1949 = vrot.slane %v1936, 4
        %v1950 = vsel %vm1249, %v1949, %v1930
        %v1951 = vrot.slane %v1930, 4
        %v1952 = vsel %vm1249, %v1936, %v1951
        %v1954 = vunpack.c.l.s4 1934713408
        %v1955 = vunpack.c.0.s8 %v1954
        %v1956 = vperm.slane %v1950, %v1955
        %v1958 = vunpack.c.l.s4 1934713408
        %v1959 = vunpack.c.0.s8 %v1958
        %v1960 = vperm.slane %v1952, %v1959
        %v1961 = vrot.slane %v1956, 4
        %v1962 = vsel %vm1249, %v1961, %v1944
        %v1963 = vrot.slane %v1944, 4
        %v1964 = vsel %vm1249, %v1956, %v1963
        %v1965 = vrot.slane %v1960, 4
        %v1966 = vsel %vm1249, %v1965, %v1948
        %v1967 = vrot.slane %v1948, 4
        %v1968 = vsel %vm1249, %v1960, %v1967
        %v1969 = vpack.c.bf16 %v1908, %v1908
        %v1970 = vpack.c.bf16 %v1962, %v1962
        %v1971 = vpack.c.bf16 %v1910, %v1910
        %v1972 = vpack.c.bf16 %v1964, %v1964
        %v1973 = vpack.c.bf16 %v1912, %v1912
        %v1974 = vpack.c.bf16 %v1966, %v1966
        %v1975 = vpack.c.bf16 %v1914, %v1914
        %v1976 = vpack.c.bf16 %v1968, %v1968
        %v1979 = vunpack.c.l.b16 %v1469
        %v1980 = vunpack.c.l.b16 %v1470
        %v1981 = vpack.c.b16 %v1980, %v1979
        %v1984 = vunpack.c.l.b16 %v1721
        %v1985 = vunpack.c.l.b16 %v1722
        %v1986 = vpack.c.b16 %v1985, %v1984
        %vm1987 = vcmask 64512
        %v1989 = vsel %vm1987, %v1981, 0
        %v1992 = vsel %vm1987, %v1986, 0
        %1994 = vmatpush.bf16.xpose.msra.mxu0 0
        %1995 = vmatpush.bf16.xpose.msra.mxu0 0
        %1996 = vmatpush.bf16.xpose.msra.mxu0 0
        %1997 = vmatpush.bf16.xpose.msra.mxu0 0
        %1998 = vmatpush.bf16.xpose.msra.mxu0 0
        %1999 = vmatpush.bf16.xpose.msra.mxu0 0
        %2000 = vmatpush.bf16.xpose.msra.mxu0 0
        %2001 = vmatpush.bf16.xpose.msra.mxu0 %v1992
        %2002 = vmatmul.bf16.gmra.mxu0 %v1989
        %v2003 = vpop.f32.mrf.mxu0
        %v2004 = vadd.f32 0.0, %v2003
        %v2005 = vpop.f32.mrf.mxu0
        %v2006 = vadd.f32 0.0, %v2005
        %2007 = vdwg.mxu0
        %v2010 = vunpack.c.l.b16 %v1471
        %v2011 = vunpack.c.l.b16 %v1472
        %v2012 = vpack.c.b16 %v2011, %v2010
        %v2015 = vunpack.c.l.b16 %v1723
        %v2016 = vunpack.c.l.b16 %v1724
        %v2017 = vpack.c.b16 %v2016, %v2015
        %v2019 = vsel %vm1987, %v2012, 0
        %v2022 = vsel %vm1987, %v2017, 0
        %2024 = vmatpush.bf16.xpose.msra.mxu0 0
        %2025 = vmatpush.bf16.xpose.msra.mxu0 0
        %2026 = vmatpush.bf16.xpose.msra.mxu0 0
        %2027 = vmatpush.bf16.xpose.msra.mxu0 0
        %2028 = vmatpush.bf16.xpose.msra.mxu0 0
        %2029 = vmatpush.bf16.xpose.msra.mxu0 0
        %2030 = vmatpush.bf16.xpose.msra.mxu0 0
        %2031 = vmatpush.bf16.xpose.msra.mxu0 %v2022
        %2032 = vmatmul.bf16.gmra.mxu0 %v2019
        %v2033 = vpop.f32.mrf.mxu0
        %v2034 = vadd.f32 0.0, %v2033
        %v2035 = vpop.f32.mrf.mxu0
        %v2036 = vadd.f32 0.0, %v2035
        %2037 = vdwg.mxu0
        %v2040 = vunpack.c.l.b16 %v1473
        %v2041 = vunpack.c.l.b16 %v1474
        %v2042 = vpack.c.b16 %v2041, %v2040
        %v2045 = vunpack.c.l.b16 %v1725
        %v2046 = vunpack.c.l.b16 %v1726
        %v2047 = vpack.c.b16 %v2046, %v2045
        %v2049 = vsel %vm1987, %v2042, 0
        %v2052 = vsel %vm1987, %v2047, 0
        %2054 = vmatpush.bf16.xpose.msra.mxu0 0
        %2055 = vmatpush.bf16.xpose.msra.mxu0 0
        %2056 = vmatpush.bf16.xpose.msra.mxu0 0
        %2057 = vmatpush.bf16.xpose.msra.mxu0 0
        %2058 = vmatpush.bf16.xpose.msra.mxu0 0
        %2059 = vmatpush.bf16.xpose.msra.mxu0 0
        %2060 = vmatpush.bf16.xpose.msra.mxu0 0
        %2061 = vmatpush.bf16.xpose.msra.mxu0 %v2052
        %2062 = vmatmul.bf16.gmra.mxu0 %v2049
        %v2063 = vpop.f32.mrf.mxu0
        %v2064 = vadd.f32 0.0, %v2063
        %v2065 = vpop.f32.mrf.mxu0
        %v2066 = vadd.f32 0.0, %v2065
        %2067 = vdwg.mxu0
        %v2070 = vunpack.c.l.b16 %v1475
        %v2071 = vunpack.c.l.b16 %v1476
        %v2072 = vpack.c.b16 %v2071, %v2070
        %v2075 = vunpack.c.l.b16 %v1727
        %v2076 = vunpack.c.l.b16 %v1728
        %v2077 = vpack.c.b16 %v2076, %v2075
        %v2079 = vsel %vm1987, %v2072, 0
        %v2082 = vsel %vm1987, %v2077, 0
        %2084 = vmatpush.bf16.xpose.msra.mxu0 0
        %2085 = vmatpush.bf16.xpose.msra.mxu0 0
        %2086 = vmatpush.bf16.xpose.msra.mxu0 0
        %2087 = vmatpush.bf16.xpose.msra.mxu0 0
        %2088 = vmatpush.bf16.xpose.msra.mxu0 0
        %2089 = vmatpush.bf16.xpose.msra.mxu0 0
        %2090 = vmatpush.bf16.xpose.msra.mxu0 0
        %2091 = vmatpush.bf16.xpose.msra.mxu0 %v2082
        %2092 = vmatmul.bf16.gmra.mxu0 %v2079
        %v2093 = vpop.f32.mrf.mxu0
        %v2094 = vadd.f32 0.0, %v2093
        %v2095 = vpop.f32.mrf.mxu0
        %v2096 = vadd.f32 0.0, %v2095
        %2097 = vdwg.mxu0
        %v2098 = vmul.f32 %v2004, 0.35355338
        %v2099 = vmul.f32 %v2006, 0.35355338
        %v2100 = vmul.f32 %v2034, 0.35355338
        %v2101 = vmul.f32 %v2036, 0.35355338
        %v2102 = vmul.f32 %v2064, 0.35355338
        %v2103 = vmul.f32 %v2066, 0.35355338
        %v2104 = vmul.f32 %v2094, 0.35355338
        %v2105 = vmul.f32 %v2096, 0.35355338
        %v2107 = vperm.slane %v1154, 0
        %v2109 = vadd.f32 %v2098, %v2107
        %v2110 = vadd.f32 %v2099, %v2107
        %v2111 = vadd.f32 %v2100, %v2107
        %v2112 = vadd.f32 %v2101, %v2107
        %v2113 = vadd.f32 %v2102, %v2107
        %v2114 = vadd.f32 %v2103, %v2107
        %v2115 = vadd.f32 %v2104, %v2107
        %v2116 = vadd.f32 %v2105, %v2107
        %vm2117 = vcmask 130048
        %v2118 = vsel %vm2117, %v2109, -inf
        %2119 = vmax.xlane.f32.xlu0 %v2118
        %v2120 = vpop.xlane.xlu0 %2119
        %v2121 = vsel %vm2117, %v2110, -inf
        %2122 = vmax.xlane.f32.xlu0 %v2121
        %v2123 = vpop.xlane.xlu0 %2122
        %v2124 = vsel %vm2117, %v2111, -inf
        %2125 = vmax.xlane.f32.xlu0 %v2124
        %v2126 = vpop.xlane.xlu0 %2125
        %v2127 = vsel %vm2117, %v2112, -inf
        %2128 = vmax.xlane.f32.xlu0 %v2127
        %v2129 = vpop.xlane.xlu0 %2128
        %v2130 = vsel %vm2117, %v2113, -inf
        %2131 = vmax.xlane.f32.xlu0 %v2130
        %v2132 = vpop.xlane.xlu0 %2131
        %v2133 = vsel %vm2117, %v2114, -inf
        %2134 = vmax.xlane.f32.xlu0 %v2133
        %v2135 = vpop.xlane.xlu0 %2134
        %v2136 = vsel %vm2117, %v2115, -inf
        %2137 = vmax.xlane.f32.xlu0 %v2136
        %v2138 = vpop.xlane.xlu0 %2137
        %v2139 = vsel %vm2117, %v2116, -inf
        %2140 = vmax.xlane.f32.xlu0 %v2139
        %v2141 = vpop.xlane.xlu0 %2140
        %v2142 = vsub.f32 %v2109, %v2120
        %v2143 = vsub.f32 %v2110, %v2123
        %v2144 = vsub.f32 %v2111, %v2126
        %v2145 = vsub.f32 %v2112, %v2129
        %v2146 = vsub.f32 %v2113, %v2132
        %v2147 = vsub.f32 %v2114, %v2135
        %v2148 = vsub.f32 %v2115, %v2138
        %v2149 = vsub.f32 %v2116, %v2141
        %v2150 = vmul.f32 %v2142, 1.442695
        %v2151 = vpow.pop %v2150
        %v2152 = vmul.f32 %v2143, 1.442695
        %v2153 = vpow.pop %v2152
        %v2154 = vmul.f32 %v2144, 1.442695
        %v2155 = vpow.pop %v2154
        %v2156 = vmul.f32 %v2145, 1.442695
        %v2157 = vpow.pop %v2156
        %v2158 = vmul.f32 %v2146, 1.442695
        %v2159 = vpow.pop %v2158
        %v2160 = vmul.f32 %v2147, 1.442695
        %v2161 = vpow.pop %v2160
        %v2162 = vmul.f32 %v2148, 1.442695
        %v2163 = vpow.pop %v2162
        %v2164 = vmul.f32 %v2149, 1.442695
        %v2165 = vpow.pop %v2164
        %v2166 = vsel %vm2117, %v2151, 0.0
        %2167 = vadd.xlane.f32.xlu0 %v2166
        %v2168 = vpop.xlane.xlu0 %2167
        %v2169 = vsel %vm2117, %v2153, 0.0
        %2170 = vadd.xlane.f32.xlu0 %v2169
        %v2171 = vpop.xlane.xlu0 %2170
        %v2172 = vsel %vm2117, %v2155, 0.0
        %2173 = vadd.xlane.f32.xlu0 %v2172
        %v2174 = vpop.xlane.xlu0 %2173
        %v2175 = vsel %vm2117, %v2157, 0.0
        %2176 = vadd.xlane.f32.xlu0 %v2175
        %v2177 = vpop.xlane.xlu0 %2176
        %v2178 = vsel %vm2117, %v2159, 0.0
        %2179 = vadd.xlane.f32.xlu0 %v2178
        %v2180 = vpop.xlane.xlu0 %2179
        %v2181 = vsel %vm2117, %v2161, 0.0
        %2182 = vadd.xlane.f32.xlu0 %v2181
        %v2183 = vpop.xlane.xlu0 %2182
        %v2184 = vsel %vm2117, %v2163, 0.0
        %2185 = vadd.xlane.f32.xlu0 %v2184
        %v2186 = vpop.xlane.xlu0 %2185
        %v2187 = vsel %vm2117, %v2165, 0.0
        %2188 = vadd.xlane.f32.xlu0 %v2187
        %v2189 = vpop.xlane.xlu0 %2188
        %v2190 = vrcp.pop %v2168
        %v2191 = vrcp.pop %v2171
        %v2192 = vrcp.pop %v2174
        %v2193 = vrcp.pop %v2177
        %v2194 = vrcp.pop %v2180
        %v2195 = vrcp.pop %v2183
        %v2196 = vrcp.pop %v2186
        %v2197 = vrcp.pop %v2189
        %v2198 = vmul.f32 %v2151, %v2190
        %v2199 = vmul.f32 %v2153, %v2191
        %v2200 = vmul.f32 %v2155, %v2192
        %v2201 = vmul.f32 %v2157, %v2193
        %v2202 = vmul.f32 %v2159, %v2194
        %v2203 = vmul.f32 %v2161, %v2195
        %v2204 = vmul.f32 %v2163, %v2196
        %v2205 = vmul.f32 %v2165, %v2197
        %v2206 = vpack.c.bf16 %v2198, %v2198
        %v2207 = vpack.c.bf16 %v2199, %v2199
        %v2208 = vpack.c.bf16 %v2200, %v2200
        %v2209 = vpack.c.bf16 %v2201, %v2201
        %v2210 = vpack.c.bf16 %v2202, %v2202
        %v2211 = vpack.c.bf16 %v2203, %v2203
        %v2212 = vpack.c.bf16 %v2204, %v2204
        %v2213 = vpack.c.bf16 %v2205, %v2205
        %v2216 = vunpack.c.l.b16 %v2206
        %v2217 = vunpack.c.l.b16 %v2207
        %v2218 = vpack.c.b16 %v2217, %v2216
        %v2221 = vunpack.c.l.b16 %v1969
        %v2222 = vunpack.c.l.b16 %v1970
        %v2223 = vpack.c.b16 %v2222, %v2221
        %v2226 = vsel %vm2117, %v2218, 0
        %2228 = vmatpush.bf16.msra.mxu0 0
        %2229 = vmatpush.bf16.msra.mxu0 0
        %2230 = vmatpush.bf16.msra.mxu0 0
        %2231 = vmatpush.bf16.msra.mxu0 0
        %2232 = vmatpush.bf16.msra.mxu0 0
        %2233 = vmatpush.bf16.msra.mxu0 0
        %2234 = vmatpush.bf16.msra.mxu0 0
        %2235 = vmatpush.bf16.msra.mxu0 %v2223
        %2236 = vmatmul.bf16.gmra.mxu0 %v2226
        %v2237 = vpop.f32.mrf.mxu0
        %v2238 = vadd.f32 0.0, %v2237
        %v2239 = vpop.f32.mrf.mxu0
        %v2240 = vadd.f32 0.0, %v2239
        %2241 = vdwg.mxu0
        %v2244 = vunpack.c.l.b16 %v2208
        %v2245 = vunpack.c.l.b16 %v2209
        %v2246 = vpack.c.b16 %v2245, %v2244
        %v2249 = vunpack.c.l.b16 %v1971
        %v2250 = vunpack.c.l.b16 %v1972
        %v2251 = vpack.c.b16 %v2250, %v2249
        %v2254 = vsel %vm2117, %v2246, 0
        %2256 = vmatpush.bf16.msra.mxu0 0
        %2257 = vmatpush.bf16.msra.mxu0 0
        %2258 = vmatpush.bf16.msra.mxu0 0
        %2259 = vmatpush.bf16.msra.mxu0 0
        %2260 = vmatpush.bf16.msra.mxu0 0
        %2261 = vmatpush.bf16.msra.mxu0 0
        %2262 = vmatpush.bf16.msra.mxu0 0
        %2263 = vmatpush.bf16.msra.mxu0 %v2251
        %2264 = vmatmul.bf16.gmra.mxu0 %v2254
        %v2265 = vpop.f32.mrf.mxu0
        %v2266 = vadd.f32 0.0, %v2265
        %v2267 = vpop.f32.mrf.mxu0
        %v2268 = vadd.f32 0.0, %v2267
        %2269 = vdwg.mxu0
        %v2272 = vunpack.c.l.b16 %v2210
        %v2273 = vunpack.c.l.b16 %v2211
        %v2274 = vpack.c.b16 %v2273, %v2272
        %v2277 = vunpack.c.l.b16 %v1973
        %v2278 = vunpack.c.l.b16 %v1974
        %v2279 = vpack.c.b16 %v2278, %v2277
        %v2282 = vsel %vm2117, %v2274, 0
        %2284 = vmatpush.bf16.msra.mxu0 0
        %2285 = vmatpush.bf16.msra.mxu0 0
        %2286 = vmatpush.bf16.msra.mxu0 0
        %2287 = vmatpush.bf16.msra.mxu0 0
        %2288 = vmatpush.bf16.msra.mxu0 0
        %2289 = vmatpush.bf16.msra.mxu0 0
        %2290 = vmatpush.bf16.msra.mxu0 0
        %2291 = vmatpush.bf16.msra.mxu0 %v2279
        %2292 = vmatmul.bf16.gmra.mxu0 %v2282
        %v2293 = vpop.f32.mrf.mxu0
        %v2294 = vadd.f32 0.0, %v2293
        %v2295 = vpop.f32.mrf.mxu0
        %v2296 = vadd.f32 0.0, %v2295
        %2297 = vdwg.mxu0
        %v2300 = vunpack.c.l.b16 %v2212
        %v2301 = vunpack.c.l.b16 %v2213
        %v2302 = vpack.c.b16 %v2301, %v2300
        %v2305 = vunpack.c.l.b16 %v1975
        %v2306 = vunpack.c.l.b16 %v1976
        %v2307 = vpack.c.b16 %v2306, %v2305
        %v2310 = vsel %vm2117, %v2302, 0
        %2312 = vmatpush.bf16.msra.mxu0 0
        %2313 = vmatpush.bf16.msra.mxu0 0
        %2314 = vmatpush.bf16.msra.mxu0 0
        %2315 = vmatpush.bf16.msra.mxu0 0
        %2316 = vmatpush.bf16.msra.mxu0 0
        %2317 = vmatpush.bf16.msra.mxu0 0
        %2318 = vmatpush.bf16.msra.mxu0 0
        %2319 = vmatpush.bf16.msra.mxu0 %v2307
        %2320 = vmatmul.bf16.gmra.mxu0 %v2310
        %v2321 = vpop.f32.mrf.mxu0
        %v2322 = vadd.f32 0.0, %v2321
        %v2323 = vpop.f32.mrf.mxu0
        %v2324 = vadd.f32 0.0, %v2323
        %2325 = vdwg.mxu0
        %v2326 = vrot.slane %v2294, 4
        %v2327 = vsel %vm1249, %v2326, %v2238
        %v2328 = vrot.slane %v2238, 4
        %v2329 = vsel %vm1249, %v2294, %v2328
        %v2331 = vunpack.c.l.s4 1983009808
        %v2332 = vunpack.c.0.s8 %v2331
        %v2333 = vperm.slane %v2327, %v2332
        %v2335 = vunpack.c.l.s4 1983009808
        %v2336 = vunpack.c.0.s8 %v2335
        %v2337 = vperm.slane %v2329, %v2336
        %v2338 = vrot.slane %v2322, 4
        %v2339 = vsel %vm1249, %v2338, %v2266
        %v2340 = vrot.slane %v2266, 4
        %v2341 = vsel %vm1249, %v2322, %v2340
        %v2343 = vunpack.c.l.s4 1983009808
        %v2344 = vunpack.c.0.s8 %v2343
        %v2345 = vperm.slane %v2339, %v2344
        %v2347 = vunpack.c.l.s4 1983009808
        %v2348 = vunpack.c.0.s8 %v2347
        %v2349 = vperm.slane %v2341, %v2348
        %v2350 = vrot.slane %v2345, 4
        %v2351 = vsel %vm1249, %v2350, %v2333
        %v2352 = vrot.slane %v2333, 4
        %v2353 = vsel %vm1249, %v2345, %v2352
        %v2355 = vunpack.c.l.s4 1934713408
        %v2356 = vunpack.c.0.s8 %v2355
        %v2357 = vperm.slane %v2351, %v2356
        %v2359 = vunpack.c.l.s4 1934713408
        %v2360 = vunpack.c.0.s8 %v2359
        %v2361 = vperm.slane %v2353, %v2360
        %v2362 = vrot.slane %v2349, 4
        %v2363 = vsel %vm1249, %v2362, %v2337
        %v2364 = vrot.slane %v2337, 4
        %v2365 = vsel %vm1249, %v2349, %v2364
        %v2367 = vunpack.c.l.s4 1934713408
        %v2368 = vunpack.c.0.s8 %v2367
        %v2369 = vperm.slane %v2363, %v2368
        %v2371 = vunpack.c.l.s4 1934713408
        %v2372 = vunpack.c.0.s8 %v2371
        %v2373 = vperm.slane %v2365, %v2372
        %v2374 = vrot.slane %v2357, 4
        %v2375 = vsel %vm1249, 0.0, %v2374
        %v2376 = vrot.slane %v2361, 4
        %v2377 = vsel %vm1249, 0.0, %v2376
        %v2378 = vrot.slane %v2369, 4
        %v2379 = vsel %vm1249, 0.0, %v2378
        %v2380 = vrot.slane %v2373, 4
        %v2381 = vsel %vm1249, 0.0, %v2380
        %v2382 = vrot.slane %v2296, 4
        %v2383 = vsel %vm1249, %v2382, %v2240
        %v2384 = vrot.slane %v2240, 4
        %v2385 = vsel %vm1249, %v2296, %v2384
        %v2387 = vunpack.c.l.s4 1983009808
        %v2388 = vunpack.c.0.s8 %v2387
        %v2389 = vperm.slane %v2383, %v2388
        %v2391 = vunpack.c.l.s4 1983009808
        %v2392 = vunpack.c.0.s8 %v2391
        %v2393 = vperm.slane %v2385, %v2392
        %v2394 = vrot.slane %v2324, 4
        %v2395 = vsel %vm1249, %v2394, %v2268
        %v2396 = vrot.slane %v2268, 4
        %v2397 = vsel %vm1249, %v2324, %v2396
        %v2399 = vunpack.c.l.s4 1983009808
        %v2400 = vunpack.c.0.s8 %v2399
        %v2401 = vperm.slane %v2395, %v2400
        %v2403 = vunpack.c.l.s4 1983009808
        %v2404 = vunpack.c.0.s8 %v2403
        %v2405 = vperm.slane %v2397, %v2404
        %v2406 = vrot.slane %v2401, 4
        %v2407 = vsel %vm1249, %v2406, %v2389
        %v2408 = vrot.slane %v2389, 4
        %v2409 = vsel %vm1249, %v2401, %v2408
        %v2411 = vunpack.c.l.s4 1934713408
        %v2412 = vunpack.c.0.s8 %v2411
        %v2413 = vperm.slane %v2407, %v2412
        %v2415 = vunpack.c.l.s4 1934713408
        %v2416 = vunpack.c.0.s8 %v2415
        %v2417 = vperm.slane %v2409, %v2416
        %v2418 = vrot.slane %v2405, 4
        %v2419 = vsel %vm1249, %v2418, %v2393
        %v2420 = vrot.slane %v2393, 4
        %v2421 = vsel %vm1249, %v2405, %v2420
        %v2423 = vunpack.c.l.s4 1934713408
        %v2424 = vunpack.c.0.s8 %v2423
        %v2425 = vperm.slane %v2419, %v2424
        %v2427 = vunpack.c.l.s4 1934713408
        %v2428 = vunpack.c.0.s8 %v2427
        %v2429 = vperm.slane %v2421, %v2428
        %v2430 = vrot.slane %v2413, 4
        %v2431 = vsel %vm1249, 0.0, %v2430
        %v2432 = vrot.slane %v2417, 4
        %v2433 = vsel %vm1249, 0.0, %v2432
        %v2434 = vrot.slane %v2425, 4
        %v2435 = vsel %vm1249, 0.0, %v2434
        %v2436 = vrot.slane %v2429, 4
        %v2437 = vsel %vm1249, 0.0, %v2436
        %v2438 = vsel %vm1249, %v2376, %v2357
        %v2440 = vunpack.c.l.s4 1983009808
        %v2441 = vunpack.c.0.s8 %v2440
        %v2442 = vperm.slane %v2438, %v2441
        %v2443 = vrot.slane %v2377, 4
        %v2444 = vsel %vm1249, %v2443, %v2375
        %v2446 = vunpack.c.l.s4 1983009808
        %v2447 = vunpack.c.0.s8 %v2446
        %v2448 = vperm.slane %v2444, %v2447
        %v2449 = vsel %vm1249, %v2380, %v2369
        %v2451 = vunpack.c.l.s4 1983009808
        %v2452 = vunpack.c.0.s8 %v2451
        %v2453 = vperm.slane %v2449, %v2452
        %v2454 = vrot.slane %v2381, 4
        %v2455 = vsel %vm1249, %v2454, %v2379
        %v2457 = vunpack.c.l.s4 1983009808
        %v2458 = vunpack.c.0.s8 %v2457
        %v2459 = vperm.slane %v2455, %v2458
        %v2460 = vrot.slane %v2448, 4
        %v2461 = vsel %vm1249, %v2460, %v2442
        %v2462 = vrot.slane %v2442, 4
        %v2463 = vsel %vm1249, %v2448, %v2462
        %v2465 = vunpack.c.l.s4 1934713408
        %v2466 = vunpack.c.0.s8 %v2465
        %v2467 = vperm.slane %v2461, %v2466
        %v2469 = vunpack.c.l.s4 1934713408
        %v2470 = vunpack.c.0.s8 %v2469
        %v2471 = vperm.slane %v2463, %v2470
        %v2472 = vrot.slane %v2459, 4
        %v2473 = vsel %vm1249, %v2472, %v2453
        %v2474 = vrot.slane %v2453, 4
        %v2475 = vsel %vm1249, %v2459, %v2474
        %v2477 = vunpack.c.l.s4 1934713408
        %v2478 = vunpack.c.0.s8 %v2477
        %v2479 = vperm.slane %v2473, %v2478
        %v2481 = vunpack.c.l.s4 1934713408
        %v2482 = vunpack.c.0.s8 %v2481
        %v2483 = vperm.slane %v2475, %v2482
        %v2484 = vrot.slane %v2479, 4
        %v2485 = vsel %vm1249, %v2484, %v2467
        %v2486 = vrot.slane %v2467, 4
        %v2487 = vsel %vm1249, %v2479, %v2486
        %v2488 = vrot.slane %v2483, 4
        %v2489 = vsel %vm1249, %v2488, %v2471
        %v2490 = vrot.slane %v2471, 4
        %v2491 = vsel %vm1249, %v2483, %v2490
        %v2492 = vsel %vm1249, %v2432, %v2413
        %v2494 = vunpack.c.l.s4 1983009808
        %v2495 = vunpack.c.0.s8 %v2494
        %v2496 = vperm.slane %v2492, %v2495
        %v2497 = vrot.slane %v2433, 4
        %v2498 = vsel %vm1249, %v2497, %v2431
        %v2500 = vunpack.c.l.s4 1983009808
        %v2501 = vunpack.c.0.s8 %v2500
        %v2502 = vperm.slane %v2498, %v2501
        %v2503 = vsel %vm1249, %v2436, %v2425
        %v2505 = vunpack.c.l.s4 1983009808
        %v2506 = vunpack.c.0.s8 %v2505
        %v2507 = vperm.slane %v2503, %v2506
        %v2508 = vrot.slane %v2437, 4
        %v2509 = vsel %vm1249, %v2508, %v2435
        %v2511 = vunpack.c.l.s4 1983009808
        %v2512 = vunpack.c.0.s8 %v2511
        %v2513 = vperm.slane %v2509, %v2512
        %v2514 = vrot.slane %v2502, 4
        %v2515 = vsel %vm1249, %v2514, %v2496
        %v2516 = vrot.slane %v2496, 4
        %v2517 = vsel %vm1249, %v2502, %v2516
        %v2519 = vunpack.c.l.s4 1934713408
        %v2520 = vunpack.c.0.s8 %v2519
        %v2521 = vperm.slane %v2515, %v2520
        %v2523 = vunpack.c.l.s4 1934713408
        %v2524 = vunpack.c.0.s8 %v2523
        %v2525 = vperm.slane %v2517, %v2524
        %v2526 = vrot.slane %v2513, 4
        %v2527 = vsel %vm1249, %v2526, %v2507
        %v2528 = vrot.slane %v2507, 4
        %v2529 = vsel %vm1249, %v2513, %v2528
        %v2531 = vunpack.c.l.s4 1934713408
        %v2532 = vunpack.c.0.s8 %v2531
        %v2533 = vperm.slane %v2527, %v2532
        %v2535 = vunpack.c.l.s4 1934713408
        %v2536 = vunpack.c.0.s8 %v2535
        %v2537 = vperm.slane %v2529, %v2536
        %v2538 = vrot.slane %v2533, 4
        %v2539 = vsel %vm1249, %v2538, %v2521
        %v2540 = vrot.slane %v2521, 4
        %v2541 = vsel %vm1249, %v2533, %v2540
        %v2542 = vrot.slane %v2537, 4
        %v2543 = vsel %vm1249, %v2542, %v2525
        %v2544 = vrot.slane %v2525, 4
        %v2545 = vsel %vm1249, %v2537, %v2544
        %2548 = vrot.lane.b32.xlu0 %v2487, 8
        %v2549 = vpop.permute.xlu0 %2548
        %2550 = vrot.lane.b32.xlu0 %v2541, 8
        %v2551 = vpop.permute.xlu0 %2550
        %2556 = vrot.lane.b32.xlu0 %v2489, 16
        %v2557 = vpop.permute.xlu0 %2556
        %2558 = vrot.lane.b32.xlu0 %v2543, 16
        %v2559 = vpop.permute.xlu0 %2558
        %2564 = vrot.lane.b32.xlu0 %v2491, 24
        %v2565 = vpop.permute.xlu0 %2564
        %2566 = vrot.lane.b32.xlu0 %v2545, 24
        %v2567 = vpop.permute.xlu0 %2566
        %v2570 = vsel %vm1987, %v2485, %v2549
        %v2571 = vsel %vm1987, %v2539, %v2551
        %v2572 = vsel %vm2117, %v2570, %v2557
        %v2573 = vsel %vm2117, %v2571, %v2559
        %vm2574 = vcmask 195584
        %v2575 = vsel %vm2574, %v2572, %v2565
        %v2576 = vsel %vm2574, %v2573, %v2567
        %v2577 = vpack.c.bf16 %v2576, %v2575
        %v2579 = vperm.slane %v1166, 0
        %v2585 = vunpack.c.l.b16 %v1162
        %v2586 = vunpack.c.l.b16 %v1163
        %v2587 = vunpack.c.l.b16 %v1164
        %v2588 = vunpack.c.l.b16 %v1165
        %v2589 = vpack.c.b16 %v2586, %v2585
        %v2590 = vpack.c.b16 %v2588, %v2587
        %v2594 = vsel %vm1184, %v2577, 0
        %2596 = vmatpush.bf16.msra.mxu0 0
        %2597 = vmatpush.bf16.msra.mxu0 0
        %2598 = vmatpush.bf16.msra.mxu0 0
        %2599 = vmatpush.bf16.msra.mxu0 0
        %2600 = vmatpush.bf16.msra.mxu0 0
        %2601 = vmatpush.bf16.msra.mxu0 0
        %2602 = vmatpush.bf16.msra.mxu0 %v2590
        %2603 = vmatpush.bf16.msra.mxu0 %v2589
        %2604 = vmatmul.bf16.gmra.mxu0 %v2594
        %v2605 = vpop.f32.mrf.mxu0
        %v2606 = vadd.f32 %v2579, %v2605
        %v2607 = vpop.f32.mrf.mxu0
        %v2608 = vadd.f32 %v2579, %v2607
        %2609 = vdwg.mxu0
        %v2610 = vadd.f32 %v1149, %v2606
        %v2611 = vadd.f32 %v1150, %v2608
        %v2612 = vld [vmem:[%s25] sm:$0x1]
        %v2613 = vld [vmem:[%s27] sm:$0x1]
        %v2614 = vsel %vm1184, %v2610, 0.0
        %2615 = vadd.xlane.f32.xlu0 %v2614
        %v2616 = vpop.xlane.xlu0 %2615
        %v2617 = vsel %vm1184, %v2611, 0.0
        %2618 = vadd.xlane.f32.xlu0 %v2617
        %v2619 = vpop.xlane.xlu0 %2618
        %v2620 = vrcp.pop 32.0
        %v2621 = vmul.f32 32.0, %v2620
        %v2622 = vsub.f32 1.0, %v2621
        %v2623 = vmul.f32 %v2620, %v2622
        %v2624 = vadd.f32 %v2620, %v2623
        %vm2625 = vweird.f32 %v2620
        %v2626 = vsel %vm2625, %v2620, %v2624
        %v2627 = vmul.f32 %v2616, %v2626
        %v2628 = vmul.f32 %v2619, %v2626
        %v2629 = vsub.f32 %v2610, %v2627
        %v2630 = vsub.f32 %v2611, %v2628
        %v2631 = vmul.f32 %v2629, %v2629
        %v2632 = vmul.f32 %v2630, %v2630
        %v2633 = vsel %vm1184, %v2631, 0.0
        %2634 = vadd.xlane.f32.xlu0 %v2633
        %v2635 = vpop.xlane.xlu0 %2634
        %v2636 = vsel %vm1184, %v2632, 0.0
        %2637 = vadd.xlane.f32.xlu0 %v2636
        %v2638 = vpop.xlane.xlu0 %2637
        %v2639 = vmul.f32 %v2635, %v2626
        %v2640 = vmul.f32 %v2638, %v2626
        %v2641 = vadd.f32 %v2639, 1e-05
        %v2642 = vadd.f32 %v2640, 1e-05
        %v2643 = vrsqrt.pop %v2641
        %v2644 = vmul.f32 %v2643, %v2641
        %v2645 = vmul.f32 %v2644, %v2643
        %v2646 = vmul.f32 0.5, %v2645
        %v2647 = vsub.f32 1.5, %v2646
        %v2648 = vmul.f32 %v2643, %v2647
        %vm2649 = vweird.f32 %v2641
        %vm2650 = vweird.f32 %v2643
        %vm2651 = vmor %vm2649, %vm2650
        %v2652 = vsel %vm2651, %v2643, %v2648
        %v2653 = vrsqrt.pop %v2642
        %v2654 = vmul.f32 %v2653, %v2642
        %v2655 = vmul.f32 %v2654, %v2653
        %v2656 = vmul.f32 0.5, %v2655
        %v2657 = vsub.f32 1.5, %v2656
        %v2658 = vmul.f32 %v2653, %v2657
        %vm2659 = vweird.f32 %v2642
        %vm2660 = vweird.f32 %v2653
        %vm2661 = vmor %vm2659, %vm2660
        %v2662 = vsel %vm2661, %v2653, %v2658
        %v2663 = vmul.f32 %v2629, %v2652
        %v2664 = vmul.f32 %v2630, %v2662
        %v2666 = vperm.slane %v2612, 0
        %v2668 = vmul.f32 %v2663, %v2666
        %v2669 = vmul.f32 %v2664, %v2666
        %v2671 = vperm.slane %v2613, 0
        %v2673 = vadd.f32 %v2668, %v2671
        %v2674 = vadd.f32 %v2669, %v2671
        %v2675 = vpack.c.bf16 %v2674, %v2673
        %v2676 = vld [vmem:[%s17] sm:$0xf]
        %v2677 = vld [vmem:[%s17 + $0x4] sm:$0xf]
        %v2678 = vld [vmem:[%s17 + $0x8] sm:$0xf]
        %v2679 = vld [vmem:[%s17 + $0xc] sm:$0xf]
        %v2680 = vld [vmem:[%s19] sm:$0x1]
        %v2682 = vperm.slane %v2680, 0
        %v2688 = vunpack.c.l.b16 %v2676
        %v2689 = vunpack.c.l.b16 %v2677
        %v2690 = vunpack.c.l.b16 %v2678
        %v2691 = vunpack.c.l.b16 %v2679
        %v2692 = vpack.c.b16 %v2689, %v2688
        %v2693 = vpack.c.b16 %v2691, %v2690
        %v2697 = vsel %vm1184, %v2675, 0
        %2699 = vmatpush.bf16.msra.mxu0 0
        %2700 = vmatpush.bf16.msra.mxu0 0
        %2701 = vmatpush.bf16.msra.mxu0 0
        %2702 = vmatpush.bf16.msra.mxu0 0
        %2703 = vmatpush.bf16.msra.mxu0 0
        %2704 = vmatpush.bf16.msra.mxu0 0
        %2705 = vmatpush.bf16.msra.mxu0 %v2693
        %2706 = vmatpush.bf16.msra.mxu0 %v2692
        %2707 = vmatmul.bf16.gmra.mxu0 %v2697
        %v2708 = vpop.f32.mrf.mxu0
        %v2709 = vadd.f32 %v2682, %v2708
        %v2710 = vpop.f32.mrf.mxu0
        %v2711 = vadd.f32 %v2682, %v2710
        %2712 = vdwg.mxu0
        %v2713 = vmax.f32 %v2709, 0.0
        %v2714 = vmax.f32 %v2711, 0.0
        %v2715 = vpack.c.bf16 %v2714, %v2713
        %v2716 = vld [vmem:[%s21] sm:$0xf]
        %v2717 = vld [vmem:[%s21 + $0x4] sm:$0xf]
        %v2718 = vld [vmem:[%s21 + $0x8] sm:$0xf]
        %v2719 = vld [vmem:[%s21 + $0xc] sm:$0xf]
        %v2720 = vld [vmem:[%s21 + $0x10] sm:$0xf]
        %v2721 = vld [vmem:[%s21 + $0x14] sm:$0xf]
        %v2722 = vld [vmem:[%s21 + $0x18] sm:$0xf]
        %v2723 = vld [vmem:[%s21 + $0x1c] sm:$0xf]
        %v2724 = vld [vmem:[%s23] sm:$0x1]
        %v2726 = vperm.slane %v2724, 0
        %v2736 = vunpack.c.l.b16 %v2716
        %v2737 = vunpack.c.l.b16 %v2717
        %v2738 = vunpack.c.l.b16 %v2718
        %v2739 = vunpack.c.l.b16 %v2719
        %v2740 = vunpack.c.l.b16 %v2720
        %v2741 = vunpack.c.l.b16 %v2721
        %v2742 = vunpack.c.l.b16 %v2722
        %v2743 = vunpack.c.l.b16 %v2723
        %v2744 = vpack.c.b16 %v2737, %v2736
        %v2745 = vpack.c.b16 %v2739, %v2738
        %v2746 = vpack.c.b16 %v2741, %v2740
        %v2747 = vpack.c.b16 %v2743, %v2742
        %vm2752 = vcmask 523264
        %v2754 = vsel %vm2752, %v2715, 0
        %2756 = vmatpush.bf16.msra.mxu0 0
        %2757 = vmatpush.bf16.msra.mxu0 0
        %2758 = vmatpush.bf16.msra.mxu0 0
        %2759 = vmatpush.bf16.msra.mxu0 0
        %2760 = vmatpush.bf16.msra.mxu0 %v2747
        %2761 = vmatpush.bf16.msra.mxu0 %v2746
        %2762 = vmatpush.bf16.msra.mxu0 %v2745
        %2763 = vmatpush.bf16.msra.mxu0 %v2744
        %2764 = vmatmul.bf16.gmra.mxu0 %v2754
        %v2765 = vpop.f32.mrf.mxu0
        %v2766 = vadd.f32 %v2726, %v2765
        %v2767 = vpop.f32.mrf.mxu0
        %v2768 = vadd.f32 %v2726, %v2767
        %2769 = vdwg.mxu0
        %v2770 = vadd.f32 %v2673, %v2766
        %v2771 = vadd.f32 %v2674, %v2768
        %v2772 = vld [vmem:[%s29] sm:$0x1]
        %v2773 = vld [vmem:[%s31] sm:$0x1]
        %v2774 = vsel %vm1184, %v2770, 0.0
        %2775 = vadd.xlane.f32.xlu0 %v2774
        %v2776 = vpop.xlane.xlu0 %2775
        %v2777 = vsel %vm1184, %v2771, 0.0
        %2778 = vadd.xlane.f32.xlu0 %v2777
        %v2779 = vpop.xlane.xlu0 %2778
        %v2780 = vmul.f32 %v2776, %v2626
        %v2781 = vmul.f32 %v2779, %v2626
        %v2782 = vsub.f32 %v2770, %v2780
        %v2783 = vsub.f32 %v2771, %v2781
        %v2784 = vmul.f32 %v2782, %v2782
        %v2785 = vmul.f32 %v2783, %v2783
        %v2786 = vsel %vm1184, %v2784, 0.0
        %2787 = vadd.xlane.f32.xlu0 %v2786
        %v2788 = vpop.xlane.xlu0 %2787
        %v2789 = vsel %vm1184, %v2785, 0.0
        %2790 = vadd.xlane.f32.xlu0 %v2789
        %v2791 = vpop.xlane.xlu0 %2790
        %v2792 = vmul.f32 %v2788, %v2626
        %v2793 = vmul.f32 %v2791, %v2626
        %v2794 = vadd.f32 %v2792, 1e-05
        %v2795 = vadd.f32 %v2793, 1e-05
        %v2796 = vrsqrt.pop %v2794
        %v2797 = vmul.f32 %v2796, %v2794
        %v2798 = vmul.f32 %v2797, %v2796
        %v2799 = vmul.f32 0.5, %v2798
        %v2800 = vsub.f32 1.5, %v2799
        %v2801 = vmul.f32 %v2796, %v2800
        %vm2802 = vweird.f32 %v2794
        %vm2803 = vweird.f32 %v2796
        %vm2804 = vmor %vm2802, %vm2803
        %v2805 = vsel %vm2804, %v2796, %v2801
        %v2806 = vrsqrt.pop %v2795
        %v2807 = vmul.f32 %v2806, %v2795
        %v2808 = vmul.f32 %v2807, %v2806
        %v2809 = vmul.f32 0.5, %v2808
        %v2810 = vsub.f32 1.5, %v2809
        %v2811 = vmul.f32 %v2806, %v2810
        %vm2812 = vweird.f32 %v2795
        %vm2813 = vweird.f32 %v2806
        %vm2814 = vmor %vm2812, %vm2813
        %v2815 = vsel %vm2814, %v2806, %v2811
        %v2816 = vmul.f32 %v2782, %v2805
        %v2817 = vmul.f32 %v2783, %v2815
        %v2819 = vperm.slane %v2772, 0
        %v2821 = vmul.f32 %v2816, %v2819
        %v2822 = vmul.f32 %v2817, %v2819
        %v2824 = vperm.slane %v2773, 0
        %v2826 = vadd.f32 %v2821, %v2824
        %v2827 = vadd.f32 %v2822, %v2824
        %v2828 = vadd.f32 %v2826, %v1151
        %v2829 = vadd.f32 %v2827, %v1152
        %s2830 = scalar_lea.vmem %s9, 16
        %v2831 = vld [vmem:[%s2830] sm:$0xf]
        %v2832 = vld [vmem:[%s2830 + $0x4] sm:$0xf]
        %v2833 = vld [vmem:[%s2830 + $0x8] sm:$0xf]
        %v2834 = vld [vmem:[%s2830 + $0xc] sm:$0xf]
        %s2835 = scalar_lea.vmem %s11, 1
        %v2836 = vld [vmem:[%s2835] sm:$0x1]
        %s2837 = scalar_lea.vmem %s13, 16
        %v2838 = vld [vmem:[%s2837] sm:$0xf]
        %v2839 = vld [vmem:[%s2837 + $0x4] sm:$0xf]
        %v2840 = vld [vmem:[%s2837 + $0x8] sm:$0xf]
        %v2841 = vld [vmem:[%s2837 + $0xc] sm:$0xf]
        %s2842 = scalar_lea.vmem %s15, 1
        %v2843 = vld [vmem:[%s2842] sm:$0x1]
        %v2844 = vpack.c.bf16 %v2829, %v2828
        %v2845 = vpack.c.bf16 %v2827, %v2826
        %v2847 = vperm.slane %v2836, 0
        %v2853 = vunpack.c.l.b16 %v2831
        %v2854 = vunpack.c.l.b16 %v2832
        %v2855 = vunpack.c.l.b16 %v2833
        %v2856 = vunpack.c.l.b16 %v2834
        %v2857 = vpack.c.b16 %v2854, %v2853
        %v2858 = vpack.c.b16 %v2856, %v2855
        %v2862 = vsel %vm1184, %v2844, 0
        %2864 = vmatpush.bf16.msra.mxu0 0
        %2865 = vmatpush.bf16.msra.mxu0 0
        %2866 = vmatpush.bf16.msra.mxu0 0
        %2867 = vmatpush.bf16.msra.mxu0 0
        %2868 = vmatpush.bf16.msra.mxu0 0
        %2869 = vmatpush.bf16.msra.mxu0 0
        %2870 = vmatpush.bf16.msra.mxu0 %v2858
        %2871 = vmatpush.bf16.msra.mxu0 %v2857
        %2872 = vmatmul.bf16.gmra.mxu0 %v2862
        %v2873 = vpop.f32.mrf.mxu0
        %v2874 = vadd.f32 %v2847, %v2873
        %v2875 = vpop.f32.mrf.mxu0
        %v2876 = vadd.f32 %v2847, %v2875
        %2877 = vdwg.mxu0
        %2878 = vrot.lane.b32.xlu0 %v2857, 64
        %v2879 = vpop.permute.xlu0 %2878
        %2880 = vrot.lane.b32.xlu0 %v2858, 64
        %v2881 = vpop.permute.xlu0 %2880
        %2884 = vrot.lane.b32.xlu0 %v2847, 64
        %v2885 = vpop.permute.xlu0 %2884
        %v2888 = vsel %vm1184, %v2845, 0
        %2890 = vmatpush.bf16.msra.mxu0 0
        %2891 = vmatpush.bf16.msra.mxu0 0
        %2892 = vmatpush.bf16.msra.mxu0 0
        %2893 = vmatpush.bf16.msra.mxu0 0
        %2894 = vmatpush.bf16.msra.mxu0 0
        %2895 = vmatpush.bf16.msra.mxu0 0
        %2896 = vmatpush.bf16.msra.mxu0 %v2881
        %2897 = vmatpush.bf16.msra.mxu0 %v2879
        %2898 = vmatmul.bf16.gmra.mxu0 %v2888
        %v2899 = vpop.f32.mrf.mxu0
        %v2900 = vadd.f32 %v2885, %v2899
        %v2901 = vpop.f32.mrf.mxu0
        %v2902 = vadd.f32 %v2885, %v2901
        %2903 = vdwg.mxu0
        %2906 = vrot.lane.b32.xlu0 %v2874, 120
        %v2907 = vpop.permute.xlu0 %2906
        %2908 = vrot.lane.b32.xlu0 %v2876, 120
        %v2909 = vpop.permute.xlu0 %2908
        %2912 = vrot.lane.b32.xlu0 %v2874, 112
        %v2913 = vpop.permute.xlu0 %2912
        %2914 = vrot.lane.b32.xlu0 %v2876, 112
        %v2915 = vpop.permute.xlu0 %2914
        %2918 = vrot.lane.b32.xlu0 %v2874, 104
        %v2919 = vpop.permute.xlu0 %2918
        %2920 = vrot.lane.b32.xlu0 %v2876, 104
        %v2921 = vpop.permute.xlu0 %2920
        %v2924 = vrot.slane %v2913, 4
        %v2925 = vsel %vm1249, %v2924, %v2874
        %v2926 = vrot.slane %v2874, 4
        %v2927 = vsel %vm1249, %v2913, %v2926
        %v2929 = vunpack.c.l.s4 1983009808
        %v2930 = vunpack.c.0.s8 %v2929
        %v2931 = vperm.slane %v2925, %v2930
        %v2933 = vunpack.c.l.s4 1983009808
        %v2934 = vunpack.c.0.s8 %v2933
        %v2935 = vperm.slane %v2927, %v2934
        %v2936 = vrot.slane %v2919, 4
        %v2937 = vsel %vm1249, %v2936, %v2907
        %v2938 = vrot.slane %v2907, 4
        %v2939 = vsel %vm1249, %v2919, %v2938
        %v2941 = vunpack.c.l.s4 1983009808
        %v2942 = vunpack.c.0.s8 %v2941
        %v2943 = vperm.slane %v2937, %v2942
        %v2945 = vunpack.c.l.s4 1983009808
        %v2946 = vunpack.c.0.s8 %v2945
        %v2947 = vperm.slane %v2939, %v2946
        %v2948 = vrot.slane %v2943, 4
        %v2949 = vsel %vm1249, %v2948, %v2931
        %v2950 = vrot.slane %v2931, 4
        %v2951 = vsel %vm1249, %v2943, %v2950
        %v2953 = vunpack.c.l.s4 1934713408
        %v2954 = vunpack.c.0.s8 %v2953
        %v2955 = vperm.slane %v2949, %v2954
        %v2957 = vunpack.c.l.s4 1934713408
        %v2958 = vunpack.c.0.s8 %v2957
        %v2959 = vperm.slane %v2951, %v2958
        %v2960 = vrot.slane %v2947, 4
        %v2961 = vsel %vm1249, %v2960, %v2935
        %v2962 = vrot.slane %v2935, 4
        %v2963 = vsel %vm1249, %v2947, %v2962
        %v2965 = vunpack.c.l.s4 1934713408
        %v2966 = vunpack.c.0.s8 %v2965
        %v2967 = vperm.slane %v2961, %v2966
        %v2969 = vunpack.c.l.s4 1934713408
        %v2970 = vunpack.c.0.s8 %v2969
        %v2971 = vperm.slane %v2963, %v2970
        %v2972 = vrot.slane %v2955, 4
        %v2973 = vsel %vm1249, 0.0, %v2972
        %v2974 = vrot.slane %v2959, 4
        %v2975 = vsel %vm1249, 0.0, %v2974
        %v2976 = vrot.slane %v2967, 4
        %v2977 = vsel %vm1249, 0.0, %v2976
        %v2978 = vrot.slane %v2971, 4
        %v2979 = vsel %vm1249, 0.0, %v2978
        %v2980 = vrot.slane %v2915, 4
        %v2981 = vsel %vm1249, %v2980, %v2876
        %v2982 = vrot.slane %v2876, 4
        %v2983 = vsel %vm1249, %v2915, %v2982
        %v2985 = vunpack.c.l.s4 1983009808
        %v2986 = vunpack.c.0.s8 %v2985
        %v2987 = vperm.slane %v2981, %v2986
        %v2989 = vunpack.c.l.s4 1983009808
        %v2990 = vunpack.c.0.s8 %v2989
        %v2991 = vperm.slane %v2983, %v2990
        %v2992 = vrot.slane %v2921, 4
        %v2993 = vsel %vm1249, %v2992, %v2909
        %v2994 = vrot.slane %v2909, 4
        %v2995 = vsel %vm1249, %v2921, %v2994
        %v2997 = vunpack.c.l.s4 1983009808
        %v2998 = vunpack.c.0.s8 %v2997
        %v2999 = vperm.slane %v2993, %v2998
        %v3001 = vunpack.c.l.s4 1983009808
        %v3002 = vunpack.c.0.s8 %v3001
        %v3003 = vperm.slane %v2995, %v3002
        %v3004 = vrot.slane %v2999, 4
        %v3005 = vsel %vm1249, %v3004, %v2987
        %v3006 = vrot.slane %v2987, 4
        %v3007 = vsel %vm1249, %v2999, %v3006
        %v3009 = vunpack.c.l.s4 1934713408
        %v3010 = vunpack.c.0.s8 %v3009
        %v3011 = vperm.slane %v3005, %v3010
        %v3013 = vunpack.c.l.s4 1934713408
        %v3014 = vunpack.c.0.s8 %v3013
        %v3015 = vperm.slane %v3007, %v3014
        %v3016 = vrot.slane %v3003, 4
        %v3017 = vsel %vm1249, %v3016, %v2991
        %v3018 = vrot.slane %v2991, 4
        %v3019 = vsel %vm1249, %v3003, %v3018
        %v3021 = vunpack.c.l.s4 1934713408
        %v3022 = vunpack.c.0.s8 %v3021
        %v3023 = vperm.slane %v3017, %v3022
        %v3025 = vunpack.c.l.s4 1934713408
        %v3026 = vunpack.c.0.s8 %v3025
        %v3027 = vperm.slane %v3019, %v3026
        %v3028 = vrot.slane %v3011, 4
        %v3029 = vsel %vm1249, 0.0, %v3028
        %v3030 = vrot.slane %v3015, 4
        %v3031 = vsel %vm1249, 0.0, %v3030
        %v3032 = vrot.slane %v3023, 4
        %v3033 = vsel %vm1249, 0.0, %v3032
        %v3034 = vrot.slane %v3027, 4
        %v3035 = vsel %vm1249, 0.0, %v3034
        %v3036 = vsel %vm1249, %v2974, %v2955
        %v3038 = vunpack.c.l.s4 1983009808
        %v3039 = vunpack.c.0.s8 %v3038
        %v3040 = vperm.slane %v3036, %v3039
        %v3041 = vrot.slane %v2975, 4
        %v3042 = vsel %vm1249, %v3041, %v2973
        %v3044 = vunpack.c.l.s4 1983009808
        %v3045 = vunpack.c.0.s8 %v3044
        %v3046 = vperm.slane %v3042, %v3045
        %v3047 = vsel %vm1249, %v2978, %v2967
        %v3049 = vunpack.c.l.s4 1983009808
        %v3050 = vunpack.c.0.s8 %v3049
        %v3051 = vperm.slane %v3047, %v3050
        %v3052 = vrot.slane %v2979, 4
        %v3053 = vsel %vm1249, %v3052, %v2977
        %v3055 = vunpack.c.l.s4 1983009808
        %v3056 = vunpack.c.0.s8 %v3055
        %v3057 = vperm.slane %v3053, %v3056
        %v3058 = vrot.slane %v3046, 4
        %v3059 = vsel %vm1249, %v3058, %v3040
        %v3060 = vrot.slane %v3040, 4
        %v3061 = vsel %vm1249, %v3046, %v3060
        %v3063 = vunpack.c.l.s4 1934713408
        %v3064 = vunpack.c.0.s8 %v3063
        %v3065 = vperm.slane %v3059, %v3064
        %v3067 = vunpack.c.l.s4 1934713408
        %v3068 = vunpack.c.0.s8 %v3067
        %v3069 = vperm.slane %v3061, %v3068
        %v3070 = vrot.slane %v3057, 4
        %v3071 = vsel %vm1249, %v3070, %v3051
        %v3072 = vrot.slane %v3051, 4
        %v3073 = vsel %vm1249, %v3057, %v3072
        %v3075 = vunpack.c.l.s4 1934713408
        %v3076 = vunpack.c.0.s8 %v3075
        %v3077 = vperm.slane %v3071, %v3076
        %v3079 = vunpack.c.l.s4 1934713408
        %v3080 = vunpack.c.0.s8 %v3079
        %v3081 = vperm.slane %v3073, %v3080
        %v3082 = vrot.slane %v3077, 4
        %v3083 = vsel %vm1249, %v3082, %v3065
        %v3084 = vrot.slane %v3065, 4
        %v3085 = vsel %vm1249, %v3077, %v3084
        %v3086 = vrot.slane %v3081, 4
        %v3087 = vsel %vm1249, %v3086, %v3069
        %v3088 = vrot.slane %v3069, 4
        %v3089 = vsel %vm1249, %v3081, %v3088
        %v3090 = vsel %vm1249, %v3030, %v3011
        %v3092 = vunpack.c.l.s4 1983009808
        %v3093 = vunpack.c.0.s8 %v3092
        %v3094 = vperm.slane %v3090, %v3093
        %v3095 = vrot.slane %v3031, 4
        %v3096 = vsel %vm1249, %v3095, %v3029
        %v3098 = vunpack.c.l.s4 1983009808
        %v3099 = vunpack.c.0.s8 %v3098
        %v3100 = vperm.slane %v3096, %v3099
        %v3101 = vsel %vm1249, %v3034, %v3023
        %v3103 = vunpack.c.l.s4 1983009808
        %v3104 = vunpack.c.0.s8 %v3103
        %v3105 = vperm.slane %v3101, %v3104
        %v3106 = vrot.slane %v3035, 4
        %v3107 = vsel %vm1249, %v3106, %v3033
        %v3109 = vunpack.c.l.s4 1983009808
        %v3110 = vunpack.c.0.s8 %v3109
        %v3111 = vperm.slane %v3107, %v3110
        %v3112 = vrot.slane %v3100, 4
        %v3113 = vsel %vm1249, %v3112, %v3094
        %v3114 = vrot.slane %v3094, 4
        %v3115 = vsel %vm1249, %v3100, %v3114
        %v3117 = vunpack.c.l.s4 1934713408
        %v3118 = vunpack.c.0.s8 %v3117
        %v3119 = vperm.slane %v3113, %v3118
        %v3121 = vunpack.c.l.s4 1934713408
        %v3122 = vunpack.c.0.s8 %v3121
        %v3123 = vperm.slane %v3115, %v3122
        %v3124 = vrot.slane %v3111, 4
        %v3125 = vsel %vm1249, %v3124, %v3105
        %v3126 = vrot.slane %v3105, 4
        %v3127 = vsel %vm1249, %v3111, %v3126
        %v3129 = vunpack.c.l.s4 1934713408
        %v3130 = vunpack.c.0.s8 %v3129
        %v3131 = vperm.slane %v3125, %v3130
        %v3133 = vunpack.c.l.s4 1934713408
        %v3134 = vunpack.c.0.s8 %v3133
        %v3135 = vperm.slane %v3127, %v3134
        %v3136 = vrot.slane %v3131, 4
        %v3137 = vsel %vm1249, %v3136, %v3119
        %v3138 = vrot.slane %v3119, 4
        %v3139 = vsel %vm1249, %v3131, %v3138
        %v3140 = vrot.slane %v3135, 4
        %v3141 = vsel %vm1249, %v3140, %v3123
        %v3142 = vrot.slane %v3123, 4
        %v3143 = vsel %vm1249, %v3135, %v3142
        %v3144 = vpack.c.bf16 %v3083, %v3083
        %v3145 = vpack.c.bf16 %v3137, %v3137
        %v3146 = vpack.c.bf16 %v3085, %v3085
        %v3147 = vpack.c.bf16 %v3139, %v3139
        %v3148 = vpack.c.bf16 %v3087, %v3087
        %v3149 = vpack.c.bf16 %v3141, %v3141
        %v3150 = vpack.c.bf16 %v3089, %v3089
        %v3151 = vpack.c.bf16 %v3143, %v3143
        %3152 = vrot.lane.b32.xlu0 %v2874, 96
        %v3153 = vpop.permute.xlu0 %3152
        %3154 = vrot.lane.b32.xlu0 %v2876, 96
        %v3155 = vpop.permute.xlu0 %3154
        %3156 = vrot.lane.b32.xlu0 %v2907, 96
        %v3157 = vpop.permute.xlu0 %3156
        %3158 = vrot.lane.b32.xlu0 %v2909, 96
        %v3159 = vpop.permute.xlu0 %3158
        %3160 = vrot.lane.b32.xlu0 %v2913, 96
        %v3161 = vpop.permute.xlu0 %3160
        %3162 = vrot.lane.b32.xlu0 %v2915, 96
        %v3163 = vpop.permute.xlu0 %3162
        %3164 = vrot.lane.b32.xlu0 %v2919, 96
        %v3165 = vpop.permute.xlu0 %3164
        %3166 = vrot.lane.b32.xlu0 %v2921, 96
        %v3167 = vpop.permute.xlu0 %3166
        %v3176 = vrot.slane %v3161, 4
        %v3177 = vsel %vm1249, %v3176, %v3153
        %v3178 = vrot.slane %v3153, 4
        %v3179 = vsel %vm1249, %v3161, %v3178
        %v3181 = vunpack.c.l.s4 1983009808
        %v3182 = vunpack.c.0.s8 %v3181
        %v3183 = vperm.slane %v3177, %v3182
        %v3185 = vunpack.c.l.s4 1983009808
        %v3186 = vunpack.c.0.s8 %v3185
        %v3187 = vperm.slane %v3179, %v3186
        %v3188 = vrot.slane %v3165, 4
        %v3189 = vsel %vm1249, %v3188, %v3157
        %v3190 = vrot.slane %v3157, 4
        %v3191 = vsel %vm1249, %v3165, %v3190
        %v3193 = vunpack.c.l.s4 1983009808
        %v3194 = vunpack.c.0.s8 %v3193
        %v3195 = vperm.slane %v3189, %v3194
        %v3197 = vunpack.c.l.s4 1983009808
        %v3198 = vunpack.c.0.s8 %v3197
        %v3199 = vperm.slane %v3191, %v3198
        %v3200 = vrot.slane %v3195, 4
        %v3201 = vsel %vm1249, %v3200, %v3183
        %v3202 = vrot.slane %v3183, 4
        %v3203 = vsel %vm1249, %v3195, %v3202
        %v3205 = vunpack.c.l.s4 1934713408
        %v3206 = vunpack.c.0.s8 %v3205
        %v3207 = vperm.slane %v3201, %v3206
        %v3209 = vunpack.c.l.s4 1934713408
        %v3210 = vunpack.c.0.s8 %v3209
        %v3211 = vperm.slane %v3203, %v3210
        %v3212 = vrot.slane %v3199, 4
        %v3213 = vsel %vm1249, %v3212, %v3187
        %v3214 = vrot.slane %v3187, 4
        %v3215 = vsel %vm1249, %v3199, %v3214
        %v3217 = vunpack.c.l.s4 1934713408
        %v3218 = vunpack.c.0.s8 %v3217
        %v3219 = vperm.slane %v3213, %v3218
        %v3221 = vunpack.c.l.s4 1934713408
        %v3222 = vunpack.c.0.s8 %v3221
        %v3223 = vperm.slane %v3215, %v3222
        %v3224 = vrot.slane %v3207, 4
        %v3225 = vsel %vm1249, 0.0, %v3224
        %v3226 = vrot.slane %v3211, 4
        %v3227 = vsel %vm1249, 0.0, %v3226
        %v3228 = vrot.slane %v3219, 4
        %v3229 = vsel %vm1249, 0.0, %v3228
        %v3230 = vrot.slane %v3223, 4
        %v3231 = vsel %vm1249, 0.0, %v3230
        %v3232 = vrot.slane %v3163, 4
        %v3233 = vsel %vm1249, %v3232, %v3155
        %v3234 = vrot.slane %v3155, 4
        %v3235 = vsel %vm1249, %v3163, %v3234
        %v3237 = vunpack.c.l.s4 1983009808
        %v3238 = vunpack.c.0.s8 %v3237
        %v3239 = vperm.slane %v3233, %v3238
        %v3241 = vunpack.c.l.s4 1983009808
        %v3242 = vunpack.c.0.s8 %v3241
        %v3243 = vperm.slane %v3235, %v3242
        %v3244 = vrot.slane %v3167, 4
        %v3245 = vsel %vm1249, %v3244, %v3159
        %v3246 = vrot.slane %v3159, 4
        %v3247 = vsel %vm1249, %v3167, %v3246
        %v3249 = vunpack.c.l.s4 1983009808
        %v3250 = vunpack.c.0.s8 %v3249
        %v3251 = vperm.slane %v3245, %v3250
        %v3253 = vunpack.c.l.s4 1983009808
        %v3254 = vunpack.c.0.s8 %v3253
        %v3255 = vperm.slane %v3247, %v3254
        %v3256 = vrot.slane %v3251, 4
        %v3257 = vsel %vm1249, %v3256, %v3239
        %v3258 = vrot.slane %v3239, 4
        %v3259 = vsel %vm1249, %v3251, %v3258
        %v3261 = vunpack.c.l.s4 1934713408
        %v3262 = vunpack.c.0.s8 %v3261
        %v3263 = vperm.slane %v3257, %v3262
        %v3265 = vunpack.c.l.s4 1934713408
        %v3266 = vunpack.c.0.s8 %v3265
        %v3267 = vperm.slane %v3259, %v3266
        %v3268 = vrot.slane %v3255, 4
        %v3269 = vsel %vm1249, %v3268, %v3243
        %v3270 = vrot.slane %v3243, 4
        %v3271 = vsel %vm1249, %v3255, %v3270
        %v3273 = vunpack.c.l.s4 1934713408
        %v3274 = vunpack.c.0.s8 %v3273
        %v3275 = vperm.slane %v3269, %v3274
        %v3277 = vunpack.c.l.s4 1934713408
        %v3278 = vunpack.c.0.s8 %v3277
        %v3279 = vperm.slane %v3271, %v3278
        %v3280 = vrot.slane %v3263, 4
        %v3281 = vsel %vm1249, 0.0, %v3280
        %v3282 = vrot.slane %v3267, 4
        %v3283 = vsel %vm1249, 0.0, %v3282
        %v3284 = vrot.slane %v3275, 4
        %v3285 = vsel %vm1249, 0.0, %v3284
        %v3286 = vrot.slane %v3279, 4
        %v3287 = vsel %vm1249, 0.0, %v3286
        %v3288 = vsel %vm1249, %v3226, %v3207
        %v3290 = vunpack.c.l.s4 1983009808
        %v3291 = vunpack.c.0.s8 %v3290
        %v3292 = vperm.slane %v3288, %v3291
        %v3293 = vrot.slane %v3227, 4
        %v3294 = vsel %vm1249, %v3293, %v3225
        %v3296 = vunpack.c.l.s4 1983009808
        %v3297 = vunpack.c.0.s8 %v3296
        %v3298 = vperm.slane %v3294, %v3297
        %v3299 = vsel %vm1249, %v3230, %v3219
        %v3301 = vunpack.c.l.s4 1983009808
        %v3302 = vunpack.c.0.s8 %v3301
        %v3303 = vperm.slane %v3299, %v3302
        %v3304 = vrot.slane %v3231, 4
        %v3305 = vsel %vm1249, %v3304, %v3229
        %v3307 = vunpack.c.l.s4 1983009808
        %v3308 = vunpack.c.0.s8 %v3307
        %v3309 = vperm.slane %v3305, %v3308
        %v3310 = vrot.slane %v3298, 4
        %v3311 = vsel %vm1249, %v3310, %v3292
        %v3312 = vrot.slane %v3292, 4
        %v3313 = vsel %vm1249, %v3298, %v3312
        %v3315 = vunpack.c.l.s4 1934713408
        %v3316 = vunpack.c.0.s8 %v3315
        %v3317 = vperm.slane %v3311, %v3316
        %v3319 = vunpack.c.l.s4 1934713408
        %v3320 = vunpack.c.0.s8 %v3319
        %v3321 = vperm.slane %v3313, %v3320
        %v3322 = vrot.slane %v3309, 4
        %v3323 = vsel %vm1249, %v3322, %v3303
        %v3324 = vrot.slane %v3303, 4
        %v3325 = vsel %vm1249, %v3309, %v3324
        %v3327 = vunpack.c.l.s4 1934713408
        %v3328 = vunpack.c.0.s8 %v3327
        %v3329 = vperm.slane %v3323, %v3328
        %v3331 = vunpack.c.l.s4 1934713408
        %v3332 = vunpack.c.0.s8 %v3331
        %v3333 = vperm.slane %v3325, %v3332
        %v3334 = vrot.slane %v3329, 4
        %v3335 = vsel %vm1249, %v3334, %v3317
        %v3336 = vrot.slane %v3317, 4
        %v3337 = vsel %vm1249, %v3329, %v3336
        %v3338 = vrot.slane %v3333, 4
        %v3339 = vsel %vm1249, %v3338, %v3321
        %v3340 = vrot.slane %v3321, 4
        %v3341 = vsel %vm1249, %v3333, %v3340
        %v3342 = vsel %vm1249, %v3282, %v3263
        %v3344 = vunpack.c.l.s4 1983009808
        %v3345 = vunpack.c.0.s8 %v3344
        %v3346 = vperm.slane %v3342, %v3345
        %v3347 = vrot.slane %v3283, 4
        %v3348 = vsel %vm1249, %v3347, %v3281
        %v3350 = vunpack.c.l.s4 1983009808
        %v3351 = vunpack.c.0.s8 %v3350
        %v3352 = vperm.slane %v3348, %v3351
        %v3353 = vsel %vm1249, %v3286, %v3275
        %v3355 = vunpack.c.l.s4 1983009808
        %v3356 = vunpack.c.0.s8 %v3355
        %v3357 = vperm.slane %v3353, %v3356
        %v3358 = vrot.slane %v3287, 4
        %v3359 = vsel %vm1249, %v3358, %v3285
        %v3361 = vunpack.c.l.s4 1983009808
        %v3362 = vunpack.c.0.s8 %v3361
        %v3363 = vperm.slane %v3359, %v3362
        %v3364 = vrot.slane %v3352, 4
        %v3365 = vsel %vm1249, %v3364, %v3346
        %v3366 = vrot.slane %v3346, 4
        %v3367 = vsel %vm1249, %v3352, %v3366
        %v3369 = vunpack.c.l.s4 1934713408
        %v3370 = vunpack.c.0.s8 %v3369
        %v3371 = vperm.slane %v3365, %v3370
        %v3373 = vunpack.c.l.s4 1934713408
        %v3374 = vunpack.c.0.s8 %v3373
        %v3375 = vperm.slane %v3367, %v3374
        %v3376 = vrot.slane %v3363, 4
        %v3377 = vsel %vm1249, %v3376, %v3357
        %v3378 = vrot.slane %v3357, 4
        %v3379 = vsel %vm1249, %v3363, %v3378
        %v3381 = vunpack.c.l.s4 1934713408
        %v3382 = vunpack.c.0.s8 %v3381
        %v3383 = vperm.slane %v3377, %v3382
        %v3385 = vunpack.c.l.s4 1934713408
        %v3386 = vunpack.c.0.s8 %v3385
        %v3387 = vperm.slane %v3379, %v3386
        %v3388 = vrot.slane %v3383, 4
        %v3389 = vsel %vm1249, %v3388, %v3371
        %v3390 = vrot.slane %v3371, 4
        %v3391 = vsel %vm1249, %v3383, %v3390
        %v3392 = vrot.slane %v3387, 4
        %v3393 = vsel %vm1249, %v3392, %v3375
        %v3394 = vrot.slane %v3375, 4
        %v3395 = vsel %vm1249, %v3387, %v3394
        %v3396 = vpack.c.bf16 %v3335, %v3335
        %v3397 = vpack.c.bf16 %v3389, %v3389
        %v3398 = vpack.c.bf16 %v3337, %v3337
        %v3399 = vpack.c.bf16 %v3391, %v3391
        %v3400 = vpack.c.bf16 %v3339, %v3339
        %v3401 = vpack.c.bf16 %v3393, %v3393
        %v3402 = vpack.c.bf16 %v3341, %v3341
        %v3403 = vpack.c.bf16 %v3395, %v3395
        %3406 = vrot.lane.b32.xlu0 %v2900, 120
        %v3407 = vpop.permute.xlu0 %3406
        %3408 = vrot.lane.b32.xlu0 %v2902, 120
        %v3409 = vpop.permute.xlu0 %3408
        %3412 = vrot.lane.b32.xlu0 %v2900, 112
        %v3413 = vpop.permute.xlu0 %3412
        %3414 = vrot.lane.b32.xlu0 %v2902, 112
        %v3415 = vpop.permute.xlu0 %3414
        %3418 = vrot.lane.b32.xlu0 %v2900, 104
        %v3419 = vpop.permute.xlu0 %3418
        %3420 = vrot.lane.b32.xlu0 %v2902, 104
        %v3421 = vpop.permute.xlu0 %3420
        %v3424 = vrot.slane %v3413, 4
        %v3425 = vsel %vm1249, %v3424, %v2900
        %v3426 = vrot.slane %v2900, 4
        %v3427 = vsel %vm1249, %v3413, %v3426
        %v3429 = vunpack.c.l.s4 1983009808
        %v3430 = vunpack.c.0.s8 %v3429
        %v3431 = vperm.slane %v3425, %v3430
        %v3433 = vunpack.c.l.s4 1983009808
        %v3434 = vunpack.c.0.s8 %v3433
        %v3435 = vperm.slane %v3427, %v3434
        %v3436 = vrot.slane %v3419, 4
        %v3437 = vsel %vm1249, %v3436, %v3407
        %v3438 = vrot.slane %v3407, 4
        %v3439 = vsel %vm1249, %v3419, %v3438
        %v3441 = vunpack.c.l.s4 1983009808
        %v3442 = vunpack.c.0.s8 %v3441
        %v3443 = vperm.slane %v3437, %v3442
        %v3445 = vunpack.c.l.s4 1983009808
        %v3446 = vunpack.c.0.s8 %v3445
        %v3447 = vperm.slane %v3439, %v3446
        %v3448 = vrot.slane %v3443, 4
        %v3449 = vsel %vm1249, %v3448, %v3431
        %v3450 = vrot.slane %v3431, 4
        %v3451 = vsel %vm1249, %v3443, %v3450
        %v3453 = vunpack.c.l.s4 1934713408
        %v3454 = vunpack.c.0.s8 %v3453
        %v3455 = vperm.slane %v3449, %v3454
        %v3457 = vunpack.c.l.s4 1934713408
        %v3458 = vunpack.c.0.s8 %v3457
        %v3459 = vperm.slane %v3451, %v3458
        %v3460 = vrot.slane %v3447, 4
        %v3461 = vsel %vm1249, %v3460, %v3435
        %v3462 = vrot.slane %v3435, 4
        %v3463 = vsel %vm1249, %v3447, %v3462
        %v3465 = vunpack.c.l.s4 1934713408
        %v3466 = vunpack.c.0.s8 %v3465
        %v3467 = vperm.slane %v3461, %v3466
        %v3469 = vunpack.c.l.s4 1934713408
        %v3470 = vunpack.c.0.s8 %v3469
        %v3471 = vperm.slane %v3463, %v3470
        %v3472 = vrot.slane %v3455, 4
        %v3473 = vsel %vm1249, 0.0, %v3472
        %v3474 = vrot.slane %v3459, 4
        %v3475 = vsel %vm1249, 0.0, %v3474
        %v3476 = vrot.slane %v3467, 4
        %v3477 = vsel %vm1249, 0.0, %v3476
        %v3478 = vrot.slane %v3471, 4
        %v3479 = vsel %vm1249, 0.0, %v3478
        %v3480 = vrot.slane %v3415, 4
        %v3481 = vsel %vm1249, %v3480, %v2902
        %v3482 = vrot.slane %v2902, 4
        %v3483 = vsel %vm1249, %v3415, %v3482
        %v3485 = vunpack.c.l.s4 1983009808
        %v3486 = vunpack.c.0.s8 %v3485
        %v3487 = vperm.slane %v3481, %v3486
        %v3489 = vunpack.c.l.s4 1983009808
        %v3490 = vunpack.c.0.s8 %v3489
        %v3491 = vperm.slane %v3483, %v3490
        %v3492 = vrot.slane %v3421, 4
        %v3493 = vsel %vm1249, %v3492, %v3409
        %v3494 = vrot.slane %v3409, 4
        %v3495 = vsel %vm1249, %v3421, %v3494
        %v3497 = vunpack.c.l.s4 1983009808
        %v3498 = vunpack.c.0.s8 %v3497
        %v3499 = vperm.slane %v3493, %v3498
        %v3501 = vunpack.c.l.s4 1983009808
        %v3502 = vunpack.c.0.s8 %v3501
        %v3503 = vperm.slane %v3495, %v3502
        %v3504 = vrot.slane %v3499, 4
        %v3505 = vsel %vm1249, %v3504, %v3487
        %v3506 = vrot.slane %v3487, 4
        %v3507 = vsel %vm1249, %v3499, %v3506
        %v3509 = vunpack.c.l.s4 1934713408
        %v3510 = vunpack.c.0.s8 %v3509
        %v3511 = vperm.slane %v3505, %v3510
        %v3513 = vunpack.c.l.s4 1934713408
        %v3514 = vunpack.c.0.s8 %v3513
        %v3515 = vperm.slane %v3507, %v3514
        %v3516 = vrot.slane %v3503, 4
        %v3517 = vsel %vm1249, %v3516, %v3491
        %v3518 = vrot.slane %v3491, 4
        %v3519 = vsel %vm1249, %v3503, %v3518
        %v3521 = vunpack.c.l.s4 1934713408
        %v3522 = vunpack.c.0.s8 %v3521
        %v3523 = vperm.slane %v3517, %v3522
        %v3525 = vunpack.c.l.s4 1934713408
        %v3526 = vunpack.c.0.s8 %v3525
        %v3527 = vperm.slane %v3519, %v3526
        %v3528 = vrot.slane %v3511, 4
        %v3529 = vsel %vm1249, 0.0, %v3528
        %v3530 = vrot.slane %v3515, 4
        %v3531 = vsel %vm1249, 0.0, %v3530
        %v3532 = vrot.slane %v3523, 4
        %v3533 = vsel %vm1249, 0.0, %v3532
        %v3534 = vrot.slane %v3527, 4
        %v3535 = vsel %vm1249, 0.0, %v3534
        %v3536 = vsel %vm1249, %v3474, %v3455
        %v3538 = vunpack.c.l.s4 1983009808
        %v3539 = vunpack.c.0.s8 %v3538
        %v3540 = vperm.slane %v3536, %v3539
        %v3541 = vrot.slane %v3475, 4
        %v3542 = vsel %vm1249, %v3541, %v3473
        %v3544 = vunpack.c.l.s4 1983009808
        %v3545 = vunpack.c.0.s8 %v3544
        %v3546 = vperm.slane %v3542, %v3545
        %v3547 = vsel %vm1249, %v3478, %v3467
        %v3549 = vunpack.c.l.s4 1983009808
        %v3550 = vunpack.c.0.s8 %v3549
        %v3551 = vperm.slane %v3547, %v3550
        %v3552 = vrot.slane %v3479, 4
        %v3553 = vsel %vm1249, %v3552, %v3477
        %v3555 = vunpack.c.l.s4 1983009808
        %v3556 = vunpack.c.0.s8 %v3555
        %v3557 = vperm.slane %v3553, %v3556
        %v3558 = vrot.slane %v3546, 4
        %v3559 = vsel %vm1249, %v3558, %v3540
        %v3560 = vrot.slane %v3540, 4
        %v3561 = vsel %vm1249, %v3546, %v3560
        %v3563 = vunpack.c.l.s4 1934713408
        %v3564 = vunpack.c.0.s8 %v3563
        %v3565 = vperm.slane %v3559, %v3564
        %v3567 = vunpack.c.l.s4 1934713408
        %v3568 = vunpack.c.0.s8 %v3567
        %v3569 = vperm.slane %v3561, %v3568
        %v3570 = vrot.slane %v3557, 4
        %v3571 = vsel %vm1249, %v3570, %v3551
        %v3572 = vrot.slane %v3551, 4
        %v3573 = vsel %vm1249, %v3557, %v3572
        %v3575 = vunpack.c.l.s4 1934713408
        %v3576 = vunpack.c.0.s8 %v3575
        %v3577 = vperm.slane %v3571, %v3576
        %v3579 = vunpack.c.l.s4 1934713408
        %v3580 = vunpack.c.0.s8 %v3579
        %v3581 = vperm.slane %v3573, %v3580
        %v3582 = vrot.slane %v3577, 4
        %v3583 = vsel %vm1249, %v3582, %v3565
        %v3584 = vrot.slane %v3565, 4
        %v3585 = vsel %vm1249, %v3577, %v3584
        %v3586 = vrot.slane %v3581, 4
        %v3587 = vsel %vm1249, %v3586, %v3569
        %v3588 = vrot.slane %v3569, 4
        %v3589 = vsel %vm1249, %v3581, %v3588
        %v3590 = vsel %vm1249, %v3530, %v3511
        %v3592 = vunpack.c.l.s4 1983009808
        %v3593 = vunpack.c.0.s8 %v3592
        %v3594 = vperm.slane %v3590, %v3593
        %v3595 = vrot.slane %v3531, 4
        %v3596 = vsel %vm1249, %v3595, %v3529
        %v3598 = vunpack.c.l.s4 1983009808
        %v3599 = vunpack.c.0.s8 %v3598
        %v3600 = vperm.slane %v3596, %v3599
        %v3601 = vsel %vm1249, %v3534, %v3523
        %v3603 = vunpack.c.l.s4 1983009808
        %v3604 = vunpack.c.0.s8 %v3603
        %v3605 = vperm.slane %v3601, %v3604
        %v3606 = vrot.slane %v3535, 4
        %v3607 = vsel %vm1249, %v3606, %v3533
        %v3609 = vunpack.c.l.s4 1983009808
        %v3610 = vunpack.c.0.s8 %v3609
        %v3611 = vperm.slane %v3607, %v3610
        %v3612 = vrot.slane %v3600, 4
        %v3613 = vsel %vm1249, %v3612, %v3594
        %v3614 = vrot.slane %v3594, 4
        %v3615 = vsel %vm1249, %v3600, %v3614
        %v3617 = vunpack.c.l.s4 1934713408
        %v3618 = vunpack.c.0.s8 %v3617
        %v3619 = vperm.slane %v3613, %v3618
        %v3621 = vunpack.c.l.s4 1934713408
        %v3622 = vunpack.c.0.s8 %v3621
        %v3623 = vperm.slane %v3615, %v3622
        %v3624 = vrot.slane %v3611, 4
        %v3625 = vsel %vm1249, %v3624, %v3605
        %v3626 = vrot.slane %v3605, 4
        %v3627 = vsel %vm1249, %v3611, %v3626
        %v3629 = vunpack.c.l.s4 1934713408
        %v3630 = vunpack.c.0.s8 %v3629
        %v3631 = vperm.slane %v3625, %v3630
        %v3633 = vunpack.c.l.s4 1934713408
        %v3634 = vunpack.c.0.s8 %v3633
        %v3635 = vperm.slane %v3627, %v3634
        %v3636 = vrot.slane %v3631, 4
        %v3637 = vsel %vm1249, %v3636, %v3619
        %v3638 = vrot.slane %v3619, 4
        %v3639 = vsel %vm1249, %v3631, %v3638
        %v3640 = vrot.slane %v3635, 4
        %v3641 = vsel %vm1249, %v3640, %v3623
        %v3642 = vrot.slane %v3623, 4
        %v3643 = vsel %vm1249, %v3635, %v3642
        %v3644 = vpack.c.bf16 %v3583, %v3583
        %v3645 = vpack.c.bf16 %v3637, %v3637
        %v3646 = vpack.c.bf16 %v3585, %v3585
        %v3647 = vpack.c.bf16 %v3639, %v3639
        %v3648 = vpack.c.bf16 %v3587, %v3587
        %v3649 = vpack.c.bf16 %v3641, %v3641
        %v3650 = vpack.c.bf16 %v3589, %v3589
        %v3651 = vpack.c.bf16 %v3643, %v3643
        %v3654 = vunpack.c.l.b16 %v3144
        %v3655 = vunpack.c.l.b16 %v3145
        %v3656 = vpack.c.b16 %v3655, %v3654
        %v3659 = vunpack.c.l.b16 %v3396
        %v3660 = vunpack.c.l.b16 %v3397
        %v3661 = vpack.c.b16 %v3660, %v3659
        %v3663 = vsel %vm1987, %v3656, 0
        %v3666 = vsel %vm1987, %v3661, 0
        %3668 = vmatpush.bf16.xpose.msra.mxu0 0
        %3669 = vmatpush.bf16.xpose.msra.mxu0 0
        %3670 = vmatpush.bf16.xpose.msra.mxu0 0
        %3671 = vmatpush.bf16.xpose.msra.mxu0 0
        %3672 = vmatpush.bf16.xpose.msra.mxu0 0
        %3673 = vmatpush.bf16.xpose.msra.mxu0 0
        %3674 = vmatpush.bf16.xpose.msra.mxu0 0
        %3675 = vmatpush.bf16.xpose.msra.mxu0 %v3666
        %3676 = vmatmul.bf16.gmra.mxu0 %v3663
        %v3677 = vpop.f32.mrf.mxu0
        %v3678 = vadd.f32 0.0, %v3677
        %v3679 = vpop.f32.mrf.mxu0
        %v3680 = vadd.f32 0.0, %v3679
        %3681 = vdwg.mxu0
        %v3684 = vunpack.c.l.b16 %v3146
        %v3685 = vunpack.c.l.b16 %v3147
        %v3686 = vpack.c.b16 %v3685, %v3684
        %v3689 = vunpack.c.l.b16 %v3398
        %v3690 = vunpack.c.l.b16 %v3399
        %v3691 = vpack.c.b16 %v3690, %v3689
        %v3693 = vsel %vm1987, %v3686, 0
        %v3696 = vsel %vm1987, %v3691, 0
        %3698 = vmatpush.bf16.xpose.msra.mxu0 0
        %3699 = vmatpush.bf16.xpose.msra.mxu0 0
        %3700 = vmatpush.bf16.xpose.msra.mxu0 0
        %3701 = vmatpush.bf16.xpose.msra.mxu0 0
        %3702 = vmatpush.bf16.xpose.msra.mxu0 0
        %3703 = vmatpush.bf16.xpose.msra.mxu0 0
        %3704 = vmatpush.bf16.xpose.msra.mxu0 0
        %3705 = vmatpush.bf16.xpose.msra.mxu0 %v3696
        %3706 = vmatmul.bf16.gmra.mxu0 %v3693
        %v3707 = vpop.f32.mrf.mxu0
        %v3708 = vadd.f32 0.0, %v3707
        %v3709 = vpop.f32.mrf.mxu0
        %v3710 = vadd.f32 0.0, %v3709
        %3711 = vdwg.mxu0
        %v3714 = vunpack.c.l.b16 %v3148
        %v3715 = vunpack.c.l.b16 %v3149
        %v3716 = vpack.c.b16 %v3715, %v3714
        %v3719 = vunpack.c.l.b16 %v3400
        %v3720 = vunpack.c.l.b16 %v3401
        %v3721 = vpack.c.b16 %v3720, %v3719
        %v3723 = vsel %vm1987, %v3716, 0
        %v3726 = vsel %vm1987, %v3721, 0
        %3728 = vmatpush.bf16.xpose.msra.mxu0 0
        %3729 = vmatpush.bf16.xpose.msra.mxu0 0
        %3730 = vmatpush.bf16.xpose.msra.mxu0 0
        %3731 = vmatpush.bf16.xpose.msra.mxu0 0
        %3732 = vmatpush.bf16.xpose.msra.mxu0 0
        %3733 = vmatpush.bf16.xpose.msra.mxu0 0
        %3734 = vmatpush.bf16.xpose.msra.mxu0 0
        %3735 = vmatpush.bf16.xpose.msra.mxu0 %v3726
        %3736 = vmatmul.bf16.gmra.mxu0 %v3723
        %v3737 = vpop.f32.mrf.mxu0
        %v3738 = vadd.f32 0.0, %v3737
        %v3739 = vpop.f32.mrf.mxu0
        %v3740 = vadd.f32 0.0, %v3739
        %3741 = vdwg.mxu0
        %v3744 = vunpack.c.l.b16 %v3150
        %v3745 = vunpack.c.l.b16 %v3151
        %v3746 = vpack.c.b16 %v3745, %v3744
        %v3749 = vunpack.c.l.b16 %v3402
        %v3750 = vunpack.c.l.b16 %v3403
        %v3751 = vpack.c.b16 %v3750, %v3749
        %v3753 = vsel %vm1987, %v3746, 0
        %v3756 = vsel %vm1987, %v3751, 0
        %3758 = vmatpush.bf16.xpose.msra.mxu0 0
        %3759 = vmatpush.bf16.xpose.msra.mxu0 0
        %3760 = vmatpush.bf16.xpose.msra.mxu0 0
        %3761 = vmatpush.bf16.xpose.msra.mxu0 0
        %3762 = vmatpush.bf16.xpose.msra.mxu0 0
        %3763 = vmatpush.bf16.xpose.msra.mxu0 0
        %3764 = vmatpush.bf16.xpose.msra.mxu0 0
        %3765 = vmatpush.bf16.xpose.msra.mxu0 %v3756
        %3766 = vmatmul.bf16.gmra.mxu0 %v3753
        %v3767 = vpop.f32.mrf.mxu0
        %v3768 = vadd.f32 0.0, %v3767
        %v3769 = vpop.f32.mrf.mxu0
        %v3770 = vadd.f32 0.0, %v3769
        %3771 = vdwg.mxu0
        %v3772 = vmul.f32 %v3678, 0.35355338
        %v3773 = vmul.f32 %v3680, 0.35355338
        %v3774 = vmul.f32 %v3708, 0.35355338
        %v3775 = vmul.f32 %v3710, 0.35355338
        %v3776 = vmul.f32 %v3738, 0.35355338
        %v3777 = vmul.f32 %v3740, 0.35355338
        %v3778 = vmul.f32 %v3768, 0.35355338
        %v3779 = vmul.f32 %v3770, 0.35355338
        %v3780 = vadd.f32 %v3772, %v2107
        %v3781 = vadd.f32 %v3773, %v2107
        %v3782 = vadd.f32 %v3774, %v2107
        %v3783 = vadd.f32 %v3775, %v2107
        %v3784 = vadd.f32 %v3776, %v2107
        %v3785 = vadd.f32 %v3777, %v2107
        %v3786 = vadd.f32 %v3778, %v2107
        %v3787 = vadd.f32 %v3779, %v2107
        %v3788 = vsel %vm2117, %v3780, -inf
        %3789 = vmax.xlane.f32.xlu0 %v3788
        %v3790 = vpop.xlane.xlu0 %3789
        %v3791 = vsel %vm2117, %v3781, -inf
        %3792 = vmax.xlane.f32.xlu0 %v3791
        %v3793 = vpop.xlane.xlu0 %3792
        %v3794 = vsel %vm2117, %v3782, -inf
        %3795 = vmax.xlane.f32.xlu0 %v3794
        %v3796 = vpop.xlane.xlu0 %3795
        %v3797 = vsel %vm2117, %v3783, -inf
        %3798 = vmax.xlane.f32.xlu0 %v3797
        %v3799 = vpop.xlane.xlu0 %3798
        %v3800 = vsel %vm2117, %v3784, -inf
        %3801 = vmax.xlane.f32.xlu0 %v3800
        %v3802 = vpop.xlane.xlu0 %3801
        %v3803 = vsel %vm2117, %v3785, -inf
        %3804 = vmax.xlane.f32.xlu0 %v3803
        %v3805 = vpop.xlane.xlu0 %3804
        %v3806 = vsel %vm2117, %v3786, -inf
        %3807 = vmax.xlane.f32.xlu0 %v3806
        %v3808 = vpop.xlane.xlu0 %3807
        %v3809 = vsel %vm2117, %v3787, -inf
        %3810 = vmax.xlane.f32.xlu0 %v3809
        %v3811 = vpop.xlane.xlu0 %3810
        %v3812 = vsub.f32 %v3780, %v3790
        %v3813 = vsub.f32 %v3781, %v3793
        %v3814 = vsub.f32 %v3782, %v3796
        %v3815 = vsub.f32 %v3783, %v3799
        %v3816 = vsub.f32 %v3784, %v3802
        %v3817 = vsub.f32 %v3785, %v3805
        %v3818 = vsub.f32 %v3786, %v3808
        %v3819 = vsub.f32 %v3787, %v3811
        %v3820 = vmul.f32 %v3812, 1.442695
        %v3821 = vpow.pop %v3820
        %v3822 = vmul.f32 %v3813, 1.442695
        %v3823 = vpow.pop %v3822
        %v3824 = vmul.f32 %v3814, 1.442695
        %v3825 = vpow.pop %v3824
        %v3826 = vmul.f32 %v3815, 1.442695
        %v3827 = vpow.pop %v3826
        %v3828 = vmul.f32 %v3816, 1.442695
        %v3829 = vpow.pop %v3828
        %v3830 = vmul.f32 %v3817, 1.442695
        %v3831 = vpow.pop %v3830
        %v3832 = vmul.f32 %v3818, 1.442695
        %v3833 = vpow.pop %v3832
        %v3834 = vmul.f32 %v3819, 1.442695
        %v3835 = vpow.pop %v3834
        %v3836 = vsel %vm2117, %v3821, 0.0
        %3837 = vadd.xlane.f32.xlu0 %v3836
        %v3838 = vpop.xlane.xlu0 %3837
        %v3839 = vsel %vm2117, %v3823, 0.0
        %3840 = vadd.xlane.f32.xlu0 %v3839
        %v3841 = vpop.xlane.xlu0 %3840
        %v3842 = vsel %vm2117, %v3825, 0.0
        %3843 = vadd.xlane.f32.xlu0 %v3842
        %v3844 = vpop.xlane.xlu0 %3843
        %v3845 = vsel %vm2117, %v3827, 0.0
        %3846 = vadd.xlane.f32.xlu0 %v3845
        %v3847 = vpop.xlane.xlu0 %3846
        %v3848 = vsel %vm2117, %v3829, 0.0
        %3849 = vadd.xlane.f32.xlu0 %v3848
        %v3850 = vpop.xlane.xlu0 %3849
        %v3851 = vsel %vm2117, %v3831, 0.0
        %3852 = vadd.xlane.f32.xlu0 %v3851
        %v3853 = vpop.xlane.xlu0 %3852
        %v3854 = vsel %vm2117, %v3833, 0.0
        %3855 = vadd.xlane.f32.xlu0 %v3854
        %v3856 = vpop.xlane.xlu0 %3855
        %v3857 = vsel %vm2117, %v3835, 0.0
        %3858 = vadd.xlane.f32.xlu0 %v3857
        %v3859 = vpop.xlane.xlu0 %3858
        %v3860 = vrcp.pop %v3838
        %v3861 = vrcp.pop %v3841
        %v3862 = vrcp.pop %v3844
        %v3863 = vrcp.pop %v3847
        %v3864 = vrcp.pop %v3850
        %v3865 = vrcp.pop %v3853
        %v3866 = vrcp.pop %v3856
        %v3867 = vrcp.pop %v3859
        %v3868 = vmul.f32 %v3821, %v3860
        %v3869 = vmul.f32 %v3823, %v3861
        %v3870 = vmul.f32 %v3825, %v3862
        %v3871 = vmul.f32 %v3827, %v3863
        %v3872 = vmul.f32 %v3829, %v3864
        %v3873 = vmul.f32 %v3831, %v3865
        %v3874 = vmul.f32 %v3833, %v3866
        %v3875 = vmul.f32 %v3835, %v3867
        %v3876 = vpack.c.bf16 %v3868, %v3868
        %v3877 = vpack.c.bf16 %v3869, %v3869
        %v3878 = vpack.c.bf16 %v3870, %v3870
        %v3879 = vpack.c.bf16 %v3871, %v3871
        %v3880 = vpack.c.bf16 %v3872, %v3872
        %v3881 = vpack.c.bf16 %v3873, %v3873
        %v3882 = vpack.c.bf16 %v3874, %v3874
        %v3883 = vpack.c.bf16 %v3875, %v3875
        %v3886 = vunpack.c.l.b16 %v3876
        %v3887 = vunpack.c.l.b16 %v3877
        %v3888 = vpack.c.b16 %v3887, %v3886
        %v3891 = vunpack.c.l.b16 %v3644
        %v3892 = vunpack.c.l.b16 %v3645
        %v3893 = vpack.c.b16 %v3892, %v3891
        %v3896 = vsel %vm2117, %v3888, 0
        %3898 = vmatpush.bf16.msra.mxu0 0
        %3899 = vmatpush.bf16.msra.mxu0 0
        %3900 = vmatpush.bf16.msra.mxu0 0
        %3901 = vmatpush.bf16.msra.mxu0 0
        %3902 = vmatpush.bf16.msra.mxu0 0
        %3903 = vmatpush.bf16.msra.mxu0 0
        %3904 = vmatpush.bf16.msra.mxu0 0
        %3905 = vmatpush.bf16.msra.mxu0 %v3893
        %3906 = vmatmul.bf16.gmra.mxu0 %v3896
        %v3907 = vpop.f32.mrf.mxu0
        %v3908 = vadd.f32 0.0, %v3907
        %v3909 = vpop.f32.mrf.mxu0
        %v3910 = vadd.f32 0.0, %v3909
        %3911 = vdwg.mxu0
        %v3914 = vunpack.c.l.b16 %v3878
        %v3915 = vunpack.c.l.b16 %v3879
        %v3916 = vpack.c.b16 %v3915, %v3914
        %v3919 = vunpack.c.l.b16 %v3646
        %v3920 = vunpack.c.l.b16 %v3647
        %v3921 = vpack.c.b16 %v3920, %v3919
        %v3924 = vsel %vm2117, %v3916, 0
        %3926 = vmatpush.bf16.msra.mxu0 0
        %3927 = vmatpush.bf16.msra.mxu0 0
        %3928 = vmatpush.bf16.msra.mxu0 0
        %3929 = vmatpush.bf16.msra.mxu0 0
        %3930 = vmatpush.bf16.msra.mxu0 0
        %3931 = vmatpush.bf16.msra.mxu0 0
        %3932 = vmatpush.bf16.msra.mxu0 0
        %3933 = vmatpush.bf16.msra.mxu0 %v3921
        %3934 = vmatmul.bf16.gmra.mxu0 %v3924
        %v3935 = vpop.f32.mrf.mxu0
        %v3936 = vadd.f32 0.0, %v3935
        %v3937 = vpop.f32.mrf.mxu0
        %v3938 = vadd.f32 0.0, %v3937
        %3939 = vdwg.mxu0
        %v3942 = vunpack.c.l.b16 %v3880
        %v3943 = vunpack.c.l.b16 %v3881
        %v3944 = vpack.c.b16 %v3943, %v3942
        %v3947 = vunpack.c.l.b16 %v3648
        %v3948 = vunpack.c.l.b16 %v3649
        %v3949 = vpack.c.b16 %v3948, %v3947
        %v3952 = vsel %vm2117, %v3944, 0
        %3954 = vmatpush.bf16.msra.mxu0 0
        %3955 = vmatpush.bf16.msra.mxu0 0
        %3956 = vmatpush.bf16.msra.mxu0 0
        %3957 = vmatpush.bf16.msra.mxu0 0
        %3958 = vmatpush.bf16.msra.mxu0 0
        %3959 = vmatpush.bf16.msra.mxu0 0
        %3960 = vmatpush.bf16.msra.mxu0 0
        %3961 = vmatpush.bf16.msra.mxu0 %v3949
        %3962 = vmatmul.bf16.gmra.mxu0 %v3952
        %v3963 = vpop.f32.mrf.mxu0
        %v3964 = vadd.f32 0.0, %v3963
        %v3965 = vpop.f32.mrf.mxu0
        %v3966 = vadd.f32 0.0, %v3965
        %3967 = vdwg.mxu0
        %v3970 = vunpack.c.l.b16 %v3882
        %v3971 = vunpack.c.l.b16 %v3883
        %v3972 = vpack.c.b16 %v3971, %v3970
        %v3975 = vunpack.c.l.b16 %v3650
        %v3976 = vunpack.c.l.b16 %v3651
        %v3977 = vpack.c.b16 %v3976, %v3975
        %v3980 = vsel %vm2117, %v3972, 0
        %3982 = vmatpush.bf16.msra.mxu0 0
        %3983 = vmatpush.bf16.msra.mxu0 0
        %3984 = vmatpush.bf16.msra.mxu0 0
        %3985 = vmatpush.bf16.msra.mxu0 0
        %3986 = vmatpush.bf16.msra.mxu0 0
        %3987 = vmatpush.bf16.msra.mxu0 0
        %3988 = vmatpush.bf16.msra.mxu0 0
        %3989 = vmatpush.bf16.msra.mxu0 %v3977
        %3990 = vmatmul.bf16.gmra.mxu0 %v3980
        %v3991 = vpop.f32.mrf.mxu0
        %v3992 = vadd.f32 0.0, %v3991
        %v3993 = vpop.f32.mrf.mxu0
        %v3994 = vadd.f32 0.0, %v3993
        %3995 = vdwg.mxu0
        %v3996 = vrot.slane %v3964, 4
        %v3997 = vsel %vm1249, %v3996, %v3908
        %v3998 = vrot.slane %v3908, 4
        %v3999 = vsel %vm1249, %v3964, %v3998
        %v4001 = vunpack.c.l.s4 1983009808
        %v4002 = vunpack.c.0.s8 %v4001
        %v4003 = vperm.slane %v3997, %v4002
        %v4005 = vunpack.c.l.s4 1983009808
        %v4006 = vunpack.c.0.s8 %v4005
        %v4007 = vperm.slane %v3999, %v4006
        %v4008 = vrot.slane %v3992, 4
        %v4009 = vsel %vm1249, %v4008, %v3936
        %v4010 = vrot.slane %v3936, 4
        %v4011 = vsel %vm1249, %v3992, %v4010
        %v4013 = vunpack.c.l.s4 1983009808
        %v4014 = vunpack.c.0.s8 %v4013
        %v4015 = vperm.slane %v4009, %v4014
        %v4017 = vunpack.c.l.s4 1983009808
        %v4018 = vunpack.c.0.s8 %v4017
        %v4019 = vperm.slane %v4011, %v4018
        %v4020 = vrot.slane %v4015, 4
        %v4021 = vsel %vm1249, %v4020, %v4003
        %v4022 = vrot.slane %v4003, 4
        %v4023 = vsel %vm1249, %v4015, %v4022
        %v4025 = vunpack.c.l.s4 1934713408
        %v4026 = vunpack.c.0.s8 %v4025
        %v4027 = vperm.slane %v4021, %v4026
        %v4029 = vunpack.c.l.s4 1934713408
        %v4030 = vunpack.c.0.s8 %v4029
        %v4031 = vperm.slane %v4023, %v4030
        %v4032 = vrot.slane %v4019, 4
        %v4033 = vsel %vm1249, %v4032, %v4007
        %v4034 = vrot.slane %v4007, 4
        %v4035 = vsel %vm1249, %v4019, %v4034
        %v4037 = vunpack.c.l.s4 1934713408
        %v4038 = vunpack.c.0.s8 %v4037
        %v4039 = vperm.slane %v4033, %v4038
        %v4041 = vunpack.c.l.s4 1934713408
        %v4042 = vunpack.c.0.s8 %v4041
        %v4043 = vperm.slane %v4035, %v4042
        %v4044 = vrot.slane %v4027, 4
        %v4045 = vsel %vm1249, 0.0, %v4044
        %v4046 = vrot.slane %v4031, 4
        %v4047 = vsel %vm1249, 0.0, %v4046
        %v4048 = vrot.slane %v4039, 4
        %v4049 = vsel %vm1249, 0.0, %v4048
        %v4050 = vrot.slane %v4043, 4
        %v4051 = vsel %vm1249, 0.0, %v4050
        %v4052 = vrot.slane %v3966, 4
        %v4053 = vsel %vm1249, %v4052, %v3910
        %v4054 = vrot.slane %v3910, 4
        %v4055 = vsel %vm1249, %v3966, %v4054
        %v4057 = vunpack.c.l.s4 1983009808
        %v4058 = vunpack.c.0.s8 %v4057
        %v4059 = vperm.slane %v4053, %v4058
        %v4061 = vunpack.c.l.s4 1983009808
        %v4062 = vunpack.c.0.s8 %v4061
        %v4063 = vperm.slane %v4055, %v4062
        %v4064 = vrot.slane %v3994, 4
        %v4065 = vsel %vm1249, %v4064, %v3938
        %v4066 = vrot.slane %v3938, 4
        %v4067 = vsel %vm1249, %v3994, %v4066
        %v4069 = vunpack.c.l.s4 1983009808
        %v4070 = vunpack.c.0.s8 %v4069
        %v4071 = vperm.slane %v4065, %v4070
        %v4073 = vunpack.c.l.s4 1983009808
        %v4074 = vunpack.c.0.s8 %v4073
        %v4075 = vperm.slane %v4067, %v4074
        %v4076 = vrot.slane %v4071, 4
        %v4077 = vsel %vm1249, %v4076, %v4059
        %v4078 = vrot.slane %v4059, 4
        %v4079 = vsel %vm1249, %v4071, %v4078
        %v4081 = vunpack.c.l.s4 1934713408
        %v4082 = vunpack.c.0.s8 %v4081
        %v4083 = vperm.slane %v4077, %v4082
        %v4085 = vunpack.c.l.s4 1934713408
        %v4086 = vunpack.c.0.s8 %v4085
        %v4087 = vperm.slane %v4079, %v4086
        %v4088 = vrot.slane %v4075, 4
        %v4089 = vsel %vm1249, %v4088, %v4063
        %v4090 = vrot.slane %v4063, 4
        %v4091 = vsel %vm1249, %v4075, %v4090
        %v4093 = vunpack.c.l.s4 1934713408
        %v4094 = vunpack.c.0.s8 %v4093
        %v4095 = vperm.slane %v4089, %v4094
        %v4097 = vunpack.c.l.s4 1934713408
        %v4098 = vunpack.c.0.s8 %v4097
        %v4099 = vperm.slane %v4091, %v4098
        %v4100 = vrot.slane %v4083, 4
        %v4101 = vsel %vm1249, 0.0, %v4100
        %v4102 = vrot.slane %v4087, 4
        %v4103 = vsel %vm1249, 0.0, %v4102
        %v4104 = vrot.slane %v4095, 4
        %v4105 = vsel %vm1249, 0.0, %v4104
        %v4106 = vrot.slane %v4099, 4
        %v4107 = vsel %vm1249, 0.0, %v4106
        %v4108 = vsel %vm1249, %v4046, %v4027
        %v4110 = vunpack.c.l.s4 1983009808
        %v4111 = vunpack.c.0.s8 %v4110
        %v4112 = vperm.slane %v4108, %v4111
        %v4113 = vrot.slane %v4047, 4
        %v4114 = vsel %vm1249, %v4113, %v4045
        %v4116 = vunpack.c.l.s4 1983009808
        %v4117 = vunpack.c.0.s8 %v4116
        %v4118 = vperm.slane %v4114, %v4117
        %v4119 = vsel %vm1249, %v4050, %v4039
        %v4121 = vunpack.c.l.s4 1983009808
        %v4122 = vunpack.c.0.s8 %v4121
        %v4123 = vperm.slane %v4119, %v4122
        %v4124 = vrot.slane %v4051, 4
        %v4125 = vsel %vm1249, %v4124, %v4049
        %v4127 = vunpack.c.l.s4 1983009808
        %v4128 = vunpack.c.0.s8 %v4127
        %v4129 = vperm.slane %v4125, %v4128
        %v4130 = vrot.slane %v4118, 4
        %v4131 = vsel %vm1249, %v4130, %v4112
        %v4132 = vrot.slane %v4112, 4
        %v4133 = vsel %vm1249, %v4118, %v4132
        %v4135 = vunpack.c.l.s4 1934713408
        %v4136 = vunpack.c.0.s8 %v4135
        %v4137 = vperm.slane %v4131, %v4136
        %v4139 = vunpack.c.l.s4 1934713408
        %v4140 = vunpack.c.0.s8 %v4139
        %v4141 = vperm.slane %v4133, %v4140
        %v4142 = vrot.slane %v4129, 4
        %v4143 = vsel %vm1249, %v4142, %v4123
        %v4144 = vrot.slane %v4123, 4
        %v4145 = vsel %vm1249, %v4129, %v4144
        %v4147 = vunpack.c.l.s4 1934713408
        %v4148 = vunpack.c.0.s8 %v4147
        %v4149 = vperm.slane %v4143, %v4148
        %v4151 = vunpack.c.l.s4 1934713408
        %v4152 = vunpack.c.0.s8 %v4151
        %v4153 = vperm.slane %v4145, %v4152
        %v4154 = vrot.slane %v4149, 4
        %v4155 = vsel %vm1249, %v4154, %v4137
        %v4156 = vrot.slane %v4137, 4
        %v4157 = vsel %vm1249, %v4149, %v4156
        %v4158 = vrot.slane %v4153, 4
        %v4159 = vsel %vm1249, %v4158, %v4141
        %v4160 = vrot.slane %v4141, 4
        %v4161 = vsel %vm1249, %v4153, %v4160
        %v4162 = vsel %vm1249, %v4102, %v4083
        %v4164 = vunpack.c.l.s4 1983009808
        %v4165 = vunpack.c.0.s8 %v4164
        %v4166 = vperm.slane %v4162, %v4165
        %v4167 = vrot.slane %v4103, 4
        %v4168 = vsel %vm1249, %v4167, %v4101
        %v4170 = vunpack.c.l.s4 1983009808
        %v4171 = vunpack.c.0.s8 %v4170
        %v4172 = vperm.slane %v4168, %v4171
        %v4173 = vsel %vm1249, %v4106, %v4095
        %v4175 = vunpack.c.l.s4 1983009808
        %v4176 = vunpack.c.0.s8 %v4175
        %v4177 = vperm.slane %v4173, %v4176
        %v4178 = vrot.slane %v4107, 4
        %v4179 = vsel %vm1249, %v4178, %v4105
        %v4181 = vunpack.c.l.s4 1983009808
        %v4182 = vunpack.c.0.s8 %v4181
        %v4183 = vperm.slane %v4179, %v4182
        %v4184 = vrot.slane %v4172, 4
        %v4185 = vsel %vm1249, %v4184, %v4166
        %v4186 = vrot.slane %v4166, 4
        %v4187 = vsel %vm1249, %v4172, %v4186
        %v4189 = vunpack.c.l.s4 1934713408
        %v4190 = vunpack.c.0.s8 %v4189
        %v4191 = vperm.slane %v4185, %v4190
        %v4193 = vunpack.c.l.s4 1934713408
        %v4194 = vunpack.c.0.s8 %v4193
        %v4195 = vperm.slane %v4187, %v4194
        %v4196 = vrot.slane %v4183, 4
        %v4197 = vsel %vm1249, %v4196, %v4177
        %v4198 = vrot.slane %v4177, 4
        %v4199 = vsel %vm1249, %v4183, %v4198
        %v4201 = vunpack.c.l.s4 1934713408
        %v4202 = vunpack.c.0.s8 %v4201
        %v4203 = vperm.slane %v4197, %v4202
        %v4205 = vunpack.c.l.s4 1934713408
        %v4206 = vunpack.c.0.s8 %v4205
        %v4207 = vperm.slane %v4199, %v4206
        %v4208 = vrot.slane %v4203, 4
        %v4209 = vsel %vm1249, %v4208, %v4191
        %v4210 = vrot.slane %v4191, 4
        %v4211 = vsel %vm1249, %v4203, %v4210
        %v4212 = vrot.slane %v4207, 4
        %v4213 = vsel %vm1249, %v4212, %v4195
        %v4214 = vrot.slane %v4195, 4
        %v4215 = vsel %vm1249, %v4207, %v4214
        %4218 = vrot.lane.b32.xlu0 %v4157, 8
        %v4219 = vpop.permute.xlu0 %4218
        %4220 = vrot.lane.b32.xlu0 %v4211, 8
        %v4221 = vpop.permute.xlu0 %4220
        %4226 = vrot.lane.b32.xlu0 %v4159, 16
        %v4227 = vpop.permute.xlu0 %4226
        %4228 = vrot.lane.b32.xlu0 %v4213, 16
        %v4229 = vpop.permute.xlu0 %4228
        %4234 = vrot.lane.b32.xlu0 %v4161, 24
        %v4235 = vpop.permute.xlu0 %4234
        %4236 = vrot.lane.b32.xlu0 %v4215, 24
        %v4237 = vpop.permute.xlu0 %4236
        %v4240 = vsel %vm1987, %v4155, %v4219
        %v4241 = vsel %vm1987, %v4209, %v4221
        %v4242 = vsel %vm2117, %v4240, %v4227
        %v4243 = vsel %vm2117, %v4241, %v4229
        %v4244 = vsel %vm2574, %v4242, %v4235
        %v4245 = vsel %vm2574, %v4243, %v4237
        %v4246 = vpack.c.bf16 %v4245, %v4244
        %v4248 = vperm.slane %v2843, 0
        %v4254 = vunpack.c.l.b16 %v2838
        %v4255 = vunpack.c.l.b16 %v2839
        %v4256 = vunpack.c.l.b16 %v2840
        %v4257 = vunpack.c.l.b16 %v2841
        %v4258 = vpack.c.b16 %v4255, %v4254
        %v4259 = vpack.c.b16 %v4257, %v4256
        %v4263 = vsel %vm1184, %v4246, 0
        %4265 = vmatpush.bf16.msra.mxu0 0
        %4266 = vmatpush.bf16.msra.mxu0 0
        %4267 = vmatpush.bf16.msra.mxu0 0
        %4268 = vmatpush.bf16.msra.mxu0 0
        %4269 = vmatpush.bf16.msra.mxu0 0
        %4270 = vmatpush.bf16.msra.mxu0 0
        %4271 = vmatpush.bf16.msra.mxu0 %v4259
        %4272 = vmatpush.bf16.msra.mxu0 %v4258
        %4273 = vmatmul.bf16.gmra.mxu0 %v4263
        %v4274 = vpop.f32.mrf.mxu0
        %v4275 = vadd.f32 %v4248, %v4274
        %v4276 = vpop.f32.mrf.mxu0
        %v4277 = vadd.f32 %v4248, %v4276
        %4278 = vdwg.mxu0
        %v4279 = vadd.f32 %v2826, %v4275
        %v4280 = vadd.f32 %v2827, %v4277
        %s4281 = scalar_lea.vmem %s25, 1
        %v4282 = vld [vmem:[%s4281] sm:$0x1]
        %s4283 = scalar_lea.vmem %s27, 1
        %v4284 = vld [vmem:[%s4283] sm:$0x1]
        %v4285 = vsel %vm1184, %v4279, 0.0
        %4286 = vadd.xlane.f32.xlu0 %v4285
        %v4287 = vpop.xlane.xlu0 %4286
        %v4288 = vsel %vm1184, %v4280, 0.0
        %4289 = vadd.xlane.f32.xlu0 %v4288
        %v4290 = vpop.xlane.xlu0 %4289
        %v4291 = vmul.f32 %v4287, %v2626
        %v4292 = vmul.f32 %v4290, %v2626
        %v4293 = vsub.f32 %v4279, %v4291
        %v4294 = vsub.f32 %v4280, %v4292
        %v4295 = vmul.f32 %v4293, %v4293
        %v4296 = vmul.f32 %v4294, %v4294
        %v4297 = vsel %vm1184, %v4295, 0.0
        %4298 = vadd.xlane.f32.xlu0 %v4297
        %v4299 = vpop.xlane.xlu0 %4298
        %v4300 = vsel %vm1184, %v4296, 0.0
        %4301 = vadd.xlane.f32.xlu0 %v4300
        %v4302 = vpop.xlane.xlu0 %4301
        %v4303 = vmul.f32 %v4299, %v2626
        %v4304 = vmul.f32 %v4302, %v2626
        %v4305 = vadd.f32 %v4303, 1e-05
        %v4306 = vadd.f32 %v4304, 1e-05
        %v4307 = vrsqrt.pop %v4305
        %v4308 = vmul.f32 %v4307, %v4305
        %v4309 = vmul.f32 %v4308, %v4307
        %v4310 = vmul.f32 0.5, %v4309
        %v4311 = vsub.f32 1.5, %v4310
        %v4312 = vmul.f32 %v4307, %v4311
        %vm4313 = vweird.f32 %v4305
        %vm4314 = vweird.f32 %v4307
        %vm4315 = vmor %vm4313, %vm4314
        %v4316 = vsel %vm4315, %v4307, %v4312
        %v4317 = vrsqrt.pop %v4306
        %v4318 = vmul.f32 %v4317, %v4306
        %v4319 = vmul.f32 %v4318, %v4317
        %v4320 = vmul.f32 0.5, %v4319
        %v4321 = vsub.f32 1.5, %v4320
        %v4322 = vmul.f32 %v4317, %v4321
        %vm4323 = vweird.f32 %v4306
        %vm4324 = vweird.f32 %v4317
        %vm4325 = vmor %vm4323, %vm4324
        %v4326 = vsel %vm4325, %v4317, %v4322
        %v4327 = vmul.f32 %v4293, %v4316
        %v4328 = vmul.f32 %v4294, %v4326
        %v4330 = vperm.slane %v4282, 0
        %v4332 = vmul.f32 %v4327, %v4330
        %v4333 = vmul.f32 %v4328, %v4330
        %v4335 = vperm.slane %v4284, 0
        %v4337 = vadd.f32 %v4332, %v4335
        %v4338 = vadd.f32 %v4333, %v4335
        %v4339 = vpack.c.bf16 %v4338, %v4337
        %s4340 = scalar_lea.vmem %s17, 16
        %v4341 = vld [vmem:[%s4340] sm:$0xf]
        %v4342 = vld [vmem:[%s4340 + $0x4] sm:$0xf]
        %v4343 = vld [vmem:[%s4340 + $0x8] sm:$0xf]
        %v4344 = vld [vmem:[%s4340 + $0xc] sm:$0xf]
        %s4345 = scalar_lea.vmem %s19, 1
        %v4346 = vld [vmem:[%s4345] sm:$0x1]
        %v4348 = vperm.slane %v4346, 0
        %v4354 = vunpack.c.l.b16 %v4341
        %v4355 = vunpack.c.l.b16 %v4342
        %v4356 = vunpack.c.l.b16 %v4343
        %v4357 = vunpack.c.l.b16 %v4344
        %v4358 = vpack.c.b16 %v4355, %v4354
        %v4359 = vpack.c.b16 %v4357, %v4356
        %v4363 = vsel %vm1184, %v4339, 0
        %4365 = vmatpush.bf16.msra.mxu0 0
        %4366 = vmatpush.bf16.msra.mxu0 0
        %4367 = vmatpush.bf16.msra.mxu0 0
        %4368 = vmatpush.bf16.msra.mxu0 0
        %4369 = vmatpush.bf16.msra.mxu0 0
        %4370 = vmatpush.bf16.msra.mxu0 0
        %4371 = vmatpush.bf16.msra.mxu0 %v4359
        %4372 = vmatpush.bf16.msra.mxu0 %v4358
        %4373 = vmatmul.bf16.gmra.mxu0 %v4363
        %v4374 = vpop.f32.mrf.mxu0
        %v4375 = vadd.f32 %v4348, %v4374
        %v4376 = vpop.f32.mrf.mxu0
        %v4377 = vadd.f32 %v4348, %v4376
        %4378 = vdwg.mxu0
        %v4379 = vmax.f32 %v4375, 0.0
        %v4380 = vmax.f32 %v4377, 0.0
        %v4381 = vpack.c.bf16 %v4380, %v4379
        %s4382 = scalar_lea.vmem %s21, 32
        %v4383 = vld [vmem:[%s4382] sm:$0xf]
        %v4384 = vld [vmem:[%s4382 + $0x4] sm:$0xf]
        %v4385 = vld [vmem:[%s4382 + $0x8] sm:$0xf]
        %v4386 = vld [vmem:[%s4382 + $0xc] sm:$0xf]
        %v4387 = vld [vmem:[%s4382 + $0x10] sm:$0xf]
        %v4388 = vld [vmem:[%s4382 + $0x14] sm:$0xf]
        %v4389 = vld [vmem:[%s4382 + $0x18] sm:$0xf]
        %v4390 = vld [vmem:[%s4382 + $0x1c] sm:$0xf]
        %s4391 = scalar_lea.vmem %s23, 1
        %v4392 = vld [vmem:[%s4391] sm:$0x1]
        %v4394 = vperm.slane %v4392, 0
        %v4404 = vunpack.c.l.b16 %v4383
        %v4405 = vunpack.c.l.b16 %v4384
        %v4406 = vunpack.c.l.b16 %v4385
        %v4407 = vunpack.c.l.b16 %v4386
        %v4408 = vunpack.c.l.b16 %v4387
        %v4409 = vunpack.c.l.b16 %v4388
        %v4410 = vunpack.c.l.b16 %v4389
        %v4411 = vunpack.c.l.b16 %v4390
        %v4412 = vpack.c.b16 %v4405, %v4404
        %v4413 = vpack.c.b16 %v4407, %v4406
        %v4414 = vpack.c.b16 %v4409, %v4408
        %v4415 = vpack.c.b16 %v4411, %v4410
        %v4421 = vsel %vm2752, %v4381, 0
        %4423 = vmatpush.bf16.msra.mxu0 0
        %4424 = vmatpush.bf16.msra.mxu0 0
        %4425 = vmatpush.bf16.msra.mxu0 0
        %4426 = vmatpush.bf16.msra.mxu0 0
        %4427 = vmatpush.bf16.msra.mxu0 %v4415
        %4428 = vmatpush.bf16.msra.mxu0 %v4414
        %4429 = vmatpush.bf16.msra.mxu0 %v4413
        %4430 = vmatpush.bf16.msra.mxu0 %v4412
        %4431 = vmatmul.bf16.gmra.mxu0 %v4421
        %v4432 = vpop.f32.mrf.mxu0
        %v4433 = vadd.f32 %v4394, %v4432
        %v4434 = vpop.f32.mrf.mxu0
        %v4435 = vadd.f32 %v4394, %v4434
        %4436 = vdwg.mxu0
        %v4437 = vadd.f32 %v4337, %v4433
        %v4438 = vadd.f32 %v4338, %v4435
        %s4439 = scalar_lea.vmem %s29, 1
        %v4440 = vld [vmem:[%s4439] sm:$0x1]
        %s4441 = scalar_lea.vmem %s31, 1
        %v4442 = vld [vmem:[%s4441] sm:$0x1]
        %v4443 = vsel %vm1184, %v4437, 0.0
        %4444 = vadd.xlane.f32.xlu0 %v4443
        %v4445 = vpop.xlane.xlu0 %4444
        %v4446 = vsel %vm1184, %v4438, 0.0
        %4447 = vadd.xlane.f32.xlu0 %v4446
        %v4448 = vpop.xlane.xlu0 %4447
        %v4449 = vmul.f32 %v4445, %v2626
        %v4450 = vmul.f32 %v4448, %v2626
        %v4451 = vsub.f32 %v4437, %v4449
        %v4452 = vsub.f32 %v4438, %v4450
        %v4453 = vmul.f32 %v4451, %v4451
        %v4454 = vmul.f32 %v4452, %v4452
        %v4455 = vsel %vm1184, %v4453, 0.0
        %4456 = vadd.xlane.f32.xlu0 %v4455
        %v4457 = vpop.xlane.xlu0 %4456
        %v4458 = vsel %vm1184, %v4454, 0.0
        %4459 = vadd.xlane.f32.xlu0 %v4458
        %v4460 = vpop.xlane.xlu0 %4459
        %v4461 = vmul.f32 %v4457, %v2626
        %v4462 = vmul.f32 %v4460, %v2626
        %v4463 = vadd.f32 %v4461, 1e-05
        %v4464 = vadd.f32 %v4462, 1e-05
        %v4465 = vrsqrt.pop %v4463
        %v4466 = vmul.f32 %v4465, %v4463
        %v4467 = vmul.f32 %v4466, %v4465
        %v4468 = vmul.f32 0.5, %v4467
        %v4469 = vsub.f32 1.5, %v4468
        %v4470 = vmul.f32 %v4465, %v4469
        %vm4471 = vweird.f32 %v4463
        %vm4472 = vweird.f32 %v4465
        %vm4473 = vmor %vm4471, %vm4472
        %v4474 = vsel %vm4473, %v4465, %v4470
        %v4475 = vrsqrt.pop %v4464
        %v4476 = vmul.f32 %v4475, %v4464
        %v4477 = vmul.f32 %v4476, %v4475
        %v4478 = vmul.f32 0.5, %v4477
        %v4479 = vsub.f32 1.5, %v4478
        %v4480 = vmul.f32 %v4475, %v4479
        %vm4481 = vweird.f32 %v4464
        %vm4482 = vweird.f32 %v4475
        %vm4483 = vmor %vm4481, %vm4482
        %v4484 = vsel %vm4483, %v4475, %v4480
        %v4485 = vmul.f32 %v4451, %v4474
        %v4486 = vmul.f32 %v4452, %v4484
        %v4488 = vperm.slane %v4440, 0
        %v4490 = vmul.f32 %v4485, %v4488
        %v4491 = vmul.f32 %v4486, %v4488
        %v4493 = vperm.slane %v4442, 0
        %v4495 = vadd.f32 %v4490, %v4493
        %v4496 = vadd.f32 %v4491, %v4493
        %v4497 = vadd.f32 %v1153, 0.0
        %v4498 = vld [vmem:[%s33] sm:$0xf]
        %v4499 = vld [vmem:[%s33 + $0x4] sm:$0xf]
        %v4500 = vld [vmem:[%s33 + $0x8] sm:$0xf]
        %v4501 = vld [vmem:[%s33 + $0xc] sm:$0xf]
        %v4502 = vld [vmem:[%s35] sm:$0x1]
        %v4503 = vld [vmem:[%s37] sm:$0xf]
        %v4504 = vld [vmem:[%s37 + $0x4] sm:$0xf]
        %v4505 = vld [vmem:[%s37 + $0x8] sm:$0xf]
        %v4506 = vld [vmem:[%s37 + $0xc] sm:$0xf]
        %v4507 = vld [vmem:[%s39] sm:$0x1]
        %v4508 = vpack.c.bf16 %v4497, %v4497
        %v4510 = vperm.slane %v4502, 0
        %v4516 = vunpack.c.l.b16 %v4498
        %v4517 = vunpack.c.l.b16 %v4499
        %v4518 = vunpack.c.l.b16 %v4500
        %v4519 = vunpack.c.l.b16 %v4501
        %v4520 = vpack.c.b16 %v4517, %v4516
        %v4521 = vpack.c.b16 %v4519, %v4518
        %v4525 = vsel %vm1184, %v4508, 0
        %4527 = vmatpush.bf16.msra.mxu0 0
        %4528 = vmatpush.bf16.msra.mxu0 0
        %4529 = vmatpush.bf16.msra.mxu0 0
        %4530 = vmatpush.bf16.msra.mxu0 0
        %4531 = vmatpush.bf16.msra.mxu0 0
        %4532 = vmatpush.bf16.msra.mxu0 0
        %4533 = vmatpush.bf16.msra.mxu0 %v4521
        %4534 = vmatpush.bf16.msra.mxu0 %v4520
        %4535 = vmatmul.bf16.gmra.mxu0 %v4525
        %v4536 = vpop.f32.mrf.mxu0
        %v4537 = vadd.f32 %v4510, %v4536
        %v4538 = vpop.f32.mrf.mxu0
        %4539 = vdwg.mxu0
        %4540 = vrot.lane.b32.xlu0 %v4520, 64
        %v4541 = vpop.permute.xlu0 %4540
        %4542 = vrot.lane.b32.xlu0 %v4521, 64
        %v4543 = vpop.permute.xlu0 %4542
        %4546 = vrot.lane.b32.xlu0 %v4510, 64
        %v4547 = vpop.permute.xlu0 %4546
        %v4550 = vsel %vm1184, 0, 0
        %4552 = vmatpush.bf16.msra.mxu0 0
        %4553 = vmatpush.bf16.msra.mxu0 0
        %4554 = vmatpush.bf16.msra.mxu0 0
        %4555 = vmatpush.bf16.msra.mxu0 0
        %4556 = vmatpush.bf16.msra.mxu0 0
        %4557 = vmatpush.bf16.msra.mxu0 0
        %4558 = vmatpush.bf16.msra.mxu0 %v4543
        %4559 = vmatpush.bf16.msra.mxu0 %v4541
        %4560 = vmatmul.bf16.gmra.mxu0 %v4550
        %v4561 = vpop.f32.mrf.mxu0
        %v4562 = vadd.f32 %v4547, %v4561
        %v4563 = vpop.f32.mrf.mxu0
        %4564 = vdwg.mxu0
        %4566 = vrot.lane.b32.xlu0 %v4537, 120
        %v4567 = vpop.permute.xlu0 %4566
        %4569 = vrot.lane.b32.xlu0 %v4537, 112
        %v4570 = vpop.permute.xlu0 %4569
        %4572 = vrot.lane.b32.xlu0 %v4537, 104
        %v4573 = vpop.permute.xlu0 %4572
        %v4575 = vrot.slane %v4570, 4
        %v4576 = vsel %vm1249, %v4575, %v4537
        %v4577 = vrot.slane %v4537, 4
        %v4578 = vsel %vm1249, %v4570, %v4577
        %v4580 = vunpack.c.l.s4 1983009808
        %v4581 = vunpack.c.0.s8 %v4580
        %v4582 = vperm.slane %v4576, %v4581
        %v4584 = vunpack.c.l.s4 1983009808
        %v4585 = vunpack.c.0.s8 %v4584
        %v4586 = vperm.slane %v4578, %v4585
        %v4587 = vrot.slane %v4573, 4
        %v4588 = vsel %vm1249, %v4587, %v4567
        %v4589 = vrot.slane %v4567, 4
        %v4590 = vsel %vm1249, %v4573, %v4589
        %v4592 = vunpack.c.l.s4 1983009808
        %v4593 = vunpack.c.0.s8 %v4592
        %v4594 = vperm.slane %v4588, %v4593
        %v4596 = vunpack.c.l.s4 1983009808
        %v4597 = vunpack.c.0.s8 %v4596
        %v4598 = vperm.slane %v4590, %v4597
        %v4599 = vrot.slane %v4594, 4
        %v4600 = vsel %vm1249, %v4599, %v4582
        %v4601 = vrot.slane %v4582, 4
        %v4602 = vsel %vm1249, %v4594, %v4601
        %v4604 = vunpack.c.l.s4 1934713408
        %v4605 = vunpack.c.0.s8 %v4604
        %v4606 = vperm.slane %v4600, %v4605
        %v4608 = vunpack.c.l.s4 1934713408
        %v4609 = vunpack.c.0.s8 %v4608
        %v4610 = vperm.slane %v4602, %v4609
        %v4611 = vrot.slane %v4598, 4
        %v4612 = vsel %vm1249, %v4611, %v4586
        %v4613 = vrot.slane %v4586, 4
        %v4614 = vsel %vm1249, %v4598, %v4613
        %v4616 = vunpack.c.l.s4 1934713408
        %v4617 = vunpack.c.0.s8 %v4616
        %v4618 = vperm.slane %v4612, %v4617
        %v4620 = vunpack.c.l.s4 1934713408
        %v4621 = vunpack.c.0.s8 %v4620
        %v4622 = vperm.slane %v4614, %v4621
        %v4623 = vrot.slane %v4606, 4
        %v4624 = vsel %vm1249, 0.0, %v4623
        %v4625 = vrot.slane %v4610, 4
        %v4626 = vsel %vm1249, 0.0, %v4625
        %v4627 = vrot.slane %v4618, 4
        %v4628 = vsel %vm1249, 0.0, %v4627
        %v4629 = vrot.slane %v4622, 4
        %v4630 = vsel %vm1249, 0.0, %v4629
        %v4631 = vsel %vm1249, %v4625, %v4606
        %v4633 = vunpack.c.l.s4 1983009808
        %v4634 = vunpack.c.0.s8 %v4633
        %v4635 = vperm.slane %v4631, %v4634
        %v4636 = vrot.slane %v4626, 4
        %v4637 = vsel %vm1249, %v4636, %v4624
        %v4639 = vunpack.c.l.s4 1983009808
        %v4640 = vunpack.c.0.s8 %v4639
        %v4641 = vperm.slane %v4637, %v4640
        %v4642 = vsel %vm1249, %v4629, %v4618
        %v4644 = vunpack.c.l.s4 1983009808
        %v4645 = vunpack.c.0.s8 %v4644
        %v4646 = vperm.slane %v4642, %v4645
        %v4647 = vrot.slane %v4630, 4
        %v4648 = vsel %vm1249, %v4647, %v4628
        %v4650 = vunpack.c.l.s4 1983009808
        %v4651 = vunpack.c.0.s8 %v4650
        %v4652 = vperm.slane %v4648, %v4651
        %v4653 = vrot.slane %v4641, 4
        %v4654 = vsel %vm1249, %v4653, %v4635
        %v4655 = vrot.slane %v4635, 4
        %v4656 = vsel %vm1249, %v4641, %v4655
        %v4658 = vunpack.c.l.s4 1934713408
        %v4659 = vunpack.c.0.s8 %v4658
        %v4660 = vperm.slane %v4654, %v4659
        %v4662 = vunpack.c.l.s4 1934713408
        %v4663 = vunpack.c.0.s8 %v4662
        %v4664 = vperm.slane %v4656, %v4663
        %v4665 = vrot.slane %v4652, 4
        %v4666 = vsel %vm1249, %v4665, %v4646
        %v4667 = vrot.slane %v4646, 4
        %v4668 = vsel %vm1249, %v4652, %v4667
        %v4670 = vunpack.c.l.s4 1934713408
        %v4671 = vunpack.c.0.s8 %v4670
        %v4672 = vperm.slane %v4666, %v4671
        %v4674 = vunpack.c.l.s4 1934713408
        %v4675 = vunpack.c.0.s8 %v4674
        %v4676 = vperm.slane %v4668, %v4675
        %v4677 = vrot.slane %v4672, 4
        %v4678 = vsel %vm1249, %v4677, %v4660
        %v4679 = vrot.slane %v4660, 4
        %v4680 = vsel %vm1249, %v4672, %v4679
        %v4681 = vrot.slane %v4676, 4
        %v4682 = vsel %vm1249, %v4681, %v4664
        %v4683 = vrot.slane %v4664, 4
        %v4684 = vsel %vm1249, %v4676, %v4683
        %v4685 = vpack.c.bf16 %v4678, %v4678
        %v4686 = vpack.c.bf16 %v4680, %v4680
        %v4687 = vpack.c.bf16 %v4682, %v4682
        %v4688 = vpack.c.bf16 %v4684, %v4684
        %4689 = vrot.lane.b32.xlu0 %v4537, 96
        %v4690 = vpop.permute.xlu0 %4689
        %4691 = vrot.lane.b32.xlu0 %v4567, 96
        %v4692 = vpop.permute.xlu0 %4691
        %4693 = vrot.lane.b32.xlu0 %v4570, 96
        %v4694 = vpop.permute.xlu0 %4693
        %4695 = vrot.lane.b32.xlu0 %v4573, 96
        %v4696 = vpop.permute.xlu0 %4695
        %v4701 = vrot.slane %v4694, 4
        %v4702 = vsel %vm1249, %v4701, %v4690
        %v4703 = vrot.slane %v4690, 4
        %v4704 = vsel %vm1249, %v4694, %v4703
        %v4706 = vunpack.c.l.s4 1983009808
        %v4707 = vunpack.c.0.s8 %v4706
        %v4708 = vperm.slane %v4702, %v4707
        %v4710 = vunpack.c.l.s4 1983009808
        %v4711 = vunpack.c.0.s8 %v4710
        %v4712 = vperm.slane %v4704, %v4711
        %v4713 = vrot.slane %v4696, 4
        %v4714 = vsel %vm1249, %v4713, %v4692
        %v4715 = vrot.slane %v4692, 4
        %v4716 = vsel %vm1249, %v4696, %v4715
        %v4718 = vunpack.c.l.s4 1983009808
        %v4719 = vunpack.c.0.s8 %v4718
        %v4720 = vperm.slane %v4714, %v4719
        %v4722 = vunpack.c.l.s4 1983009808
        %v4723 = vunpack.c.0.s8 %v4722
        %v4724 = vperm.slane %v4716, %v4723
        %v4725 = vrot.slane %v4720, 4
        %v4726 = vsel %vm1249, %v4725, %v4708
        %v4727 = vrot.slane %v4708, 4
        %v4728 = vsel %vm1249, %v4720, %v4727
        %v4730 = vunpack.c.l.s4 1934713408
        %v4731 = vunpack.c.0.s8 %v4730
        %v4732 = vperm.slane %v4726, %v4731
        %v4734 = vunpack.c.l.s4 1934713408
        %v4735 = vunpack.c.0.s8 %v4734
        %v4736 = vperm.slane %v4728, %v4735
        %v4737 = vrot.slane %v4724, 4
        %v4738 = vsel %vm1249, %v4737, %v4712
        %v4739 = vrot.slane %v4712, 4
        %v4740 = vsel %vm1249, %v4724, %v4739
        %v4742 = vunpack.c.l.s4 1934713408
        %v4743 = vunpack.c.0.s8 %v4742
        %v4744 = vperm.slane %v4738, %v4743
        %v4746 = vunpack.c.l.s4 1934713408
        %v4747 = vunpack.c.0.s8 %v4746
        %v4748 = vperm.slane %v4740, %v4747
        %v4749 = vrot.slane %v4732, 4
        %v4750 = vsel %vm1249, 0.0, %v4749
        %v4751 = vrot.slane %v4736, 4
        %v4752 = vsel %vm1249, 0.0, %v4751
        %v4753 = vrot.slane %v4744, 4
        %v4754 = vsel %vm1249, 0.0, %v4753
        %v4755 = vrot.slane %v4748, 4
        %v4756 = vsel %vm1249, 0.0, %v4755
        %v4757 = vsel %vm1249, %v4751, %v4732
        %v4759 = vunpack.c.l.s4 1983009808
        %v4760 = vunpack.c.0.s8 %v4759
        %v4761 = vperm.slane %v4757, %v4760
        %v4762 = vrot.slane %v4752, 4
        %v4763 = vsel %vm1249, %v4762, %v4750
        %v4765 = vunpack.c.l.s4 1983009808
        %v4766 = vunpack.c.0.s8 %v4765
        %v4767 = vperm.slane %v4763, %v4766
        %v4768 = vsel %vm1249, %v4755, %v4744
        %v4770 = vunpack.c.l.s4 1983009808
        %v4771 = vunpack.c.0.s8 %v4770
        %v4772 = vperm.slane %v4768, %v4771
        %v4773 = vrot.slane %v4756, 4
        %v4774 = vsel %vm1249, %v4773, %v4754
        %v4776 = vunpack.c.l.s4 1983009808
        %v4777 = vunpack.c.0.s8 %v4776
        %v4778 = vperm.slane %v4774, %v4777
        %v4779 = vrot.slane %v4767, 4
        %v4780 = vsel %vm1249, %v4779, %v4761
        %v4781 = vrot.slane %v4761, 4
        %v4782 = vsel %vm1249, %v4767, %v4781
        %v4784 = vunpack.c.l.s4 1934713408
        %v4785 = vunpack.c.0.s8 %v4784
        %v4786 = vperm.slane %v4780, %v4785
        %v4788 = vunpack.c.l.s4 1934713408
        %v4789 = vunpack.c.0.s8 %v4788
        %v4790 = vperm.slane %v4782, %v4789
        %v4791 = vrot.slane %v4778, 4
        %v4792 = vsel %vm1249, %v4791, %v4772
        %v4793 = vrot.slane %v4772, 4
        %v4794 = vsel %vm1249, %v4778, %v4793
        %v4796 = vunpack.c.l.s4 1934713408
        %v4797 = vunpack.c.0.s8 %v4796
        %v4798 = vperm.slane %v4792, %v4797
        %v4800 = vunpack.c.l.s4 1934713408
        %v4801 = vunpack.c.0.s8 %v4800
        %v4802 = vperm.slane %v4794, %v4801
        %v4803 = vrot.slane %v4798, 4
        %v4804 = vsel %vm1249, %v4803, %v4786
        %v4805 = vrot.slane %v4786, 4
        %v4806 = vsel %vm1249, %v4798, %v4805
        %v4807 = vrot.slane %v4802, 4
        %v4808 = vsel %vm1249, %v4807, %v4790
        %v4809 = vrot.slane %v4790, 4
        %v4810 = vsel %vm1249, %v4802, %v4809
        %v4811 = vpack.c.bf16 %v4804, %v4804
        %v4812 = vpack.c.bf16 %v4806, %v4806
        %v4813 = vpack.c.bf16 %v4808, %v4808
        %v4814 = vpack.c.bf16 %v4810, %v4810
        %4816 = vrot.lane.b32.xlu0 %v4562, 120
        %v4817 = vpop.permute.xlu0 %4816
        %4819 = vrot.lane.b32.xlu0 %v4562, 112
        %v4820 = vpop.permute.xlu0 %4819
        %4822 = vrot.lane.b32.xlu0 %v4562, 104
        %v4823 = vpop.permute.xlu0 %4822
        %v4825 = vrot.slane %v4820, 4
        %v4826 = vsel %vm1249, %v4825, %v4562
        %v4827 = vrot.slane %v4562, 4
        %v4828 = vsel %vm1249, %v4820, %v4827
        %v4830 = vunpack.c.l.s4 1983009808
        %v4831 = vunpack.c.0.s8 %v4830
        %v4832 = vperm.slane %v4826, %v4831
        %v4834 = vunpack.c.l.s4 1983009808
        %v4835 = vunpack.c.0.s8 %v4834
        %v4836 = vperm.slane %v4828, %v4835
        %v4837 = vrot.slane %v4823, 4
        %v4838 = vsel %vm1249, %v4837, %v4817
        %v4839 = vrot.slane %v4817, 4
        %v4840 = vsel %vm1249, %v4823, %v4839
        %v4842 = vunpack.c.l.s4 1983009808
        %v4843 = vunpack.c.0.s8 %v4842
        %v4844 = vperm.slane %v4838, %v4843
        %v4846 = vunpack.c.l.s4 1983009808
        %v4847 = vunpack.c.0.s8 %v4846
        %v4848 = vperm.slane %v4840, %v4847
        %v4849 = vrot.slane %v4844, 4
        %v4850 = vsel %vm1249, %v4849, %v4832
        %v4851 = vrot.slane %v4832, 4
        %v4852 = vsel %vm1249, %v4844, %v4851
        %v4854 = vunpack.c.l.s4 1934713408
        %v4855 = vunpack.c.0.s8 %v4854
        %v4856 = vperm.slane %v4850, %v4855
        %v4858 = vunpack.c.l.s4 1934713408
        %v4859 = vunpack.c.0.s8 %v4858
        %v4860 = vperm.slane %v4852, %v4859
        %v4861 = vrot.slane %v4848, 4
        %v4862 = vsel %vm1249, %v4861, %v4836
        %v4863 = vrot.slane %v4836, 4
        %v4864 = vsel %vm1249, %v4848, %v4863
        %v4866 = vunpack.c.l.s4 1934713408
        %v4867 = vunpack.c.0.s8 %v4866
        %v4868 = vperm.slane %v4862, %v4867
        %v4870 = vunpack.c.l.s4 1934713408
        %v4871 = vunpack.c.0.s8 %v4870
        %v4872 = vperm.slane %v4864, %v4871
        %v4873 = vrot.slane %v4856, 4
        %v4874 = vsel %vm1249, 0.0, %v4873
        %v4875 = vrot.slane %v4860, 4
        %v4876 = vsel %vm1249, 0.0, %v4875
        %v4877 = vrot.slane %v4868, 4
        %v4878 = vsel %vm1249, 0.0, %v4877
        %v4879 = vrot.slane %v4872, 4
        %v4880 = vsel %vm1249, 0.0, %v4879
        %v4881 = vsel %vm1249, %v4875, %v4856
        %v4883 = vunpack.c.l.s4 1983009808
        %v4884 = vunpack.c.0.s8 %v4883
        %v4885 = vperm.slane %v4881, %v4884
        %v4886 = vrot.slane %v4876, 4
        %v4887 = vsel %vm1249, %v4886, %v4874
        %v4889 = vunpack.c.l.s4 1983009808
        %v4890 = vunpack.c.0.s8 %v4889
        %v4891 = vperm.slane %v4887, %v4890
        %v4892 = vsel %vm1249, %v4879, %v4868
        %v4894 = vunpack.c.l.s4 1983009808
        %v4895 = vunpack.c.0.s8 %v4894
        %v4896 = vperm.slane %v4892, %v4895
        %v4897 = vrot.slane %v4880, 4
        %v4898 = vsel %vm1249, %v4897, %v4878
        %v4900 = vunpack.c.l.s4 1983009808
        %v4901 = vunpack.c.0.s8 %v4900
        %v4902 = vperm.slane %v4898, %v4901
        %v4903 = vrot.slane %v4891, 4
        %v4904 = vsel %vm1249, %v4903, %v4885
        %v4905 = vrot.slane %v4885, 4
        %v4906 = vsel %vm1249, %v4891, %v4905
        %v4908 = vunpack.c.l.s4 1934713408
        %v4909 = vunpack.c.0.s8 %v4908
        %v4910 = vperm.slane %v4904, %v4909
        %v4912 = vunpack.c.l.s4 1934713408
        %v4913 = vunpack.c.0.s8 %v4912
        %v4914 = vperm.slane %v4906, %v4913
        %v4915 = vrot.slane %v4902, 4
        %v4916 = vsel %vm1249, %v4915, %v4896
        %v4917 = vrot.slane %v4896, 4
        %v4918 = vsel %vm1249, %v4902, %v4917
        %v4920 = vunpack.c.l.s4 1934713408
        %v4921 = vunpack.c.0.s8 %v4920
        %v4922 = vperm.slane %v4916, %v4921
        %v4924 = vunpack.c.l.s4 1934713408
        %v4925 = vunpack.c.0.s8 %v4924
        %v4926 = vperm.slane %v4918, %v4925
        %v4927 = vrot.slane %v4922, 4
        %v4928 = vsel %vm1249, %v4927, %v4910
        %v4929 = vrot.slane %v4910, 4
        %v4930 = vsel %vm1249, %v4922, %v4929
        %v4931 = vrot.slane %v4926, 4
        %v4932 = vsel %vm1249, %v4931, %v4914
        %v4933 = vrot.slane %v4914, 4
        %v4934 = vsel %vm1249, %v4926, %v4933
        %v4935 = vpack.c.bf16 %v4928, %v4928
        %v4936 = vpack.c.bf16 %v4930, %v4930
        %v4937 = vpack.c.bf16 %v4932, %v4932
        %v4938 = vpack.c.bf16 %v4934, %v4934
        %v4940 = vsel %vm1987, %v4685, 0
        %v4943 = vsel %vm1987, %v4811, 0
        %4945 = vmatpush.bf16.xpose.msra.mxu0 0
        %4946 = vmatpush.bf16.xpose.msra.mxu0 0
        %4947 = vmatpush.bf16.xpose.msra.mxu0 0
        %4948 = vmatpush.bf16.xpose.msra.mxu0 0
        %4949 = vmatpush.bf16.xpose.msra.mxu0 0
        %4950 = vmatpush.bf16.xpose.msra.mxu0 0
        %4951 = vmatpush.bf16.xpose.msra.mxu0 0
        %4952 = vmatpush.bf16.xpose.msra.mxu0 %v4943
        %4953 = vmatmul.bf16.gmra.mxu0 %v4940
        %v4954 = vpop.f32.mrf.mxu0
        %v4955 = vadd.f32 0.0, %v4954
        %v4956 = vpop.f32.mrf.mxu0
        %4957 = vdwg.mxu0
        %v4959 = vsel %vm1987, %v4686, 0
        %v4962 = vsel %vm1987, %v4812, 0
        %4964 = vmatpush.bf16.xpose.msra.mxu0 0
        %4965 = vmatpush.bf16.xpose.msra.mxu0 0
        %4966 = vmatpush.bf16.xpose.msra.mxu0 0
        %4967 = vmatpush.bf16.xpose.msra.mxu0 0
        %4968 = vmatpush.bf16.xpose.msra.mxu0 0
        %4969 = vmatpush.bf16.xpose.msra.mxu0 0
        %4970 = vmatpush.bf16.xpose.msra.mxu0 0
        %4971 = vmatpush.bf16.xpose.msra.mxu0 %v4962
        %4972 = vmatmul.bf16.gmra.mxu0 %v4959
        %v4973 = vpop.f32.mrf.mxu0
        %v4974 = vadd.f32 0.0, %v4973
        %v4975 = vpop.f32.mrf.mxu0
        %4976 = vdwg.mxu0
        %v4978 = vsel %vm1987, %v4687, 0
        %v4981 = vsel %vm1987, %v4813, 0
        %4983 = vmatpush.bf16.xpose.msra.mxu0 0
        %4984 = vmatpush.bf16.xpose.msra.mxu0 0
        %4985 = vmatpush.bf16.xpose.msra.mxu0 0
        %4986 = vmatpush.bf16.xpose.msra.mxu0 0
        %4987 = vmatpush.bf16.xpose.msra.mxu0 0
        %4988 = vmatpush.bf16.xpose.msra.mxu0 0
        %4989 = vmatpush.bf16.xpose.msra.mxu0 0
        %4990 = vmatpush.bf16.xpose.msra.mxu0 %v4981
        %4991 = vmatmul.bf16.gmra.mxu0 %v4978
        %v4992 = vpop.f32.mrf.mxu0
        %v4993 = vadd.f32 0.0, %v4992
        %v4994 = vpop.f32.mrf.mxu0
        %4995 = vdwg.mxu0
        %v4997 = vsel %vm1987, %v4688, 0
        %v5000 = vsel %vm1987, %v4814, 0
        %5002 = vmatpush.bf16.xpose.msra.mxu0 0
        %5003 = vmatpush.bf16.xpose.msra.mxu0 0
        %5004 = vmatpush.bf16.xpose.msra.mxu0 0
        %5005 = vmatpush.bf16.xpose.msra.mxu0 0
        %5006 = vmatpush.bf16.xpose.msra.mxu0 0
        %5007 = vmatpush.bf16.xpose.msra.mxu0 0
        %5008 = vmatpush.bf16.xpose.msra.mxu0 0
        %5009 = vmatpush.bf16.xpose.msra.mxu0 %v5000
        %5010 = vmatmul.bf16.gmra.mxu0 %v4997
        %v5011 = vpop.f32.mrf.mxu0
        %v5012 = vadd.f32 0.0, %v5011
        %v5013 = vpop.f32.mrf.mxu0
        %5014 = vdwg.mxu0
        %v5015 = vmul.f32 %v4955, 0.35355338
        %v5016 = vmul.f32 %v4974, 0.35355338
        %v5017 = vmul.f32 %v4993, 0.35355338
        %v5018 = vmul.f32 %v5012, 0.35355338
        %v5019 = vsel %vm1987, %v5015, -inf
        %5020 = vmax.xlane.f32.xlu0 %v5019
        %v5021 = vpop.xlane.xlu0 %5020
        %v5022 = vsel %vm1987, %v5016, -inf
        %5023 = vmax.xlane.f32.xlu0 %v5022
        %v5024 = vpop.xlane.xlu0 %5023
        %v5025 = vsel %vm1987, %v5017, -inf
        %5026 = vmax.xlane.f32.xlu0 %v5025
        %v5027 = vpop.xlane.xlu0 %5026
        %v5028 = vsel %vm1987, %v5018, -inf
        %5029 = vmax.xlane.f32.xlu0 %v5028
        %v5030 = vpop.xlane.xlu0 %5029
        %v5031 = vsub.f32 %v5015, %v5021
        %v5032 = vsub.f32 %v5016, %v5024
        %v5033 = vsub.f32 %v5017, %v5027
        %v5034 = vsub.f32 %v5018, %v5030
        %v5035 = vmul.f32 %v5031, 1.442695
        %v5036 = vpow.pop %v5035
        %v5037 = vmul.f32 %v5032, 1.442695
        %v5038 = vpow.pop %v5037
        %v5039 = vmul.f32 %v5033, 1.442695
        %v5040 = vpow.pop %v5039
        %v5041 = vmul.f32 %v5034, 1.442695
        %v5042 = vpow.pop %v5041
        %v5043 = vsel %vm1987, %v5036, 0.0
        %5044 = vadd.xlane.f32.xlu0 %v5043
        %v5045 = vpop.xlane.xlu0 %5044
        %v5046 = vsel %vm1987, %v5038, 0.0
        %5047 = vadd.xlane.f32.xlu0 %v5046
        %v5048 = vpop.xlane.xlu0 %5047
        %v5049 = vsel %vm1987, %v5040, 0.0
        %5050 = vadd.xlane.f32.xlu0 %v5049
        %v5051 = vpop.xlane.xlu0 %5050
        %v5052 = vsel %vm1987, %v5042, 0.0
        %5053 = vadd.xlane.f32.xlu0 %v5052
        %v5054 = vpop.xlane.xlu0 %5053
        %v5055 = vrcp.pop %v5045
        %v5056 = vrcp.pop %v5048
        %v5057 = vrcp.pop %v5051
        %v5058 = vrcp.pop %v5054
        %v5059 = vmul.f32 %v5036, %v5055
        %v5060 = vmul.f32 %v5038, %v5056
        %v5061 = vmul.f32 %v5040, %v5057
        %v5062 = vmul.f32 %v5042, %v5058
        %v5063 = vpack.c.bf16 %v5059, %v5059
        %v5064 = vpack.c.bf16 %v5060, %v5060
        %v5065 = vpack.c.bf16 %v5061, %v5061
        %v5066 = vpack.c.bf16 %v5062, %v5062
        %v5068 = vsel %vm1987, %v5063, 0
        %vm5070 = vcmask 1043456
        %v5072 = vsel %vm5070, %v4935, 0
        %5074 = vmatpush.bf16.msra.mxu0 0
        %5075 = vmatpush.bf16.msra.mxu0 0
        %5076 = vmatpush.bf16.msra.mxu0 0
        %5077 = vmatpush.bf16.msra.mxu0 0
        %5078 = vmatpush.bf16.msra.mxu0 0
        %5079 = vmatpush.bf16.msra.mxu0 0
        %5080 = vmatpush.bf16.msra.mxu0 0
        %5081 = vmatpush.bf16.msra.mxu0 %v5072
        %5082 = vmatmul.bf16.gmra.mxu0 %v5068
        %v5083 = vpop.f32.mrf.mxu0
        %v5084 = vadd.f32 0.0, %v5083
        %v5085 = vpop.f32.mrf.mxu0
        %5086 = vdwg.mxu0
        %v5088 = vsel %vm1987, %v5064, 0
        %v5091 = vsel %vm5070, %v4936, 0
        %5093 = vmatpush.bf16.msra.mxu0 0
        %5094 = vmatpush.bf16.msra.mxu0 0
        %5095 = vmatpush.bf16.msra.mxu0 0
        %5096 = vmatpush.bf16.msra.mxu0 0
        %5097 = vmatpush.bf16.msra.mxu0 0
        %5098 = vmatpush.bf16.msra.mxu0 0
        %5099 = vmatpush.bf16.msra.mxu0 0
        %5100 = vmatpush.bf16.msra.mxu0 %v5091
        %5101 = vmatmul.bf16.gmra.mxu0 %v5088
        %v5102 = vpop.f32.mrf.mxu0
        %v5103 = vadd.f32 0.0, %v5102
        %v5104 = vpop.f32.mrf.mxu0
        %5105 = vdwg.mxu0
        %v5107 = vsel %vm1987, %v5065, 0
        %v5110 = vsel %vm5070, %v4937, 0
        %5112 = vmatpush.bf16.msra.mxu0 0
        %5113 = vmatpush.bf16.msra.mxu0 0
        %5114 = vmatpush.bf16.msra.mxu0 0
        %5115 = vmatpush.bf16.msra.mxu0 0
        %5116 = vmatpush.bf16.msra.mxu0 0
        %5117 = vmatpush.bf16.msra.mxu0 0
        %5118 = vmatpush.bf16.msra.mxu0 0
        %5119 = vmatpush.bf16.msra.mxu0 %v5110
        %5120 = vmatmul.bf16.gmra.mxu0 %v5107
        %v5121 = vpop.f32.mrf.mxu0
        %v5122 = vadd.f32 0.0, %v5121
        %v5123 = vpop.f32.mrf.mxu0
        %5124 = vdwg.mxu0
        %v5126 = vsel %vm1987, %v5066, 0
        %v5129 = vsel %vm5070, %v4938, 0
        %5131 = vmatpush.bf16.msra.mxu0 0
        %5132 = vmatpush.bf16.msra.mxu0 0
        %5133 = vmatpush.bf16.msra.mxu0 0
        %5134 = vmatpush.bf16.msra.mxu0 0
        %5135 = vmatpush.bf16.msra.mxu0 0
        %5136 = vmatpush.bf16.msra.mxu0 0
        %5137 = vmatpush.bf16.msra.mxu0 0
        %5138 = vmatpush.bf16.msra.mxu0 %v5129
        %5139 = vmatmul.bf16.gmra.mxu0 %v5126
        %v5140 = vpop.f32.mrf.mxu0
        %v5141 = vadd.f32 0.0, %v5140
        %v5142 = vpop.f32.mrf.mxu0
        %5143 = vdwg.mxu0
        %v5144 = vrot.slane %v5122, 4
        %v5145 = vsel %vm1249, %v5144, %v5084
        %v5146 = vrot.slane %v5084, 4
        %v5147 = vsel %vm1249, %v5122, %v5146
        %v5149 = vunpack.c.l.s4 1983009808
        %v5150 = vunpack.c.0.s8 %v5149
        %v5151 = vperm.slane %v5145, %v5150
        %v5153 = vunpack.c.l.s4 1983009808
        %v5154 = vunpack.c.0.s8 %v5153
        %v5155 = vperm.slane %v5147, %v5154
        %v5156 = vrot.slane %v5141, 4
        %v5157 = vsel %vm1249, %v5156, %v5103
        %v5158 = vrot.slane %v5103, 4
        %v5159 = vsel %vm1249, %v5141, %v5158
        %v5161 = vunpack.c.l.s4 1983009808
        %v5162 = vunpack.c.0.s8 %v5161
        %v5163 = vperm.slane %v5157, %v5162
        %v5165 = vunpack.c.l.s4 1983009808
        %v5166 = vunpack.c.0.s8 %v5165
        %v5167 = vperm.slane %v5159, %v5166
        %v5168 = vrot.slane %v5163, 4
        %v5169 = vsel %vm1249, %v5168, %v5151
        %v5170 = vrot.slane %v5151, 4
        %v5171 = vsel %vm1249, %v5163, %v5170
        %v5173 = vunpack.c.l.s4 1934713408
        %v5174 = vunpack.c.0.s8 %v5173
        %v5175 = vperm.slane %v5169, %v5174
        %v5177 = vunpack.c.l.s4 1934713408
        %v5178 = vunpack.c.0.s8 %v5177
        %v5179 = vperm.slane %v5171, %v5178
        %v5180 = vrot.slane %v5167, 4
        %v5181 = vsel %vm1249, %v5180, %v5155
        %v5182 = vrot.slane %v5155, 4
        %v5183 = vsel %vm1249, %v5167, %v5182
        %v5185 = vunpack.c.l.s4 1934713408
        %v5186 = vunpack.c.0.s8 %v5185
        %v5187 = vperm.slane %v5181, %v5186
        %v5189 = vunpack.c.l.s4 1934713408
        %v5190 = vunpack.c.0.s8 %v5189
        %v5191 = vperm.slane %v5183, %v5190
        %v5192 = vrot.slane %v5175, 4
        %v5193 = vsel %vm1249, 0.0, %v5192
        %v5194 = vrot.slane %v5179, 4
        %v5195 = vsel %vm1249, 0.0, %v5194
        %v5196 = vrot.slane %v5187, 4
        %v5197 = vsel %vm1249, 0.0, %v5196
        %v5198 = vrot.slane %v5191, 4
        %v5199 = vsel %vm1249, 0.0, %v5198
        %v5200 = vsel %vm1249, %v5194, %v5175
        %v5202 = vunpack.c.l.s4 1983009808
        %v5203 = vunpack.c.0.s8 %v5202
        %v5204 = vperm.slane %v5200, %v5203
        %v5205 = vrot.slane %v5195, 4
        %v5206 = vsel %vm1249, %v5205, %v5193
        %v5208 = vunpack.c.l.s4 1983009808
        %v5209 = vunpack.c.0.s8 %v5208
        %v5210 = vperm.slane %v5206, %v5209
        %v5211 = vsel %vm1249, %v5198, %v5187
        %v5213 = vunpack.c.l.s4 1983009808
        %v5214 = vunpack.c.0.s8 %v5213
        %v5215 = vperm.slane %v5211, %v5214
        %v5216 = vrot.slane %v5199, 4
        %v5217 = vsel %vm1249, %v5216, %v5197
        %v5219 = vunpack.c.l.s4 1983009808
        %v5220 = vunpack.c.0.s8 %v5219
        %v5221 = vperm.slane %v5217, %v5220
        %v5222 = vrot.slane %v5210, 4
        %v5223 = vsel %vm1249, %v5222, %v5204
        %v5224 = vrot.slane %v5204, 4
        %v5225 = vsel %vm1249, %v5210, %v5224
        %v5227 = vunpack.c.l.s4 1934713408
        %v5228 = vunpack.c.0.s8 %v5227
        %v5229 = vperm.slane %v5223, %v5228
        %v5231 = vunpack.c.l.s4 1934713408
        %v5232 = vunpack.c.0.s8 %v5231
        %v5233 = vperm.slane %v5225, %v5232
        %v5234 = vrot.slane %v5221, 4
        %v5235 = vsel %vm1249, %v5234, %v5215
        %v5236 = vrot.slane %v5215, 4
        %v5237 = vsel %vm1249, %v5221, %v5236
        %v5239 = vunpack.c.l.s4 1934713408
        %v5240 = vunpack.c.0.s8 %v5239
        %v5241 = vperm.slane %v5235, %v5240
        %v5243 = vunpack.c.l.s4 1934713408
        %v5244 = vunpack.c.0.s8 %v5243
        %v5245 = vperm.slane %v5237, %v5244
        %v5246 = vrot.slane %v5241, 4
        %v5247 = vsel %vm1249, %v5246, %v5229
        %v5248 = vrot.slane %v5229, 4
        %v5249 = vsel %vm1249, %v5241, %v5248
        %v5250 = vrot.slane %v5245, 4
        %v5251 = vsel %vm1249, %v5250, %v5233
        %v5252 = vrot.slane %v5233, 4
        %v5253 = vsel %vm1249, %v5245, %v5252
        %5255 = vrot.lane.b32.xlu0 %v5249, 8
        %v5256 = vpop.permute.xlu0 %5255
        %5259 = vrot.lane.b32.xlu0 %v5251, 16
        %v5260 = vpop.permute.xlu0 %5259
        %5263 = vrot.lane.b32.xlu0 %v5253, 24
        %v5264 = vpop.permute.xlu0 %5263
        %v5266 = vsel %vm1987, %v5247, %v5256
        %v5267 = vsel %vm2117, %v5266, %v5260
        %v5268 = vsel %vm2574, %v5267, %v5264
        %v5269 = vpack.c.bf16 %v5268, %v5268
        %v5271 = vperm.slane %v4507, 0
        %v5277 = vunpack.c.l.b16 %v4503
        %v5278 = vunpack.c.l.b16 %v4504
        %v5279 = vunpack.c.l.b16 %v4505
        %v5280 = vunpack.c.l.b16 %v4506
        %v5281 = vpack.c.b16 %v5278, %v5277
        %v5282 = vpack.c.b16 %v5280, %v5279
        %v5286 = vsel %vm1184, %v5269, 0
        %5288 = vmatpush.bf16.msra.mxu0 0
        %5289 = vmatpush.bf16.msra.mxu0 0
        %5290 = vmatpush.bf16.msra.mxu0 0
        %5291 = vmatpush.bf16.msra.mxu0 0
        %5292 = vmatpush.bf16.msra.mxu0 0
        %5293 = vmatpush.bf16.msra.mxu0 0
        %5294 = vmatpush.bf16.msra.mxu0 %v5282
        %5295 = vmatpush.bf16.msra.mxu0 %v5281
        %5296 = vmatmul.bf16.gmra.mxu0 %v5286
        %v5297 = vpop.f32.mrf.mxu0
        %v5298 = vadd.f32 %v5271, %v5297
        %v5299 = vpop.f32.mrf.mxu0
        %5300 = vdwg.mxu0
        %v5301 = vadd.f32 %v5298, 0.0
        %v5302 = vld [vmem:[%s57] sm:$0x1]
        %v5303 = vld [vmem:[%s59] sm:$0x1]
        %v5304 = vsel %vm1184, %v5301, 0.0
        %5305 = vadd.xlane.f32.xlu0 %v5304
        %v5306 = vpop.xlane.xlu0 %5305
        %v5307 = vmul.f32 %v5306, %v2626
        %v5308 = vsub.f32 %v5301, %v5307
        %v5309 = vmul.f32 %v5308, %v5308
        %v5310 = vsel %vm1184, %v5309, 0.0
        %5311 = vadd.xlane.f32.xlu0 %v5310
        %v5312 = vpop.xlane.xlu0 %5311
        %v5313 = vmul.f32 %v5312, %v2626
        %v5314 = vadd.f32 %v5313, 1e-05
        %v5315 = vrsqrt.pop %v5314
        %v5316 = vmul.f32 %v5315, %v5314
        %v5317 = vmul.f32 %v5316, %v5315
        %v5318 = vmul.f32 0.5, %v5317
        %v5319 = vsub.f32 1.5, %v5318
        %v5320 = vmul.f32 %v5315, %v5319
        %vm5321 = vweird.f32 %v5314
        %vm5322 = vweird.f32 %v5315
        %vm5323 = vmor %vm5321, %vm5322
        %v5324 = vsel %vm5323, %v5315, %v5320
        %v5325 = vmul.f32 %v5308, %v5324
        %v5327 = vperm.slane %v5302, 0
        %v5329 = vmul.f32 %v5325, %v5327
        %v5331 = vperm.slane %v5303, 0
        %v5333 = vadd.f32 %v5329, %v5331
        %v5334 = vadd.f32 %v5333, %v1153
        %v5335 = vld [vmem:[%s41] sm:$0xf]
        %v5336 = vld [vmem:[%s41 + $0x4] sm:$0xf]
        %v5337 = vld [vmem:[%s41 + $0x8] sm:$0xf]
        %v5338 = vld [vmem:[%s41 + $0xc] sm:$0xf]
        %v5339 = vld [vmem:[%s43] sm:$0x1]
        %v5340 = vld [vmem:[%s45] sm:$0xf]
        %v5341 = vld [vmem:[%s45 + $0x4] sm:$0xf]
        %v5342 = vld [vmem:[%s45 + $0x8] sm:$0xf]
        %v5343 = vld [vmem:[%s45 + $0xc] sm:$0xf]
        %v5344 = vld [vmem:[%s47] sm:$0x1]
        %v5345 = vpack.c.bf16 %v5334, %v5334
        %v5347 = vperm.slane %v5339, 0
        %v5353 = vunpack.c.l.b16 %v5335
        %v5354 = vunpack.c.l.b16 %v5336
        %v5355 = vunpack.c.l.b16 %v5337
        %v5356 = vunpack.c.l.b16 %v5338
        %v5357 = vpack.c.b16 %v5354, %v5353
        %v5358 = vpack.c.b16 %v5356, %v5355
        %v5362 = vsel %vm1184, %v5345, 0
        %5364 = vmatpush.bf16.msra.mxu0 0
        %5365 = vmatpush.bf16.msra.mxu0 0
        %5366 = vmatpush.bf16.msra.mxu0 0
        %5367 = vmatpush.bf16.msra.mxu0 0
        %5368 = vmatpush.bf16.msra.mxu0 0
        %5369 = vmatpush.bf16.msra.mxu0 0
        %5370 = vmatpush.bf16.msra.mxu0 %v5358
        %5371 = vmatpush.bf16.msra.mxu0 %v5357
        %5372 = vmatmul.bf16.gmra.mxu0 %v5362
        %v5373 = vpop.f32.mrf.mxu0
        %v5374 = vadd.f32 %v5347, %v5373
        %v5375 = vpop.f32.mrf.mxu0
        %5376 = vdwg.mxu0
        %5377 = vrot.lane.b32.xlu0 %v5357, 96
        %v5378 = vpop.permute.xlu0 %5377
        %5379 = vrot.lane.b32.xlu0 %v5358, 96
        %v5380 = vpop.permute.xlu0 %5379
        %5383 = vrot.lane.b32.xlu0 %v5347, 96
        %v5384 = vpop.permute.xlu0 %5383
        %5386 = vmatpush.bf16.msra.mxu0 0
        %5387 = vmatpush.bf16.msra.mxu0 0
        %5388 = vmatpush.bf16.msra.mxu0 0
        %5389 = vmatpush.bf16.msra.mxu0 0
        %5390 = vmatpush.bf16.msra.mxu0 0
        %5391 = vmatpush.bf16.msra.mxu0 0
        %5392 = vmatpush.bf16.msra.mxu0 %v5380
        %5393 = vmatpush.bf16.msra.mxu0 %v5378
        %5394 = vmatmul.bf16.gmra.mxu0 %v2862
        %v5395 = vpop.f32.mrf.mxu0
        %v5396 = vadd.f32 %v5384, %v5395
        %v5397 = vpop.f32.mrf.mxu0
        %v5398 = vadd.f32 %v5384, %v5397
        %5399 = vdwg.mxu0
        %5400 = vrot.lane.b32.xlu0 %v5357, 64
        %v5401 = vpop.permute.xlu0 %5400
        %5402 = vrot.lane.b32.xlu0 %v5358, 64
        %v5403 = vpop.permute.xlu0 %5402
        %5406 = vrot.lane.b32.xlu0 %v5347, 64
        %v5407 = vpop.permute.xlu0 %5406
        %5409 = vmatpush.bf16.msra.mxu0 0
        %5410 = vmatpush.bf16.msra.mxu0 0
        %5411 = vmatpush.bf16.msra.mxu0 0
        %5412 = vmatpush.bf16.msra.mxu0 0
        %5413 = vmatpush.bf16.msra.mxu0 0
        %5414 = vmatpush.bf16.msra.mxu0 0
        %5415 = vmatpush.bf16.msra.mxu0 %v5403
        %5416 = vmatpush.bf16.msra.mxu0 %v5401
        %5417 = vmatmul.bf16.gmra.mxu0 %v2888
        %v5418 = vpop.f32.mrf.mxu0
        %v5419 = vadd.f32 %v5407, %v5418
        %v5420 = vpop.f32.mrf.mxu0
        %v5421 = vadd.f32 %v5407, %v5420
        %5422 = vdwg.mxu0
        %5424 = vrot.lane.b32.xlu0 %v5374, 120
        %v5425 = vpop.permute.xlu0 %5424
        %5427 = vrot.lane.b32.xlu0 %v5374, 112
        %v5428 = vpop.permute.xlu0 %5427
        %5430 = vrot.lane.b32.xlu0 %v5374, 104
        %v5431 = vpop.permute.xlu0 %5430
        %v5433 = vrot.slane %v5428, 4
        %v5434 = vsel %vm1249, %v5433, %v5374
        %v5435 = vrot.slane %v5374, 4
        %v5436 = vsel %vm1249, %v5428, %v5435
        %v5438 = vunpack.c.l.s4 1983009808
        %v5439 = vunpack.c.0.s8 %v5438
        %v5440 = vperm.slane %v5434, %v5439
        %v5442 = vunpack.c.l.s4 1983009808
        %v5443 = vunpack.c.0.s8 %v5442
        %v5444 = vperm.slane %v5436, %v5443
        %v5445 = vrot.slane %v5431, 4
        %v5446 = vsel %vm1249, %v5445, %v5425
        %v5447 = vrot.slane %v5425, 4
        %v5448 = vsel %vm1249, %v5431, %v5447
        %v5450 = vunpack.c.l.s4 1983009808
        %v5451 = vunpack.c.0.s8 %v5450
        %v5452 = vperm.slane %v5446, %v5451
        %v5454 = vunpack.c.l.s4 1983009808
        %v5455 = vunpack.c.0.s8 %v5454
        %v5456 = vperm.slane %v5448, %v5455
        %v5457 = vrot.slane %v5452, 4
        %v5458 = vsel %vm1249, %v5457, %v5440
        %v5459 = vrot.slane %v5440, 4
        %v5460 = vsel %vm1249, %v5452, %v5459
        %v5462 = vunpack.c.l.s4 1934713408
        %v5463 = vunpack.c.0.s8 %v5462
        %v5464 = vperm.slane %v5458, %v5463
        %v5466 = vunpack.c.l.s4 1934713408
        %v5467 = vunpack.c.0.s8 %v5466
        %v5468 = vperm.slane %v5460, %v5467
        %v5469 = vrot.slane %v5456, 4
        %v5470 = vsel %vm1249, %v5469, %v5444
        %v5471 = vrot.slane %v5444, 4
        %v5472 = vsel %vm1249, %v5456, %v5471
        %v5474 = vunpack.c.l.s4 1934713408
        %v5475 = vunpack.c.0.s8 %v5474
        %v5476 = vperm.slane %v5470, %v5475
        %v5478 = vunpack.c.l.s4 1934713408
        %v5479 = vunpack.c.0.s8 %v5478
        %v5480 = vperm.slane %v5472, %v5479
        %v5481 = vrot.slane %v5464, 4
        %v5482 = vsel %vm1249, 0.0, %v5481
        %v5483 = vrot.slane %v5468, 4
        %v5484 = vsel %vm1249, 0.0, %v5483
        %v5485 = vrot.slane %v5476, 4
        %v5486 = vsel %vm1249, 0.0, %v5485
        %v5487 = vrot.slane %v5480, 4
        %v5488 = vsel %vm1249, 0.0, %v5487
        %v5489 = vsel %vm1249, %v5483, %v5464
        %v5491 = vunpack.c.l.s4 1983009808
        %v5492 = vunpack.c.0.s8 %v5491
        %v5493 = vperm.slane %v5489, %v5492
        %v5494 = vrot.slane %v5484, 4
        %v5495 = vsel %vm1249, %v5494, %v5482
        %v5497 = vunpack.c.l.s4 1983009808
        %v5498 = vunpack.c.0.s8 %v5497
        %v5499 = vperm.slane %v5495, %v5498
        %v5500 = vsel %vm1249, %v5487, %v5476
        %v5502 = vunpack.c.l.s4 1983009808
        %v5503 = vunpack.c.0.s8 %v5502
        %v5504 = vperm.slane %v5500, %v5503
        %v5505 = vrot.slane %v5488, 4
        %v5506 = vsel %vm1249, %v5505, %v5486
        %v5508 = vunpack.c.l.s4 1983009808
        %v5509 = vunpack.c.0.s8 %v5508
        %v5510 = vperm.slane %v5506, %v5509
        %v5511 = vrot.slane %v5499, 4
        %v5512 = vsel %vm1249, %v5511, %v5493
        %v5513 = vrot.slane %v5493, 4
        %v5514 = vsel %vm1249, %v5499, %v5513
        %v5516 = vunpack.c.l.s4 1934713408
        %v5517 = vunpack.c.0.s8 %v5516
        %v5518 = vperm.slane %v5512, %v5517
        %v5520 = vunpack.c.l.s4 1934713408
        %v5521 = vunpack.c.0.s8 %v5520
        %v5522 = vperm.slane %v5514, %v5521
        %v5523 = vrot.slane %v5510, 4
        %v5524 = vsel %vm1249, %v5523, %v5504
        %v5525 = vrot.slane %v5504, 4
        %v5526 = vsel %vm1249, %v5510, %v5525
        %v5528 = vunpack.c.l.s4 1934713408
        %v5529 = vunpack.c.0.s8 %v5528
        %v5530 = vperm.slane %v5524, %v5529
        %v5532 = vunpack.c.l.s4 1934713408
        %v5533 = vunpack.c.0.s8 %v5532
        %v5534 = vperm.slane %v5526, %v5533
        %v5535 = vrot.slane %v5530, 4
        %v5536 = vsel %vm1249, %v5535, %v5518
        %v5537 = vrot.slane %v5518, 4
        %v5538 = vsel %vm1249, %v5530, %v5537
        %v5539 = vrot.slane %v5534, 4
        %v5540 = vsel %vm1249, %v5539, %v5522
        %v5541 = vrot.slane %v5522, 4
        %v5542 = vsel %vm1249, %v5534, %v5541
        %v5543 = vpack.c.bf16 %v5536, %v5536
        %v5544 = vpack.c.bf16 %v5538, %v5538
        %v5545 = vpack.c.bf16 %v5540, %v5540
        %v5546 = vpack.c.bf16 %v5542, %v5542
        %5549 = vrot.lane.b32.xlu0 %v5396, 120
        %v5550 = vpop.permute.xlu0 %5549
        %5551 = vrot.lane.b32.xlu0 %v5398, 120
        %v5552 = vpop.permute.xlu0 %5551
        %5555 = vrot.lane.b32.xlu0 %v5396, 112
        %v5556 = vpop.permute.xlu0 %5555
        %5557 = vrot.lane.b32.xlu0 %v5398, 112
        %v5558 = vpop.permute.xlu0 %5557
        %5561 = vrot.lane.b32.xlu0 %v5396, 104
        %v5562 = vpop.permute.xlu0 %5561
        %5563 = vrot.lane.b32.xlu0 %v5398, 104
        %v5564 = vpop.permute.xlu0 %5563
        %v5567 = vrot.slane %v5556, 4
        %v5568 = vsel %vm1249, %v5567, %v5396
        %v5569 = vrot.slane %v5396, 4
        %v5570 = vsel %vm1249, %v5556, %v5569
        %v5572 = vunpack.c.l.s4 1983009808
        %v5573 = vunpack.c.0.s8 %v5572
        %v5574 = vperm.slane %v5568, %v5573
        %v5576 = vunpack.c.l.s4 1983009808
        %v5577 = vunpack.c.0.s8 %v5576
        %v5578 = vperm.slane %v5570, %v5577
        %v5579 = vrot.slane %v5562, 4
        %v5580 = vsel %vm1249, %v5579, %v5550
        %v5581 = vrot.slane %v5550, 4
        %v5582 = vsel %vm1249, %v5562, %v5581
        %v5584 = vunpack.c.l.s4 1983009808
        %v5585 = vunpack.c.0.s8 %v5584
        %v5586 = vperm.slane %v5580, %v5585
        %v5588 = vunpack.c.l.s4 1983009808
        %v5589 = vunpack.c.0.s8 %v5588
        %v5590 = vperm.slane %v5582, %v5589
        %v5591 = vrot.slane %v5586, 4
        %v5592 = vsel %vm1249, %v5591, %v5574
        %v5593 = vrot.slane %v5574, 4
        %v5594 = vsel %vm1249, %v5586, %v5593
        %v5596 = vunpack.c.l.s4 1934713408
        %v5597 = vunpack.c.0.s8 %v5596
        %v5598 = vperm.slane %v5592, %v5597
        %v5600 = vunpack.c.l.s4 1934713408
        %v5601 = vunpack.c.0.s8 %v5600
        %v5602 = vperm.slane %v5594, %v5601
        %v5603 = vrot.slane %v5590, 4
        %v5604 = vsel %vm1249, %v5603, %v5578
        %v5605 = vrot.slane %v5578, 4
        %v5606 = vsel %vm1249, %v5590, %v5605
        %v5608 = vunpack.c.l.s4 1934713408
        %v5609 = vunpack.c.0.s8 %v5608
        %v5610 = vperm.slane %v5604, %v5609
        %v5612 = vunpack.c.l.s4 1934713408
        %v5613 = vunpack.c.0.s8 %v5612
        %v5614 = vperm.slane %v5606, %v5613
        %v5615 = vrot.slane %v5598, 4
        %v5616 = vsel %vm1249, 0.0, %v5615
        %v5617 = vrot.slane %v5602, 4
        %v5618 = vsel %vm1249, 0.0, %v5617
        %v5619 = vrot.slane %v5610, 4
        %v5620 = vsel %vm1249, 0.0, %v5619
        %v5621 = vrot.slane %v5614, 4
        %v5622 = vsel %vm1249, 0.0, %v5621
        %v5623 = vrot.slane %v5558, 4
        %v5624 = vsel %vm1249, %v5623, %v5398
        %v5625 = vrot.slane %v5398, 4
        %v5626 = vsel %vm1249, %v5558, %v5625
        %v5628 = vunpack.c.l.s4 1983009808
        %v5629 = vunpack.c.0.s8 %v5628
        %v5630 = vperm.slane %v5624, %v5629
        %v5632 = vunpack.c.l.s4 1983009808
        %v5633 = vunpack.c.0.s8 %v5632
        %v5634 = vperm.slane %v5626, %v5633
        %v5635 = vrot.slane %v5564, 4
        %v5636 = vsel %vm1249, %v5635, %v5552
        %v5637 = vrot.slane %v5552, 4
        %v5638 = vsel %vm1249, %v5564, %v5637
        %v5640 = vunpack.c.l.s4 1983009808
        %v5641 = vunpack.c.0.s8 %v5640
        %v5642 = vperm.slane %v5636, %v5641
        %v5644 = vunpack.c.l.s4 1983009808
        %v5645 = vunpack.c.0.s8 %v5644
        %v5646 = vperm.slane %v5638, %v5645
        %v5647 = vrot.slane %v5642, 4
        %v5648 = vsel %vm1249, %v5647, %v5630
        %v5649 = vrot.slane %v5630, 4
        %v5650 = vsel %vm1249, %v5642, %v5649
        %v5652 = vunpack.c.l.s4 1934713408
        %v5653 = vunpack.c.0.s8 %v5652
        %v5654 = vperm.slane %v5648, %v5653
        %v5656 = vunpack.c.l.s4 1934713408
        %v5657 = vunpack.c.0.s8 %v5656
        %v5658 = vperm.slane %v5650, %v5657
        %v5659 = vrot.slane %v5646, 4
        %v5660 = vsel %vm1249, %v5659, %v5634
        %v5661 = vrot.slane %v5634, 4
        %v5662 = vsel %vm1249, %v5646, %v5661
        %v5664 = vunpack.c.l.s4 1934713408
        %v5665 = vunpack.c.0.s8 %v5664
        %v5666 = vperm.slane %v5660, %v5665
        %v5668 = vunpack.c.l.s4 1934713408
        %v5669 = vunpack.c.0.s8 %v5668
        %v5670 = vperm.slane %v5662, %v5669
        %v5671 = vrot.slane %v5654, 4
        %v5672 = vsel %vm1249, 0.0, %v5671
        %v5673 = vrot.slane %v5658, 4
        %v5674 = vsel %vm1249, 0.0, %v5673
        %v5675 = vrot.slane %v5666, 4
        %v5676 = vsel %vm1249, 0.0, %v5675
        %v5677 = vrot.slane %v5670, 4
        %v5678 = vsel %vm1249, 0.0, %v5677
        %v5679 = vsel %vm1249, %v5617, %v5598
        %v5681 = vunpack.c.l.s4 1983009808
        %v5682 = vunpack.c.0.s8 %v5681
        %v5683 = vperm.slane %v5679, %v5682
        %v5684 = vrot.slane %v5618, 4
        %v5685 = vsel %vm1249, %v5684, %v5616
        %v5687 = vunpack.c.l.s4 1983009808
        %v5688 = vunpack.c.0.s8 %v5687
        %v5689 = vperm.slane %v5685, %v5688
        %v5690 = vsel %vm1249, %v5621, %v5610
        %v5692 = vunpack.c.l.s4 1983009808
        %v5693 = vunpack.c.0.s8 %v5692
        %v5694 = vperm.slane %v5690, %v5693
        %v5695 = vrot.slane %v5622, 4
        %v5696 = vsel %vm1249, %v5695, %v5620
        %v5698 = vunpack.c.l.s4 1983009808
        %v5699 = vunpack.c.0.s8 %v5698
        %v5700 = vperm.slane %v5696, %v5699
        %v5701 = vrot.slane %v5689, 4
        %v5702 = vsel %vm1249, %v5701, %v5683
        %v5703 = vrot.slane %v5683, 4
        %v5704 = vsel %vm1249, %v5689, %v5703
        %v5706 = vunpack.c.l.s4 1934713408
        %v5707 = vunpack.c.0.s8 %v5706
        %v5708 = vperm.slane %v5702, %v5707
        %v5710 = vunpack.c.l.s4 1934713408
        %v5711 = vunpack.c.0.s8 %v5710
        %v5712 = vperm.slane %v5704, %v5711
        %v5713 = vrot.slane %v5700, 4
        %v5714 = vsel %vm1249, %v5713, %v5694
        %v5715 = vrot.slane %v5694, 4
        %v5716 = vsel %vm1249, %v5700, %v5715
        %v5718 = vunpack.c.l.s4 1934713408
        %v5719 = vunpack.c.0.s8 %v5718
        %v5720 = vperm.slane %v5714, %v5719
        %v5722 = vunpack.c.l.s4 1934713408
        %v5723 = vunpack.c.0.s8 %v5722
        %v5724 = vperm.slane %v5716, %v5723
        %v5725 = vrot.slane %v5720, 4
        %v5726 = vsel %vm1249, %v5725, %v5708
        %v5727 = vrot.slane %v5708, 4
        %v5728 = vsel %vm1249, %v5720, %v5727
        %v5729 = vrot.slane %v5724, 4
        %v5730 = vsel %vm1249, %v5729, %v5712
        %v5731 = vrot.slane %v5712, 4
        %v5732 = vsel %vm1249, %v5724, %v5731
        %v5733 = vsel %vm1249, %v5673, %v5654
        %v5735 = vunpack.c.l.s4 1983009808
        %v5736 = vunpack.c.0.s8 %v5735
        %v5737 = vperm.slane %v5733, %v5736
        %v5738 = vrot.slane %v5674, 4
        %v5739 = vsel %vm1249, %v5738, %v5672
        %v5741 = vunpack.c.l.s4 1983009808
        %v5742 = vunpack.c.0.s8 %v5741
        %v5743 = vperm.slane %v5739, %v5742
        %v5744 = vsel %vm1249, %v5677, %v5666
        %v5746 = vunpack.c.l.s4 1983009808
        %v5747 = vunpack.c.0.s8 %v5746
        %v5748 = vperm.slane %v5744, %v5747
        %v5749 = vrot.slane %v5678, 4
        %v5750 = vsel %vm1249, %v5749, %v5676
        %v5752 = vunpack.c.l.s4 1983009808
        %v5753 = vunpack.c.0.s8 %v5752
        %v5754 = vperm.slane %v5750, %v5753
        %v5755 = vrot.slane %v5743, 4
        %v5756 = vsel %vm1249, %v5755, %v5737
        %v5757 = vrot.slane %v5737, 4
        %v5758 = vsel %vm1249, %v5743, %v5757
        %v5760 = vunpack.c.l.s4 1934713408
        %v5761 = vunpack.c.0.s8 %v5760
        %v5762 = vperm.slane %v5756, %v5761
        %v5764 = vunpack.c.l.s4 1934713408
        %v5765 = vunpack.c.0.s8 %v5764
        %v5766 = vperm.slane %v5758, %v5765
        %v5767 = vrot.slane %v5754, 4
        %v5768 = vsel %vm1249, %v5767, %v5748
        %v5769 = vrot.slane %v5748, 4
        %v5770 = vsel %vm1249, %v5754, %v5769
        %v5772 = vunpack.c.l.s4 1934713408
        %v5773 = vunpack.c.0.s8 %v5772
        %v5774 = vperm.slane %v5768, %v5773
        %v5776 = vunpack.c.l.s4 1934713408
        %v5777 = vunpack.c.0.s8 %v5776
        %v5778 = vperm.slane %v5770, %v5777
        %v5779 = vrot.slane %v5774, 4
        %v5780 = vsel %vm1249, %v5779, %v5762
        %v5781 = vrot.slane %v5762, 4
        %v5782 = vsel %vm1249, %v5774, %v5781
        %v5783 = vrot.slane %v5778, 4
        %v5784 = vsel %vm1249, %v5783, %v5766
        %v5785 = vrot.slane %v5766, 4
        %v5786 = vsel %vm1249, %v5778, %v5785
        %v5787 = vpack.c.bf16 %v5726, %v5726
        %v5788 = vpack.c.bf16 %v5780, %v5780
        %v5789 = vpack.c.bf16 %v5728, %v5728
        %v5790 = vpack.c.bf16 %v5782, %v5782
        %v5791 = vpack.c.bf16 %v5730, %v5730
        %v5792 = vpack.c.bf16 %v5784, %v5784
        %v5793 = vpack.c.bf16 %v5732, %v5732
        %v5794 = vpack.c.bf16 %v5786, %v5786
        %5797 = vrot.lane.b32.xlu0 %v5419, 120
        %v5798 = vpop.permute.xlu0 %5797
        %5799 = vrot.lane.b32.xlu0 %v5421, 120
        %v5800 = vpop.permute.xlu0 %5799
        %5803 = vrot.lane.b32.xlu0 %v5419, 112
        %v5804 = vpop.permute.xlu0 %5803
        %5805 = vrot.lane.b32.xlu0 %v5421, 112
        %v5806 = vpop.permute.xlu0 %5805
        %5809 = vrot.lane.b32.xlu0 %v5419, 104
        %v5810 = vpop.permute.xlu0 %5809
        %5811 = vrot.lane.b32.xlu0 %v5421, 104
        %v5812 = vpop.permute.xlu0 %5811
        %v5815 = vrot.slane %v5804, 4
        %v5816 = vsel %vm1249, %v5815, %v5419
        %v5817 = vrot.slane %v5419, 4
        %v5818 = vsel %vm1249, %v5804, %v5817
        %v5820 = vunpack.c.l.s4 1983009808
        %v5821 = vunpack.c.0.s8 %v5820
        %v5822 = vperm.slane %v5816, %v5821
        %v5824 = vunpack.c.l.s4 1983009808
        %v5825 = vunpack.c.0.s8 %v5824
        %v5826 = vperm.slane %v5818, %v5825
        %v5827 = vrot.slane %v5810, 4
        %v5828 = vsel %vm1249, %v5827, %v5798
        %v5829 = vrot.slane %v5798, 4
        %v5830 = vsel %vm1249, %v5810, %v5829
        %v5832 = vunpack.c.l.s4 1983009808
        %v5833 = vunpack.c.0.s8 %v5832
        %v5834 = vperm.slane %v5828, %v5833
        %v5836 = vunpack.c.l.s4 1983009808
        %v5837 = vunpack.c.0.s8 %v5836
        %v5838 = vperm.slane %v5830, %v5837
        %v5839 = vrot.slane %v5834, 4
        %v5840 = vsel %vm1249, %v5839, %v5822
        %v5841 = vrot.slane %v5822, 4
        %v5842 = vsel %vm1249, %v5834, %v5841
        %v5844 = vunpack.c.l.s4 1934713408
        %v5845 = vunpack.c.0.s8 %v5844
        %v5846 = vperm.slane %v5840, %v5845
        %v5848 = vunpack.c.l.s4 1934713408
        %v5849 = vunpack.c.0.s8 %v5848
        %v5850 = vperm.slane %v5842, %v5849
        %v5851 = vrot.slane %v5838, 4
        %v5852 = vsel %vm1249, %v5851, %v5826
        %v5853 = vrot.slane %v5826, 4
        %v5854 = vsel %vm1249, %v5838, %v5853
        %v5856 = vunpack.c.l.s4 1934713408
        %v5857 = vunpack.c.0.s8 %v5856
        %v5858 = vperm.slane %v5852, %v5857
        %v5860 = vunpack.c.l.s4 1934713408
        %v5861 = vunpack.c.0.s8 %v5860
        %v5862 = vperm.slane %v5854, %v5861
        %v5863 = vrot.slane %v5846, 4
        %v5864 = vsel %vm1249, 0.0, %v5863
        %v5865 = vrot.slane %v5850, 4
        %v5866 = vsel %vm1249, 0.0, %v5865
        %v5867 = vrot.slane %v5858, 4
        %v5868 = vsel %vm1249, 0.0, %v5867
        %v5869 = vrot.slane %v5862, 4
        %v5870 = vsel %vm1249, 0.0, %v5869
        %v5871 = vrot.slane %v5806, 4
        %v5872 = vsel %vm1249, %v5871, %v5421
        %v5873 = vrot.slane %v5421, 4
        %v5874 = vsel %vm1249, %v5806, %v5873
        %v5876 = vunpack.c.l.s4 1983009808
        %v5877 = vunpack.c.0.s8 %v5876
        %v5878 = vperm.slane %v5872, %v5877
        %v5880 = vunpack.c.l.s4 1983009808
        %v5881 = vunpack.c.0.s8 %v5880
        %v5882 = vperm.slane %v5874, %v5881
        %v5883 = vrot.slane %v5812, 4
        %v5884 = vsel %vm1249, %v5883, %v5800
        %v5885 = vrot.slane %v5800, 4
        %v5886 = vsel %vm1249, %v5812, %v5885
        %v5888 = vunpack.c.l.s4 1983009808
        %v5889 = vunpack.c.0.s8 %v5888
        %v5890 = vperm.slane %v5884, %v5889
        %v5892 = vunpack.c.l.s4 1983009808
        %v5893 = vunpack.c.0.s8 %v5892
        %v5894 = vperm.slane %v5886, %v5893
        %v5895 = vrot.slane %v5890, 4
        %v5896 = vsel %vm1249, %v5895, %v5878
        %v5897 = vrot.slane %v5878, 4
        %v5898 = vsel %vm1249, %v5890, %v5897
        %v5900 = vunpack.c.l.s4 1934713408
        %v5901 = vunpack.c.0.s8 %v5900
        %v5902 = vperm.slane %v5896, %v5901
        %v5904 = vunpack.c.l.s4 1934713408
        %v5905 = vunpack.c.0.s8 %v5904
        %v5906 = vperm.slane %v5898, %v5905
        %v5907 = vrot.slane %v5894, 4
        %v5908 = vsel %vm1249, %v5907, %v5882
        %v5909 = vrot.slane %v5882, 4
        %v5910 = vsel %vm1249, %v5894, %v5909
        %v5912 = vunpack.c.l.s4 1934713408
        %v5913 = vunpack.c.0.s8 %v5912
        %v5914 = vperm.slane %v5908, %v5913
        %v5916 = vunpack.c.l.s4 1934713408
        %v5917 = vunpack.c.0.s8 %v5916
        %v5918 = vperm.slane %v5910, %v5917
        %v5919 = vrot.slane %v5902, 4
        %v5920 = vsel %vm1249, 0.0, %v5919
        %v5921 = vrot.slane %v5906, 4
        %v5922 = vsel %vm1249, 0.0, %v5921
        %v5923 = vrot.slane %v5914, 4
        %v5924 = vsel %vm1249, 0.0, %v5923
        %v5925 = vrot.slane %v5918, 4
        %v5926 = vsel %vm1249, 0.0, %v5925
        %v5927 = vsel %vm1249, %v5865, %v5846
        %v5929 = vunpack.c.l.s4 1983009808
        %v5930 = vunpack.c.0.s8 %v5929
        %v5931 = vperm.slane %v5927, %v5930
        %v5932 = vrot.slane %v5866, 4
        %v5933 = vsel %vm1249, %v5932, %v5864
        %v5935 = vunpack.c.l.s4 1983009808
        %v5936 = vunpack.c.0.s8 %v5935
        %v5937 = vperm.slane %v5933, %v5936
        %v5938 = vsel %vm1249, %v5869, %v5858
        %v5940 = vunpack.c.l.s4 1983009808
        %v5941 = vunpack.c.0.s8 %v5940
        %v5942 = vperm.slane %v5938, %v5941
        %v5943 = vrot.slane %v5870, 4
        %v5944 = vsel %vm1249, %v5943, %v5868
        %v5946 = vunpack.c.l.s4 1983009808
        %v5947 = vunpack.c.0.s8 %v5946
        %v5948 = vperm.slane %v5944, %v5947
        %v5949 = vrot.slane %v5937, 4
        %v5950 = vsel %vm1249, %v5949, %v5931
        %v5951 = vrot.slane %v5931, 4
        %v5952 = vsel %vm1249, %v5937, %v5951
        %v5954 = vunpack.c.l.s4 1934713408
        %v5955 = vunpack.c.0.s8 %v5954
        %v5956 = vperm.slane %v5950, %v5955
        %v5958 = vunpack.c.l.s4 1934713408
        %v5959 = vunpack.c.0.s8 %v5958
        %v5960 = vperm.slane %v5952, %v5959
        %v5961 = vrot.slane %v5948, 4
        %v5962 = vsel %vm1249, %v5961, %v5942
        %v5963 = vrot.slane %v5942, 4
        %v5964 = vsel %vm1249, %v5948, %v5963
        %v5966 = vunpack.c.l.s4 1934713408
        %v5967 = vunpack.c.0.s8 %v5966
        %v5968 = vperm.slane %v5962, %v5967
        %v5970 = vunpack.c.l.s4 1934713408
        %v5971 = vunpack.c.0.s8 %v5970
        %v5972 = vperm.slane %v5964, %v5971
        %v5973 = vrot.slane %v5968, 4
        %v5974 = vsel %vm1249, %v5973, %v5956
        %v5975 = vrot.slane %v5956, 4
        %v5976 = vsel %vm1249, %v5968, %v5975
        %v5977 = vrot.slane %v5972, 4
        %v5978 = vsel %vm1249, %v5977, %v5960
        %v5979 = vrot.slane %v5960, 4
        %v5980 = vsel %vm1249, %v5972, %v5979
        %v5981 = vsel %vm1249, %v5921, %v5902
        %v5983 = vunpack.c.l.s4 1983009808
        %v5984 = vunpack.c.0.s8 %v5983
        %v5985 = vperm.slane %v5981, %v5984
        %v5986 = vrot.slane %v5922, 4
        %v5987 = vsel %vm1249, %v5986, %v5920
        %v5989 = vunpack.c.l.s4 1983009808
        %v5990 = vunpack.c.0.s8 %v5989
        %v5991 = vperm.slane %v5987, %v5990
        %v5992 = vsel %vm1249, %v5925, %v5914
        %v5994 = vunpack.c.l.s4 1983009808
        %v5995 = vunpack.c.0.s8 %v5994
        %v5996 = vperm.slane %v5992, %v5995
        %v5997 = vrot.slane %v5926, 4
        %v5998 = vsel %vm1249, %v5997, %v5924
        %v6000 = vunpack.c.l.s4 1983009808
        %v6001 = vunpack.c.0.s8 %v6000
        %v6002 = vperm.slane %v5998, %v6001
        %v6003 = vrot.slane %v5991, 4
        %v6004 = vsel %vm1249, %v6003, %v5985
        %v6005 = vrot.slane %v5985, 4
        %v6006 = vsel %vm1249, %v5991, %v6005
        %v6008 = vunpack.c.l.s4 1934713408
        %v6009 = vunpack.c.0.s8 %v6008
        %v6010 = vperm.slane %v6004, %v6009
        %v6012 = vunpack.c.l.s4 1934713408
        %v6013 = vunpack.c.0.s8 %v6012
        %v6014 = vperm.slane %v6006, %v6013
        %v6015 = vrot.slane %v6002, 4
        %v6016 = vsel %vm1249, %v6015, %v5996
        %v6017 = vrot.slane %v5996, 4
        %v6018 = vsel %vm1249, %v6002, %v6017
        %v6020 = vunpack.c.l.s4 1934713408
        %v6021 = vunpack.c.0.s8 %v6020
        %v6022 = vperm.slane %v6016, %v6021
        %v6024 = vunpack.c.l.s4 1934713408
        %v6025 = vunpack.c.0.s8 %v6024
        %v6026 = vperm.slane %v6018, %v6025
        %v6027 = vrot.slane %v6022, 4
        %v6028 = vsel %vm1249, %v6027, %v6010
        %v6029 = vrot.slane %v6010, 4
        %v6030 = vsel %vm1249, %v6022, %v6029
        %v6031 = vrot.slane %v6026, 4
        %v6032 = vsel %vm1249, %v6031, %v6014
        %v6033 = vrot.slane %v6014, 4
        %v6034 = vsel %vm1249, %v6026, %v6033
        %v6035 = vpack.c.bf16 %v5974, %v5974
        %v6036 = vpack.c.bf16 %v6028, %v6028
        %v6037 = vpack.c.bf16 %v5976, %v5976
        %v6038 = vpack.c.bf16 %v6030, %v6030
        %v6039 = vpack.c.bf16 %v5978, %v5978
        %v6040 = vpack.c.bf16 %v6032, %v6032
        %v6041 = vpack.c.bf16 %v5980, %v5980
        %v6042 = vpack.c.bf16 %v6034, %v6034
        %v6045 = vunpack.c.l.b16 %v5787
        %v6046 = vunpack.c.l.b16 %v5788
        %v6047 = vpack.c.b16 %v6046, %v6045
        %v6049 = vsel %vm1987, %v5543, 0
        %v6052 = vsel %vm1987, %v6047, 0
        %6054 = vmatpush.bf16.xpose.msra.mxu0 0
        %6055 = vmatpush.bf16.xpose.msra.mxu0 0
        %6056 = vmatpush.bf16.xpose.msra.mxu0 0
        %6057 = vmatpush.bf16.xpose.msra.mxu0 0
        %6058 = vmatpush.bf16.xpose.msra.mxu0 0
        %6059 = vmatpush.bf16.xpose.msra.mxu0 0
        %6060 = vmatpush.bf16.xpose.msra.mxu0 0
        %6061 = vmatpush.bf16.xpose.msra.mxu0 %v6052
        %6062 = vmatmul.bf16.gmra.mxu0 %v6049
        %v6063 = vpop.f32.mrf.mxu0
        %v6064 = vadd.f32 0.0, %v6063
        %v6065 = vpop.f32.mrf.mxu0
        %6066 = vdwg.mxu0
        %v6069 = vunpack.c.l.b16 %v5789
        %v6070 = vunpack.c.l.b16 %v5790
        %v6071 = vpack.c.b16 %v6070, %v6069
        %v6073 = vsel %vm1987, %v5544, 0
        %v6076 = vsel %vm1987, %v6071, 0
        %6078 = vmatpush.bf16.xpose.msra.mxu0 0
        %6079 = vmatpush.bf16.xpose.msra.mxu0 0
        %6080 = vmatpush.bf16.xpose.msra.mxu0 0
        %6081 = vmatpush.bf16.xpose.msra.mxu0 0
        %6082 = vmatpush.bf16.xpose.msra.mxu0 0
        %6083 = vmatpush.bf16.xpose.msra.mxu0 0
        %6084 = vmatpush.bf16.xpose.msra.mxu0 0
        %6085 = vmatpush.bf16.xpose.msra.mxu0 %v6076
        %6086 = vmatmul.bf16.gmra.mxu0 %v6073
        %v6087 = vpop.f32.mrf.mxu0
        %v6088 = vadd.f32 0.0, %v6087
        %v6089 = vpop.f32.mrf.mxu0
        %6090 = vdwg.mxu0
        %v6093 = vunpack.c.l.b16 %v5791
        %v6094 = vunpack.c.l.b16 %v5792
        %v6095 = vpack.c.b16 %v6094, %v6093
        %v6097 = vsel %vm1987, %v5545, 0
        %v6100 = vsel %vm1987, %v6095, 0
        %6102 = vmatpush.bf16.xpose.msra.mxu0 0
        %6103 = vmatpush.bf16.xpose.msra.mxu0 0
        %6104 = vmatpush.bf16.xpose.msra.mxu0 0
        %6105 = vmatpush.bf16.xpose.msra.mxu0 0
        %6106 = vmatpush.bf16.xpose.msra.mxu0 0
        %6107 = vmatpush.bf16.xpose.msra.mxu0 0
        %6108 = vmatpush.bf16.xpose.msra.mxu0 0
        %6109 = vmatpush.bf16.xpose.msra.mxu0 %v6100
        %6110 = vmatmul.bf16.gmra.mxu0 %v6097
        %v6111 = vpop.f32.mrf.mxu0
        %v6112 = vadd.f32 0.0, %v6111
        %v6113 = vpop.f32.mrf.mxu0
        %6114 = vdwg.mxu0
        %v6117 = vunpack.c.l.b16 %v5793
        %v6118 = vunpack.c.l.b16 %v5794
        %v6119 = vpack.c.b16 %v6118, %v6117
        %v6121 = vsel %vm1987, %v5546, 0
        %v6124 = vsel %vm1987, %v6119, 0
        %6126 = vmatpush.bf16.xpose.msra.mxu0 0
        %6127 = vmatpush.bf16.xpose.msra.mxu0 0
        %6128 = vmatpush.bf16.xpose.msra.mxu0 0
        %6129 = vmatpush.bf16.xpose.msra.mxu0 0
        %6130 = vmatpush.bf16.xpose.msra.mxu0 0
        %6131 = vmatpush.bf16.xpose.msra.mxu0 0
        %6132 = vmatpush.bf16.xpose.msra.mxu0 0
        %6133 = vmatpush.bf16.xpose.msra.mxu0 %v6124
        %6134 = vmatmul.bf16.gmra.mxu0 %v6121
        %v6135 = vpop.f32.mrf.mxu0
        %v6136 = vadd.f32 0.0, %v6135
        %v6137 = vpop.f32.mrf.mxu0
        %6138 = vdwg.mxu0
        %v6139 = vmul.f32 %v6064, 0.35355338
        %v6140 = vmul.f32 %v6088, 0.35355338
        %v6141 = vmul.f32 %v6112, 0.35355338
        %v6142 = vmul.f32 %v6136, 0.35355338
        %v6143 = vadd.f32 %v6139, %v2107
        %v6144 = vadd.f32 %v6140, %v2107
        %v6145 = vadd.f32 %v6141, %v2107
        %v6146 = vadd.f32 %v6142, %v2107
        %v6147 = vsel %vm2117, %v6143, -inf
        %6148 = vmax.xlane.f32.xlu0 %v6147
        %v6149 = vpop.xlane.xlu0 %6148
        %v6150 = vsel %vm2117, %v6144, -inf
        %6151 = vmax.xlane.f32.xlu0 %v6150
        %v6152 = vpop.xlane.xlu0 %6151
        %v6153 = vsel %vm2117, %v6145, -inf
        %6154 = vmax.xlane.f32.xlu0 %v6153
        %v6155 = vpop.xlane.xlu0 %6154
        %v6156 = vsel %vm2117, %v6146, -inf
        %6157 = vmax.xlane.f32.xlu0 %v6156
        %v6158 = vpop.xlane.xlu0 %6157
        %v6159 = vsub.f32 %v6143, %v6149
        %v6160 = vsub.f32 %v6144, %v6152
        %v6161 = vsub.f32 %v6145, %v6155
        %v6162 = vsub.f32 %v6146, %v6158
        %v6163 = vmul.f32 %v6159, 1.442695
        %v6164 = vpow.pop %v6163
        %v6165 = vmul.f32 %v6160, 1.442695
        %v6166 = vpow.pop %v6165
        %v6167 = vmul.f32 %v6161, 1.442695
        %v6168 = vpow.pop %v6167
        %v6169 = vmul.f32 %v6162, 1.442695
        %v6170 = vpow.pop %v6169
        %v6171 = vsel %vm2117, %v6164, 0.0
        %6172 = vadd.xlane.f32.xlu0 %v6171
        %v6173 = vpop.xlane.xlu0 %6172
        %v6174 = vsel %vm2117, %v6166, 0.0
        %6175 = vadd.xlane.f32.xlu0 %v6174
        %v6176 = vpop.xlane.xlu0 %6175
        %v6177 = vsel %vm2117, %v6168, 0.0
        %6178 = vadd.xlane.f32.xlu0 %v6177
        %v6179 = vpop.xlane.xlu0 %6178
        %v6180 = vsel %vm2117, %v6170, 0.0
        %6181 = vadd.xlane.f32.xlu0 %v6180
        %v6182 = vpop.xlane.xlu0 %6181
        %v6183 = vrcp.pop %v6173
        %v6184 = vrcp.pop %v6176
        %v6185 = vrcp.pop %v6179
        %v6186 = vrcp.pop %v6182
        %v6187 = vmul.f32 %v6164, %v6183
        %v6188 = vmul.f32 %v6166, %v6184
        %v6189 = vmul.f32 %v6168, %v6185
        %v6190 = vmul.f32 %v6170, %v6186
        %v6191 = vpack.c.bf16 %v6187, %v6187
        %v6192 = vpack.c.bf16 %v6188, %v6188
        %v6193 = vpack.c.bf16 %v6189, %v6189
        %v6194 = vpack.c.bf16 %v6190, %v6190
        %v6197 = vunpack.c.l.b16 %v6035
        %v6198 = vunpack.c.l.b16 %v6036
        %v6199 = vpack.c.b16 %v6198, %v6197
        %v6202 = vsel %vm2117, %v6191, 0
        %6204 = vmatpush.bf16.msra.mxu0 0
        %6205 = vmatpush.bf16.msra.mxu0 0
        %6206 = vmatpush.bf16.msra.mxu0 0
        %6207 = vmatpush.bf16.msra.mxu0 0
        %6208 = vmatpush.bf16.msra.mxu0 0
        %6209 = vmatpush.bf16.msra.mxu0 0
        %6210 = vmatpush.bf16.msra.mxu0 0
        %6211 = vmatpush.bf16.msra.mxu0 %v6199
        %6212 = vmatmul.bf16.gmra.mxu0 %v6202
        %v6213 = vpop.f32.mrf.mxu0
        %v6214 = vadd.f32 0.0, %v6213
        %v6215 = vpop.f32.mrf.mxu0
        %6216 = vdwg.mxu0
        %v6219 = vunpack.c.l.b16 %v6037
        %v6220 = vunpack.c.l.b16 %v6038
        %v6221 = vpack.c.b16 %v6220, %v6219
        %v6224 = vsel %vm2117, %v6192, 0
        %6226 = vmatpush.bf16.msra.mxu0 0
        %6227 = vmatpush.bf16.msra.mxu0 0
        %6228 = vmatpush.bf16.msra.mxu0 0
        %6229 = vmatpush.bf16.msra.mxu0 0
        %6230 = vmatpush.bf16.msra.mxu0 0
        %6231 = vmatpush.bf16.msra.mxu0 0
        %6232 = vmatpush.bf16.msra.mxu0 0
        %6233 = vmatpush.bf16.msra.mxu0 %v6221
        %6234 = vmatmul.bf16.gmra.mxu0 %v6224
        %v6235 = vpop.f32.mrf.mxu0
        %v6236 = vadd.f32 0.0, %v6235
        %v6237 = vpop.f32.mrf.mxu0
        %6238 = vdwg.mxu0
        %v6241 = vunpack.c.l.b16 %v6039
        %v6242 = vunpack.c.l.b16 %v6040
        %v6243 = vpack.c.b16 %v6242, %v6241
        %v6246 = vsel %vm2117, %v6193, 0
        %6248 = vmatpush.bf16.msra.mxu0 0
        %6249 = vmatpush.bf16.msra.mxu0 0
        %6250 = vmatpush.bf16.msra.mxu0 0
        %6251 = vmatpush.bf16.msra.mxu0 0
        %6252 = vmatpush.bf16.msra.mxu0 0
        %6253 = vmatpush.bf16.msra.mxu0 0
        %6254 = vmatpush.bf16.msra.mxu0 0
        %6255 = vmatpush.bf16.msra.mxu0 %v6243
        %6256 = vmatmul.bf16.gmra.mxu0 %v6246
        %v6257 = vpop.f32.mrf.mxu0
        %v6258 = vadd.f32 0.0, %v6257
        %v6259 = vpop.f32.mrf.mxu0
        %6260 = vdwg.mxu0
        %v6263 = vunpack.c.l.b16 %v6041
        %v6264 = vunpack.c.l.b16 %v6042
        %v6265 = vpack.c.b16 %v6264, %v6263
        %v6268 = vsel %vm2117, %v6194, 0
        %6270 = vmatpush.bf16.msra.mxu0 0
        %6271 = vmatpush.bf16.msra.mxu0 0
        %6272 = vmatpush.bf16.msra.mxu0 0
        %6273 = vmatpush.bf16.msra.mxu0 0
        %6274 = vmatpush.bf16.msra.mxu0 0
        %6275 = vmatpush.bf16.msra.mxu0 0
        %6276 = vmatpush.bf16.msra.mxu0 0
        %6277 = vmatpush.bf16.msra.mxu0 %v6265
        %6278 = vmatmul.bf16.gmra.mxu0 %v6268
        %v6279 = vpop.f32.mrf.mxu0
        %v6280 = vadd.f32 0.0, %v6279
        %v6281 = vpop.f32.mrf.mxu0
        %6282 = vdwg.mxu0
        %v6283 = vrot.slane %v6258, 4
        %v6284 = vsel %vm1249, %v6283, %v6214
        %v6285 = vrot.slane %v6214, 4
        %v6286 = vsel %vm1249, %v6258, %v6285
        %v6288 = vunpack.c.l.s4 1983009808
        %v6289 = vunpack.c.0.s8 %v6288
        %v6290 = vperm.slane %v6284, %v6289
        %v6292 = vunpack.c.l.s4 1983009808
        %v6293 = vunpack.c.0.s8 %v6292
        %v6294 = vperm.slane %v6286, %v6293
        %v6295 = vrot.slane %v6280, 4
        %v6296 = vsel %vm1249, %v6295, %v6236
        %v6297 = vrot.slane %v6236, 4
        %v6298 = vsel %vm1249, %v6280, %v6297
        %v6300 = vunpack.c.l.s4 1983009808
        %v6301 = vunpack.c.0.s8 %v6300
        %v6302 = vperm.slane %v6296, %v6301
        %v6304 = vunpack.c.l.s4 1983009808
        %v6305 = vunpack.c.0.s8 %v6304
        %v6306 = vperm.slane %v6298, %v6305
        %v6307 = vrot.slane %v6302, 4
        %v6308 = vsel %vm1249, %v6307, %v6290
        %v6309 = vrot.slane %v6290, 4
        %v6310 = vsel %vm1249, %v6302, %v6309
        %v6312 = vunpack.c.l.s4 1934713408
        %v6313 = vunpack.c.0.s8 %v6312
        %v6314 = vperm.slane %v6308, %v6313
        %v6316 = vunpack.c.l.s4 1934713408
        %v6317 = vunpack.c.0.s8 %v6316
        %v6318 = vperm.slane %v6310, %v6317
        %v6319 = vrot.slane %v6306, 4
        %v6320 = vsel %vm1249, %v6319, %v6294
        %v6321 = vrot.slane %v6294, 4
        %v6322 = vsel %vm1249, %v6306, %v6321
        %v6324 = vunpack.c.l.s4 1934713408
        %v6325 = vunpack.c.0.s8 %v6324
        %v6326 = vperm.slane %v6320, %v6325
        %v6328 = vunpack.c.l.s4 1934713408
        %v6329 = vunpack.c.0.s8 %v6328
        %v6330 = vperm.slane %v6322, %v6329
        %v6331 = vrot.slane %v6314, 4
        %v6332 = vsel %vm1249, 0.0, %v6331
        %v6333 = vrot.slane %v6318, 4
        %v6334 = vsel %vm1249, 0.0, %v6333
        %v6335 = vrot.slane %v6326, 4
        %v6336 = vsel %vm1249, 0.0, %v6335
        %v6337 = vrot.slane %v6330, 4
        %v6338 = vsel %vm1249, 0.0, %v6337
        %v6339 = vsel %vm1249, %v6333, %v6314
        %v6341 = vunpack.c.l.s4 1983009808
        %v6342 = vunpack.c.0.s8 %v6341
        %v6343 = vperm.slane %v6339, %v6342
        %v6344 = vrot.slane %v6334, 4
        %v6345 = vsel %vm1249, %v6344, %v6332
        %v6347 = vunpack.c.l.s4 1983009808
        %v6348 = vunpack.c.0.s8 %v6347
        %v6349 = vperm.slane %v6345, %v6348
        %v6350 = vsel %vm1249, %v6337, %v6326
        %v6352 = vunpack.c.l.s4 1983009808
        %v6353 = vunpack.c.0.s8 %v6352
        %v6354 = vperm.slane %v6350, %v6353
        %v6355 = vrot.slane %v6338, 4
        %v6356 = vsel %vm1249, %v6355, %v6336
        %v6358 = vunpack.c.l.s4 1983009808
        %v6359 = vunpack.c.0.s8 %v6358
        %v6360 = vperm.slane %v6356, %v6359
        %v6361 = vrot.slane %v6349, 4
        %v6362 = vsel %vm1249, %v6361, %v6343
        %v6363 = vrot.slane %v6343, 4
        %v6364 = vsel %vm1249, %v6349, %v6363
        %v6366 = vunpack.c.l.s4 1934713408
        %v6367 = vunpack.c.0.s8 %v6366
        %v6368 = vperm.slane %v6362, %v6367
        %v6370 = vunpack.c.l.s4 1934713408
        %v6371 = vunpack.c.0.s8 %v6370
        %v6372 = vperm.slane %v6364, %v6371
        %v6373 = vrot.slane %v6360, 4
        %v6374 = vsel %vm1249, %v6373, %v6354
        %v6375 = vrot.slane %v6354, 4
        %v6376 = vsel %vm1249, %v6360, %v6375
        %v6378 = vunpack.c.l.s4 1934713408
        %v6379 = vunpack.c.0.s8 %v6378
        %v6380 = vperm.slane %v6374, %v6379
        %v6382 = vunpack.c.l.s4 1934713408
        %v6383 = vunpack.c.0.s8 %v6382
        %v6384 = vperm.slane %v6376, %v6383
        %v6385 = vrot.slane %v6380, 4
        %v6386 = vsel %vm1249, %v6385, %v6368
        %v6387 = vrot.slane %v6368, 4
        %v6388 = vsel %vm1249, %v6380, %v6387
        %v6389 = vrot.slane %v6384, 4
        %v6390 = vsel %vm1249, %v6389, %v6372
        %v6391 = vrot.slane %v6372, 4
        %v6392 = vsel %vm1249, %v6384, %v6391
        %6394 = vrot.lane.b32.xlu0 %v6388, 8
        %v6395 = vpop.permute.xlu0 %6394
        %6398 = vrot.lane.b32.xlu0 %v6390, 16
        %v6399 = vpop.permute.xlu0 %6398
        %6402 = vrot.lane.b32.xlu0 %v6392, 24
        %v6403 = vpop.permute.xlu0 %6402
        %v6405 = vsel %vm1987, %v6386, %v6395
        %v6406 = vsel %vm2117, %v6405, %v6399
        %v6407 = vsel %vm2574, %v6406, %v6403
        %v6408 = vpack.c.bf16 %v6407, %v6407
        %v6410 = vperm.slane %v5344, 0
        %v6416 = vunpack.c.l.b16 %v5340
        %v6417 = vunpack.c.l.b16 %v5341
        %v6418 = vunpack.c.l.b16 %v5342
        %v6419 = vunpack.c.l.b16 %v5343
        %v6420 = vpack.c.b16 %v6417, %v6416
        %v6421 = vpack.c.b16 %v6419, %v6418
        %v6425 = vsel %vm1184, %v6408, 0
        %6427 = vmatpush.bf16.msra.mxu0 0
        %6428 = vmatpush.bf16.msra.mxu0 0
        %6429 = vmatpush.bf16.msra.mxu0 0
        %6430 = vmatpush.bf16.msra.mxu0 0
        %6431 = vmatpush.bf16.msra.mxu0 0
        %6432 = vmatpush.bf16.msra.mxu0 0
        %6433 = vmatpush.bf16.msra.mxu0 %v6421
        %6434 = vmatpush.bf16.msra.mxu0 %v6420
        %6435 = vmatmul.bf16.gmra.mxu0 %v6425
        %v6436 = vpop.f32.mrf.mxu0
        %v6437 = vadd.f32 %v6410, %v6436
        %v6438 = vpop.f32.mrf.mxu0
        %6439 = vdwg.mxu0
        %v6440 = vadd.f32 %v5333, %v6437
        %v6441 = vld [vmem:[%s61] sm:$0x1]
        %v6442 = vld [vmem:[%s63] sm:$0x1]
        %v6443 = vsel %vm1184, %v6440, 0.0
        %6444 = vadd.xlane.f32.xlu0 %v6443
        %v6445 = vpop.xlane.xlu0 %6444
        %v6446 = vmul.f32 %v6445, %v2626
        %v6447 = vsub.f32 %v6440, %v6446
        %v6448 = vmul.f32 %v6447, %v6447
        %v6449 = vsel %vm1184, %v6448, 0.0
        %6450 = vadd.xlane.f32.xlu0 %v6449
        %v6451 = vpop.xlane.xlu0 %6450
        %v6452 = vmul.f32 %v6451, %v2626
        %v6453 = vadd.f32 %v6452, 1e-05
        %v6454 = vrsqrt.pop %v6453
        %v6455 = vmul.f32 %v6454, %v6453
        %v6456 = vmul.f32 %v6455, %v6454
        %v6457 = vmul.f32 0.5, %v6456
        %v6458 = vsub.f32 1.5, %v6457
        %v6459 = vmul.f32 %v6454, %v6458
        %vm6460 = vweird.f32 %v6453
        %vm6461 = vweird.f32 %v6454
        %vm6462 = vmor %vm6460, %vm6461
        %v6463 = vsel %vm6462, %v6454, %v6459
        %v6464 = vmul.f32 %v6447, %v6463
        %v6466 = vperm.slane %v6441, 0
        %v6468 = vmul.f32 %v6464, %v6466
        %v6470 = vperm.slane %v6442, 0
        %v6472 = vadd.f32 %v6468, %v6470
        %v6473 = vpack.c.bf16 %v6472, %v6472
        %v6474 = vld [vmem:[%s49] sm:$0xf]
        %v6475 = vld [vmem:[%s49 + $0x4] sm:$0xf]
        %v6476 = vld [vmem:[%s49 + $0x8] sm:$0xf]
        %v6477 = vld [vmem:[%s49 + $0xc] sm:$0xf]
        %v6478 = vld [vmem:[%s51] sm:$0x1]
        %v6480 = vperm.slane %v6478, 0
        %v6486 = vunpack.c.l.b16 %v6474
        %v6487 = vunpack.c.l.b16 %v6475
        %v6488 = vunpack.c.l.b16 %v6476
        %v6489 = vunpack.c.l.b16 %v6477
        %v6490 = vpack.c.b16 %v6487, %v6486
        %v6491 = vpack.c.b16 %v6489, %v6488
        %v6495 = vsel %vm1184, %v6473, 0
        %6497 = vmatpush.bf16.msra.mxu0 0
        %6498 = vmatpush.bf16.msra.mxu0 0
        %6499 = vmatpush.bf16.msra.mxu0 0
        %6500 = vmatpush.bf16.msra.mxu0 0
        %6501 = vmatpush.bf16.msra.mxu0 0
        %6502 = vmatpush.bf16.msra.mxu0 0
        %6503 = vmatpush.bf16.msra.mxu0 %v6491
        %6504 = vmatpush.bf16.msra.mxu0 %v6490
        %6505 = vmatmul.bf16.gmra.mxu0 %v6495
        %v6506 = vpop.f32.mrf.mxu0
        %v6507 = vadd.f32 %v6480, %v6506
        %v6508 = vpop.f32.mrf.mxu0
        %6509 = vdwg.mxu0
        %v6510 = vmax.f32 %v6507, 0.0
        %v6511 = vpack.c.bf16 %v6510, %v6510
        %v6512 = vld [vmem:[%s53] sm:$0xf]
        %v6513 = vld [vmem:[%s53 + $0x4] sm:$0xf]
        %v6514 = vld [vmem:[%s53 + $0x8] sm:$0xf]
        %v6515 = vld [vmem:[%s53 + $0xc] sm:$0xf]
        %v6516 = vld [vmem:[%s53 + $0x10] sm:$0xf]
        %v6517 = vld [vmem:[%s53 + $0x14] sm:$0xf]
        %v6518 = vld [vmem:[%s53 + $0x18] sm:$0xf]
        %v6519 = vld [vmem:[%s53 + $0x1c] sm:$0xf]
        %v6520 = vld [vmem:[%s55] sm:$0x1]
        %v6522 = vperm.slane %v6520, 0
        %v6532 = vunpack.c.l.b16 %v6512
        %v6533 = vunpack.c.l.b16 %v6513
        %v6534 = vunpack.c.l.b16 %v6514
        %v6535 = vunpack.c.l.b16 %v6515
        %v6536 = vunpack.c.l.b16 %v6516
        %v6537 = vunpack.c.l.b16 %v6517
        %v6538 = vunpack.c.l.b16 %v6518
        %v6539 = vunpack.c.l.b16 %v6519
        %v6540 = vpack.c.b16 %v6533, %v6532
        %v6541 = vpack.c.b16 %v6535, %v6534
        %v6542 = vpack.c.b16 %v6537, %v6536
        %v6543 = vpack.c.b16 %v6539, %v6538
        %v6549 = vsel %vm2752, %v6511, 0
        %6551 = vmatpush.bf16.msra.mxu0 0
        %6552 = vmatpush.bf16.msra.mxu0 0
        %6553 = vmatpush.bf16.msra.mxu0 0
        %6554 = vmatpush.bf16.msra.mxu0 0
        %6555 = vmatpush.bf16.msra.mxu0 %v6543
        %6556 = vmatpush.bf16.msra.mxu0 %v6542
        %6557 = vmatpush.bf16.msra.mxu0 %v6541
        %6558 = vmatpush.bf16.msra.mxu0 %v6540
        %6559 = vmatmul.bf16.gmra.mxu0 %v6549
        %v6560 = vpop.f32.mrf.mxu0
        %v6561 = vadd.f32 %v6522, %v6560
        %v6562 = vpop.f32.mrf.mxu0
        %6563 = vdwg.mxu0
        %v6564 = vadd.f32 %v6472, %v6561
        %v6565 = vld [vmem:[%s65] sm:$0x1]
        %v6566 = vld [vmem:[%s67] sm:$0x1]
        %v6567 = vsel %vm1184, %v6564, 0.0
        %6568 = vadd.xlane.f32.xlu0 %v6567
        %v6569 = vpop.xlane.xlu0 %6568
        %v6570 = vmul.f32 %v6569, %v2626
        %v6571 = vsub.f32 %v6564, %v6570
        %v6572 = vmul.f32 %v6571, %v6571
        %v6573 = vsel %vm1184, %v6572, 0.0
        %6574 = vadd.xlane.f32.xlu0 %v6573
        %v6575 = vpop.xlane.xlu0 %6574
        %v6576 = vmul.f32 %v6575, %v2626
        %v6577 = vadd.f32 %v6576, 1e-05
        %v6578 = vrsqrt.pop %v6577
        %v6579 = vmul.f32 %v6578, %v6577
        %v6580 = vmul.f32 %v6579, %v6578
        %v6581 = vmul.f32 0.5, %v6580
        %v6582 = vsub.f32 1.5, %v6581
        %v6583 = vmul.f32 %v6578, %v6582
        %vm6584 = vweird.f32 %v6577
        %vm6585 = vweird.f32 %v6578
        %vm6586 = vmor %vm6584, %vm6585
        %v6587 = vsel %vm6586, %v6578, %v6583
        %v6588 = vmul.f32 %v6571, %v6587
        %v6590 = vperm.slane %v6565, 0
        %v6592 = vmul.f32 %v6588, %v6590
        %v6594 = vperm.slane %v6566, 0
        %v6596 = vadd.f32 %v6592, %v6594
        %v6597 = vadd.f32 %v6596, %v1153
        %s6598 = scalar_lea.vmem %s33, 16
        %v6599 = vld [vmem:[%s6598] sm:$0xf]
        %v6600 = vld [vmem:[%s6598 + $0x4] sm:$0xf]
        %v6601 = vld [vmem:[%s6598 + $0x8] sm:$0xf]
        %v6602 = vld [vmem:[%s6598 + $0xc] sm:$0xf]
        %s6603 = scalar_lea.vmem %s35, 1
        %v6604 = vld [vmem:[%s6603] sm:$0x1]
        %s6605 = scalar_lea.vmem %s37, 16
        %v6606 = vld [vmem:[%s6605] sm:$0xf]
        %v6607 = vld [vmem:[%s6605 + $0x4] sm:$0xf]
        %v6608 = vld [vmem:[%s6605 + $0x8] sm:$0xf]
        %v6609 = vld [vmem:[%s6605 + $0xc] sm:$0xf]
        %s6610 = scalar_lea.vmem %s39, 1
        %v6611 = vld [vmem:[%s6610] sm:$0x1]
        %v6612 = vpack.c.bf16 %v6597, %v6597
        %v6613 = vpack.c.bf16 %v6596, %v6596
        %v6615 = vperm.slane %v6604, 0
        %v6621 = vunpack.c.l.b16 %v6599
        %v6622 = vunpack.c.l.b16 %v6600
        %v6623 = vunpack.c.l.b16 %v6601
        %v6624 = vunpack.c.l.b16 %v6602
        %v6625 = vpack.c.b16 %v6622, %v6621
        %v6626 = vpack.c.b16 %v6624, %v6623
        %v6630 = vsel %vm1184, %v6612, 0
        %6632 = vmatpush.bf16.msra.mxu0 0
        %6633 = vmatpush.bf16.msra.mxu0 0
        %6634 = vmatpush.bf16.msra.mxu0 0
        %6635 = vmatpush.bf16.msra.mxu0 0
        %6636 = vmatpush.bf16.msra.mxu0 0
        %6637 = vmatpush.bf16.msra.mxu0 0
        %6638 = vmatpush.bf16.msra.mxu0 %v6626
        %6639 = vmatpush.bf16.msra.mxu0 %v6625
        %6640 = vmatmul.bf16.gmra.mxu0 %v6630
        %v6641 = vpop.f32.mrf.mxu0
        %v6642 = vadd.f32 %v6615, %v6641
        %v6643 = vpop.f32.mrf.mxu0
        %6644 = vdwg.mxu0
        %6645 = vrot.lane.b32.xlu0 %v6625, 64
        %v6646 = vpop.permute.xlu0 %6645
        %6647 = vrot.lane.b32.xlu0 %v6626, 64
        %v6648 = vpop.permute.xlu0 %6647
        %6651 = vrot.lane.b32.xlu0 %v6615, 64
        %v6652 = vpop.permute.xlu0 %6651
        %v6655 = vsel %vm1184, %v6613, 0
        %6657 = vmatpush.bf16.msra.mxu0 0
        %6658 = vmatpush.bf16.msra.mxu0 0
        %6659 = vmatpush.bf16.msra.mxu0 0
        %6660 = vmatpush.bf16.msra.mxu0 0
        %6661 = vmatpush.bf16.msra.mxu0 0
        %6662 = vmatpush.bf16.msra.mxu0 0
        %6663 = vmatpush.bf16.msra.mxu0 %v6648
        %6664 = vmatpush.bf16.msra.mxu0 %v6646
        %6665 = vmatmul.bf16.gmra.mxu0 %v6655
        %v6666 = vpop.f32.mrf.mxu0
        %v6667 = vadd.f32 %v6652, %v6666
        %v6668 = vpop.f32.mrf.mxu0
        %6669 = vdwg.mxu0
        %6671 = vrot.lane.b32.xlu0 %v6642, 120
        %v6672 = vpop.permute.xlu0 %6671
        %6674 = vrot.lane.b32.xlu0 %v6642, 112
        %v6675 = vpop.permute.xlu0 %6674
        %6677 = vrot.lane.b32.xlu0 %v6642, 104
        %v6678 = vpop.permute.xlu0 %6677
        %v6680 = vrot.slane %v6675, 4
        %v6681 = vsel %vm1249, %v6680, %v6642
        %v6682 = vrot.slane %v6642, 4
        %v6683 = vsel %vm1249, %v6675, %v6682
        %v6685 = vunpack.c.l.s4 1983009808
        %v6686 = vunpack.c.0.s8 %v6685
        %v6687 = vperm.slane %v6681, %v6686
        %v6689 = vunpack.c.l.s4 1983009808
        %v6690 = vunpack.c.0.s8 %v6689
        %v6691 = vperm.slane %v6683, %v6690
        %v6692 = vrot.slane %v6678, 4
        %v6693 = vsel %vm1249, %v6692, %v6672
        %v6694 = vrot.slane %v6672, 4
        %v6695 = vsel %vm1249, %v6678, %v6694
        %v6697 = vunpack.c.l.s4 1983009808
        %v6698 = vunpack.c.0.s8 %v6697
        %v6699 = vperm.slane %v6693, %v6698
        %v6701 = vunpack.c.l.s4 1983009808
        %v6702 = vunpack.c.0.s8 %v6701
        %v6703 = vperm.slane %v6695, %v6702
        %v6704 = vrot.slane %v6699, 4
        %v6705 = vsel %vm1249, %v6704, %v6687
        %v6706 = vrot.slane %v6687, 4
        %v6707 = vsel %vm1249, %v6699, %v6706
        %v6709 = vunpack.c.l.s4 1934713408
        %v6710 = vunpack.c.0.s8 %v6709
        %v6711 = vperm.slane %v6705, %v6710
        %v6713 = vunpack.c.l.s4 1934713408
        %v6714 = vunpack.c.0.s8 %v6713
        %v6715 = vperm.slane %v6707, %v6714
        %v6716 = vrot.slane %v6703, 4
        %v6717 = vsel %vm1249, %v6716, %v6691
        %v6718 = vrot.slane %v6691, 4
        %v6719 = vsel %vm1249, %v6703, %v6718
        %v6721 = vunpack.c.l.s4 1934713408
        %v6722 = vunpack.c.0.s8 %v6721
        %v6723 = vperm.slane %v6717, %v6722
        %v6725 = vunpack.c.l.s4 1934713408
        %v6726 = vunpack.c.0.s8 %v6725
        %v6727 = vperm.slane %v6719, %v6726
        %v6728 = vrot.slane %v6711, 4
        %v6729 = vsel %vm1249, 0.0, %v6728
        %v6730 = vrot.slane %v6715, 4
        %v6731 = vsel %vm1249, 0.0, %v6730
        %v6732 = vrot.slane %v6723, 4
        %v6733 = vsel %vm1249, 0.0, %v6732
        %v6734 = vrot.slane %v6727, 4
        %v6735 = vsel %vm1249, 0.0, %v6734
        %v6736 = vsel %vm1249, %v6730, %v6711
        %v6738 = vunpack.c.l.s4 1983009808
        %v6739 = vunpack.c.0.s8 %v6738
        %v6740 = vperm.slane %v6736, %v6739
        %v6741 = vrot.slane %v6731, 4
        %v6742 = vsel %vm1249, %v6741, %v6729
        %v6744 = vunpack.c.l.s4 1983009808
        %v6745 = vunpack.c.0.s8 %v6744
        %v6746 = vperm.slane %v6742, %v6745
        %v6747 = vsel %vm1249, %v6734, %v6723
        %v6749 = vunpack.c.l.s4 1983009808
        %v6750 = vunpack.c.0.s8 %v6749
        %v6751 = vperm.slane %v6747, %v6750
        %v6752 = vrot.slane %v6735, 4
        %v6753 = vsel %vm1249, %v6752, %v6733
        %v6755 = vunpack.c.l.s4 1983009808
        %v6756 = vunpack.c.0.s8 %v6755
        %v6757 = vperm.slane %v6753, %v6756
        %v6758 = vrot.slane %v6746, 4
        %v6759 = vsel %vm1249, %v6758, %v6740
        %v6760 = vrot.slane %v6740, 4
        %v6761 = vsel %vm1249, %v6746, %v6760
        %v6763 = vunpack.c.l.s4 1934713408
        %v6764 = vunpack.c.0.s8 %v6763
        %v6765 = vperm.slane %v6759, %v6764
        %v6767 = vunpack.c.l.s4 1934713408
        %v6768 = vunpack.c.0.s8 %v6767
        %v6769 = vperm.slane %v6761, %v6768
        %v6770 = vrot.slane %v6757, 4
        %v6771 = vsel %vm1249, %v6770, %v6751
        %v6772 = vrot.slane %v6751, 4
        %v6773 = vsel %vm1249, %v6757, %v6772
        %v6775 = vunpack.c.l.s4 1934713408
        %v6776 = vunpack.c.0.s8 %v6775
        %v6777 = vperm.slane %v6771, %v6776
        %v6779 = vunpack.c.l.s4 1934713408
        %v6780 = vunpack.c.0.s8 %v6779
        %v6781 = vperm.slane %v6773, %v6780
        %v6782 = vrot.slane %v6777, 4
        %v6783 = vsel %vm1249, %v6782, %v6765
        %v6784 = vrot.slane %v6765, 4
        %v6785 = vsel %vm1249, %v6777, %v6784
        %v6786 = vrot.slane %v6781, 4
        %v6787 = vsel %vm1249, %v6786, %v6769
        %v6788 = vrot.slane %v6769, 4
        %v6789 = vsel %vm1249, %v6781, %v6788
        %v6790 = vpack.c.bf16 %v6783, %v6783
        %v6791 = vpack.c.bf16 %v6785, %v6785
        %v6792 = vpack.c.bf16 %v6787, %v6787
        %v6793 = vpack.c.bf16 %v6789, %v6789
        %6794 = vrot.lane.b32.xlu0 %v6642, 96
        %v6795 = vpop.permute.xlu0 %6794
        %6796 = vrot.lane.b32.xlu0 %v6672, 96
        %v6797 = vpop.permute.xlu0 %6796
        %6798 = vrot.lane.b32.xlu0 %v6675, 96
        %v6799 = vpop.permute.xlu0 %6798
        %6800 = vrot.lane.b32.xlu0 %v6678, 96
        %v6801 = vpop.permute.xlu0 %6800
        %v6806 = vrot.slane %v6799, 4
        %v6807 = vsel %vm1249, %v6806, %v6795
        %v6808 = vrot.slane %v6795, 4
        %v6809 = vsel %vm1249, %v6799, %v6808
        %v6811 = vunpack.c.l.s4 1983009808
        %v6812 = vunpack.c.0.s8 %v6811
        %v6813 = vperm.slane %v6807, %v6812
        %v6815 = vunpack.c.l.s4 1983009808
        %v6816 = vunpack.c.0.s8 %v6815
        %v6817 = vperm.slane %v6809, %v6816
        %v6818 = vrot.slane %v6801, 4
        %v6819 = vsel %vm1249, %v6818, %v6797
        %v6820 = vrot.slane %v6797, 4
        %v6821 = vsel %vm1249, %v6801, %v6820
        %v6823 = vunpack.c.l.s4 1983009808
        %v6824 = vunpack.c.0.s8 %v6823
        %v6825 = vperm.slane %v6819, %v6824
        %v6827 = vunpack.c.l.s4 1983009808
        %v6828 = vunpack.c.0.s8 %v6827
        %v6829 = vperm.slane %v6821, %v6828
        %v6830 = vrot.slane %v6825, 4
        %v6831 = vsel %vm1249, %v6830, %v6813
        %v6832 = vrot.slane %v6813, 4
        %v6833 = vsel %vm1249, %v6825, %v6832
        %v6835 = vunpack.c.l.s4 1934713408
        %v6836 = vunpack.c.0.s8 %v6835
        %v6837 = vperm.slane %v6831, %v6836
        %v6839 = vunpack.c.l.s4 1934713408
        %v6840 = vunpack.c.0.s8 %v6839
        %v6841 = vperm.slane %v6833, %v6840
        %v6842 = vrot.slane %v6829, 4
        %v6843 = vsel %vm1249, %v6842, %v6817
        %v6844 = vrot.slane %v6817, 4
        %v6845 = vsel %vm1249, %v6829, %v6844
        %v6847 = vunpack.c.l.s4 1934713408
        %v6848 = vunpack.c.0.s8 %v6847
        %v6849 = vperm.slane %v6843, %v6848
        %v6851 = vunpack.c.l.s4 1934713408
        %v6852 = vunpack.c.0.s8 %v6851
        %v6853 = vperm.slane %v6845, %v6852
        %v6854 = vrot.slane %v6837, 4
        %v6855 = vsel %vm1249, 0.0, %v6854
        %v6856 = vrot.slane %v6841, 4
        %v6857 = vsel %vm1249, 0.0, %v6856
        %v6858 = vrot.slane %v6849, 4
        %v6859 = vsel %vm1249, 0.0, %v6858
        %v6860 = vrot.slane %v6853, 4
        %v6861 = vsel %vm1249, 0.0, %v6860
        %v6862 = vsel %vm1249, %v6856, %v6837
        %v6864 = vunpack.c.l.s4 1983009808
        %v6865 = vunpack.c.0.s8 %v6864
        %v6866 = vperm.slane %v6862, %v6865
        %v6867 = vrot.slane %v6857, 4
        %v6868 = vsel %vm1249, %v6867, %v6855
        %v6870 = vunpack.c.l.s4 1983009808
        %v6871 = vunpack.c.0.s8 %v6870
        %v6872 = vperm.slane %v6868, %v6871
        %v6873 = vsel %vm1249, %v6860, %v6849
        %v6875 = vunpack.c.l.s4 1983009808
        %v6876 = vunpack.c.0.s8 %v6875
        %v6877 = vperm.slane %v6873, %v6876
        %v6878 = vrot.slane %v6861, 4
        %v6879 = vsel %vm1249, %v6878, %v6859
        %v6881 = vunpack.c.l.s4 1983009808
        %v6882 = vunpack.c.0.s8 %v6881
        %v6883 = vperm.slane %v6879, %v6882
        %v6884 = vrot.slane %v6872, 4
        %v6885 = vsel %vm1249, %v6884, %v6866
        %v6886 = vrot.slane %v6866, 4
        %v6887 = vsel %vm1249, %v6872, %v6886
        %v6889 = vunpack.c.l.s4 1934713408
        %v6890 = vunpack.c.0.s8 %v6889
        %v6891 = vperm.slane %v6885, %v6890
        %v6893 = vunpack.c.l.s4 1934713408
        %v6894 = vunpack.c.0.s8 %v6893
        %v6895 = vperm.slane %v6887, %v6894
        %v6896 = vrot.slane %v6883, 4
        %v6897 = vsel %vm1249, %v6896, %v6877
        %v6898 = vrot.slane %v6877, 4
        %v6899 = vsel %vm1249, %v6883, %v6898
        %v6901 = vunpack.c.l.s4 1934713408
        %v6902 = vunpack.c.0.s8 %v6901
        %v6903 = vperm.slane %v6897, %v6902
        %v6905 = vunpack.c.l.s4 1934713408
        %v6906 = vunpack.c.0.s8 %v6905
        %v6907 = vperm.slane %v6899, %v6906
        %v6908 = vrot.slane %v6903, 4
        %v6909 = vsel %vm1249, %v6908, %v6891
        %v6910 = vrot.slane %v6891, 4
        %v6911 = vsel %vm1249, %v6903, %v6910
        %v6912 = vrot.slane %v6907, 4
        %v6913 = vsel %vm1249, %v6912, %v6895
        %v6914 = vrot.slane %v6895, 4
        %v6915 = vsel %vm1249, %v6907, %v6914
        %v6916 = vpack.c.bf16 %v6909, %v6909
        %v6917 = vpack.c.bf16 %v6911, %v6911
        %v6918 = vpack.c.bf16 %v6913, %v6913
        %v6919 = vpack.c.bf16 %v6915, %v6915
        %6921 = vrot.lane.b32.xlu0 %v6667, 120
        %v6922 = vpop.permute.xlu0 %6921
        %6924 = vrot.lane.b32.xlu0 %v6667, 112
        %v6925 = vpop.permute.xlu0 %6924
        %6927 = vrot.lane.b32.xlu0 %v6667, 104
        %v6928 = vpop.permute.xlu0 %6927
        %v6930 = vrot.slane %v6925, 4
        %v6931 = vsel %vm1249, %v6930, %v6667
        %v6932 = vrot.slane %v6667, 4
        %v6933 = vsel %vm1249, %v6925, %v6932
        %v6935 = vunpack.c.l.s4 1983009808
        %v6936 = vunpack.c.0.s8 %v6935
        %v6937 = vperm.slane %v6931, %v6936
        %v6939 = vunpack.c.l.s4 1983009808
        %v6940 = vunpack.c.0.s8 %v6939
        %v6941 = vperm.slane %v6933, %v6940
        %v6942 = vrot.slane %v6928, 4
        %v6943 = vsel %vm1249, %v6942, %v6922
        %v6944 = vrot.slane %v6922, 4
        %v6945 = vsel %vm1249, %v6928, %v6944
        %v6947 = vunpack.c.l.s4 1983009808
        %v6948 = vunpack.c.0.s8 %v6947
        %v6949 = vperm.slane %v6943, %v6948
        %v6951 = vunpack.c.l.s4 1983009808
        %v6952 = vunpack.c.0.s8 %v6951
        %v6953 = vperm.slane %v6945, %v6952
        %v6954 = vrot.slane %v6949, 4
        %v6955 = vsel %vm1249, %v6954, %v6937
        %v6956 = vrot.slane %v6937, 4
        %v6957 = vsel %vm1249, %v6949, %v6956
        %v6959 = vunpack.c.l.s4 1934713408
        %v6960 = vunpack.c.0.s8 %v6959
        %v6961 = vperm.slane %v6955, %v6960
        %v6963 = vunpack.c.l.s4 1934713408
        %v6964 = vunpack.c.0.s8 %v6963
        %v6965 = vperm.slane %v6957, %v6964
        %v6966 = vrot.slane %v6953, 4
        %v6967 = vsel %vm1249, %v6966, %v6941
        %v6968 = vrot.slane %v6941, 4
        %v6969 = vsel %vm1249, %v6953, %v6968
        %v6971 = vunpack.c.l.s4 1934713408
        %v6972 = vunpack.c.0.s8 %v6971
        %v6973 = vperm.slane %v6967, %v6972
        %v6975 = vunpack.c.l.s4 1934713408
        %v6976 = vunpack.c.0.s8 %v6975
        %v6977 = vperm.slane %v6969, %v6976
        %v6978 = vrot.slane %v6961, 4
        %v6979 = vsel %vm1249, 0.0, %v6978
        %v6980 = vrot.slane %v6965, 4
        %v6981 = vsel %vm1249, 0.0, %v6980
        %v6982 = vrot.slane %v6973, 4
        %v6983 = vsel %vm1249, 0.0, %v6982
        %v6984 = vrot.slane %v6977, 4
        %v6985 = vsel %vm1249, 0.0, %v6984
        %v6986 = vsel %vm1249, %v6980, %v6961
        %v6988 = vunpack.c.l.s4 1983009808
        %v6989 = vunpack.c.0.s8 %v6988
        %v6990 = vperm.slane %v6986, %v6989
        %v6991 = vrot.slane %v6981, 4
        %v6992 = vsel %vm1249, %v6991, %v6979
        %v6994 = vunpack.c.l.s4 1983009808
        %v6995 = vunpack.c.0.s8 %v6994
        %v6996 = vperm.slane %v6992, %v6995
        %v6997 = vsel %vm1249, %v6984, %v6973
        %v6999 = vunpack.c.l.s4 1983009808
        %v7000 = vunpack.c.0.s8 %v6999
        %v7001 = vperm.slane %v6997, %v7000
        %v7002 = vrot.slane %v6985, 4
        %v7003 = vsel %vm1249, %v7002, %v6983
        %v7005 = vunpack.c.l.s4 1983009808
        %v7006 = vunpack.c.0.s8 %v7005
        %v7007 = vperm.slane %v7003, %v7006
        %v7008 = vrot.slane %v6996, 4
        %v7009 = vsel %vm1249, %v7008, %v6990
        %v7010 = vrot.slane %v6990, 4
        %v7011 = vsel %vm1249, %v6996, %v7010
        %v7013 = vunpack.c.l.s4 1934713408
        %v7014 = vunpack.c.0.s8 %v7013
        %v7015 = vperm.slane %v7009, %v7014
        %v7017 = vunpack.c.l.s4 1934713408
        %v7018 = vunpack.c.0.s8 %v7017
        %v7019 = vperm.slane %v7011, %v7018
        %v7020 = vrot.slane %v7007, 4
        %v7021 = vsel %vm1249, %v7020, %v7001
        %v7022 = vrot.slane %v7001, 4
        %v7023 = vsel %vm1249, %v7007, %v7022
        %v7025 = vunpack.c.l.s4 1934713408
        %v7026 = vunpack.c.0.s8 %v7025
        %v7027 = vperm.slane %v7021, %v7026
        %v7029 = vunpack.c.l.s4 1934713408
        %v7030 = vunpack.c.0.s8 %v7029
        %v7031 = vperm.slane %v7023, %v7030
        %v7032 = vrot.slane %v7027, 4
        %v7033 = vsel %vm1249, %v7032, %v7015
        %v7034 = vrot.slane %v7015, 4
        %v7035 = vsel %vm1249, %v7027, %v7034
        %v7036 = vrot.slane %v7031, 4
        %v7037 = vsel %vm1249, %v7036, %v7019
        %v7038 = vrot.slane %v7019, 4
        %v7039 = vsel %vm1249, %v7031, %v7038
        %v7040 = vpack.c.bf16 %v7033, %v7033
        %v7041 = vpack.c.bf16 %v7035, %v7035
        %v7042 = vpack.c.bf16 %v7037, %v7037
        %v7043 = vpack.c.bf16 %v7039, %v7039
        %v7045 = vsel %vm1987, %v6790, 0
        %v7048 = vsel %vm1987, %v6916, 0
        %7050 = vmatpush.bf16.xpose.msra.mxu0 0
        %7051 = vmatpush.bf16.xpose.msra.mxu0 0
        %7052 = vmatpush.bf16.xpose.msra.mxu0 0
        %7053 = vmatpush.bf16.xpose.msra.mxu0 0
        %7054 = vmatpush.bf16.xpose.msra.mxu0 0
        %7055 = vmatpush.bf16.xpose.msra.mxu0 0
        %7056 = vmatpush.bf16.xpose.msra.mxu0 0
        %7057 = vmatpush.bf16.xpose.msra.mxu0 %v7048
        %7058 = vmatmul.bf16.gmra.mxu0 %v7045
        %v7059 = vpop.f32.mrf.mxu0
        %v7060 = vadd.f32 0.0, %v7059
        %v7061 = vpop.f32.mrf.mxu0
        %7062 = vdwg.mxu0
        %v7064 = vsel %vm1987, %v6791, 0
        %v7067 = vsel %vm1987, %v6917, 0
        %7069 = vmatpush.bf16.xpose.msra.mxu0 0
        %7070 = vmatpush.bf16.xpose.msra.mxu0 0
        %7071 = vmatpush.bf16.xpose.msra.mxu0 0
        %7072 = vmatpush.bf16.xpose.msra.mxu0 0
        %7073 = vmatpush.bf16.xpose.msra.mxu0 0
        %7074 = vmatpush.bf16.xpose.msra.mxu0 0
        %7075 = vmatpush.bf16.xpose.msra.mxu0 0
        %7076 = vmatpush.bf16.xpose.msra.mxu0 %v7067
        %7077 = vmatmul.bf16.gmra.mxu0 %v7064
        %v7078 = vpop.f32.mrf.mxu0
        %v7079 = vadd.f32 0.0, %v7078
        %v7080 = vpop.f32.mrf.mxu0
        %7081 = vdwg.mxu0
        %v7083 = vsel %vm1987, %v6792, 0
        %v7086 = vsel %vm1987, %v6918, 0
        %7088 = vmatpush.bf16.xpose.msra.mxu0 0
        %7089 = vmatpush.bf16.xpose.msra.mxu0 0
        %7090 = vmatpush.bf16.xpose.msra.mxu0 0
        %7091 = vmatpush.bf16.xpose.msra.mxu0 0
        %7092 = vmatpush.bf16.xpose.msra.mxu0 0
        %7093 = vmatpush.bf16.xpose.msra.mxu0 0
        %7094 = vmatpush.bf16.xpose.msra.mxu0 0
        %7095 = vmatpush.bf16.xpose.msra.mxu0 %v7086
        %7096 = vmatmul.bf16.gmra.mxu0 %v7083
        %v7097 = vpop.f32.mrf.mxu0
        %v7098 = vadd.f32 0.0, %v7097
        %v7099 = vpop.f32.mrf.mxu0
        %7100 = vdwg.mxu0
        %v7102 = vsel %vm1987, %v6793, 0
        %v7105 = vsel %vm1987, %v6919, 0
        %7107 = vmatpush.bf16.xpose.msra.mxu0 0
        %7108 = vmatpush.bf16.xpose.msra.mxu0 0
        %7109 = vmatpush.bf16.xpose.msra.mxu0 0
        %7110 = vmatpush.bf16.xpose.msra.mxu0 0
        %7111 = vmatpush.bf16.xpose.msra.mxu0 0
        %7112 = vmatpush.bf16.xpose.msra.mxu0 0
        %7113 = vmatpush.bf16.xpose.msra.mxu0 0
        %7114 = vmatpush.bf16.xpose.msra.mxu0 %v7105
        %7115 = vmatmul.bf16.gmra.mxu0 %v7102
        %v7116 = vpop.f32.mrf.mxu0
        %v7117 = vadd.f32 0.0, %v7116
        %v7118 = vpop.f32.mrf.mxu0
        %7119 = vdwg.mxu0
        %v7120 = vmul.f32 %v7060, 0.35355338
        %v7121 = vmul.f32 %v7079, 0.35355338
        %v7122 = vmul.f32 %v7098, 0.35355338
        %v7123 = vmul.f32 %v7117, 0.35355338
        %v7124 = vsel %vm1987, %v7120, -inf
        %7125 = vmax.xlane.f32.xlu0 %v7124
        %v7126 = vpop.xlane.xlu0 %7125
        %v7127 = vsel %vm1987, %v7121, -inf
        %7128 = vmax.xlane.f32.xlu0 %v7127
        %v7129 = vpop.xlane.xlu0 %7128
        %v7130 = vsel %vm1987, %v7122, -inf
        %7131 = vmax.xlane.f32.xlu0 %v7130
        %v7132 = vpop.xlane.xlu0 %7131
        %v7133 = vsel %vm1987, %v7123, -inf
        %7134 = vmax.xlane.f32.xlu0 %v7133
        %v7135 = vpop.xlane.xlu0 %7134
        %v7136 = vsub.f32 %v7120, %v7126
        %v7137 = vsub.f32 %v7121, %v7129
        %v7138 = vsub.f32 %v7122, %v7132
        %v7139 = vsub.f32 %v7123, %v7135
        %v7140 = vmul.f32 %v7136, 1.442695
        %v7141 = vpow.pop %v7140
        %v7142 = vmul.f32 %v7137, 1.442695
        %v7143 = vpow.pop %v7142
        %v7144 = vmul.f32 %v7138, 1.442695
        %v7145 = vpow.pop %v7144
        %v7146 = vmul.f32 %v7139, 1.442695
        %v7147 = vpow.pop %v7146
        %v7148 = vsel %vm1987, %v7141, 0.0
        %7149 = vadd.xlane.f32.xlu0 %v7148
        %v7150 = vpop.xlane.xlu0 %7149
        %v7151 = vsel %vm1987, %v7143, 0.0
        %7152 = vadd.xlane.f32.xlu0 %v7151
        %v7153 = vpop.xlane.xlu0 %7152
        %v7154 = vsel %vm1987, %v7145, 0.0
        %7155 = vadd.xlane.f32.xlu0 %v7154
        %v7156 = vpop.xlane.xlu0 %7155
        %v7157 = vsel %vm1987, %v7147, 0.0
        %7158 = vadd.xlane.f32.xlu0 %v7157
        %v7159 = vpop.xlane.xlu0 %7158
        %v7160 = vrcp.pop %v7150
        %v7161 = vrcp.pop %v7153
        %v7162 = vrcp.pop %v7156
        %v7163 = vrcp.pop %v7159
        %v7164 = vmul.f32 %v7141, %v7160
        %v7165 = vmul.f32 %v7143, %v7161
        %v7166 = vmul.f32 %v7145, %v7162
        %v7167 = vmul.f32 %v7147, %v7163
        %v7168 = vpack.c.bf16 %v7164, %v7164
        %v7169 = vpack.c.bf16 %v7165, %v7165
        %v7170 = vpack.c.bf16 %v7166, %v7166
        %v7171 = vpack.c.bf16 %v7167, %v7167
        %v7173 = vsel %vm1987, %v7168, 0
        %v7176 = vsel %vm5070, %v7040, 0
        %7178 = vmatpush.bf16.msra.mxu0 0
        %7179 = vmatpush.bf16.msra.mxu0 0
        %7180 = vmatpush.bf16.msra.mxu0 0
        %7181 = vmatpush.bf16.msra.mxu0 0
        %7182 = vmatpush.bf16.msra.mxu0 0
        %7183 = vmatpush.bf16.msra.mxu0 0
        %7184 = vmatpush.bf16.msra.mxu0 0
        %7185 = vmatpush.bf16.msra.mxu0 %v7176
        %7186 = vmatmul.bf16.gmra.mxu0 %v7173
        %v7187 = vpop.f32.mrf.mxu0
        %v7188 = vadd.f32 0.0, %v7187
        %v7189 = vpop.f32.mrf.mxu0
        %7190 = vdwg.mxu0
        %v7192 = vsel %vm1987, %v7169, 0
        %v7195 = vsel %vm5070, %v7041, 0
        %7197 = vmatpush.bf16.msra.mxu0 0
        %7198 = vmatpush.bf16.msra.mxu0 0
        %7199 = vmatpush.bf16.msra.mxu0 0
        %7200 = vmatpush.bf16.msra.mxu0 0
        %7201 = vmatpush.bf16.msra.mxu0 0
        %7202 = vmatpush.bf16.msra.mxu0 0
        %7203 = vmatpush.bf16.msra.mxu0 0
        %7204 = vmatpush.bf16.msra.mxu0 %v7195
        %7205 = vmatmul.bf16.gmra.mxu0 %v7192
        %v7206 = vpop.f32.mrf.mxu0
        %v7207 = vadd.f32 0.0, %v7206
        %v7208 = vpop.f32.mrf.mxu0
        %7209 = vdwg.mxu0
        %v7211 = vsel %vm1987, %v7170, 0
        %v7214 = vsel %vm5070, %v7042, 0
        %7216 = vmatpush.bf16.msra.mxu0 0
        %7217 = vmatpush.bf16.msra.mxu0 0
        %7218 = vmatpush.bf16.msra.mxu0 0
        %7219 = vmatpush.bf16.msra.mxu0 0
        %7220 = vmatpush.bf16.msra.mxu0 0
        %7221 = vmatpush.bf16.msra.mxu0 0
        %7222 = vmatpush.bf16.msra.mxu0 0
        %7223 = vmatpush.bf16.msra.mxu0 %v7214
        %7224 = vmatmul.bf16.gmra.mxu0 %v7211
        %v7225 = vpop.f32.mrf.mxu0
        %v7226 = vadd.f32 0.0, %v7225
        %v7227 = vpop.f32.mrf.mxu0
        %7228 = vdwg.mxu0
        %v7230 = vsel %vm1987, %v7171, 0
        %v7233 = vsel %vm5070, %v7043, 0
        %7235 = vmatpush.bf16.msra.mxu0 0
        %7236 = vmatpush.bf16.msra.mxu0 0
        %7237 = vmatpush.bf16.msra.mxu0 0
        %7238 = vmatpush.bf16.msra.mxu0 0
        %7239 = vmatpush.bf16.msra.mxu0 0
        %7240 = vmatpush.bf16.msra.mxu0 0
        %7241 = vmatpush.bf16.msra.mxu0 0
        %7242 = vmatpush.bf16.msra.mxu0 %v7233
        %7243 = vmatmul.bf16.gmra.mxu0 %v7230
        %v7244 = vpop.f32.mrf.mxu0
        %v7245 = vadd.f32 0.0, %v7244
        %v7246 = vpop.f32.mrf.mxu0
        %7247 = vdwg.mxu0
        %v7248 = vrot.slane %v7226, 4
        %v7249 = vsel %vm1249, %v7248, %v7188
        %v7250 = vrot.slane %v7188, 4
        %v7251 = vsel %vm1249, %v7226, %v7250
        %v7253 = vunpack.c.l.s4 1983009808
        %v7254 = vunpack.c.0.s8 %v7253
        %v7255 = vperm.slane %v7249, %v7254
        %v7257 = vunpack.c.l.s4 1983009808
        %v7258 = vunpack.c.0.s8 %v7257
        %v7259 = vperm.slane %v7251, %v7258
        %v7260 = vrot.slane %v7245, 4
        %v7261 = vsel %vm1249, %v7260, %v7207
        %v7262 = vrot.slane %v7207, 4
        %v7263 = vsel %vm1249, %v7245, %v7262
        %v7265 = vunpack.c.l.s4 1983009808
        %v7266 = vunpack.c.0.s8 %v7265
        %v7267 = vperm.slane %v7261, %v7266
        %v7269 = vunpack.c.l.s4 1983009808
        %v7270 = vunpack.c.0.s8 %v7269
        %v7271 = vperm.slane %v7263, %v7270
        %v7272 = vrot.slane %v7267, 4
        %v7273 = vsel %vm1249, %v7272, %v7255
        %v7274 = vrot.slane %v7255, 4
        %v7275 = vsel %vm1249, %v7267, %v7274
        %v7277 = vunpack.c.l.s4 1934713408
        %v7278 = vunpack.c.0.s8 %v7277
        %v7279 = vperm.slane %v7273, %v7278
        %v7281 = vunpack.c.l.s4 1934713408
        %v7282 = vunpack.c.0.s8 %v7281
        %v7283 = vperm.slane %v7275, %v7282
        %v7284 = vrot.slane %v7271, 4
        %v7285 = vsel %vm1249, %v7284, %v7259
        %v7286 = vrot.slane %v7259, 4
        %v7287 = vsel %vm1249, %v7271, %v7286
        %v7289 = vunpack.c.l.s4 1934713408
        %v7290 = vunpack.c.0.s8 %v7289
        %v7291 = vperm.slane %v7285, %v7290
        %v7293 = vunpack.c.l.s4 1934713408
        %v7294 = vunpack.c.0.s8 %v7293
        %v7295 = vperm.slane %v7287, %v7294
        %v7296 = vrot.slane %v7279, 4
        %v7297 = vsel %vm1249, 0.0, %v7296
        %v7298 = vrot.slane %v7283, 4
        %v7299 = vsel %vm1249, 0.0, %v7298
        %v7300 = vrot.slane %v7291, 4
        %v7301 = vsel %vm1249, 0.0, %v7300
        %v7302 = vrot.slane %v7295, 4
        %v7303 = vsel %vm1249, 0.0, %v7302
        %v7304 = vsel %vm1249, %v7298, %v7279
        %v7306 = vunpack.c.l.s4 1983009808
        %v7307 = vunpack.c.0.s8 %v7306
        %v7308 = vperm.slane %v7304, %v7307
        %v7309 = vrot.slane %v7299, 4
        %v7310 = vsel %vm1249, %v7309, %v7297
        %v7312 = vunpack.c.l.s4 1983009808
        %v7313 = vunpack.c.0.s8 %v7312
        %v7314 = vperm.slane %v7310, %v7313
        %v7315 = vsel %vm1249, %v7302, %v7291
        %v7317 = vunpack.c.l.s4 1983009808
        %v7318 = vunpack.c.0.s8 %v7317
        %v7319 = vperm.slane %v7315, %v7318
        %v7320 = vrot.slane %v7303, 4
        %v7321 = vsel %vm1249, %v7320, %v7301
        %v7323 = vunpack.c.l.s4 1983009808
        %v7324 = vunpack.c.0.s8 %v7323
        %v7325 = vperm.slane %v7321, %v7324
        %v7326 = vrot.slane %v7314, 4
        %v7327 = vsel %vm1249, %v7326, %v7308
        %v7328 = vrot.slane %v7308, 4
        %v7329 = vsel %vm1249, %v7314, %v7328
        %v7331 = vunpack.c.l.s4 1934713408
        %v7332 = vunpack.c.0.s8 %v7331
        %v7333 = vperm.slane %v7327, %v7332
        %v7335 = vunpack.c.l.s4 1934713408
        %v7336 = vunpack.c.0.s8 %v7335
        %v7337 = vperm.slane %v7329, %v7336
        %v7338 = vrot.slane %v7325, 4
        %v7339 = vsel %vm1249, %v7338, %v7319
        %v7340 = vrot.slane %v7319, 4
        %v7341 = vsel %vm1249, %v7325, %v7340
        %v7343 = vunpack.c.l.s4 1934713408
        %v7344 = vunpack.c.0.s8 %v7343
        %v7345 = vperm.slane %v7339, %v7344
        %v7347 = vunpack.c.l.s4 1934713408
        %v7348 = vunpack.c.0.s8 %v7347
        %v7349 = vperm.slane %v7341, %v7348
        %v7350 = vrot.slane %v7345, 4
        %v7351 = vsel %vm1249, %v7350, %v7333
        %v7352 = vrot.slane %v7333, 4
        %v7353 = vsel %vm1249, %v7345, %v7352
        %v7354 = vrot.slane %v7349, 4
        %v7355 = vsel %vm1249, %v7354, %v7337
        %v7356 = vrot.slane %v7337, 4
        %v7357 = vsel %vm1249, %v7349, %v7356
        %7359 = vrot.lane.b32.xlu0 %v7353, 8
        %v7360 = vpop.permute.xlu0 %7359
        %7363 = vrot.lane.b32.xlu0 %v7355, 16
        %v7364 = vpop.permute.xlu0 %7363
        %7367 = vrot.lane.b32.xlu0 %v7357, 24
        %v7368 = vpop.permute.xlu0 %7367
        %v7370 = vsel %vm1987, %v7351, %v7360
        %v7371 = vsel %vm2117, %v7370, %v7364
        %v7372 = vsel %vm2574, %v7371, %v7368
        %v7373 = vpack.c.bf16 %v7372, %v7372
        %v7375 = vperm.slane %v6611, 0
        %v7381 = vunpack.c.l.b16 %v6606
        %v7382 = vunpack.c.l.b16 %v6607
        %v7383 = vunpack.c.l.b16 %v6608
        %v7384 = vunpack.c.l.b16 %v6609
        %v7385 = vpack.c.b16 %v7382, %v7381
        %v7386 = vpack.c.b16 %v7384, %v7383
        %v7390 = vsel %vm1184, %v7373, 0
        %7392 = vmatpush.bf16.msra.mxu0 0
        %7393 = vmatpush.bf16.msra.mxu0 0
        %7394 = vmatpush.bf16.msra.mxu0 0
        %7395 = vmatpush.bf16.msra.mxu0 0
        %7396 = vmatpush.bf16.msra.mxu0 0
        %7397 = vmatpush.bf16.msra.mxu0 0
        %7398 = vmatpush.bf16.msra.mxu0 %v7386
        %7399 = vmatpush.bf16.msra.mxu0 %v7385
        %7400 = vmatmul.bf16.gmra.mxu0 %v7390
        %v7401 = vpop.f32.mrf.mxu0
        %v7402 = vadd.f32 %v7375, %v7401
        %v7403 = vpop.f32.mrf.mxu0
        %7404 = vdwg.mxu0
        %v7405 = vadd.f32 %v6596, %v7402
        %s7406 = scalar_lea.vmem %s57, 1
        %v7407 = vld [vmem:[%s7406] sm:$0x1]
        %s7408 = scalar_lea.vmem %s59, 1
        %v7409 = vld [vmem:[%s7408] sm:$0x1]
        %v7410 = vsel %vm1184, %v7405, 0.0
        %7411 = vadd.xlane.f32.xlu0 %v7410
        %v7412 = vpop.xlane.xlu0 %7411
        %v7413 = vmul.f32 %v7412, %v2626
        %v7414 = vsub.f32 %v7405, %v7413
        %v7415 = vmul.f32 %v7414, %v7414
        %v7416 = vsel %vm1184, %v7415, 0.0
        %7417 = vadd.xlane.f32.xlu0 %v7416
        %v7418 = vpop.xlane.xlu0 %7417
        %v7419 = vmul.f32 %v7418, %v2626
        %v7420 = vadd.f32 %v7419, 1e-05
        %v7421 = vrsqrt.pop %v7420
        %v7422 = vmul.f32 %v7421, %v7420
        %v7423 = vmul.f32 %v7422, %v7421
        %v7424 = vmul.f32 0.5, %v7423
        %v7425 = vsub.f32 1.5, %v7424
        %v7426 = vmul.f32 %v7421, %v7425
        %vm7427 = vweird.f32 %v7420
        %vm7428 = vweird.f32 %v7421
        %vm7429 = vmor %vm7427, %vm7428
        %v7430 = vsel %vm7429, %v7421, %v7426
        %v7431 = vmul.f32 %v7414, %v7430
        %v7433 = vperm.slane %v7407, 0
        %v7435 = vmul.f32 %v7431, %v7433
        %v7437 = vperm.slane %v7409, 0
        %v7439 = vadd.f32 %v7435, %v7437
        %v7440 = vadd.f32 %v7439, %v1153
        %v7441 = vadd.f32 %v4495, %v1151
        %v7442 = vadd.f32 %v4496, %v1152
        %s7443 = scalar_lea.vmem %s41, 16
        %v7444 = vld [vmem:[%s7443] sm:$0xf]
        %v7445 = vld [vmem:[%s7443 + $0x4] sm:$0xf]
        %v7446 = vld [vmem:[%s7443 + $0x8] sm:$0xf]
        %v7447 = vld [vmem:[%s7443 + $0xc] sm:$0xf]
        %s7448 = scalar_lea.vmem %s43, 1
        %v7449 = vld [vmem:[%s7448] sm:$0x1]
        %s7450 = scalar_lea.vmem %s45, 16
        %v7451 = vld [vmem:[%s7450] sm:$0xf]
        %v7452 = vld [vmem:[%s7450 + $0x4] sm:$0xf]
        %v7453 = vld [vmem:[%s7450 + $0x8] sm:$0xf]
        %v7454 = vld [vmem:[%s7450 + $0xc] sm:$0xf]
        %s7455 = scalar_lea.vmem %s47, 1
        %v7456 = vld [vmem:[%s7455] sm:$0x1]
        %v7457 = vpack.c.bf16 %v7440, %v7440
        %v7458 = vpack.c.bf16 %v4496, %v4495
        %v7459 = vpack.c.bf16 %v7442, %v7441
        %v7461 = vperm.slane %v7449, 0
        %v7467 = vunpack.c.l.b16 %v7444
        %v7468 = vunpack.c.l.b16 %v7445
        %v7469 = vunpack.c.l.b16 %v7446
        %v7470 = vunpack.c.l.b16 %v7447
        %v7471 = vpack.c.b16 %v7468, %v7467
        %v7472 = vpack.c.b16 %v7470, %v7469
        %v7476 = vsel %vm1184, %v7457, 0
        %7478 = vmatpush.bf16.msra.mxu0 0
        %7479 = vmatpush.bf16.msra.mxu0 0
        %7480 = vmatpush.bf16.msra.mxu0 0
        %7481 = vmatpush.bf16.msra.mxu0 0
        %7482 = vmatpush.bf16.msra.mxu0 0
        %7483 = vmatpush.bf16.msra.mxu0 0
        %7484 = vmatpush.bf16.msra.mxu0 %v7472
        %7485 = vmatpush.bf16.msra.mxu0 %v7471
        %7486 = vmatmul.bf16.gmra.mxu0 %v7476
        %v7487 = vpop.f32.mrf.mxu0
        %v7488 = vadd.f32 %v7461, %v7487
        %v7489 = vpop.f32.mrf.mxu0
        %7490 = vdwg.mxu0
        %7491 = vrot.lane.b32.xlu0 %v7471, 96
        %v7492 = vpop.permute.xlu0 %7491
        %7493 = vrot.lane.b32.xlu0 %v7472, 96
        %v7494 = vpop.permute.xlu0 %7493
        %7497 = vrot.lane.b32.xlu0 %v7461, 96
        %v7498 = vpop.permute.xlu0 %7497
        %v7501 = vsel %vm1184, %v7459, 0
        %7503 = vmatpush.bf16.msra.mxu0 0
        %7504 = vmatpush.bf16.msra.mxu0 0
        %7505 = vmatpush.bf16.msra.mxu0 0
        %7506 = vmatpush.bf16.msra.mxu0 0
        %7507 = vmatpush.bf16.msra.mxu0 0
        %7508 = vmatpush.bf16.msra.mxu0 0
        %7509 = vmatpush.bf16.msra.mxu0 %v7494
        %7510 = vmatpush.bf16.msra.mxu0 %v7492
        %7511 = vmatmul.bf16.gmra.mxu0 %v7501
        %v7512 = vpop.f32.mrf.mxu0
        %v7513 = vadd.f32 %v7498, %v7512
        %v7514 = vpop.f32.mrf.mxu0
        %v7515 = vadd.f32 %v7498, %v7514
        %7516 = vdwg.mxu0
        %7517 = vrot.lane.b32.xlu0 %v7471, 64
        %v7518 = vpop.permute.xlu0 %7517
        %7519 = vrot.lane.b32.xlu0 %v7472, 64
        %v7520 = vpop.permute.xlu0 %7519
        %7523 = vrot.lane.b32.xlu0 %v7461, 64
        %v7524 = vpop.permute.xlu0 %7523
        %v7527 = vsel %vm1184, %v7458, 0
        %7529 = vmatpush.bf16.msra.mxu0 0
        %7530 = vmatpush.bf16.msra.mxu0 0
        %7531 = vmatpush.bf16.msra.mxu0 0
        %7532 = vmatpush.bf16.msra.mxu0 0
        %7533 = vmatpush.bf16.msra.mxu0 0
        %7534 = vmatpush.bf16.msra.mxu0 0
        %7535 = vmatpush.bf16.msra.mxu0 %v7520
        %7536 = vmatpush.bf16.msra.mxu0 %v7518
        %7537 = vmatmul.bf16.gmra.mxu0 %v7527
        %v7538 = vpop.f32.mrf.mxu0
        %v7539 = vadd.f32 %v7524, %v7538
        %v7540 = vpop.f32.mrf.mxu0
        %v7541 = vadd.f32 %v7524, %v7540
        %7542 = vdwg.mxu0
        %7544 = vrot.lane.b32.xlu0 %v7488, 120
        %v7545 = vpop.permute.xlu0 %7544
        %7547 = vrot.lane.b32.xlu0 %v7488, 112
        %v7548 = vpop.permute.xlu0 %7547
        %7550 = vrot.lane.b32.xlu0 %v7488, 104
        %v7551 = vpop.permute.xlu0 %7550
        %v7553 = vrot.slane %v7548, 4
        %v7554 = vsel %vm1249, %v7553, %v7488
        %v7555 = vrot.slane %v7488, 4
        %v7556 = vsel %vm1249, %v7548, %v7555
        %v7558 = vunpack.c.l.s4 1983009808
        %v7559 = vunpack.c.0.s8 %v7558
        %v7560 = vperm.slane %v7554, %v7559
        %v7562 = vunpack.c.l.s4 1983009808
        %v7563 = vunpack.c.0.s8 %v7562
        %v7564 = vperm.slane %v7556, %v7563
        %v7565 = vrot.slane %v7551, 4
        %v7566 = vsel %vm1249, %v7565, %v7545
        %v7567 = vrot.slane %v7545, 4
        %v7568 = vsel %vm1249, %v7551, %v7567
        %v7570 = vunpack.c.l.s4 1983009808
        %v7571 = vunpack.c.0.s8 %v7570
        %v7572 = vperm.slane %v7566, %v7571
        %v7574 = vunpack.c.l.s4 1983009808
        %v7575 = vunpack.c.0.s8 %v7574
        %v7576 = vperm.slane %v7568, %v7575
        %v7577 = vrot.slane %v7572, 4
        %v7578 = vsel %vm1249, %v7577, %v7560
        %v7579 = vrot.slane %v7560, 4
        %v7580 = vsel %vm1249, %v7572, %v7579
        %v7582 = vunpack.c.l.s4 1934713408
        %v7583 = vunpack.c.0.s8 %v7582
        %v7584 = vperm.slane %v7578, %v7583
        %v7586 = vunpack.c.l.s4 1934713408
        %v7587 = vunpack.c.0.s8 %v7586
        %v7588 = vperm.slane %v7580, %v7587
        %v7589 = vrot.slane %v7576, 4
        %v7590 = vsel %vm1249, %v7589, %v7564
        %v7591 = vrot.slane %v7564, 4
        %v7592 = vsel %vm1249, %v7576, %v7591
        %v7594 = vunpack.c.l.s4 1934713408
        %v7595 = vunpack.c.0.s8 %v7594
        %v7596 = vperm.slane %v7590, %v7595
        %v7598 = vunpack.c.l.s4 1934713408
        %v7599 = vunpack.c.0.s8 %v7598
        %v7600 = vperm.slane %v7592, %v7599
        %v7601 = vrot.slane %v7584, 4
        %v7602 = vsel %vm1249, 0.0, %v7601
        %v7603 = vrot.slane %v7588, 4
        %v7604 = vsel %vm1249, 0.0, %v7603
        %v7605 = vrot.slane %v7596, 4
        %v7606 = vsel %vm1249, 0.0, %v7605
        %v7607 = vrot.slane %v7600, 4
        %v7608 = vsel %vm1249, 0.0, %v7607
        %v7609 = vsel %vm1249, %v7603, %v7584
        %v7611 = vunpack.c.l.s4 1983009808
        %v7612 = vunpack.c.0.s8 %v7611
        %v7613 = vperm.slane %v7609, %v7612
        %v7614 = vrot.slane %v7604, 4
        %v7615 = vsel %vm1249, %v7614, %v7602
        %v7617 = vunpack.c.l.s4 1983009808
        %v7618 = vunpack.c.0.s8 %v7617
        %v7619 = vperm.slane %v7615, %v7618
        %v7620 = vsel %vm1249, %v7607, %v7596
        %v7622 = vunpack.c.l.s4 1983009808
        %v7623 = vunpack.c.0.s8 %v7622
        %v7624 = vperm.slane %v7620, %v7623
        %v7625 = vrot.slane %v7608, 4
        %v7626 = vsel %vm1249, %v7625, %v7606
        %v7628 = vunpack.c.l.s4 1983009808
        %v7629 = vunpack.c.0.s8 %v7628
        %v7630 = vperm.slane %v7626, %v7629
        %v7631 = vrot.slane %v7619, 4
        %v7632 = vsel %vm1249, %v7631, %v7613
        %v7633 = vrot.slane %v7613, 4
        %v7634 = vsel %vm1249, %v7619, %v7633
        %v7636 = vunpack.c.l.s4 1934713408
        %v7637 = vunpack.c.0.s8 %v7636
        %v7638 = vperm.slane %v7632, %v7637
        %v7640 = vunpack.c.l.s4 1934713408
        %v7641 = vunpack.c.0.s8 %v7640
        %v7642 = vperm.slane %v7634, %v7641
        %v7643 = vrot.slane %v7630, 4
        %v7644 = vsel %vm1249, %v7643, %v7624
        %v7645 = vrot.slane %v7624, 4
        %v7646 = vsel %vm1249, %v7630, %v7645
        %v7648 = vunpack.c.l.s4 1934713408
        %v7649 = vunpack.c.0.s8 %v7648
        %v7650 = vperm.slane %v7644, %v7649
        %v7652 = vunpack.c.l.s4 1934713408
        %v7653 = vunpack.c.0.s8 %v7652
        %v7654 = vperm.slane %v7646, %v7653
        %v7655 = vrot.slane %v7650, 4
        %v7656 = vsel %vm1249, %v7655, %v7638
        %v7657 = vrot.slane %v7638, 4
        %v7658 = vsel %vm1249, %v7650, %v7657
        %v7659 = vrot.slane %v7654, 4
        %v7660 = vsel %vm1249, %v7659, %v7642
        %v7661 = vrot.slane %v7642, 4
        %v7662 = vsel %vm1249, %v7654, %v7661
        %v7663 = vpack.c.bf16 %v7656, %v7656
        %v7664 = vpack.c.bf16 %v7658, %v7658
        %v7665 = vpack.c.bf16 %v7660, %v7660
        %v7666 = vpack.c.bf16 %v7662, %v7662
        %7669 = vrot.lane.b32.xlu0 %v7513, 120
        %v7670 = vpop.permute.xlu0 %7669
        %7671 = vrot.lane.b32.xlu0 %v7515, 120
        %v7672 = vpop.permute.xlu0 %7671
        %7675 = vrot.lane.b32.xlu0 %v7513, 112
        %v7676 = vpop.permute.xlu0 %7675
        %7677 = vrot.lane.b32.xlu0 %v7515, 112
        %v7678 = vpop.permute.xlu0 %7677
        %7681 = vrot.lane.b32.xlu0 %v7513, 104
        %v7682 = vpop.permute.xlu0 %7681
        %7683 = vrot.lane.b32.xlu0 %v7515, 104
        %v7684 = vpop.permute.xlu0 %7683
        %v7687 = vrot.slane %v7676, 4
        %v7688 = vsel %vm1249, %v7687, %v7513
        %v7689 = vrot.slane %v7513, 4
        %v7690 = vsel %vm1249, %v7676, %v7689
        %v7692 = vunpack.c.l.s4 1983009808
        %v7693 = vunpack.c.0.s8 %v7692
        %v7694 = vperm.slane %v7688, %v7693
        %v7696 = vunpack.c.l.s4 1983009808
        %v7697 = vunpack.c.0.s8 %v7696
        %v7698 = vperm.slane %v7690, %v7697
        %v7699 = vrot.slane %v7682, 4
        %v7700 = vsel %vm1249, %v7699, %v7670
        %v7701 = vrot.slane %v7670, 4
        %v7702 = vsel %vm1249, %v7682, %v7701
        %v7704 = vunpack.c.l.s4 1983009808
        %v7705 = vunpack.c.0.s8 %v7704
        %v7706 = vperm.slane %v7700, %v7705
        %v7708 = vunpack.c.l.s4 1983009808
        %v7709 = vunpack.c.0.s8 %v7708
        %v7710 = vperm.slane %v7702, %v7709
        %v7711 = vrot.slane %v7706, 4
        %v7712 = vsel %vm1249, %v7711, %v7694
        %v7713 = vrot.slane %v7694, 4
        %v7714 = vsel %vm1249, %v7706, %v7713
        %v7716 = vunpack.c.l.s4 1934713408
        %v7717 = vunpack.c.0.s8 %v7716
        %v7718 = vperm.slane %v7712, %v7717
        %v7720 = vunpack.c.l.s4 1934713408
        %v7721 = vunpack.c.0.s8 %v7720
        %v7722 = vperm.slane %v7714, %v7721
        %v7723 = vrot.slane %v7710, 4
        %v7724 = vsel %vm1249, %v7723, %v7698
        %v7725 = vrot.slane %v7698, 4
        %v7726 = vsel %vm1249, %v7710, %v7725
        %v7728 = vunpack.c.l.s4 1934713408
        %v7729 = vunpack.c.0.s8 %v7728
        %v7730 = vperm.slane %v7724, %v7729
        %v7732 = vunpack.c.l.s4 1934713408
        %v7733 = vunpack.c.0.s8 %v7732
        %v7734 = vperm.slane %v7726, %v7733
        %v7735 = vrot.slane %v7718, 4
        %v7736 = vsel %vm1249, 0.0, %v7735
        %v7737 = vrot.slane %v7722, 4
        %v7738 = vsel %vm1249, 0.0, %v7737
        %v7739 = vrot.slane %v7730, 4
        %v7740 = vsel %vm1249, 0.0, %v7739
        %v7741 = vrot.slane %v7734, 4
        %v7742 = vsel %vm1249, 0.0, %v7741
        %v7743 = vrot.slane %v7678, 4
        %v7744 = vsel %vm1249, %v7743, %v7515
        %v7745 = vrot.slane %v7515, 4
        %v7746 = vsel %vm1249, %v7678, %v7745
        %v7748 = vunpack.c.l.s4 1983009808
        %v7749 = vunpack.c.0.s8 %v7748
        %v7750 = vperm.slane %v7744, %v7749
        %v7752 = vunpack.c.l.s4 1983009808
        %v7753 = vunpack.c.0.s8 %v7752
        %v7754 = vperm.slane %v7746, %v7753
        %v7755 = vrot.slane %v7684, 4
        %v7756 = vsel %vm1249, %v7755, %v7672
        %v7757 = vrot.slane %v7672, 4
        %v7758 = vsel %vm1249, %v7684, %v7757
        %v7760 = vunpack.c.l.s4 1983009808
        %v7761 = vunpack.c.0.s8 %v7760
        %v7762 = vperm.slane %v7756, %v7761
        %v7764 = vunpack.c.l.s4 1983009808
        %v7765 = vunpack.c.0.s8 %v7764
        %v7766 = vperm.slane %v7758, %v7765
        %v7767 = vrot.slane %v7762, 4
        %v7768 = vsel %vm1249, %v7767, %v7750
        %v7769 = vrot.slane %v7750, 4
        %v7770 = vsel %vm1249, %v7762, %v7769
        %v7772 = vunpack.c.l.s4 1934713408
        %v7773 = vunpack.c.0.s8 %v7772
        %v7774 = vperm.slane %v7768, %v7773
        %v7776 = vunpack.c.l.s4 1934713408
        %v7777 = vunpack.c.0.s8 %v7776
        %v7778 = vperm.slane %v7770, %v7777
        %v7779 = vrot.slane %v7766, 4
        %v7780 = vsel %vm1249, %v7779, %v7754
        %v7781 = vrot.slane %v7754, 4
        %v7782 = vsel %vm1249, %v7766, %v7781
        %v7784 = vunpack.c.l.s4 1934713408
        %v7785 = vunpack.c.0.s8 %v7784
        %v7786 = vperm.slane %v7780, %v7785
        %v7788 = vunpack.c.l.s4 1934713408
        %v7789 = vunpack.c.0.s8 %v7788
        %v7790 = vperm.slane %v7782, %v7789
        %v7791 = vrot.slane %v7774, 4
        %v7792 = vsel %vm1249, 0.0, %v7791
        %v7793 = vrot.slane %v7778, 4
        %v7794 = vsel %vm1249, 0.0, %v7793
        %v7795 = vrot.slane %v7786, 4
        %v7796 = vsel %vm1249, 0.0, %v7795
        %v7797 = vrot.slane %v7790, 4
        %v7798 = vsel %vm1249, 0.0, %v7797
        %v7799 = vsel %vm1249, %v7737, %v7718
        %v7801 = vunpack.c.l.s4 1983009808
        %v7802 = vunpack.c.0.s8 %v7801
        %v7803 = vperm.slane %v7799, %v7802
        %v7804 = vrot.slane %v7738, 4
        %v7805 = vsel %vm1249, %v7804, %v7736
        %v7807 = vunpack.c.l.s4 1983009808
        %v7808 = vunpack.c.0.s8 %v7807
        %v7809 = vperm.slane %v7805, %v7808
        %v7810 = vsel %vm1249, %v7741, %v7730
        %v7812 = vunpack.c.l.s4 1983009808
        %v7813 = vunpack.c.0.s8 %v7812
        %v7814 = vperm.slane %v7810, %v7813
        %v7815 = vrot.slane %v7742, 4
        %v7816 = vsel %vm1249, %v7815, %v7740
        %v7818 = vunpack.c.l.s4 1983009808
        %v7819 = vunpack.c.0.s8 %v7818
        %v7820 = vperm.slane %v7816, %v7819
        %v7821 = vrot.slane %v7809, 4
        %v7822 = vsel %vm1249, %v7821, %v7803
        %v7823 = vrot.slane %v7803, 4
        %v7824 = vsel %vm1249, %v7809, %v7823
        %v7826 = vunpack.c.l.s4 1934713408
        %v7827 = vunpack.c.0.s8 %v7826
        %v7828 = vperm.slane %v7822, %v7827
        %v7830 = vunpack.c.l.s4 1934713408
        %v7831 = vunpack.c.0.s8 %v7830
        %v7832 = vperm.slane %v7824, %v7831
        %v7833 = vrot.slane %v7820, 4
        %v7834 = vsel %vm1249, %v7833, %v7814
        %v7835 = vrot.slane %v7814, 4
        %v7836 = vsel %vm1249, %v7820, %v7835
        %v7838 = vunpack.c.l.s4 1934713408
        %v7839 = vunpack.c.0.s8 %v7838
        %v7840 = vperm.slane %v7834, %v7839
        %v7842 = vunpack.c.l.s4 1934713408
        %v7843 = vunpack.c.0.s8 %v7842
        %v7844 = vperm.slane %v7836, %v7843
        %v7845 = vrot.slane %v7840, 4
        %v7846 = vsel %vm1249, %v7845, %v7828
        %v7847 = vrot.slane %v7828, 4
        %v7848 = vsel %vm1249, %v7840, %v7847
        %v7849 = vrot.slane %v7844, 4
        %v7850 = vsel %vm1249, %v7849, %v7832
        %v7851 = vrot.slane %v7832, 4
        %v7852 = vsel %vm1249, %v7844, %v7851
        %v7853 = vsel %vm1249, %v7793, %v7774
        %v7855 = vunpack.c.l.s4 1983009808
        %v7856 = vunpack.c.0.s8 %v7855
        %v7857 = vperm.slane %v7853, %v7856
        %v7858 = vrot.slane %v7794, 4
        %v7859 = vsel %vm1249, %v7858, %v7792
        %v7861 = vunpack.c.l.s4 1983009808
        %v7862 = vunpack.c.0.s8 %v7861
        %v7863 = vperm.slane %v7859, %v7862
        %v7864 = vsel %vm1249, %v7797, %v7786
        %v7866 = vunpack.c.l.s4 1983009808
        %v7867 = vunpack.c.0.s8 %v7866
        %v7868 = vperm.slane %v7864, %v7867
        %v7869 = vrot.slane %v7798, 4
        %v7870 = vsel %vm1249, %v7869, %v7796
        %v7872 = vunpack.c.l.s4 1983009808
        %v7873 = vunpack.c.0.s8 %v7872
        %v7874 = vperm.slane %v7870, %v7873
        %v7875 = vrot.slane %v7863, 4
        %v7876 = vsel %vm1249, %v7875, %v7857
        %v7877 = vrot.slane %v7857, 4
        %v7878 = vsel %vm1249, %v7863, %v7877
        %v7880 = vunpack.c.l.s4 1934713408
        %v7881 = vunpack.c.0.s8 %v7880
        %v7882 = vperm.slane %v7876, %v7881
        %v7884 = vunpack.c.l.s4 1934713408
        %v7885 = vunpack.c.0.s8 %v7884
        %v7886 = vperm.slane %v7878, %v7885
        %v7887 = vrot.slane %v7874, 4
        %v7888 = vsel %vm1249, %v7887, %v7868
        %v7889 = vrot.slane %v7868, 4
        %v7890 = vsel %vm1249, %v7874, %v7889
        %v7892 = vunpack.c.l.s4 1934713408
        %v7893 = vunpack.c.0.s8 %v7892
        %v7894 = vperm.slane %v7888, %v7893
        %v7896 = vunpack.c.l.s4 1934713408
        %v7897 = vunpack.c.0.s8 %v7896
        %v7898 = vperm.slane %v7890, %v7897
        %v7899 = vrot.slane %v7894, 4
        %v7900 = vsel %vm1249, %v7899, %v7882
        %v7901 = vrot.slane %v7882, 4
        %v7902 = vsel %vm1249, %v7894, %v7901
        %v7903 = vrot.slane %v7898, 4
        %v7904 = vsel %vm1249, %v7903, %v7886
        %v7905 = vrot.slane %v7886, 4
        %v7906 = vsel %vm1249, %v7898, %v7905
        %v7907 = vpack.c.bf16 %v7846, %v7846
        %v7908 = vpack.c.bf16 %v7900, %v7900
        %v7909 = vpack.c.bf16 %v7848, %v7848
        %v7910 = vpack.c.bf16 %v7902, %v7902
        %v7911 = vpack.c.bf16 %v7850, %v7850
        %v7912 = vpack.c.bf16 %v7904, %v7904
        %v7913 = vpack.c.bf16 %v7852, %v7852
        %v7914 = vpack.c.bf16 %v7906, %v7906
        %7917 = vrot.lane.b32.xlu0 %v7539, 120
        %v7918 = vpop.permute.xlu0 %7917
        %7919 = vrot.lane.b32.xlu0 %v7541, 120
        %v7920 = vpop.permute.xlu0 %7919
        %7923 = vrot.lane.b32.xlu0 %v7539, 112
        %v7924 = vpop.permute.xlu0 %7923
        %7925 = vrot.lane.b32.xlu0 %v7541, 112
        %v7926 = vpop.permute.xlu0 %7925
        %7929 = vrot.lane.b32.xlu0 %v7539, 104
        %v7930 = vpop.permute.xlu0 %7929
        %7931 = vrot.lane.b32.xlu0 %v7541, 104
        %v7932 = vpop.permute.xlu0 %7931
        %v7935 = vrot.slane %v7924, 4
        %v7936 = vsel %vm1249, %v7935, %v7539
        %v7937 = vrot.slane %v7539, 4
        %v7938 = vsel %vm1249, %v7924, %v7937
        %v7940 = vunpack.c.l.s4 1983009808
        %v7941 = vunpack.c.0.s8 %v7940
        %v7942 = vperm.slane %v7936, %v7941
        %v7944 = vunpack.c.l.s4 1983009808
        %v7945 = vunpack.c.0.s8 %v7944
        %v7946 = vperm.slane %v7938, %v7945
        %v7947 = vrot.slane %v7930, 4
        %v7948 = vsel %vm1249, %v7947, %v7918
        %v7949 = vrot.slane %v7918, 4
        %v7950 = vsel %vm1249, %v7930, %v7949
        %v7952 = vunpack.c.l.s4 1983009808
        %v7953 = vunpack.c.0.s8 %v7952
        %v7954 = vperm.slane %v7948, %v7953
        %v7956 = vunpack.c.l.s4 1983009808
        %v7957 = vunpack.c.0.s8 %v7956
        %v7958 = vperm.slane %v7950, %v7957
        %v7959 = vrot.slane %v7954, 4
        %v7960 = vsel %vm1249, %v7959, %v7942
        %v7961 = vrot.slane %v7942, 4
        %v7962 = vsel %vm1249, %v7954, %v7961
        %v7964 = vunpack.c.l.s4 1934713408
        %v7965 = vunpack.c.0.s8 %v7964
        %v7966 = vperm.slane %v7960, %v7965
        %v7968 = vunpack.c.l.s4 1934713408
        %v7969 = vunpack.c.0.s8 %v7968
        %v7970 = vperm.slane %v7962, %v7969
        %v7971 = vrot.slane %v7958, 4
        %v7972 = vsel %vm1249, %v7971, %v7946
        %v7973 = vrot.slane %v7946, 4
        %v7974 = vsel %vm1249, %v7958, %v7973
        %v7976 = vunpack.c.l.s4 1934713408
        %v7977 = vunpack.c.0.s8 %v7976
        %v7978 = vperm.slane %v7972, %v7977
        %v7980 = vunpack.c.l.s4 1934713408
        %v7981 = vunpack.c.0.s8 %v7980
        %v7982 = vperm.slane %v7974, %v7981
        %v7983 = vrot.slane %v7966, 4
        %v7984 = vsel %vm1249, 0.0, %v7983
        %v7985 = vrot.slane %v7970, 4
        %v7986 = vsel %vm1249, 0.0, %v7985
        %v7987 = vrot.slane %v7978, 4
        %v7988 = vsel %vm1249, 0.0, %v7987
        %v7989 = vrot.slane %v7982, 4
        %v7990 = vsel %vm1249, 0.0, %v7989
        %v7991 = vrot.slane %v7926, 4
        %v7992 = vsel %vm1249, %v7991, %v7541
        %v7993 = vrot.slane %v7541, 4
        %v7994 = vsel %vm1249, %v7926, %v7993
        %v7996 = vunpack.c.l.s4 1983009808
        %v7997 = vunpack.c.0.s8 %v7996
        %v7998 = vperm.slane %v7992, %v7997
        %v8000 = vunpack.c.l.s4 1983009808
        %v8001 = vunpack.c.0.s8 %v8000
        %v8002 = vperm.slane %v7994, %v8001
        %v8003 = vrot.slane %v7932, 4
        %v8004 = vsel %vm1249, %v8003, %v7920
        %v8005 = vrot.slane %v7920, 4
        %v8006 = vsel %vm1249, %v7932, %v8005
        %v8008 = vunpack.c.l.s4 1983009808
        %v8009 = vunpack.c.0.s8 %v8008
        %v8010 = vperm.slane %v8004, %v8009
        %v8012 = vunpack.c.l.s4 1983009808
        %v8013 = vunpack.c.0.s8 %v8012
        %v8014 = vperm.slane %v8006, %v8013
        %v8015 = vrot.slane %v8010, 4
        %v8016 = vsel %vm1249, %v8015, %v7998
        %v8017 = vrot.slane %v7998, 4
        %v8018 = vsel %vm1249, %v8010, %v8017
        %v8020 = vunpack.c.l.s4 1934713408
        %v8021 = vunpack.c.0.s8 %v8020
        %v8022 = vperm.slane %v8016, %v8021
        %v8024 = vunpack.c.l.s4 1934713408
        %v8025 = vunpack.c.0.s8 %v8024
        %v8026 = vperm.slane %v8018, %v8025
        %v8027 = vrot.slane %v8014, 4
        %v8028 = vsel %vm1249, %v8027, %v8002
        %v8029 = vrot.slane %v8002, 4
        %v8030 = vsel %vm1249, %v8014, %v8029
        %v8032 = vunpack.c.l.s4 1934713408
        %v8033 = vunpack.c.0.s8 %v8032
        %v8034 = vperm.slane %v8028, %v8033
        %v8036 = vunpack.c.l.s4 1934713408
        %v8037 = vunpack.c.0.s8 %v8036
        %v8038 = vperm.slane %v8030, %v8037
        %v8039 = vrot.slane %v8022, 4
        %v8040 = vsel %vm1249, 0.0, %v8039
        %v8041 = vrot.slane %v8026, 4
        %v8042 = vsel %vm1249, 0.0, %v8041
        %v8043 = vrot.slane %v8034, 4
        %v8044 = vsel %vm1249, 0.0, %v8043
        %v8045 = vrot.slane %v8038, 4
        %v8046 = vsel %vm1249, 0.0, %v8045
        %v8047 = vsel %vm1249, %v7985, %v7966
        %v8049 = vunpack.c.l.s4 1983009808
        %v8050 = vunpack.c.0.s8 %v8049
        %v8051 = vperm.slane %v8047, %v8050
        %v8052 = vrot.slane %v7986, 4
        %v8053 = vsel %vm1249, %v8052, %v7984
        %v8055 = vunpack.c.l.s4 1983009808
        %v8056 = vunpack.c.0.s8 %v8055
        %v8057 = vperm.slane %v8053, %v8056
        %v8058 = vsel %vm1249, %v7989, %v7978
        %v8060 = vunpack.c.l.s4 1983009808
        %v8061 = vunpack.c.0.s8 %v8060
        %v8062 = vperm.slane %v8058, %v8061
        %v8063 = vrot.slane %v7990, 4
        %v8064 = vsel %vm1249, %v8063, %v7988
        %v8066 = vunpack.c.l.s4 1983009808
        %v8067 = vunpack.c.0.s8 %v8066
        %v8068 = vperm.slane %v8064, %v8067
        %v8069 = vrot.slane %v8057, 4
        %v8070 = vsel %vm1249, %v8069, %v8051
        %v8071 = vrot.slane %v8051, 4
        %v8072 = vsel %vm1249, %v8057, %v8071
        %v8074 = vunpack.c.l.s4 1934713408
        %v8075 = vunpack.c.0.s8 %v8074
        %v8076 = vperm.slane %v8070, %v8075
        %v8078 = vunpack.c.l.s4 1934713408
        %v8079 = vunpack.c.0.s8 %v8078
        %v8080 = vperm.slane %v8072, %v8079
        %v8081 = vrot.slane %v8068, 4
        %v8082 = vsel %vm1249, %v8081, %v8062
        %v8083 = vrot.slane %v8062, 4
        %v8084 = vsel %vm1249, %v8068, %v8083
        %v8086 = vunpack.c.l.s4 1934713408
        %v8087 = vunpack.c.0.s8 %v8086
        %v8088 = vperm.slane %v8082, %v8087
        %v8090 = vunpack.c.l.s4 1934713408
        %v8091 = vunpack.c.0.s8 %v8090
        %v8092 = vperm.slane %v8084, %v8091
        %v8093 = vrot.slane %v8088, 4
        %v8094 = vsel %vm1249, %v8093, %v8076
        %v8095 = vrot.slane %v8076, 4
        %v8096 = vsel %vm1249, %v8088, %v8095
        %v8097 = vrot.slane %v8092, 4
        %v8098 = vsel %vm1249, %v8097, %v8080
        %v8099 = vrot.slane %v8080, 4
        %v8100 = vsel %vm1249, %v8092, %v8099
        %v8101 = vsel %vm1249, %v8041, %v8022
        %v8103 = vunpack.c.l.s4 1983009808
        %v8104 = vunpack.c.0.s8 %v8103
        %v8105 = vperm.slane %v8101, %v8104
        %v8106 = vrot.slane %v8042, 4
        %v8107 = vsel %vm1249, %v8106, %v8040
        %v8109 = vunpack.c.l.s4 1983009808
        %v8110 = vunpack.c.0.s8 %v8109
        %v8111 = vperm.slane %v8107, %v8110
        %v8112 = vsel %vm1249, %v8045, %v8034
        %v8114 = vunpack.c.l.s4 1983009808
        %v8115 = vunpack.c.0.s8 %v8114
        %v8116 = vperm.slane %v8112, %v8115
        %v8117 = vrot.slane %v8046, 4
        %v8118 = vsel %vm1249, %v8117, %v8044
        %v8120 = vunpack.c.l.s4 1983009808
        %v8121 = vunpack.c.0.s8 %v8120
        %v8122 = vperm.slane %v8118, %v8121
        %v8123 = vrot.slane %v8111, 4
        %v8124 = vsel %vm1249, %v8123, %v8105
        %v8125 = vrot.slane %v8105, 4
        %v8126 = vsel %vm1249, %v8111, %v8125
        %v8128 = vunpack.c.l.s4 1934713408
        %v8129 = vunpack.c.0.s8 %v8128
        %v8130 = vperm.slane %v8124, %v8129
        %v8132 = vunpack.c.l.s4 1934713408
        %v8133 = vunpack.c.0.s8 %v8132
        %v8134 = vperm.slane %v8126, %v8133
        %v8135 = vrot.slane %v8122, 4
        %v8136 = vsel %vm1249, %v8135, %v8116
        %v8137 = vrot.slane %v8116, 4
        %v8138 = vsel %vm1249, %v8122, %v8137
        %v8140 = vunpack.c.l.s4 1934713408
        %v8141 = vunpack.c.0.s8 %v8140
        %v8142 = vperm.slane %v8136, %v8141
        %v8144 = vunpack.c.l.s4 1934713408
        %v8145 = vunpack.c.0.s8 %v8144
        %v8146 = vperm.slane %v8138, %v8145
        %v8147 = vrot.slane %v8142, 4
        %v8148 = vsel %vm1249, %v8147, %v8130
        %v8149 = vrot.slane %v8130, 4
        %v8150 = vsel %vm1249, %v8142, %v8149
        %v8151 = vrot.slane %v8146, 4
        %v8152 = vsel %vm1249, %v8151, %v8134
        %v8153 = vrot.slane %v8134, 4
        %v8154 = vsel %vm1249, %v8146, %v8153
        %v8155 = vpack.c.bf16 %v8094, %v8094
        %v8156 = vpack.c.bf16 %v8148, %v8148
        %v8157 = vpack.c.bf16 %v8096, %v8096
        %v8158 = vpack.c.bf16 %v8150, %v8150
        %v8159 = vpack.c.bf16 %v8098, %v8098
        %v8160 = vpack.c.bf16 %v8152, %v8152
        %v8161 = vpack.c.bf16 %v8100, %v8100
        %v8162 = vpack.c.bf16 %v8154, %v8154
        %v8165 = vunpack.c.l.b16 %v7907
        %v8166 = vunpack.c.l.b16 %v7908
        %v8167 = vpack.c.b16 %v8166, %v8165
        %v8169 = vsel %vm1987, %v7663, 0
        %v8172 = vsel %vm1987, %v8167, 0
        %8174 = vmatpush.bf16.xpose.msra.mxu0 0
        %8175 = vmatpush.bf16.xpose.msra.mxu0 0
        %8176 = vmatpush.bf16.xpose.msra.mxu0 0
        %8177 = vmatpush.bf16.xpose.msra.mxu0 0
        %8178 = vmatpush.bf16.xpose.msra.mxu0 0
        %8179 = vmatpush.bf16.xpose.msra.mxu0 0
        %8180 = vmatpush.bf16.xpose.msra.mxu0 0
        %8181 = vmatpush.bf16.xpose.msra.mxu0 %v8172
        %8182 = vmatmul.bf16.gmra.mxu0 %v8169
        %v8183 = vpop.f32.mrf.mxu0
        %v8184 = vadd.f32 0.0, %v8183
        %v8185 = vpop.f32.mrf.mxu0
        %8186 = vdwg.mxu0
        %v8189 = vunpack.c.l.b16 %v7909
        %v8190 = vunpack.c.l.b16 %v7910
        %v8191 = vpack.c.b16 %v8190, %v8189
        %v8193 = vsel %vm1987, %v7664, 0
        %v8196 = vsel %vm1987, %v8191, 0
        %8198 = vmatpush.bf16.xpose.msra.mxu0 0
        %8199 = vmatpush.bf16.xpose.msra.mxu0 0
        %8200 = vmatpush.bf16.xpose.msra.mxu0 0
        %8201 = vmatpush.bf16.xpose.msra.mxu0 0
        %8202 = vmatpush.bf16.xpose.msra.mxu0 0
        %8203 = vmatpush.bf16.xpose.msra.mxu0 0
        %8204 = vmatpush.bf16.xpose.msra.mxu0 0
        %8205 = vmatpush.bf16.xpose.msra.mxu0 %v8196
        %8206 = vmatmul.bf16.gmra.mxu0 %v8193
        %v8207 = vpop.f32.mrf.mxu0
        %v8208 = vadd.f32 0.0, %v8207
        %v8209 = vpop.f32.mrf.mxu0
        %8210 = vdwg.mxu0
        %v8213 = vunpack.c.l.b16 %v7911
        %v8214 = vunpack.c.l.b16 %v7912
        %v8215 = vpack.c.b16 %v8214, %v8213
        %v8217 = vsel %vm1987, %v7665, 0
        %v8220 = vsel %vm1987, %v8215, 0
        %8222 = vmatpush.bf16.xpose.msra.mxu0 0
        %8223 = vmatpush.bf16.xpose.msra.mxu0 0
        %8224 = vmatpush.bf16.xpose.msra.mxu0 0
        %8225 = vmatpush.bf16.xpose.msra.mxu0 0
        %8226 = vmatpush.bf16.xpose.msra.mxu0 0
        %8227 = vmatpush.bf16.xpose.msra.mxu0 0
        %8228 = vmatpush.bf16.xpose.msra.mxu0 0
        %8229 = vmatpush.bf16.xpose.msra.mxu0 %v8220
        %8230 = vmatmul.bf16.gmra.mxu0 %v8217
        %v8231 = vpop.f32.mrf.mxu0
        %v8232 = vadd.f32 0.0, %v8231
        %v8233 = vpop.f32.mrf.mxu0
        %8234 = vdwg.mxu0
        %v8237 = vunpack.c.l.b16 %v7913
        %v8238 = vunpack.c.l.b16 %v7914
        %v8239 = vpack.c.b16 %v8238, %v8237
        %v8241 = vsel %vm1987, %v7666, 0
        %v8244 = vsel %vm1987, %v8239, 0
        %8246 = vmatpush.bf16.xpose.msra.mxu0 0
        %8247 = vmatpush.bf16.xpose.msra.mxu0 0
        %8248 = vmatpush.bf16.xpose.msra.mxu0 0
        %8249 = vmatpush.bf16.xpose.msra.mxu0 0
        %8250 = vmatpush.bf16.xpose.msra.mxu0 0
        %8251 = vmatpush.bf16.xpose.msra.mxu0 0
        %8252 = vmatpush.bf16.xpose.msra.mxu0 0
        %8253 = vmatpush.bf16.xpose.msra.mxu0 %v8244
        %8254 = vmatmul.bf16.gmra.mxu0 %v8241
        %v8255 = vpop.f32.mrf.mxu0
        %v8256 = vadd.f32 0.0, %v8255
        %v8257 = vpop.f32.mrf.mxu0
        %8258 = vdwg.mxu0
        %v8259 = vmul.f32 %v8184, 0.35355338
        %v8260 = vmul.f32 %v8208, 0.35355338
        %v8261 = vmul.f32 %v8232, 0.35355338
        %v8262 = vmul.f32 %v8256, 0.35355338
        %v8263 = vadd.f32 %v8259, %v2107
        %v8264 = vadd.f32 %v8260, %v2107
        %v8265 = vadd.f32 %v8261, %v2107
        %v8266 = vadd.f32 %v8262, %v2107
        %v8267 = vsel %vm2117, %v8263, -inf
        %8268 = vmax.xlane.f32.xlu0 %v8267
        %v8269 = vpop.xlane.xlu0 %8268
        %v8270 = vsel %vm2117, %v8264, -inf
        %8271 = vmax.xlane.f32.xlu0 %v8270
        %v8272 = vpop.xlane.xlu0 %8271
        %v8273 = vsel %vm2117, %v8265, -inf
        %8274 = vmax.xlane.f32.xlu0 %v8273
        %v8275 = vpop.xlane.xlu0 %8274
        %v8276 = vsel %vm2117, %v8266, -inf
        %8277 = vmax.xlane.f32.xlu0 %v8276
        %v8278 = vpop.xlane.xlu0 %8277
        %v8279 = vsub.f32 %v8263, %v8269
        %v8280 = vsub.f32 %v8264, %v8272
        %v8281 = vsub.f32 %v8265, %v8275
        %v8282 = vsub.f32 %v8266, %v8278
        %v8283 = vmul.f32 %v8279, 1.442695
        %v8284 = vpow.pop %v8283
        %v8285 = vmul.f32 %v8280, 1.442695
        %v8286 = vpow.pop %v8285
        %v8287 = vmul.f32 %v8281, 1.442695
        %v8288 = vpow.pop %v8287
        %v8289 = vmul.f32 %v8282, 1.442695
        %v8290 = vpow.pop %v8289
        %v8291 = vsel %vm2117, %v8284, 0.0
        %8292 = vadd.xlane.f32.xlu0 %v8291
        %v8293 = vpop.xlane.xlu0 %8292
        %v8294 = vsel %vm2117, %v8286, 0.0
        %8295 = vadd.xlane.f32.xlu0 %v8294
        %v8296 = vpop.xlane.xlu0 %8295
        %v8297 = vsel %vm2117, %v8288, 0.0
        %8298 = vadd.xlane.f32.xlu0 %v8297
        %v8299 = vpop.xlane.xlu0 %8298
        %v8300 = vsel %vm2117, %v8290, 0.0
        %8301 = vadd.xlane.f32.xlu0 %v8300
        %v8302 = vpop.xlane.xlu0 %8301
        %v8303 = vrcp.pop %v8293
        %v8304 = vrcp.pop %v8296
        %v8305 = vrcp.pop %v8299
        %v8306 = vrcp.pop %v8302
        %v8307 = vmul.f32 %v8284, %v8303
        %v8308 = vmul.f32 %v8286, %v8304
        %v8309 = vmul.f32 %v8288, %v8305
        %v8310 = vmul.f32 %v8290, %v8306
        %v8311 = vpack.c.bf16 %v8307, %v8307
        %v8312 = vpack.c.bf16 %v8308, %v8308
        %v8313 = vpack.c.bf16 %v8309, %v8309
        %v8314 = vpack.c.bf16 %v8310, %v8310
        %v8317 = vunpack.c.l.b16 %v8155
        %v8318 = vunpack.c.l.b16 %v8156
        %v8319 = vpack.c.b16 %v8318, %v8317
        %v8322 = vsel %vm2117, %v8311, 0
        %8324 = vmatpush.bf16.msra.mxu0 0
        %8325 = vmatpush.bf16.msra.mxu0 0
        %8326 = vmatpush.bf16.msra.mxu0 0
        %8327 = vmatpush.bf16.msra.mxu0 0
        %8328 = vmatpush.bf16.msra.mxu0 0
        %8329 = vmatpush.bf16.msra.mxu0 0
        %8330 = vmatpush.bf16.msra.mxu0 0
        %8331 = vmatpush.bf16.msra.mxu0 %v8319
        %8332 = vmatmul.bf16.gmra.mxu0 %v8322
        %v8333 = vpop.f32.mrf.mxu0
        %v8334 = vadd.f32 0.0, %v8333
        %v8335 = vpop.f32.mrf.mxu0
        %8336 = vdwg.mxu0
        %v8339 = vunpack.c.l.b16 %v8157
        %v8340 = vunpack.c.l.b16 %v8158
        %v8341 = vpack.c.b16 %v8340, %v8339
        %v8344 = vsel %vm2117, %v8312, 0
        %8346 = vmatpush.bf16.msra.mxu0 0
        %8347 = vmatpush.bf16.msra.mxu0 0
        %8348 = vmatpush.bf16.msra.mxu0 0
        %8349 = vmatpush.bf16.msra.mxu0 0
        %8350 = vmatpush.bf16.msra.mxu0 0
        %8351 = vmatpush.bf16.msra.mxu0 0
        %8352 = vmatpush.bf16.msra.mxu0 0
        %8353 = vmatpush.bf16.msra.mxu0 %v8341
        %8354 = vmatmul.bf16.gmra.mxu0 %v8344
        %v8355 = vpop.f32.mrf.mxu0
        %v8356 = vadd.f32 0.0, %v8355
        %v8357 = vpop.f32.mrf.mxu0
        %8358 = vdwg.mxu0
        %v8361 = vunpack.c.l.b16 %v8159
        %v8362 = vunpack.c.l.b16 %v8160
        %v8363 = vpack.c.b16 %v8362, %v8361
        %v8366 = vsel %vm2117, %v8313, 0
        %8368 = vmatpush.bf16.msra.mxu0 0
        %8369 = vmatpush.bf16.msra.mxu0 0
        %8370 = vmatpush.bf16.msra.mxu0 0
        %8371 = vmatpush.bf16.msra.mxu0 0
        %8372 = vmatpush.bf16.msra.mxu0 0
        %8373 = vmatpush.bf16.msra.mxu0 0
        %8374 = vmatpush.bf16.msra.mxu0 0
        %8375 = vmatpush.bf16.msra.mxu0 %v8363
        %8376 = vmatmul.bf16.gmra.mxu0 %v8366
        %v8377 = vpop.f32.mrf.mxu0
        %v8378 = vadd.f32 0.0, %v8377
        %v8379 = vpop.f32.mrf.mxu0
        %8380 = vdwg.mxu0
        %v8383 = vunpack.c.l.b16 %v8161
        %v8384 = vunpack.c.l.b16 %v8162
        %v8385 = vpack.c.b16 %v8384, %v8383
        %v8388 = vsel %vm2117, %v8314, 0
        %8390 = vmatpush.bf16.msra.mxu0 0
        %8391 = vmatpush.bf16.msra.mxu0 0
        %8392 = vmatpush.bf16.msra.mxu0 0
        %8393 = vmatpush.bf16.msra.mxu0 0
        %8394 = vmatpush.bf16.msra.mxu0 0
        %8395 = vmatpush.bf16.msra.mxu0 0
        %8396 = vmatpush.bf16.msra.mxu0 0
        %8397 = vmatpush.bf16.msra.mxu0 %v8385
        %8398 = vmatmul.bf16.gmra.mxu0 %v8388
        %v8399 = vpop.f32.mrf.mxu0
        %v8400 = vadd.f32 0.0, %v8399
        %v8401 = vpop.f32.mrf.mxu0
        %8402 = vdwg.mxu0
        %v8403 = vrot.slane %v8378, 4
        %v8404 = vsel %vm1249, %v8403, %v8334
        %v8405 = vrot.slane %v8334, 4
        %v8406 = vsel %vm1249, %v8378, %v8405
        %v8408 = vunpack.c.l.s4 1983009808
        %v8409 = vunpack.c.0.s8 %v8408
        %v8410 = vperm.slane %v8404, %v8409
        %v8412 = vunpack.c.l.s4 1983009808
        %v8413 = vunpack.c.0.s8 %v8412
        %v8414 = vperm.slane %v8406, %v8413
        %v8415 = vrot.slane %v8400, 4
        %v8416 = vsel %vm1249, %v8415, %v8356
        %v8417 = vrot.slane %v8356, 4
        %v8418 = vsel %vm1249, %v8400, %v8417
        %v8420 = vunpack.c.l.s4 1983009808
        %v8421 = vunpack.c.0.s8 %v8420
        %v8422 = vperm.slane %v8416, %v8421
        %v8424 = vunpack.c.l.s4 1983009808
        %v8425 = vunpack.c.0.s8 %v8424
        %v8426 = vperm.slane %v8418, %v8425
        %v8427 = vrot.slane %v8422, 4
        %v8428 = vsel %vm1249, %v8427, %v8410
        %v8429 = vrot.slane %v8410, 4
        %v8430 = vsel %vm1249, %v8422, %v8429
        %v8432 = vunpack.c.l.s4 1934713408
        %v8433 = vunpack.c.0.s8 %v8432
        %v8434 = vperm.slane %v8428, %v8433
        %v8436 = vunpack.c.l.s4 1934713408
        %v8437 = vunpack.c.0.s8 %v8436
        %v8438 = vperm.slane %v8430, %v8437
        %v8439 = vrot.slane %v8426, 4
        %v8440 = vsel %vm1249, %v8439, %v8414
        %v8441 = vrot.slane %v8414, 4
        %v8442 = vsel %vm1249, %v8426, %v8441
        %v8444 = vunpack.c.l.s4 1934713408
        %v8445 = vunpack.c.0.s8 %v8444
        %v8446 = vperm.slane %v8440, %v8445
        %v8448 = vunpack.c.l.s4 1934713408
        %v8449 = vunpack.c.0.s8 %v8448
        %v8450 = vperm.slane %v8442, %v8449
        %v8451 = vrot.slane %v8434, 4
        %v8452 = vsel %vm1249, 0.0, %v8451
        %v8453 = vrot.slane %v8438, 4
        %v8454 = vsel %vm1249, 0.0, %v8453
        %v8455 = vrot.slane %v8446, 4
        %v8456 = vsel %vm1249, 0.0, %v8455
        %v8457 = vrot.slane %v8450, 4
        %v8458 = vsel %vm1249, 0.0, %v8457
        %v8459 = vsel %vm1249, %v8453, %v8434
        %v8461 = vunpack.c.l.s4 1983009808
        %v8462 = vunpack.c.0.s8 %v8461
        %v8463 = vperm.slane %v8459, %v8462
        %v8464 = vrot.slane %v8454, 4
        %v8465 = vsel %vm1249, %v8464, %v8452
        %v8467 = vunpack.c.l.s4 1983009808
        %v8468 = vunpack.c.0.s8 %v8467
        %v8469 = vperm.slane %v8465, %v8468
        %v8470 = vsel %vm1249, %v8457, %v8446
        %v8472 = vunpack.c.l.s4 1983009808
        %v8473 = vunpack.c.0.s8 %v8472
        %v8474 = vperm.slane %v8470, %v8473
        %v8475 = vrot.slane %v8458, 4
        %v8476 = vsel %vm1249, %v8475, %v8456
        %v8478 = vunpack.c.l.s4 1983009808
        %v8479 = vunpack.c.0.s8 %v8478
        %v8480 = vperm.slane %v8476, %v8479
        %v8481 = vrot.slane %v8469, 4
        %v8482 = vsel %vm1249, %v8481, %v8463
        %v8483 = vrot.slane %v8463, 4
        %v8484 = vsel %vm1249, %v8469, %v8483
        %v8486 = vunpack.c.l.s4 1934713408
        %v8487 = vunpack.c.0.s8 %v8486
        %v8488 = vperm.slane %v8482, %v8487
        %v8490 = vunpack.c.l.s4 1934713408
        %v8491 = vunpack.c.0.s8 %v8490
        %v8492 = vperm.slane %v8484, %v8491
        %v8493 = vrot.slane %v8480, 4
        %v8494 = vsel %vm1249, %v8493, %v8474
        %v8495 = vrot.slane %v8474, 4
        %v8496 = vsel %vm1249, %v8480, %v8495
        %v8498 = vunpack.c.l.s4 1934713408
        %v8499 = vunpack.c.0.s8 %v8498
        %v8500 = vperm.slane %v8494, %v8499
        %v8502 = vunpack.c.l.s4 1934713408
        %v8503 = vunpack.c.0.s8 %v8502
        %v8504 = vperm.slane %v8496, %v8503
        %v8505 = vrot.slane %v8500, 4
        %v8506 = vsel %vm1249, %v8505, %v8488
        %v8507 = vrot.slane %v8488, 4
        %v8508 = vsel %vm1249, %v8500, %v8507
        %v8509 = vrot.slane %v8504, 4
        %v8510 = vsel %vm1249, %v8509, %v8492
        %v8511 = vrot.slane %v8492, 4
        %v8512 = vsel %vm1249, %v8504, %v8511
        %8514 = vrot.lane.b32.xlu0 %v8508, 8
        %v8515 = vpop.permute.xlu0 %8514
        %8518 = vrot.lane.b32.xlu0 %v8510, 16
        %v8519 = vpop.permute.xlu0 %8518
        %8522 = vrot.lane.b32.xlu0 %v8512, 24
        %v8523 = vpop.permute.xlu0 %8522
        %v8525 = vsel %vm1987, %v8506, %v8515
        %v8526 = vsel %vm2117, %v8525, %v8519
        %v8527 = vsel %vm2574, %v8526, %v8523
        %v8528 = vpack.c.bf16 %v8527, %v8527
        %v8530 = vperm.slane %v7456, 0
        %v8536 = vunpack.c.l.b16 %v7451
        %v8537 = vunpack.c.l.b16 %v7452
        %v8538 = vunpack.c.l.b16 %v7453
        %v8539 = vunpack.c.l.b16 %v7454
        %v8540 = vpack.c.b16 %v8537, %v8536
        %v8541 = vpack.c.b16 %v8539, %v8538
        %v8545 = vsel %vm1184, %v8528, 0
        %8547 = vmatpush.bf16.msra.mxu0 0
        %8548 = vmatpush.bf16.msra.mxu0 0
        %8549 = vmatpush.bf16.msra.mxu0 0
        %8550 = vmatpush.bf16.msra.mxu0 0
        %8551 = vmatpush.bf16.msra.mxu0 0
        %8552 = vmatpush.bf16.msra.mxu0 0
        %8553 = vmatpush.bf16.msra.mxu0 %v8541
        %8554 = vmatpush.bf16.msra.mxu0 %v8540
        %8555 = vmatmul.bf16.gmra.mxu0 %v8545
        %v8556 = vpop.f32.mrf.mxu0
        %v8557 = vadd.f32 %v8530, %v8556
        %v8558 = vpop.f32.mrf.mxu0
        %8559 = vdwg.mxu0
        %v8560 = vadd.f32 %v7439, %v8557
        %s8561 = scalar_lea.vmem %s61, 1
        %v8562 = vld [vmem:[%s8561] sm:$0x1]
        %s8563 = scalar_lea.vmem %s63, 1
        %v8564 = vld [vmem:[%s8563] sm:$0x1]
        %v8565 = vsel %vm1184, %v8560, 0.0
        %8566 = vadd.xlane.f32.xlu0 %v8565
        %v8567 = vpop.xlane.xlu0 %8566
        %v8568 = vmul.f32 %v8567, %v2626
        %v8569 = vsub.f32 %v8560, %v8568
        %v8570 = vmul.f32 %v8569, %v8569
        %v8571 = vsel %vm1184, %v8570, 0.0
        %8572 = vadd.xlane.f32.xlu0 %v8571
        %v8573 = vpop.xlane.xlu0 %8572
        %v8574 = vmul.f32 %v8573, %v2626
        %v8575 = vadd.f32 %v8574, 1e-05
        %v8576 = vrsqrt.pop %v8575
        %v8577 = vmul.f32 %v8576, %v8575
        %v8578 = vmul.f32 %v8577, %v8576
        %v8579 = vmul.f32 0.5, %v8578
        %v8580 = vsub.f32 1.5, %v8579
        %v8581 = vmul.f32 %v8576, %v8580
        %vm8582 = vweird.f32 %v8575
        %vm8583 = vweird.f32 %v8576
        %vm8584 = vmor %vm8582, %vm8583
        %v8585 = vsel %vm8584, %v8576, %v8581
        %v8586 = vmul.f32 %v8569, %v8585
        %v8588 = vperm.slane %v8562, 0
        %v8590 = vmul.f32 %v8586, %v8588
        %v8592 = vperm.slane %v8564, 0
        %v8594 = vadd.f32 %v8590, %v8592
        %v8595 = vpack.c.bf16 %v8594, %v8594
        %s8596 = scalar_lea.vmem %s49, 16
        %v8597 = vld [vmem:[%s8596] sm:$0xf]
        %v8598 = vld [vmem:[%s8596 + $0x4] sm:$0xf]
        %v8599 = vld [vmem:[%s8596 + $0x8] sm:$0xf]
        %v8600 = vld [vmem:[%s8596 + $0xc] sm:$0xf]
        %s8601 = scalar_lea.vmem %s51, 1
        %v8602 = vld [vmem:[%s8601] sm:$0x1]
        %v8604 = vperm.slane %v8602, 0
        %v8610 = vunpack.c.l.b16 %v8597
        %v8611 = vunpack.c.l.b16 %v8598
        %v8612 = vunpack.c.l.b16 %v8599
        %v8613 = vunpack.c.l.b16 %v8600
        %v8614 = vpack.c.b16 %v8611, %v8610
        %v8615 = vpack.c.b16 %v8613, %v8612
        %v8619 = vsel %vm1184, %v8595, 0
        %8621 = vmatpush.bf16.msra.mxu0 0
        %8622 = vmatpush.bf16.msra.mxu0 0
        %8623 = vmatpush.bf16.msra.mxu0 0
        %8624 = vmatpush.bf16.msra.mxu0 0
        %8625 = vmatpush.bf16.msra.mxu0 0
        %8626 = vmatpush.bf16.msra.mxu0 0
        %8627 = vmatpush.bf16.msra.mxu0 %v8615
        %8628 = vmatpush.bf16.msra.mxu0 %v8614
        %8629 = vmatmul.bf16.gmra.mxu0 %v8619
        %v8630 = vpop.f32.mrf.mxu0
        %v8631 = vadd.f32 %v8604, %v8630
        %v8632 = vpop.f32.mrf.mxu0
        %8633 = vdwg.mxu0
        %v8634 = vmax.f32 %v8631, 0.0
        %v8635 = vpack.c.bf16 %v8634, %v8634
        %s8636 = scalar_lea.vmem %s53, 32
        %v8637 = vld [vmem:[%s8636] sm:$0xf]
        %v8638 = vld [vmem:[%s8636 + $0x4] sm:$0xf]
        %v8639 = vld [vmem:[%s8636 + $0x8] sm:$0xf]
        %v8640 = vld [vmem:[%s8636 + $0xc] sm:$0xf]
        %v8641 = vld [vmem:[%s8636 + $0x10] sm:$0xf]
        %v8642 = vld [vmem:[%s8636 + $0x14] sm:$0xf]
        %v8643 = vld [vmem:[%s8636 + $0x18] sm:$0xf]
        %v8644 = vld [vmem:[%s8636 + $0x1c] sm:$0xf]
        %s8645 = scalar_lea.vmem %s55, 1
        %v8646 = vld [vmem:[%s8645] sm:$0x1]
        %v8648 = vperm.slane %v8646, 0
        %v8658 = vunpack.c.l.b16 %v8637
        %v8659 = vunpack.c.l.b16 %v8638
        %v8660 = vunpack.c.l.b16 %v8639
        %v8661 = vunpack.c.l.b16 %v8640
        %v8662 = vunpack.c.l.b16 %v8641
        %v8663 = vunpack.c.l.b16 %v8642
        %v8664 = vunpack.c.l.b16 %v8643
        %v8665 = vunpack.c.l.b16 %v8644
        %v8666 = vpack.c.b16 %v8659, %v8658
        %v8667 = vpack.c.b16 %v8661, %v8660
        %v8668 = vpack.c.b16 %v8663, %v8662
        %v8669 = vpack.c.b16 %v8665, %v8664
        %v8675 = vsel %vm2752, %v8635, 0
        %8677 = vmatpush.bf16.msra.mxu0 0
        %8678 = vmatpush.bf16.msra.mxu0 0
        %8679 = vmatpush.bf16.msra.mxu0 0
        %8680 = vmatpush.bf16.msra.mxu0 0
        %8681 = vmatpush.bf16.msra.mxu0 %v8669
        %8682 = vmatpush.bf16.msra.mxu0 %v8668
        %8683 = vmatpush.bf16.msra.mxu0 %v8667
        %8684 = vmatpush.bf16.msra.mxu0 %v8666
        %8685 = vmatmul.bf16.gmra.mxu0 %v8675
        %v8686 = vpop.f32.mrf.mxu0
        %v8687 = vadd.f32 %v8648, %v8686
        %v8688 = vpop.f32.mrf.mxu0
        %8689 = vdwg.mxu0
        %v8690 = vadd.f32 %v8594, %v8687
        %s8691 = scalar_lea.vmem %s65, 1
        %v8692 = vld [vmem:[%s8691] sm:$0x1]
        %s8693 = scalar_lea.vmem %s67, 1
        %v8694 = vld [vmem:[%s8693] sm:$0x1]
        %v8695 = vsel %vm1184, %v8690, 0.0
        %8696 = vadd.xlane.f32.xlu0 %v8695
        %v8697 = vpop.xlane.xlu0 %8696
        %v8698 = vmul.f32 %v8697, %v2626
        %v8699 = vsub.f32 %v8690, %v8698
        %v8700 = vmul.f32 %v8699, %v8699
        %v8701 = vsel %vm1184, %v8700, 0.0
        %8702 = vadd.xlane.f32.xlu0 %v8701
        %v8703 = vpop.xlane.xlu0 %8702
        %v8704 = vmul.f32 %v8703, %v2626
        %v8705 = vadd.f32 %v8704, 1e-05
        %v8706 = vrsqrt.pop %v8705
        %v8707 = vmul.f32 %v8706, %v8705
        %v8708 = vmul.f32 %v8707, %v8706
        %v8709 = vmul.f32 0.5, %v8708
        %v8710 = vsub.f32 1.5, %v8709
        %v8711 = vmul.f32 %v8706, %v8710
        %vm8712 = vweird.f32 %v8705
        %vm8713 = vweird.f32 %v8706
        %vm8714 = vmor %vm8712, %vm8713
        %v8715 = vsel %vm8714, %v8706, %v8711
        %v8716 = vmul.f32 %v8699, %v8715
        %v8718 = vperm.slane %v8692, 0
        %v8720 = vmul.f32 %v8716, %v8718
        %v8722 = vperm.slane %v8694, 0
        %v8724 = vadd.f32 %v8720, %v8722
        %v8725 = vld [vmem:[%s69] sm:$0x1]
        %v8726 = vld [vmem:[%s71] sm:$0x1]
        %v8727 = vsel %vm1184, %v8724, 0.0
        %8728 = vadd.xlane.f32.xlu0 %v8727
        %v8729 = vpop.xlane.xlu0 %8728
        %v8730 = vmul.f32 %v8729, %v2626
        %v8731 = vsub.f32 %v8724, %v8730
        %v8732 = vmul.f32 %v8731, %v8731
        %v8733 = vsel %vm1184, %v8732, 0.0
        %8734 = vadd.xlane.f32.xlu0 %v8733
        %v8735 = vpop.xlane.xlu0 %8734
        %v8736 = vmul.f32 %v8735, %v2626
        %v8737 = vadd.f32 %v8736, 1e-05
        %v8738 = vrsqrt.pop %v8737
        %v8739 = vmul.f32 %v8738, %v8737
        %v8740 = vmul.f32 %v8739, %v8738
        %v8741 = vmul.f32 0.5, %v8740
        %v8742 = vsub.f32 1.5, %v8741
        %v8743 = vmul.f32 %v8738, %v8742
        %vm8744 = vweird.f32 %v8737
        %vm8745 = vweird.f32 %v8738
        %vm8746 = vmor %vm8744, %vm8745
        %v8747 = vsel %vm8746, %v8738, %v8743
        %v8748 = vmul.f32 %v8731, %v8747
        %v8750 = vperm.slane %v8725, 0
        %v8752 = vmul.f32 %v8748, %v8750
        %v8754 = vperm.slane %v8726, 0
        %v8756 = vadd.f32 %v8752, %v8754
        %8757 = vst.msk [vmem:[%s1130] sm:$0xff] %vm1184, %v8756
        %s8758 = sand.u32 %s871, 1
        %s8759 = scalar_lea.sflag [#allocation3], %s8758
        %s8760 = sand.u32 %s871, 1
        %s8761 = smul.addr %s8760, 8
        %s8762 = scalar_lea.vmem [#allocation2], %s8761
        // Predicated region
        $region165: #{transformer_forward.1} parent=163 // pred_check
          %p8763 = pneg %p881
        $region166: #{transformer_forward.1} parent=163 // pred_check_branch
          %8765 = sbr.rel (%p8763) target = $region168
        $region167: #{transformer_forward.1} parent=163 // pred_region
          %8767 = vsyncadd %s8759, 0
          %s8768 = smul.addr %s87, 8
          %s8769 = scalar_lea.hbm %s73, %s8768
          %s8771 = sshll.u32 %s8762, 4
          %s8772 = int_to_ptr.vmem [resolvable:$true] %s8771
          %s8773 = sshll.u32 %s8769, 4
          %s8774 = int_to_ptr.hbm [resolvable:$true] %s8773
          %8776 = dma.vmem_to_hbm [thread:$0]  %s8772, 128, %s8774, %s8759
        $region168: #{transformer_forward.1} parent=163 // pred_fallthru
          _
      $region164: #{transformer_forward.1} parent=5 // pred_fallthru
        _
      %p8777 = scmp.le.s32.totalorder 2, %s82
      // Predicated region
      $region169: #{transformer_forward.1} parent=5 // pred_check
        %p8778 = pneg %p8777
      $region170: #{transformer_forward.1} parent=5 // pred_check_branch
        %8780 = sbr.rel (%p8778) target = $region172
      $region171: #{transformer_forward.1} parent=5 // pred_region
        %s8781 = ssub.s32 %s82, 2
        // Predicated region
        $region173: #{transformer_forward.1} parent=171 // pred_check
          %p8782 = pneg %p887
        $region174: #{transformer_forward.1} parent=171 // pred_check_branch
          %8784 = sbr.rel (%p8782) target = $region176
        $region175: #{transformer_forward.1} parent=171 // pred_region
          %s8785 = sand.u32 %s872, 1
          %s8786 = scalar_lea.sflag [#allocation3], %s8785
          %s8787 = sand.u32 %s872, 1
          %s8788 = smul.addr %s8787, 8
          %s8789 = scalar_lea.vmem [#allocation2], %s8788
          %8791 = dma.done %s8786, 128
        $region176: #{transformer_forward.1} parent=171 // pred_fallthru
          _
      $region172: #{transformer_forward.1} parent=5 // pred_fallthru
        _
    $region6: #{transformer_forward.1} parent=1 // loop_footer
      %s86 = sadd.s32 1, %s82
    $region7: #{transformer_forward.1} parent=1 // loop_footer_branch
      %81 = sbr.rel target = $region3
    $region8: #{transformer_forward.1} parent=1 // loop_exit
      _
    %8792 = vsyncpa [#allocation3], 1
    %s8793 = scalar_lea.sflag [#allocation3], 1
    %8794 = vsyncpa %s8793, 1

</llo_original>
